<compile_context>
chip_gen: v6e
topology: v6e:2x2x1
jax: 0.10.0
libtpu: 0.0.40
codegen_flags: <defaults>
</compile_context>

<pallas_src>
import jax
import jax.numpy as jnp
from jax.experimental import pallas as pl
from jax.experimental.pallas import tpu as pltpu

# Logical layer dims from the PyTorch module.
LAYER_DIMS = [(350, 2000), (2000, 1000), (1000, 500), (500, 250), (250, 1)]
# Lane-dense padded dims (multiples of 128); K of layer i+1 == N_pad of layer i.
PADDED_DIMS = [(384, 2048), (2048, 1024), (1024, 512), (512, 256), (256, 128)]

N_STREAM_LAYERS = 4                      # layers 1-4 are manually streamed from HBM
TILE_N = [512, 512, 512, 256]            # weight DMA column-tile widths (mult. of 256)
CN = 256                                 # compute chunk width (MXU-friendly)
N_STREAM_TILES = sum(PADDED_DIMS[li][1] // TILE_N[li] for li in range(N_STREAM_LAYERS))  # 8

IN_PAD = PADDED_DIMS[0][0]               # 384
OUT_PAD = PADDED_DIMS[-1][1]             # 128
ACT_W = max(n for _, n in PADDED_DIMS)   # 2048 (widest activation)


def _fused_mlp_kernel(x_ref,                       # VMEM [M, 384] bf16
                      w1, w2, w3, w4,              # HBM (pl.ANY): [n_tiles, K_pad, TN] bf16
                      w5_ref,                      # VMEM [256, 128] bf16 (last layer)
                      b1, b2, b3, b4, b5,          # VMEM [1, N_pad] f32
                      o_ref,                       # VMEM [M, 128] f32
                      act_a, act_b,                # VMEM [M, 2048] bf16 scratch (ping/pong)
                      wb1, wb2, wb3, wb4,          # VMEM dedicated weight slots per layer
                      dma_sem):                    # DMA semaphores, shape (N_STREAM_TILES,)
    w_hbm = (w1, w2, w3, w4)
    wbufs = (wb1, wb2, wb3, wb4)
    b_refs = (b1, b2, b3, b4)
    srcs = (x_ref, act_a, act_b, act_a)
    dsts = (act_a, act_b, act_a, act_b)

    # Static schedule over every streamed (layer, n-tile) pair: 4+2+1+1 = 8 tiles.
    tiles = []
    for li in range(N_STREAM_LAYERS):
        for j in range(PADDED_DIMS[li][1] // TILE_N[li]):
            tiles.append((li, j))

    # Blast out every weight DMA up front: each tile has a dedicated VMEM slot
    # and a dedicated semaphore, so no DMA start ever waits on compute and the
    # HBM weight stream runs back-to-back.
    copies = []
    for t, (li, j) in enumerate(tiles):
        cp = pltpu.make_async_copy(w_hbm[li].at[j],      # contiguous HBM tile
                                   wbufs[li].at[j],      # dedicated VMEM slot
                                   dma_sem.at[t])
        cp.start()
        copies.append(cp)

    # Consume tiles in stream order; compute hides under the DMA stream.
    t = 0
    for li in range(N_STREAM_LAYERS):
        kp, npad = PADDED_DIMS[li]
        tn = TILE_N[li]
        lhs = srcs[li][:, :kp]                           # bf16, loaded once per layer
        for j in range(npad // tn):
            copies[t].wait()                             # tile (li, j) is resident
            for c in range(tn // CN):
                col = j * tn + c * CN
                y = jnp.dot(lhs, wbufs[li][j, :, c * CN:(c + 1) * CN],
                            preferred_element_type=jnp.float32)   # MXU, f32 accumulate
                y = jnp.maximum(y + b_refs[li][:, col:col + CN], 0.0)
                dsts[li][:, col:col + CN] = y.astype(jnp.bfloat16)
            t += 1

    # Final 250->1 layer: weight already resident via VMEM in_spec, no tail DMA.
    h4 = act_b[:, :PADDED_DIMS[4][0]]                    # [M, 256] bf16
    o_ref[...] = jnp.dot(h4, w5_ref[...],
                         preferred_element_type=jnp.float32) + b5[...]


def ann_forward_pallas(x, tiled_ws, w5_pad, padded_bs):
    """Fused Pallas forward. x: [M, 350] f32 -> [M, 1] f32."""
    M = x.shape[0]
    x_pad = jnp.zeros((M, IN_PAD), jnp.bfloat16).at[:, :LAYER_DIMS[0][0]].set(
        x.astype(jnp.bfloat16))
    out_pad = pl.pallas_call(
        _fused_mlp_kernel,
        out_shape=jax.ShapeDtypeStruct((M, OUT_PAD), jnp.float32),
        in_specs=(
            [pl.BlockSpec((M, IN_PAD), lambda: (0, 0))]                # x (VMEM)
            + [pl.BlockSpec(memory_space=pl.ANY)] * N_STREAM_LAYERS    # w1..w4 stay in HBM
            + [pl.BlockSpec((PADDED_DIMS[4][0], OUT_PAD), lambda: (0, 0))]  # w5 (VMEM)
            + [pl.BlockSpec((1, n), lambda: (0, 0)) for (_, n) in PADDED_DIMS]  # biases
        ),
        out_specs=pl.BlockSpec((M, OUT_PAD), lambda: (0, 0)),
        scratch_shapes=(
            [pltpu.VMEM((M, ACT_W), jnp.bfloat16),                     # activation ping
             pltpu.VMEM((M, ACT_W), jnp.bfloat16)]                     # activation pong
            + [pltpu.VMEM((PADDED_DIMS[li][1] // TILE_N[li],
                           PADDED_DIMS[li][0], TILE_N[li]), jnp.bfloat16)
               for li in range(N_STREAM_LAYERS)]                       # dedicated weight slots
            + [pltpu.SemaphoreType.DMA((N_STREAM_TILES,))]
        ),
    )(x_pad, *tiled_ws, w5_pad, *padded_bs)
    return out_pad[:, :LAYER_DIMS[-1][1]]


# -------------------- parameter setup (deterministic, in-script) --------------------

def init_params(key):
    """PyTorch-Linear-style init: U(-1/sqrt(fan_in), 1/sqrt(fan_in)); weights -> bf16."""
    params = []
    for fan_in, fan_out in LAYER_DIMS:
        key, kw, kb = jax.random.split(key, 3)
        bound = 1.0 / jnp.sqrt(jnp.float32(fan_in))
        w = jax.random.uniform(kw, (fan_in, fan_out), jnp.float32, -bound, bound)
        b = jax.random.uniform(kb, (1, fan_out), jnp.float32, -bound, bound)
        params.append((w.astype(jnp.bfloat16), b))
    return params


def prepare_params(params):
    """Zero-pad to lane-dense shapes; pre-tile streamed weights as [n_tiles, K_pad, TN]."""
    tiled_ws, padded_bs = [], []
    w5_pad = None
    for li, ((w, b), (kp, npad)) in enumerate(zip(params, PADDED_DIMS)):
        k, n = w.shape
        wp = jnp.zeros((kp, npad), jnp.bfloat16).at[:k, :n].set(w)
        if li < N_STREAM_LAYERS:
            tn = TILE_N[li]
            wt = wp.reshape(kp, npad // tn, tn).transpose(1, 0, 2)  # contiguous column tiles
            tiled_ws.append(wt)
        else:
            w5_pad = wp                                             # (256, 128) bf16
        padded_bs.append(jnp.zeros((1, npad), jnp.float32).at[:, :n].set(b))
    return tuple(tiled_ws), w5_pad, tuple(padded_bs)


def ann_forward_ref(x, params):
    """Pure-JAX reference (same bf16 weights, f32 activations — original module math)."""
    h = x
    n = len(params)
    for i, (w, b) in enumerate(params):
        h = h @ w.astype(jnp.float32) + b
        if i < n - 1:
            h = jnp.maximum(h, 0.0)
    return h


if __name__ == "__main__":
    key = jax.random.PRNGKey(0)
    key, kx = jax.random.split(key)

    batch = 8
    x = jax.random.normal(kx, (batch, LAYER_DIMS[0][0]), jnp.float32)
    params = init_params(key)
    tiled_ws, w5_pad, padded_bs = prepare_params(params)

    fwd = jax.jit(ann_forward_pallas)
    out = jax.block_until_ready(fwd(x, tiled_ws, w5_pad, padded_bs))

    ref = ann_forward_ref(x, params)
    assert out.shape == (batch, 1), out.shape
    err = float(jnp.max(jnp.abs(out - ref)))
    assert jnp.allclose(out, ref, atol=2e-2, rtol=2e-2), f"mismatch vs reference: {err}"

    print("KERNEL_OK")
</pallas_src>

<mosaic_0001>
module attributes {stable_mosaic.version = 11 : i64} {
  func.func @_fused_mlp_kernel(%arg0: memref<8x384xbf16, #tpu.memory_space<vmem>>, %arg1: memref<4x384x512xbf16, #tpu.memory_space<any>>, %arg2: memref<2x2048x512xbf16, #tpu.memory_space<any>>, %arg3: memref<1x1024x512xbf16, #tpu.memory_space<any>>, %arg4: memref<1x512x256xbf16, #tpu.memory_space<any>>, %arg5: memref<256x128xbf16, #tpu.memory_space<vmem>>, %arg6: memref<1x2048xf32, #tpu.memory_space<vmem>>, %arg7: memref<1x1024xf32, #tpu.memory_space<vmem>>, %arg8: memref<1x512xf32, #tpu.memory_space<vmem>>, %arg9: memref<1x256xf32, #tpu.memory_space<vmem>>, %arg10: memref<1x128xf32, #tpu.memory_space<vmem>>, %arg11: memref<8x128xf32, #tpu.memory_space<vmem>>, %arg12: memref<8x2048xbf16, #tpu.memory_space<vmem>>, %arg13: memref<8x2048xbf16, #tpu.memory_space<vmem>>, %arg14: memref<4x384x512xbf16, #tpu.memory_space<vmem>>, %arg15: memref<2x2048x512xbf16, #tpu.memory_space<vmem>>, %arg16: memref<1x1024x512xbf16, #tpu.memory_space<vmem>>, %arg17: memref<1x512x256xbf16, #tpu.memory_space<vmem>>, %arg18: memref<8x!tpu.dma_semaphore, #tpu.memory_space<semaphore_mem>>) attributes {dimension_semantics = [], scalar_prefetch = 0 : i64, scratch_operands = 7 : i64, tpu.core_type = #tpu.core_type<tc>} {
    %c0_i32 = arith.constant 0 : i32
    %c0_i32_0 = arith.constant 0 : i32
    %c0_i32_1 = arith.constant 0 : i32
    %c0_i32_2 = arith.constant 0 : i32
    %c0_i32_3 = arith.constant 0 : i32
    %0 = tpu.memref_slice %arg1[%c0_i32, %c0_i32_2, %c0_i32_3] : memref<4x384x512xbf16, #tpu.memory_space<any>> -> memref<1x384x512xbf16, #tpu.memory_space<any>>
    %1 = tpu.memref_squeeze %0 : memref<1x384x512xbf16, #tpu.memory_space<any>> -> memref<384x512xbf16, #tpu.memory_space<any>>
    %c0_i32_4 = arith.constant 0 : i32
    %c0_i32_5 = arith.constant 0 : i32
    %2 = tpu.memref_slice %arg14[%c0_i32_0, %c0_i32_4, %c0_i32_5] : memref<4x384x512xbf16, #tpu.memory_space<vmem>> -> memref<1x384x512xbf16, #tpu.memory_space<vmem>>
    %3 = tpu.memref_squeeze %2 : memref<1x384x512xbf16, #tpu.memory_space<vmem>> -> memref<384x512xbf16, #tpu.memory_space<vmem>>
    %4 = tpu.memref_slice %arg18[%c0_i32_1] : memref<8x!tpu.dma_semaphore, #tpu.memory_space<semaphore_mem>> -> memref<1x!tpu.dma_semaphore, #tpu.memory_space<semaphore_mem>>
    %5 = tpu.memref_squeeze %4 : memref<1x!tpu.dma_semaphore, #tpu.memory_space<semaphore_mem>> -> memref<!tpu.dma_semaphore, #tpu.memory_space<semaphore_mem>>
    tpu.enqueue_dma source(%1 : memref<384x512xbf16, #tpu.memory_space<any>>) target(%3 : memref<384x512xbf16, #tpu.memory_space<vmem>>) target_semaphore(%5 : memref<!tpu.dma_semaphore, #tpu.memory_space<semaphore_mem>>)
    %c1_i32 = arith.constant 1 : i32
    %c1_i32_6 = arith.constant 1 : i32
    %c1_i32_7 = arith.constant 1 : i32
    %c0_i32_8 = arith.constant 0 : i32
    %c0_i32_9 = arith.constant 0 : i32
    %6 = tpu.memref_slice %arg1[%c1_i32, %c0_i32_8, %c0_i32_9] : memref<4x384x512xbf16, #tpu.memory_space<any>> -> memref<1x384x512xbf16, #tpu.memory_space<any>>
    %7 = tpu.memref_squeeze %6 : memref<1x384x512xbf16, #tpu.memory_space<any>> -> memref<384x512xbf16, #tpu.memory_space<any>>
    %c0_i32_10 = arith.constant 0 : i32
    %c0_i32_11 = arith.constant 0 : i32
    %8 = tpu.memref_slice %arg14[%c1_i32_6, %c0_i32_10, %c0_i32_11] : memref<4x384x512xbf16, #tpu.memory_space<vmem>> -> memref<1x384x512xbf16, #tpu.memory_space<vmem>>
    %9 = tpu.memref_squeeze %8 : memref<1x384x512xbf16, #tpu.memory_space<vmem>> -> memref<384x512xbf16, #tpu.memory_space<vmem>>
    %10 = tpu.memref_slice %arg18[%c1_i32_7] : memref<8x!tpu.dma_semaphore, #tpu.memory_space<semaphore_mem>> -> memref<1x!tpu.dma_semaphore, #tpu.memory_space<semaphore_mem>>
    %11 = tpu.memref_squeeze %10 : memref<1x!tpu.dma_semaphore, #tpu.memory_space<semaphore_mem>> -> memref<!tpu.dma_semaphore, #tpu.memory_space<semaphore_mem>>
    tpu.enqueue_dma source(%7 : memref<384x512xbf16, #tpu.memory_space<any>>) target(%9 : memref<384x512xbf16, #tpu.memory_space<vmem>>) target_semaphore(%11 : memref<!tpu.dma_semaphore, #tpu.memory_space<semaphore_mem>>)
    %c2_i32 = arith.constant 2 : i32
    %c2_i32_12 = arith.constant 2 : i32
    %c2_i32_13 = arith.constant 2 : i32
    %c0_i32_14 = arith.constant 0 : i32
    %c0_i32_15 = arith.constant 0 : i32
    %12 = tpu.memref_slice %arg1[%c2_i32, %c0_i32_14, %c0_i32_15] : memref<4x384x512xbf16, #tpu.memory_space<any>> -> memref<1x384x512xbf16, #tpu.memory_space<any>>
    %13 = tpu.memref_squeeze %12 : memref<1x384x512xbf16, #tpu.memory_space<any>> -> memref<384x512xbf16, #tpu.memory_space<any>>
    %c0_i32_16 = arith.constant 0 : i32
    %c0_i32_17 = arith.constant 0 : i32
    %14 = tpu.memref_slice %arg14[%c2_i32_12, %c0_i32_16, %c0_i32_17] : memref<4x384x512xbf16, #tpu.memory_space<vmem>> -> memref<1x384x512xbf16, #tpu.memory_space<vmem>>
    %15 = tpu.memref_squeeze %14 : memref<1x384x512xbf16, #tpu.memory_space<vmem>> -> memref<384x512xbf16, #tpu.memory_space<vmem>>
    %16 = tpu.memref_slice %arg18[%c2_i32_13] : memref<8x!tpu.dma_semaphore, #tpu.memory_space<semaphore_mem>> -> memref<1x!tpu.dma_semaphore, #tpu.memory_space<semaphore_mem>>
    %17 = tpu.memref_squeeze %16 : memref<1x!tpu.dma_semaphore, #tpu.memory_space<semaphore_mem>> -> memref<!tpu.dma_semaphore, #tpu.memory_space<semaphore_mem>>
    tpu.enqueue_dma source(%13 : memref<384x512xbf16, #tpu.memory_space<any>>) target(%15 : memref<384x512xbf16, #tpu.memory_space<vmem>>) target_semaphore(%17 : memref<!tpu.dma_semaphore, #tpu.memory_space<semaphore_mem>>)
    %c3_i32 = arith.constant 3 : i32
    %c3_i32_18 = arith.constant 3 : i32
    %c3_i32_19 = arith.constant 3 : i32
    %c0_i32_20 = arith.constant 0 : i32
    %c0_i32_21 = arith.constant 0 : i32
    %18 = tpu.memref_slice %arg1[%c3_i32, %c0_i32_20, %c0_i32_21] : memref<4x384x512xbf16, #tpu.memory_space<any>> -> memref<1x384x512xbf16, #tpu.memory_space<any>>
    %19 = tpu.memref_squeeze %18 : memref<1x384x512xbf16, #tpu.memory_space<any>> -> memref<384x512xbf16, #tpu.memory_space<any>>
    %c0_i32_22 = arith.constant 0 : i32
    %c0_i32_23 = arith.constant 0 : i32
    %20 = tpu.memref_slice %arg14[%c3_i32_18, %c0_i32_22, %c0_i32_23] : memref<4x384x512xbf16, #tpu.memory_space<vmem>> -> memref<1x384x512xbf16, #tpu.memory_space<vmem>>
    %21 = tpu.memref_squeeze %20 : memref<1x384x512xbf16, #tpu.memory_space<vmem>> -> memref<384x512xbf16, #tpu.memory_space<vmem>>
    %22 = tpu.memref_slice %arg18[%c3_i32_19] : memref<8x!tpu.dma_semaphore, #tpu.memory_space<semaphore_mem>> -> memref<1x!tpu.dma_semaphore, #tpu.memory_space<semaphore_mem>>
    %23 = tpu.memref_squeeze %22 : memref<1x!tpu.dma_semaphore, #tpu.memory_space<semaphore_mem>> -> memref<!tpu.dma_semaphore, #tpu.memory_space<semaphore_mem>>
    tpu.enqueue_dma source(%19 : memref<384x512xbf16, #tpu.memory_space<any>>) target(%21 : memref<384x512xbf16, #tpu.memory_space<vmem>>) target_semaphore(%23 : memref<!tpu.dma_semaphore, #tpu.memory_space<semaphore_mem>>)
    %c0_i32_24 = arith.constant 0 : i32
    %c0_i32_25 = arith.constant 0 : i32
    %c4_i32 = arith.constant 4 : i32
    %c0_i32_26 = arith.constant 0 : i32
    %c0_i32_27 = arith.constant 0 : i32
    %24 = tpu.memref_slice %arg2[%c0_i32_24, %c0_i32_26, %c0_i32_27] : memref<2x2048x512xbf16, #tpu.memory_space<any>> -> memref<1x2048x512xbf16, #tpu.memory_space<any>>
    %25 = tpu.memref_squeeze %24 : memref<1x2048x512xbf16, #tpu.memory_space<any>> -> memref<2048x512xbf16, #tpu.memory_space<any>>
    %c0_i32_28 = arith.constant 0 : i32
    %c0_i32_29 = arith.constant 0 : i32
    %26 = tpu.memref_slice %arg15[%c0_i32_25, %c0_i32_28, %c0_i32_29] : memref<2x2048x512xbf16, #tpu.memory_space<vmem>> -> memref<1x2048x512xbf16, #tpu.memory_space<vmem>>
    %27 = tpu.memref_squeeze %26 : memref<1x2048x512xbf16, #tpu.memory_space<vmem>> -> memref<2048x512xbf16, #tpu.memory_space<vmem>>
    %28 = tpu.memref_slice %arg18[%c4_i32] : memref<8x!tpu.dma_semaphore, #tpu.memory_space<semaphore_mem>> -> memref<1x!tpu.dma_semaphore, #tpu.memory_space<semaphore_mem>>
    %29 = tpu.memref_squeeze %28 : memref<1x!tpu.dma_semaphore, #tpu.memory_space<semaphore_mem>> -> memref<!tpu.dma_semaphore, #tpu.memory_space<semaphore_mem>>
    tpu.enqueue_dma source(%25 : memref<2048x512xbf16, #tpu.memory_space<any>>) target(%27 : memref<2048x512xbf16, #tpu.memory_space<vmem>>) target_semaphore(%29 : memref<!tpu.dma_semaphore, #tpu.memory_space<semaphore_mem>>)
    %c1_i32_30 = arith.constant 1 : i32
    %c1_i32_31 = arith.constant 1 : i32
    %c5_i32 = arith.constant 5 : i32
    %c0_i32_32 = arith.constant 0 : i32
    %c0_i32_33 = arith.constant 0 : i32
    %30 = tpu.memref_slice %arg2[%c1_i32_30, %c0_i32_32, %c0_i32_33] : memref<2x2048x512xbf16, #tpu.memory_space<any>> -> memref<1x2048x512xbf16, #tpu.memory_space<any>>
    %31 = tpu.memref_squeeze %30 : memref<1x2048x512xbf16, #tpu.memory_space<any>> -> memref<2048x512xbf16, #tpu.memory_space<any>>
    %c0_i32_34 = arith.constant 0 : i32
    %c0_i32_35 = arith.constant 0 : i32
    %32 = tpu.memref_slice %arg15[%c1_i32_31, %c0_i32_34, %c0_i32_35] : memref<2x2048x512xbf16, #tpu.memory_space<vmem>> -> memref<1x2048x512xbf16, #tpu.memory_space<vmem>>
    %33 = tpu.memref_squeeze %32 : memref<1x2048x512xbf16, #tpu.memory_space<vmem>> -> memref<2048x512xbf16, #tpu.memory_space<vmem>>
    %34 = tpu.memref_slice %arg18[%c5_i32] : memref<8x!tpu.dma_semaphore, #tpu.memory_space<semaphore_mem>> -> memref<1x!tpu.dma_semaphore, #tpu.memory_space<semaphore_mem>>
    %35 = tpu.memref_squeeze %34 : memref<1x!tpu.dma_semaphore, #tpu.memory_space<semaphore_mem>> -> memref<!tpu.dma_semaphore, #tpu.memory_space<semaphore_mem>>
    tpu.enqueue_dma source(%31 : memref<2048x512xbf16, #tpu.memory_space<any>>) target(%33 : memref<2048x512xbf16, #tpu.memory_space<vmem>>) target_semaphore(%35 : memref<!tpu.dma_semaphore, #tpu.memory_space<semaphore_mem>>)
    %c0_i32_36 = arith.constant 0 : i32
    %c0_i32_37 = arith.constant 0 : i32
    %c6_i32 = arith.constant 6 : i32
    %c0_i32_38 = arith.constant 0 : i32
    %c0_i32_39 = arith.constant 0 : i32
    %36 = tpu.memref_slice %arg3[%c0_i32_36, %c0_i32_38, %c0_i32_39] : memref<1x1024x512xbf16, #tpu.memory_space<any>> -> memref<1x1024x512xbf16, #tpu.memory_space<any>>
    %37 = tpu.memref_squeeze %36 : memref<1x1024x512xbf16, #tpu.memory_space<any>> -> memref<1024x512xbf16, #tpu.memory_space<any>>
    %c0_i32_40 = arith.constant 0 : i32
    %c0_i32_41 = arith.constant 0 : i32
    %38 = tpu.memref_slice %arg16[%c0_i32_37, %c0_i32_40, %c0_i32_41] : memref<1x1024x512xbf16, #tpu.memory_space<vmem>> -> memref<1x1024x512xbf16, #tpu.memory_space<vmem>>
    %39 = tpu.memref_squeeze %38 : memref<1x1024x512xbf16, #tpu.memory_space<vmem>> -> memref<1024x512xbf16, #tpu.memory_space<vmem>>
    %40 = tpu.memref_slice %arg18[%c6_i32] : memref<8x!tpu.dma_semaphore, #tpu.memory_space<semaphore_mem>> -> memref<1x!tpu.dma_semaphore, #tpu.memory_space<semaphore_mem>>
    %41 = tpu.memref_squeeze %40 : memref<1x!tpu.dma_semaphore, #tpu.memory_space<semaphore_mem>> -> memref<!tpu.dma_semaphore, #tpu.memory_space<semaphore_mem>>
    tpu.enqueue_dma source(%37 : memref<1024x512xbf16, #tpu.memory_space<any>>) target(%39 : memref<1024x512xbf16, #tpu.memory_space<vmem>>) target_semaphore(%41 : memref<!tpu.dma_semaphore, #tpu.memory_space<semaphore_mem>>)
    %c0_i32_42 = arith.constant 0 : i32
    %c0_i32_43 = arith.constant 0 : i32
    %c7_i32 = arith.constant 7 : i32
    %c0_i32_44 = arith.constant 0 : i32
    %c0_i32_45 = arith.constant 0 : i32
    %42 = tpu.memref_slice %arg4[%c0_i32_42, %c0_i32_44, %c0_i32_45] : memref<1x512x256xbf16, #tpu.memory_space<any>> -> memref<1x512x256xbf16, #tpu.memory_space<any>>
    %43 = tpu.memref_squeeze %42 : memref<1x512x256xbf16, #tpu.memory_space<any>> -> memref<512x256xbf16, #tpu.memory_space<any>>
    %c0_i32_46 = arith.constant 0 : i32
    %c0_i32_47 = arith.constant 0 : i32
    %44 = tpu.memref_slice %arg17[%c0_i32_43, %c0_i32_46, %c0_i32_47] : memref<1x512x256xbf16, #tpu.memory_space<vmem>> -> memref<1x512x256xbf16, #tpu.memory_space<vmem>>
    %45 = tpu.memref_squeeze %44 : memref<1x512x256xbf16, #tpu.memory_space<vmem>> -> memref<512x256xbf16, #tpu.memory_space<vmem>>
    %46 = tpu.memref_slice %arg18[%c7_i32] : memref<8x!tpu.dma_semaphore, #tpu.memory_space<semaphore_mem>> -> memref<1x!tpu.dma_semaphore, #tpu.memory_space<semaphore_mem>>
    %47 = tpu.memref_squeeze %46 : memref<1x!tpu.dma_semaphore, #tpu.memory_space<semaphore_mem>> -> memref<!tpu.dma_semaphore, #tpu.memory_space<semaphore_mem>>
    tpu.enqueue_dma source(%43 : memref<512x256xbf16, #tpu.memory_space<any>>) target(%45 : memref<512x256xbf16, #tpu.memory_space<vmem>>) target_semaphore(%47 : memref<!tpu.dma_semaphore, #tpu.memory_space<semaphore_mem>>)
    %c0 = arith.constant 0 : index
    %c0_48 = arith.constant 0 : index
    %48 = vector.load %arg0[%c0, %c0_48] : memref<8x384xbf16, #tpu.memory_space<vmem>>, vector<8x384xbf16>
    %c0_i32_49 = arith.constant 0 : i32
    %c0_i32_50 = arith.constant 0 : i32
    %c0_i32_51 = arith.constant 0 : i32
    %c0_i32_52 = arith.constant 0 : i32
    %c0_i32_53 = arith.constant 0 : i32
    %49 = tpu.memref_slice %arg1[%c0_i32_49, %c0_i32_52, %c0_i32_53] : memref<4x384x512xbf16, #tpu.memory_space<any>> -> memref<1x384x512xbf16, #tpu.memory_space<any>>
    %50 = tpu.memref_squeeze %49 : memref<1x384x512xbf16, #tpu.memory_space<any>> -> memref<384x512xbf16, #tpu.memory_space<any>>
    %c0_i32_54 = arith.constant 0 : i32
    %c0_i32_55 = arith.constant 0 : i32
    %51 = tpu.memref_slice %arg14[%c0_i32_50, %c0_i32_54, %c0_i32_55] : memref<4x384x512xbf16, #tpu.memory_space<vmem>> -> memref<1x384x512xbf16, #tpu.memory_space<vmem>>
    %52 = tpu.memref_squeeze %51 : memref<1x384x512xbf16, #tpu.memory_space<vmem>> -> memref<384x512xbf16, #tpu.memory_space<vmem>>
    %53 = tpu.memref_slice %arg18[%c0_i32_51] : memref<8x!tpu.dma_semaphore, #tpu.memory_space<semaphore_mem>> -> memref<1x!tpu.dma_semaphore, #tpu.memory_space<semaphore_mem>>
    %54 = tpu.memref_squeeze %53 : memref<1x!tpu.dma_semaphore, #tpu.memory_space<semaphore_mem>> -> memref<!tpu.dma_semaphore, #tpu.memory_space<semaphore_mem>>
    tpu.wait_dma2 semaphore(%54 : memref<!tpu.dma_semaphore, #tpu.memory_space<semaphore_mem>>) src(%50 : memref<384x512xbf16, #tpu.memory_space<any>>) dst(%52 : memref<384x512xbf16, #tpu.memory_space<vmem>>)
    %c0_56 = arith.constant 0 : index
    %c0_57 = arith.constant 0 : index
    %c0_58 = arith.constant 0 : index
    %55 = vector.load %arg14[%c0_56, %c0_57, %c0_58] : memref<4x384x512xbf16, #tpu.memory_space<vmem>>, vector<1x384x256xbf16>
    %56 = vector.shape_cast %55 : vector<1x384x256xbf16> to vector<384x256xbf16>
    %cst = arith.constant dense<0.000000e+00> : vector<8x256xf32>
    %57 = tpu.matmul %48, %56, %cst {dimension_numbers = #tpu.dot_dimension_numbers<[1], [0], [0], [1], [0, 0, 1, 1], [], []>} : vector<8x384xbf16>, vector<384x256xbf16>, vector<8x256xf32> -> vector<8x256xf32>
    %c0_59 = arith.constant 0 : index
    %c0_60 = arith.constant 0 : index
    %58 = vector.load %arg6[%c0_59, %c0_60] : memref<1x2048xf32, #tpu.memory_space<vmem>>, vector<1x256xf32>
    %59 = vector.broadcast %58 : vector<1x256xf32> to vector<8x256xf32>
    %60 = arith.addf %57, %59 : vector<8x256xf32>
    %cst_61 = arith.constant 0.000000e+00 : f32
    %61 = vector.broadcast %cst_61 : f32 to vector<8x256xf32>
    %62 = arith.maximumf %60, %61 : vector<8x256xf32>
    %63 = arith.truncf %62 : vector<8x256xf32> to vector<8x256xbf16>
    %c0_62 = arith.constant 0 : index
    %c0_63 = arith.constant 0 : index
    %64 = vector.load %arg12[%c0_62, %c0_63] : memref<8x2048xbf16, #tpu.memory_space<vmem>>, vector<8x256xbf16>
    tpu.vector_store %arg12[%c0_62, %c0_63], %63 {strides = array<i32>} : memref<8x2048xbf16, #tpu.memory_space<vmem>>, vector<8x256xbf16>,
    %c0_64 = arith.constant 0 : index
    %c0_65 = arith.constant 0 : index
    %c256 = arith.constant 256 : index
    %65 = vector.load %arg14[%c0_64, %c0_65, %c256] : memref<4x384x512xbf16, #tpu.memory_space<vmem>>, vector<1x384x256xbf16>
    %66 = vector.shape_cast %65 : vector<1x384x256xbf16> to vector<384x256xbf16>
    %cst_66 = arith.constant dense<0.000000e+00> : vector<8x256xf32>
    %67 = tpu.matmul %48, %66, %cst_66 {dimension_numbers = #tpu.dot_dimension_numbers<[1], [0], [0], [1], [0, 0, 1, 1], [], []>} : vector<8x384xbf16>, vector<384x256xbf16>, vector<8x256xf32> -> vector<8x256xf32>
    %c0_67 = arith.constant 0 : index
    %c256_68 = arith.constant 256 : index
    %68 = vector.load %arg6[%c0_67, %c256_68] : memref<1x2048xf32, #tpu.memory_space<vmem>>, vector<1x256xf32>
    %69 = vector.broadcast %68 : vector<1x256xf32> to vector<8x256xf32>
    %70 = arith.addf %67, %69 : vector<8x256xf32>
    %cst_69 = arith.constant 0.000000e+00 : f32
    %71 = vector.broadcast %cst_69 : f32 to vector<8x256xf32>
    %72 = arith.maximumf %70, %71 : vector<8x256xf32>
    %73 = arith.truncf %72 : vector<8x256xf32> to vector<8x256xbf16>
    %c0_70 = arith.constant 0 : index
    %c256_71 = arith.constant 256 : index
    %74 = vector.load %arg12[%c0_70, %c256_71] : memref<8x2048xbf16, #tpu.memory_space<vmem>>, vector<8x256xbf16>
    tpu.vector_store %arg12[%c0_70, %c256_71], %73 {strides = array<i32>} : memref<8x2048xbf16, #tpu.memory_space<vmem>>, vector<8x256xbf16>,
    %c1_i32_72 = arith.constant 1 : i32
    %c1_i32_73 = arith.constant 1 : i32
    %c1_i32_74 = arith.constant 1 : i32
    %c0_i32_75 = arith.constant 0 : i32
    %c0_i32_76 = arith.constant 0 : i32
    %75 = tpu.memref_slice %arg1[%c1_i32_72, %c0_i32_75, %c0_i32_76] : memref<4x384x512xbf16, #tpu.memory_space<any>> -> memref<1x384x512xbf16, #tpu.memory_space<any>>
    %76 = tpu.memref_squeeze %75 : memref<1x384x512xbf16, #tpu.memory_space<any>> -> memref<384x512xbf16, #tpu.memory_space<any>>
    %c0_i32_77 = arith.constant 0 : i32
    %c0_i32_78 = arith.constant 0 : i32
    %77 = tpu.memref_slice %arg14[%c1_i32_73, %c0_i32_77, %c0_i32_78] : memref<4x384x512xbf16, #tpu.memory_space<vmem>> -> memref<1x384x512xbf16, #tpu.memory_space<vmem>>
    %78 = tpu.memref_squeeze %77 : memref<1x384x512xbf16, #tpu.memory_space<vmem>> -> memref<384x512xbf16, #tpu.memory_space<vmem>>
    %79 = tpu.memref_slice %arg18[%c1_i32_74] : memref<8x!tpu.dma_semaphore, #tpu.memory_space<semaphore_mem>> -> memref<1x!tpu.dma_semaphore, #tpu.memory_space<semaphore_mem>>
    %80 = tpu.memref_squeeze %79 : memref<1x!tpu.dma_semaphore, #tpu.memory_space<semaphore_mem>> -> memref<!tpu.dma_semaphore, #tpu.memory_space<semaphore_mem>>
    tpu.wait_dma2 semaphore(%80 : memref<!tpu.dma_semaphore, #tpu.memory_space<semaphore_mem>>) src(%76 : memref<384x512xbf16, #tpu.memory_space<any>>) dst(%78 : memref<384x512xbf16, #tpu.memory_space<vmem>>)
    %c1 = arith.constant 1 : index
    %c0_79 = arith.constant 0 : index
    %c0_80 = arith.constant 0 : index
    %81 = vector.load %arg14[%c1, %c0_79, %c0_80] : memref<4x384x512xbf16, #tpu.memory_space<vmem>>, vector<1x384x256xbf16>
    %82 = vector.shape_cast %81 : vector<1x384x256xbf16> to vector<384x256xbf16>
    %cst_81 = arith.constant dense<0.000000e+00> : vector<8x256xf32>
    %83 = tpu.matmul %48, %82, %cst_81 {dimension_numbers = #tpu.dot_dimension_numbers<[1], [0], [0], [1], [0, 0, 1, 1], [], []>} : vector<8x384xbf16>, vector<384x256xbf16>, vector<8x256xf32> -> vector<8x256xf32>
    %c0_82 = arith.constant 0 : index
    %c512 = arith.constant 512 : index
    %84 = vector.load %arg6[%c0_82, %c512] : memref<1x2048xf32, #tpu.memory_space<vmem>>, vector<1x256xf32>
    %85 = vector.broadcast %84 : vector<1x256xf32> to vector<8x256xf32>
    %86 = arith.addf %83, %85 : vector<8x256xf32>
    %cst_83 = arith.constant 0.000000e+00 : f32
    %87 = vector.broadcast %cst_83 : f32 to vector<8x256xf32>
    %88 = arith.maximumf %86, %87 : vector<8x256xf32>
    %89 = arith.truncf %88 : vector<8x256xf32> to vector<8x256xbf16>
    %c0_84 = arith.constant 0 : index
    %c512_85 = arith.constant 512 : index
    %90 = vector.load %arg12[%c0_84, %c512_85] : memref<8x2048xbf16, #tpu.memory_space<vmem>>, vector<8x256xbf16>
    tpu.vector_store %arg12[%c0_84, %c512_85], %89 {strides = array<i32>} : memref<8x2048xbf16, #tpu.memory_space<vmem>>, vector<8x256xbf16>,
    %c1_86 = arith.constant 1 : index
    %c0_87 = arith.constant 0 : index
    %c256_88 = arith.constant 256 : index
    %91 = vector.load %arg14[%c1_86, %c0_87, %c256_88] : memref<4x384x512xbf16, #tpu.memory_space<vmem>>, vector<1x384x256xbf16>
    %92 = vector.shape_cast %91 : vector<1x384x256xbf16> to vector<384x256xbf16>
    %cst_89 = arith.constant dense<0.000000e+00> : vector<8x256xf32>
    %93 = tpu.matmul %48, %92, %cst_89 {dimension_numbers = #tpu.dot_dimension_numbers<[1], [0], [0], [1], [0, 0, 1, 1], [], []>} : vector<8x384xbf16>, vector<384x256xbf16>, vector<8x256xf32> -> vector<8x256xf32>
    %c0_90 = arith.constant 0 : index
    %c768 = arith.constant 768 : index
    %94 = vector.load %arg6[%c0_90, %c768] : memref<1x2048xf32, #tpu.memory_space<vmem>>, vector<1x256xf32>
    %95 = vector.broadcast %94 : vector<1x256xf32> to vector<8x256xf32>
    %96 = arith.addf %93, %95 : vector<8x256xf32>
    %cst_91 = arith.constant 0.000000e+00 : f32
    %97 = vector.broadcast %cst_91 : f32 to vector<8x256xf32>
    %98 = arith.maximumf %96, %97 : vector<8x256xf32>
    %99 = arith.truncf %98 : vector<8x256xf32> to vector<8x256xbf16>
    %c0_92 = arith.constant 0 : index
    %c768_93 = arith.constant 768 : index
    %100 = vector.load %arg12[%c0_92, %c768_93] : memref<8x2048xbf16, #tpu.memory_space<vmem>>, vector<8x256xbf16>
    tpu.vector_store %arg12[%c0_92, %c768_93], %99 {strides = array<i32>} : memref<8x2048xbf16, #tpu.memory_space<vmem>>, vector<8x256xbf16>,
    %c2_i32_94 = arith.constant 2 : i32
    %c2_i32_95 = arith.constant 2 : i32
    %c2_i32_96 = arith.constant 2 : i32
    %c0_i32_97 = arith.constant 0 : i32
    %c0_i32_98 = arith.constant 0 : i32
    %101 = tpu.memref_slice %arg1[%c2_i32_94, %c0_i32_97, %c0_i32_98] : memref<4x384x512xbf16, #tpu.memory_space<any>> -> memref<1x384x512xbf16, #tpu.memory_space<any>>
    %102 = tpu.memref_squeeze %101 : memref<1x384x512xbf16, #tpu.memory_space<any>> -> memref<384x512xbf16, #tpu.memory_space<any>>
    %c0_i32_99 = arith.constant 0 : i32
    %c0_i32_100 = arith.constant 0 : i32
    %103 = tpu.memref_slice %arg14[%c2_i32_95, %c0_i32_99, %c0_i32_100] : memref<4x384x512xbf16, #tpu.memory_space<vmem>> -> memref<1x384x512xbf16, #tpu.memory_space<vmem>>
    %104 = tpu.memref_squeeze %103 : memref<1x384x512xbf16, #tpu.memory_space<vmem>> -> memref<384x512xbf16, #tpu.memory_space<vmem>>
    %105 = tpu.memref_slice %arg18[%c2_i32_96] : memref<8x!tpu.dma_semaphore, #tpu.memory_space<semaphore_mem>> -> memref<1x!tpu.dma_semaphore, #tpu.memory_space<semaphore_mem>>
    %106 = tpu.memref_squeeze %105 : memref<1x!tpu.dma_semaphore, #tpu.memory_space<semaphore_mem>> -> memref<!tpu.dma_semaphore, #tpu.memory_space<semaphore_mem>>
    tpu.wait_dma2 semaphore(%106 : memref<!tpu.dma_semaphore, #tpu.memory_space<semaphore_mem>>) src(%102 : memref<384x512xbf16, #tpu.memory_space<any>>) dst(%104 : memref<384x512xbf16, #tpu.memory_space<vmem>>)
    %c2 = arith.constant 2 : index
    %c0_101 = arith.constant 0 : index
    %c0_102 = arith.constant 0 : index
    %107 = vector.load %arg14[%c2, %c0_101, %c0_102] : memref<4x384x512xbf16, #tpu.memory_space<vmem>>, vector<1x384x256xbf16>
    %108 = vector.shape_cast %107 : vector<1x384x256xbf16> to vector<384x256xbf16>
    %cst_103 = arith.constant dense<0.000000e+00> : vector<8x256xf32>
    %109 = tpu.matmul %48, %108, %cst_103 {dimension_numbers = #tpu.dot_dimension_numbers<[1], [0], [0], [1], [0, 0, 1, 1], [], []>} : vector<8x384xbf16>, vector<384x256xbf16>, vector<8x256xf32> -> vector<8x256xf32>
    %c0_104 = arith.constant 0 : index
    %c1024 = arith.constant 1024 : index
    %110 = vector.load %arg6[%c0_104, %c1024] : memref<1x2048xf32, #tpu.memory_space<vmem>>, vector<1x256xf32>
    %111 = vector.broadcast %110 : vector<1x256xf32> to vector<8x256xf32>
    %112 = arith.addf %109, %111 : vector<8x256xf32>
    %cst_105 = arith.constant 0.000000e+00 : f32
    %113 = vector.broadcast %cst_105 : f32 to vector<8x256xf32>
    %114 = arith.maximumf %112, %113 : vector<8x256xf32>
    %115 = arith.truncf %114 : vector<8x256xf32> to vector<8x256xbf16>
    %c0_106 = arith.constant 0 : index
    %c1024_107 = arith.constant 1024 : index
    %116 = vector.load %arg12[%c0_106, %c1024_107] : memref<8x2048xbf16, #tpu.memory_space<vmem>>, vector<8x256xbf16>
    tpu.vector_store %arg12[%c0_106, %c1024_107], %115 {strides = array<i32>} : memref<8x2048xbf16, #tpu.memory_space<vmem>>, vector<8x256xbf16>,
    %c2_108 = arith.constant 2 : index
    %c0_109 = arith.constant 0 : index
    %c256_110 = arith.constant 256 : index
    %117 = vector.load %arg14[%c2_108, %c0_109, %c256_110] : memref<4x384x512xbf16, #tpu.memory_space<vmem>>, vector<1x384x256xbf16>
    %118 = vector.shape_cast %117 : vector<1x384x256xbf16> to vector<384x256xbf16>
    %cst_111 = arith.constant dense<0.000000e+00> : vector<8x256xf32>
    %119 = tpu.matmul %48, %118, %cst_111 {dimension_numbers = #tpu.dot_dimension_numbers<[1], [0], [0], [1], [0, 0, 1, 1], [], []>} : vector<8x384xbf16>, vector<384x256xbf16>, vector<8x256xf32> -> vector<8x256xf32>
    %c0_112 = arith.constant 0 : index
    %c1280 = arith.constant 1280 : index
    %120 = vector.load %arg6[%c0_112, %c1280] : memref<1x2048xf32, #tpu.memory_space<vmem>>, vector<1x256xf32>
    %121 = vector.broadcast %120 : vector<1x256xf32> to vector<8x256xf32>
    %122 = arith.addf %119, %121 : vector<8x256xf32>
    %cst_113 = arith.constant 0.000000e+00 : f32
    %123 = vector.broadcast %cst_113 : f32 to vector<8x256xf32>
    %124 = arith.maximumf %122, %123 : vector<8x256xf32>
    %125 = arith.truncf %124 : vector<8x256xf32> to vector<8x256xbf16>
    %c0_114 = arith.constant 0 : index
    %c1280_115 = arith.constant 1280 : index
    %126 = vector.load %arg12[%c0_114, %c1280_115] : memref<8x2048xbf16, #tpu.memory_space<vmem>>, vector<8x256xbf16>
    tpu.vector_store %arg12[%c0_114, %c1280_115], %125 {strides = array<i32>} : memref<8x2048xbf16, #tpu.memory_space<vmem>>, vector<8x256xbf16>,
    %c3_i32_116 = arith.constant 3 : i32
    %c3_i32_117 = arith.constant 3 : i32
    %c3_i32_118 = arith.constant 3 : i32
    %c0_i32_119 = arith.constant 0 : i32
    %c0_i32_120 = arith.constant 0 : i32
    %127 = tpu.memref_slice %arg1[%c3_i32_116, %c0_i32_119, %c0_i32_120] : memref<4x384x512xbf16, #tpu.memory_space<any>> -> memref<1x384x512xbf16, #tpu.memory_space<any>>
    %128 = tpu.memref_squeeze %127 : memref<1x384x512xbf16, #tpu.memory_space<any>> -> memref<384x512xbf16, #tpu.memory_space<any>>
    %c0_i32_121 = arith.constant 0 : i32
    %c0_i32_122 = arith.constant 0 : i32
    %129 = tpu.memref_slice %arg14[%c3_i32_117, %c0_i32_121, %c0_i32_122] : memref<4x384x512xbf16, #tpu.memory_space<vmem>> -> memref<1x384x512xbf16, #tpu.memory_space<vmem>>
    %130 = tpu.memref_squeeze %129 : memref<1x384x512xbf16, #tpu.memory_space<vmem>> -> memref<384x512xbf16, #tpu.memory_space<vmem>>
    %131 = tpu.memref_slice %arg18[%c3_i32_118] : memref<8x!tpu.dma_semaphore, #tpu.memory_space<semaphore_mem>> -> memref<1x!tpu.dma_semaphore, #tpu.memory_space<semaphore_mem>>
    %132 = tpu.memref_squeeze %131 : memref<1x!tpu.dma_semaphore, #tpu.memory_space<semaphore_mem>> -> memref<!tpu.dma_semaphore, #tpu.memory_space<semaphore_mem>>
    tpu.wait_dma2 semaphore(%132 : memref<!tpu.dma_semaphore, #tpu.memory_space<semaphore_mem>>) src(%128 : memref<384x512xbf16, #tpu.memory_space<any>>) dst(%130 : memref<384x512xbf16, #tpu.memory_space<vmem>>)
    %c3 = arith.constant 3 : index
    %c0_123 = arith.constant 0 : index
    %c0_124 = arith.constant 0 : index
    %133 = vector.load %arg14[%c3, %c0_123, %c0_124] : memref<4x384x512xbf16, #tpu.memory_space<vmem>>, vector<1x384x256xbf16>
    %134 = vector.shape_cast %133 : vector<1x384x256xbf16> to vector<384x256xbf16>
    %cst_125 = arith.constant dense<0.000000e+00> : vector<8x256xf32>
    %135 = tpu.matmul %48, %134, %cst_125 {dimension_numbers = #tpu.dot_dimension_numbers<[1], [0], [0], [1], [0, 0, 1, 1], [], []>} : vector<8x384xbf16>, vector<384x256xbf16>, vector<8x256xf32> -> vector<8x256xf32>
    %c0_126 = arith.constant 0 : index
    %c1536 = arith.constant 1536 : index
    %136 = vector.load %arg6[%c0_126, %c1536] : memref<1x2048xf32, #tpu.memory_space<vmem>>, vector<1x256xf32>
    %137 = vector.broadcast %136 : vector<1x256xf32> to vector<8x256xf32>
    %138 = arith.addf %135, %137 : vector<8x256xf32>
    %cst_127 = arith.constant 0.000000e+00 : f32
    %139 = vector.broadcast %cst_127 : f32 to vector<8x256xf32>
    %140 = arith.maximumf %138, %139 : vector<8x256xf32>
    %141 = arith.truncf %140 : vector<8x256xf32> to vector<8x256xbf16>
    %c0_128 = arith.constant 0 : index
    %c1536_129 = arith.constant 1536 : index
    %142 = vector.load %arg12[%c0_128, %c1536_129] : memref<8x2048xbf16, #tpu.memory_space<vmem>>, vector<8x256xbf16>
    tpu.vector_store %arg12[%c0_128, %c1536_129], %141 {strides = array<i32>} : memref<8x2048xbf16, #tpu.memory_space<vmem>>, vector<8x256xbf16>,
    %c3_130 = arith.constant 3 : index
    %c0_131 = arith.constant 0 : index
    %c256_132 = arith.constant 256 : index
    %143 = vector.load %arg14[%c3_130, %c0_131, %c256_132] : memref<4x384x512xbf16, #tpu.memory_space<vmem>>, vector<1x384x256xbf16>
    %144 = vector.shape_cast %143 : vector<1x384x256xbf16> to vector<384x256xbf16>
    %cst_133 = arith.constant dense<0.000000e+00> : vector<8x256xf32>
    %145 = tpu.matmul %48, %144, %cst_133 {dimension_numbers = #tpu.dot_dimension_numbers<[1], [0], [0], [1], [0, 0, 1, 1], [], []>} : vector<8x384xbf16>, vector<384x256xbf16>, vector<8x256xf32> -> vector<8x256xf32>
    %c0_134 = arith.constant 0 : index
    %c1792 = arith.constant 1792 : index
    %146 = vector.load %arg6[%c0_134, %c1792] : memref<1x2048xf32, #tpu.memory_space<vmem>>, vector<1x256xf32>
    %147 = vector.broadcast %146 : vector<1x256xf32> to vector<8x256xf32>
    %148 = arith.addf %145, %147 : vector<8x256xf32>
    %cst_135 = arith.constant 0.000000e+00 : f32
    %149 = vector.broadcast %cst_135 : f32 to vector<8x256xf32>
    %150 = arith.maximumf %148, %149 : vector<8x256xf32>
    %151 = arith.truncf %150 : vector<8x256xf32> to vector<8x256xbf16>
    %c0_136 = arith.constant 0 : index
    %c1792_137 = arith.constant 1792 : index
    %152 = vector.load %arg12[%c0_136, %c1792_137] : memref<8x2048xbf16, #tpu.memory_space<vmem>>, vector<8x256xbf16>
    tpu.vector_store %arg12[%c0_136, %c1792_137], %151 {strides = array<i32>} : memref<8x2048xbf16, #tpu.memory_space<vmem>>, vector<8x256xbf16>,
    %c0_138 = arith.constant 0 : index
    %c0_139 = arith.constant 0 : index
    %153 = vector.load %arg12[%c0_138, %c0_139] : memref<8x2048xbf16, #tpu.memory_space<vmem>>, vector<8x2048xbf16>
    %c0_i32_140 = arith.constant 0 : i32
    %c0_i32_141 = arith.constant 0 : i32
    %c4_i32_142 = arith.constant 4 : i32
    %c0_i32_143 = arith.constant 0 : i32
    %c0_i32_144 = arith.constant 0 : i32
    %154 = tpu.memref_slice %arg2[%c0_i32_140, %c0_i32_143, %c0_i32_144] : memref<2x2048x512xbf16, #tpu.memory_space<any>> -> memref<1x2048x512xbf16, #tpu.memory_space<any>>
    %155 = tpu.memref_squeeze %154 : memref<1x2048x512xbf16, #tpu.memory_space<any>> -> memref<2048x512xbf16, #tpu.memory_space<any>>
    %c0_i32_145 = arith.constant 0 : i32
    %c0_i32_146 = arith.constant 0 : i32
    %156 = tpu.memref_slice %arg15[%c0_i32_141, %c0_i32_145, %c0_i32_146] : memref<2x2048x512xbf16, #tpu.memory_space<vmem>> -> memref<1x2048x512xbf16, #tpu.memory_space<vmem>>
    %157 = tpu.memref_squeeze %156 : memref<1x2048x512xbf16, #tpu.memory_space<vmem>> -> memref<2048x512xbf16, #tpu.memory_space<vmem>>
    %158 = tpu.memref_slice %arg18[%c4_i32_142] : memref<8x!tpu.dma_semaphore, #tpu.memory_space<semaphore_mem>> -> memref<1x!tpu.dma_semaphore, #tpu.memory_space<semaphore_mem>>
    %159 = tpu.memref_squeeze %158 : memref<1x!tpu.dma_semaphore, #tpu.memory_space<semaphore_mem>> -> memref<!tpu.dma_semaphore, #tpu.memory_space<semaphore_mem>>
    tpu.wait_dma2 semaphore(%159 : memref<!tpu.dma_semaphore, #tpu.memory_space<semaphore_mem>>) src(%155 : memref<2048x512xbf16, #tpu.memory_space<any>>) dst(%157 : memref<2048x512xbf16, #tpu.memory_space<vmem>>)
    %c0_147 = arith.constant 0 : index
    %c0_148 = arith.constant 0 : index
    %c0_149 = arith.constant 0 : index
    %160 = vector.load %arg15[%c0_147, %c0_148, %c0_149] : memref<2x2048x512xbf16, #tpu.memory_space<vmem>>, vector<1x2048x256xbf16>
    %161 = vector.shape_cast %160 : vector<1x2048x256xbf16> to vector<2048x256xbf16>
    %cst_150 = arith.constant dense<0.000000e+00> : vector<8x256xf32>
    %162 = tpu.matmul %153, %161, %cst_150 {dimension_numbers = #tpu.dot_dimension_numbers<[1], [0], [0], [1], [0, 0, 1, 1], [], []>} : vector<8x2048xbf16>, vector<2048x256xbf16>, vector<8x256xf32> -> vector<8x256xf32>
    %c0_151 = arith.constant 0 : index
    %c0_152 = arith.constant 0 : index
    %163 = vector.load %arg7[%c0_151, %c0_152] : memref<1x1024xf32, #tpu.memory_space<vmem>>, vector<1x256xf32>
    %164 = vector.broadcast %163 : vector<1x256xf32> to vector<8x256xf32>
    %165 = arith.addf %162, %164 : vector<8x256xf32>
    %cst_153 = arith.constant 0.000000e+00 : f32
    %166 = vector.broadcast %cst_153 : f32 to vector<8x256xf32>
    %167 = arith.maximumf %165, %166 : vector<8x256xf32>
    %168 = arith.truncf %167 : vector<8x256xf32> to vector<8x256xbf16>
    %c0_154 = arith.constant 0 : index
    %c0_155 = arith.constant 0 : index
    %169 = vector.load %arg13[%c0_154, %c0_155] : memref<8x2048xbf16, #tpu.memory_space<vmem>>, vector<8x256xbf16>
    tpu.vector_store %arg13[%c0_154, %c0_155], %168 {strides = array<i32>} : memref<8x2048xbf16, #tpu.memory_space<vmem>>, vector<8x256xbf16>,
    %c0_156 = arith.constant 0 : index
    %c0_157 = arith.constant 0 : index
    %c256_158 = arith.constant 256 : index
    %170 = vector.load %arg15[%c0_156, %c0_157, %c256_158] : memref<2x2048x512xbf16, #tpu.memory_space<vmem>>, vector<1x2048x256xbf16>
    %171 = vector.shape_cast %170 : vector<1x2048x256xbf16> to vector<2048x256xbf16>
    %cst_159 = arith.constant dense<0.000000e+00> : vector<8x256xf32>
    %172 = tpu.matmul %153, %171, %cst_159 {dimension_numbers = #tpu.dot_dimension_numbers<[1], [0], [0], [1], [0, 0, 1, 1], [], []>} : vector<8x2048xbf16>, vector<2048x256xbf16>, vector<8x256xf32> -> vector<8x256xf32>
    %c0_160 = arith.constant 0 : index
    %c256_161 = arith.constant 256 : index
    %173 = vector.load %arg7[%c0_160, %c256_161] : memref<1x1024xf32, #tpu.memory_space<vmem>>, vector<1x256xf32>
    %174 = vector.broadcast %173 : vector<1x256xf32> to vector<8x256xf32>
    %175 = arith.addf %172, %174 : vector<8x256xf32>
    %cst_162 = arith.constant 0.000000e+00 : f32
    %176 = vector.broadcast %cst_162 : f32 to vector<8x256xf32>
    %177 = arith.maximumf %175, %176 : vector<8x256xf32>
    %178 = arith.truncf %177 : vector<8x256xf32> to vector<8x256xbf16>
    %c0_163 = arith.constant 0 : index
    %c256_164 = arith.constant 256 : index
    %179 = vector.load %arg13[%c0_163, %c256_164] : memref<8x2048xbf16, #tpu.memory_space<vmem>>, vector<8x256xbf16>
    tpu.vector_store %arg13[%c0_163, %c256_164], %178 {strides = array<i32>} : memref<8x2048xbf16, #tpu.memory_space<vmem>>, vector<8x256xbf16>,
    %c1_i32_165 = arith.constant 1 : i32
    %c1_i32_166 = arith.constant 1 : i32
    %c5_i32_167 = arith.constant 5 : i32
    %c0_i32_168 = arith.constant 0 : i32
    %c0_i32_169 = arith.constant 0 : i32
    %180 = tpu.memref_slice %arg2[%c1_i32_165, %c0_i32_168, %c0_i32_169] : memref<2x2048x512xbf16, #tpu.memory_space<any>> -> memref<1x2048x512xbf16, #tpu.memory_space<any>>
    %181 = tpu.memref_squeeze %180 : memref<1x2048x512xbf16, #tpu.memory_space<any>> -> memref<2048x512xbf16, #tpu.memory_space<any>>
    %c0_i32_170 = arith.constant 0 : i32
    %c0_i32_171 = arith.constant 0 : i32
    %182 = tpu.memref_slice %arg15[%c1_i32_166, %c0_i32_170, %c0_i32_171] : memref<2x2048x512xbf16, #tpu.memory_space<vmem>> -> memref<1x2048x512xbf16, #tpu.memory_space<vmem>>
    %183 = tpu.memref_squeeze %182 : memref<1x2048x512xbf16, #tpu.memory_space<vmem>> -> memref<2048x512xbf16, #tpu.memory_space<vmem>>
    %184 = tpu.memref_slice %arg18[%c5_i32_167] : memref<8x!tpu.dma_semaphore, #tpu.memory_space<semaphore_mem>> -> memref<1x!tpu.dma_semaphore, #tpu.memory_space<semaphore_mem>>
    %185 = tpu.memref_squeeze %184 : memref<1x!tpu.dma_semaphore, #tpu.memory_space<semaphore_mem>> -> memref<!tpu.dma_semaphore, #tpu.memory_space<semaphore_mem>>
    tpu.wait_dma2 semaphore(%185 : memref<!tpu.dma_semaphore, #tpu.memory_space<semaphore_mem>>) src(%181 : memref<2048x512xbf16, #tpu.memory_space<any>>) dst(%183 : memref<2048x512xbf16, #tpu.memory_space<vmem>>)
    %c1_172 = arith.constant 1 : index
    %c0_173 = arith.constant 0 : index
    %c0_174 = arith.constant 0 : index
    %186 = vector.load %arg15[%c1_172, %c0_173, %c0_174] : memref<2x2048x512xbf16, #tpu.memory_space<vmem>>, vector<1x2048x256xbf16>
    %187 = vector.shape_cast %186 : vector<1x2048x256xbf16> to vector<2048x256xbf16>
    %cst_175 = arith.constant dense<0.000000e+00> : vector<8x256xf32>
    %188 = tpu.matmul %153, %187, %cst_175 {dimension_numbers = #tpu.dot_dimension_numbers<[1], [0], [0], [1], [0, 0, 1, 1], [], []>} : vector<8x2048xbf16>, vector<2048x256xbf16>, vector<8x256xf32> -> vector<8x256xf32>
    %c0_176 = arith.constant 0 : index
    %c512_177 = arith.constant 512 : index
    %189 = vector.load %arg7[%c0_176, %c512_177] : memref<1x1024xf32, #tpu.memory_space<vmem>>, vector<1x256xf32>
    %190 = vector.broadcast %189 : vector<1x256xf32> to vector<8x256xf32>
    %191 = arith.addf %188, %190 : vector<8x256xf32>
    %cst_178 = arith.constant 0.000000e+00 : f32
    %192 = vector.broadcast %cst_178 : f32 to vector<8x256xf32>
    %193 = arith.maximumf %191, %192 : vector<8x256xf32>
    %194 = arith.truncf %193 : vector<8x256xf32> to vector<8x256xbf16>
    %c0_179 = arith.constant 0 : index
    %c512_180 = arith.constant 512 : index
    %195 = vector.load %arg13[%c0_179, %c512_180] : memref<8x2048xbf16, #tpu.memory_space<vmem>>, vector<8x256xbf16>
    tpu.vector_store %arg13[%c0_179, %c512_180], %194 {strides = array<i32>} : memref<8x2048xbf16, #tpu.memory_space<vmem>>, vector<8x256xbf16>,
    %c1_181 = arith.constant 1 : index
    %c0_182 = arith.constant 0 : index
    %c256_183 = arith.constant 256 : index
    %196 = vector.load %arg15[%c1_181, %c0_182, %c256_183] : memref<2x2048x512xbf16, #tpu.memory_space<vmem>>, vector<1x2048x256xbf16>
    %197 = vector.shape_cast %196 : vector<1x2048x256xbf16> to vector<2048x256xbf16>
    %cst_184 = arith.constant dense<0.000000e+00> : vector<8x256xf32>
    %198 = tpu.matmul %153, %197, %cst_184 {dimension_numbers = #tpu.dot_dimension_numbers<[1], [0], [0], [1], [0, 0, 1, 1], [], []>} : vector<8x2048xbf16>, vector<2048x256xbf16>, vector<8x256xf32> -> vector<8x256xf32>
    %c0_185 = arith.constant 0 : index
    %c768_186 = arith.constant 768 : index
    %199 = vector.load %arg7[%c0_185, %c768_186] : memref<1x1024xf32, #tpu.memory_space<vmem>>, vector<1x256xf32>
    %200 = vector.broadcast %199 : vector<1x256xf32> to vector<8x256xf32>
    %201 = arith.addf %198, %200 : vector<8x256xf32>
    %cst_187 = arith.constant 0.000000e+00 : f32
    %202 = vector.broadcast %cst_187 : f32 to vector<8x256xf32>
    %203 = arith.maximumf %201, %202 : vector<8x256xf32>
    %204 = arith.truncf %203 : vector<8x256xf32> to vector<8x256xbf16>
    %c0_188 = arith.constant 0 : index
    %c768_189 = arith.constant 768 : index
    %205 = vector.load %arg13[%c0_188, %c768_189] : memref<8x2048xbf16, #tpu.memory_space<vmem>>, vector<8x256xbf16>
    tpu.vector_store %arg13[%c0_188, %c768_189], %204 {strides = array<i32>} : memref<8x2048xbf16, #tpu.memory_space<vmem>>, vector<8x256xbf16>,
    %c0_190 = arith.constant 0 : index
    %c0_191 = arith.constant 0 : index
    %206 = vector.load %arg13[%c0_190, %c0_191] : memref<8x2048xbf16, #tpu.memory_space<vmem>>, vector<8x1024xbf16>
    %c0_i32_192 = arith.constant 0 : i32
    %c0_i32_193 = arith.constant 0 : i32
    %c6_i32_194 = arith.constant 6 : i32
    %c0_i32_195 = arith.constant 0 : i32
    %c0_i32_196 = arith.constant 0 : i32
    %207 = tpu.memref_slice %arg3[%c0_i32_192, %c0_i32_195, %c0_i32_196] : memref<1x1024x512xbf16, #tpu.memory_space<any>> -> memref<1x1024x512xbf16, #tpu.memory_space<any>>
    %208 = tpu.memref_squeeze %207 : memref<1x1024x512xbf16, #tpu.memory_space<any>> -> memref<1024x512xbf16, #tpu.memory_space<any>>
    %c0_i32_197 = arith.constant 0 : i32
    %c0_i32_198 = arith.constant 0 : i32
    %209 = tpu.memref_slice %arg16[%c0_i32_193, %c0_i32_197, %c0_i32_198] : memref<1x1024x512xbf16, #tpu.memory_space<vmem>> -> memref<1x1024x512xbf16, #tpu.memory_space<vmem>>
    %210 = tpu.memref_squeeze %209 : memref<1x1024x512xbf16, #tpu.memory_space<vmem>> -> memref<1024x512xbf16, #tpu.memory_space<vmem>>
    %211 = tpu.memref_slice %arg18[%c6_i32_194] : memref<8x!tpu.dma_semaphore, #tpu.memory_space<semaphore_mem>> -> memref<1x!tpu.dma_semaphore, #tpu.memory_space<semaphore_mem>>
    %212 = tpu.memref_squeeze %211 : memref<1x!tpu.dma_semaphore, #tpu.memory_space<semaphore_mem>> -> memref<!tpu.dma_semaphore, #tpu.memory_space<semaphore_mem>>
    tpu.wait_dma2 semaphore(%212 : memref<!tpu.dma_semaphore, #tpu.memory_space<semaphore_mem>>) src(%208 : memref<1024x512xbf16, #tpu.memory_space<any>>) dst(%210 : memref<1024x512xbf16, #tpu.memory_space<vmem>>)
    %c0_199 = arith.constant 0 : index
    %c0_200 = arith.constant 0 : index
    %c0_201 = arith.constant 0 : index
    %213 = vector.load %arg16[%c0_199, %c0_200, %c0_201] : memref<1x1024x512xbf16, #tpu.memory_space<vmem>>, vector<1x1024x256xbf16>
    %214 = vector.shape_cast %213 : vector<1x1024x256xbf16> to vector<1024x256xbf16>
    %cst_202 = arith.constant dense<0.000000e+00> : vector<8x256xf32>
    %215 = tpu.matmul %206, %214, %cst_202 {dimension_numbers = #tpu.dot_dimension_numbers<[1], [0], [0], [1], [0, 0, 1, 1], [], []>} : vector<8x1024xbf16>, vector<1024x256xbf16>, vector<8x256xf32> -> vector<8x256xf32>
    %c0_203 = arith.constant 0 : index
    %c0_204 = arith.constant 0 : index
    %216 = vector.load %arg8[%c0_203, %c0_204] : memref<1x512xf32, #tpu.memory_space<vmem>>, vector<1x256xf32>
    %217 = vector.broadcast %216 : vector<1x256xf32> to vector<8x256xf32>
    %218 = arith.addf %215, %217 : vector<8x256xf32>
    %cst_205 = arith.constant 0.000000e+00 : f32
    %219 = vector.broadcast %cst_205 : f32 to vector<8x256xf32>
    %220 = arith.maximumf %218, %219 : vector<8x256xf32>
    %221 = arith.truncf %220 : vector<8x256xf32> to vector<8x256xbf16>
    %c0_206 = arith.constant 0 : index
    %c0_207 = arith.constant 0 : index
    %222 = vector.load %arg12[%c0_206, %c0_207] : memref<8x2048xbf16, #tpu.memory_space<vmem>>, vector<8x256xbf16>
    tpu.vector_store %arg12[%c0_206, %c0_207], %221 {strides = array<i32>} : memref<8x2048xbf16, #tpu.memory_space<vmem>>, vector<8x256xbf16>,
    %c0_208 = arith.constant 0 : index
    %c0_209 = arith.constant 0 : index
    %c256_210 = arith.constant 256 : index
    %223 = vector.load %arg16[%c0_208, %c0_209, %c256_210] : memref<1x1024x512xbf16, #tpu.memory_space<vmem>>, vector<1x1024x256xbf16>
    %224 = vector.shape_cast %223 : vector<1x1024x256xbf16> to vector<1024x256xbf16>
    %cst_211 = arith.constant dense<0.000000e+00> : vector<8x256xf32>
    %225 = tpu.matmul %206, %224, %cst_211 {dimension_numbers = #tpu.dot_dimension_numbers<[1], [0], [0], [1], [0, 0, 1, 1], [], []>} : vector<8x1024xbf16>, vector<1024x256xbf16>, vector<8x256xf32> -> vector<8x256xf32>
    %c0_212 = arith.constant 0 : index
    %c256_213 = arith.constant 256 : index
    %226 = vector.load %arg8[%c0_212, %c256_213] : memref<1x512xf32, #tpu.memory_space<vmem>>, vector<1x256xf32>
    %227 = vector.broadcast %226 : vector<1x256xf32> to vector<8x256xf32>
    %228 = arith.addf %225, %227 : vector<8x256xf32>
    %cst_214 = arith.constant 0.000000e+00 : f32
    %229 = vector.broadcast %cst_214 : f32 to vector<8x256xf32>
    %230 = arith.maximumf %228, %229 : vector<8x256xf32>
    %231 = arith.truncf %230 : vector<8x256xf32> to vector<8x256xbf16>
    %c0_215 = arith.constant 0 : index
    %c256_216 = arith.constant 256 : index
    %232 = vector.load %arg12[%c0_215, %c256_216] : memref<8x2048xbf16, #tpu.memory_space<vmem>>, vector<8x256xbf16>
    tpu.vector_store %arg12[%c0_215, %c256_216], %231 {strides = array<i32>} : memref<8x2048xbf16, #tpu.memory_space<vmem>>, vector<8x256xbf16>,
    %c0_217 = arith.constant 0 : index
    %c0_218 = arith.constant 0 : index
    %233 = vector.load %arg12[%c0_217, %c0_218] : memref<8x2048xbf16, #tpu.memory_space<vmem>>, vector<8x512xbf16>
    %c0_i32_219 = arith.constant 0 : i32
    %c0_i32_220 = arith.constant 0 : i32
    %c7_i32_221 = arith.constant 7 : i32
    %c0_i32_222 = arith.constant 0 : i32
    %c0_i32_223 = arith.constant 0 : i32
    %234 = tpu.memref_slice %arg4[%c0_i32_219, %c0_i32_222, %c0_i32_223] : memref<1x512x256xbf16, #tpu.memory_space<any>> -> memref<1x512x256xbf16, #tpu.memory_space<any>>
    %235 = tpu.memref_squeeze %234 : memref<1x512x256xbf16, #tpu.memory_space<any>> -> memref<512x256xbf16, #tpu.memory_space<any>>
    %c0_i32_224 = arith.constant 0 : i32
    %c0_i32_225 = arith.constant 0 : i32
    %236 = tpu.memref_slice %arg17[%c0_i32_220, %c0_i32_224, %c0_i32_225] : memref<1x512x256xbf16, #tpu.memory_space<vmem>> -> memref<1x512x256xbf16, #tpu.memory_space<vmem>>
    %237 = tpu.memref_squeeze %236 : memref<1x512x256xbf16, #tpu.memory_space<vmem>> -> memref<512x256xbf16, #tpu.memory_space<vmem>>
    %238 = tpu.memref_slice %arg18[%c7_i32_221] : memref<8x!tpu.dma_semaphore, #tpu.memory_space<semaphore_mem>> -> memref<1x!tpu.dma_semaphore, #tpu.memory_space<semaphore_mem>>
    %239 = tpu.memref_squeeze %238 : memref<1x!tpu.dma_semaphore, #tpu.memory_space<semaphore_mem>> -> memref<!tpu.dma_semaphore, #tpu.memory_space<semaphore_mem>>
    tpu.wait_dma2 semaphore(%239 : memref<!tpu.dma_semaphore, #tpu.memory_space<semaphore_mem>>) src(%235 : memref<512x256xbf16, #tpu.memory_space<any>>) dst(%237 : memref<512x256xbf16, #tpu.memory_space<vmem>>)
    %c0_226 = arith.constant 0 : index
    %c0_227 = arith.constant 0 : index
    %c0_228 = arith.constant 0 : index
    %240 = vector.load %arg17[%c0_226, %c0_227, %c0_228] : memref<1x512x256xbf16, #tpu.memory_space<vmem>>, vector<1x512x256xbf16>
    %241 = vector.shape_cast %240 : vector<1x512x256xbf16> to vector<512x256xbf16>
    %cst_229 = arith.constant dense<0.000000e+00> : vector<8x256xf32>
    %242 = tpu.matmul %233, %241, %cst_229 {dimension_numbers = #tpu.dot_dimension_numbers<[1], [0], [0], [1], [0, 0, 1, 1], [], []>} : vector<8x512xbf16>, vector<512x256xbf16>, vector<8x256xf32> -> vector<8x256xf32>
    %c0_230 = arith.constant 0 : index
    %c0_231 = arith.constant 0 : index
    %243 = vector.load %arg9[%c0_230, %c0_231] : memref<1x256xf32, #tpu.memory_space<vmem>>, vector<1x256xf32>
    %244 = vector.broadcast %243 : vector<1x256xf32> to vector<8x256xf32>
    %245 = arith.addf %242, %244 : vector<8x256xf32>
    %cst_232 = arith.constant 0.000000e+00 : f32
    %246 = vector.broadcast %cst_232 : f32 to vector<8x256xf32>
    %247 = arith.maximumf %245, %246 : vector<8x256xf32>
    %248 = arith.truncf %247 : vector<8x256xf32> to vector<8x256xbf16>
    %c0_233 = arith.constant 0 : index
    %c0_234 = arith.constant 0 : index
    %249 = vector.load %arg13[%c0_233, %c0_234] : memref<8x2048xbf16, #tpu.memory_space<vmem>>, vector<8x256xbf16>
    tpu.vector_store %arg13[%c0_233, %c0_234], %248 {strides = array<i32>} : memref<8x2048xbf16, #tpu.memory_space<vmem>>, vector<8x256xbf16>,
    %c0_235 = arith.constant 0 : index
    %c0_236 = arith.constant 0 : index
    %250 = vector.load %arg13[%c0_235, %c0_236] : memref<8x2048xbf16, #tpu.memory_space<vmem>>, vector<8x256xbf16>
    %c0_237 = arith.constant 0 : index
    %c0_238 = arith.constant 0 : index
    %251 = vector.load %arg5[%c0_237, %c0_238] : memref<256x128xbf16, #tpu.memory_space<vmem>>, vector<256x128xbf16>
    %cst_239 = arith.constant dense<0.000000e+00> : vector<8x128xf32>
    %252 = tpu.matmul %250, %251, %cst_239 {dimension_numbers = #tpu.dot_dimension_numbers<[1], [0], [0], [1], [0, 0, 1, 1], [], []>} : vector<8x256xbf16>, vector<256x128xbf16>, vector<8x128xf32> -> vector<8x128xf32>
    %c0_240 = arith.constant 0 : index
    %c0_241 = arith.constant 0 : index
    %253 = vector.load %arg10[%c0_240, %c0_241] : memref<1x128xf32, #tpu.memory_space<vmem>>, vector<1x128xf32>
    %254 = vector.broadcast %253 : vector<1x128xf32> to vector<8x128xf32>
    %255 = arith.addf %252, %254 : vector<8x128xf32>
    %c0_242 = arith.constant 0 : index
    %c0_243 = arith.constant 0 : index
    %256 = vector.load %arg11[%c0_242, %c0_243] : memref<8x128xf32, #tpu.memory_space<vmem>>, vector<8x128xf32>
    tpu.vector_store %arg11[%c0_242, %c0_243], %255 {strides = array<i32>} : memref<8x128xf32, #tpu.memory_space<vmem>>, vector<8x128xf32>,
    return
  }
}

</mosaic_0001>

<llo_original>
// kernel: ann_forward_pallas.1
$region0: #{ann_forward_pallas.1}
  #allocation0 [shape = 'u32[]', space=smem, size = 0x4, offset = 0x4, fixed_abs, tag = 'smem constant byte address 0x4 - core index']
  #allocation1 [shape = 'u32[144,128]{1,0:T(1,128)}', space=vmem, size = 0x12000, scoped, tag = 'internal scratch']
  #allocation2 [shape = 'bf16[8,2048]{1,0:T(8,128)(2,1)}', space=vmem, size = 0x8000, scoped, tag = 'scratch operand']
  #allocation3 [shape = 'bf16[8,2048]{1,0:T(8,128)(2,1)}', space=vmem, size = 0x8000, scoped, tag = 'scratch operand']
  #allocation4 [shape = 'bf16[4,384,512]{2,1,0:T(8,128)(2,1)}', space=vmem, size = 0x180000, scoped, tag = 'scratch operand']
  #allocation5 [shape = 'bf16[2,2048,512]{2,1,0:T(8,128)(2,1)}', space=vmem, size = 0x400000, scoped, tag = 'scratch operand']
  #allocation6 [shape = 'bf16[1,1024,512]{2,1,0:T(8,128)(2,1)}', space=vmem, size = 0x100000, scoped, tag = 'scratch operand']
  #allocation7 [shape = 'bf16[1,512,256]{2,1,0:T(8,128)(2,1)}', space=vmem, size = 0x40000, scoped, tag = 'scratch operand']
  #allocation8 [shape = 's32[8]{0}', space=sflag, size = 0x20, scoped, tag = 'scratch operand']
  #allocation19 [shape = 's32[]', space=sflag, size = 0x4, offset = 0, fixed_abs, tag = 'sflag constant byte address 0x0 - dummy sync flag']
  #allocation20 [shape = 's32[]', space=sflag, size = 0x4, offset = 0, fixed_abs, tag = 'sflag constant byte address 0x0 - dummy sync flag']
  #allocation21 [shape = 'u32[]', space=smem, size = 0x4, offset = 0x44, fixed_abs, tag = 'smem constant byte address 0x44 - assertion arg 0']
  #allocation22 [shape = 'u32[]', space=smem, size = 0x4, offset = 0x48, fixed_abs, tag = 'smem constant byte address 0x48 - assertion arg 1']
  #allocation23 [shape = 's32[]', space=sflag, size = 0x4, offset = 0, fixed_abs, tag = 'sflag constant byte address 0x0 - dummy sync flag']
  #allocation24 [shape = 's32[]', space=sflag, size = 0x4, offset = 0, fixed_abs, tag = 'sflag constant byte address 0x0 - dummy sync flag']
  #allocation25 [shape = 's32[]', space=sflag, size = 0x4, offset = 0, fixed_abs, tag = 'sflag constant byte address 0x0 - dummy sync flag']
  #allocation26 [shape = 's32[]', space=sflag, size = 0x4, offset = 0, fixed_abs, tag = 'sflag constant byte address 0x0 - dummy sync flag']
  #allocation27 [shape = 's32[]', space=sflag, size = 0x4, offset = 0, fixed_abs, tag = 'sflag constant byte address 0x0 - dummy sync flag']
  #allocation28 [shape = 's32[]', space=sflag, size = 0x4, offset = 0, fixed_abs, tag = 'sflag constant byte address 0x0 - dummy sync flag']
  #allocation29 [shape = 's32[]', space=sflag, size = 0x4, offset = 0, fixed_abs, tag = 'sflag constant byte address 0x0 - dummy sync flag']
  #allocation30 [shape = 's32[]', space=sflag, size = 0x4, offset = 0, fixed_abs, tag = 'sflag constant byte address 0x0 - dummy sync flag']
  #allocation31 [shape = 's32[]', space=sflag, size = 0x4, offset = 0, fixed_abs, tag = 'sflag constant byte address 0x0 - dummy sync flag']
  #allocation32 [shape = 's32[]', space=sflag, size = 0x4, offset = 0, fixed_abs, tag = 'sflag constant byte address 0x0 - dummy sync flag']
  #allocation33 [shape = 's32[]', space=sflag, size = 0x4, offset = 0, fixed_abs, tag = 'sflag constant byte address 0x0 - dummy sync flag']
  #allocation34 [shape = 's32[]', space=sflag, size = 0x4, offset = 0, fixed_abs, tag = 'sflag constant byte address 0x0 - dummy sync flag']
  #allocation35 [shape = 's32[]', space=sflag, size = 0x4, offset = 0, fixed_abs, tag = 'sflag constant byte address 0x0 - dummy sync flag']
  #allocation36 [shape = 's32[]', space=sflag, size = 0x4, offset = 0, fixed_abs, tag = 'sflag constant byte address 0x0 - dummy sync flag']
  %s0 = inlined_call_operand.vmem [shape: bf16[8,384], index: 0, kind: input, shape index: {}]
  %s1 = inlined_call_operand.hbm [shape: bf16[4,384,512], index: 1, kind: input, shape index: {}]
  %s2 = inlined_call_operand.hbm [shape: bf16[2,2048,512], index: 2, kind: input, shape index: {}]
  %s3 = inlined_call_operand.hbm [shape: bf16[1,1024,512], index: 3, kind: input, shape index: {}]
  %s4 = inlined_call_operand.hbm [shape: bf16[1,512,256], index: 4, kind: input, shape index: {}]
  %s5 = inlined_call_operand.hbm [shape: bf16[256,128], index: 5, kind: input, shape index: {}]
  %s6 = inlined_call_operand.hbm [shape: f32[1,2048], index: 6, kind: input, shape index: {}]
  %s7 = inlined_call_operand.hbm [shape: f32[1,1024], index: 7, kind: input, shape index: {}]
  %s8 = inlined_call_operand.hbm [shape: f32[1,512], index: 8, kind: input, shape index: {}]
  %s9 = inlined_call_operand.hbm [shape: f32[1,256], index: 9, kind: input, shape index: {}]
  %s10 = inlined_call_operand.hbm [shape: f32[1,128], index: 10, kind: input, shape index: {}]
  %s11 = inlined_call_operand.vmem [shape: f32[8,128], index: 11, kind: output, shape index: {}]
  %s12 = sld [smem:[#allocation0]]
  $region94: #{ann_forward_pallas.1} parent=0
    _
  %s14 = ssub.s32 1, %s12
  %s15 = scalar_select 0, %s14, %s12
  $region1: #{ann_forward_pallas.1} parent=0
    #allocation9 [shape = 'u8[65536]{0}', space=vmem, size = 0x10000, scoped, tag = 'input window, operand 5, single buffered']
    #allocation10 [shape = 's32[1]{0}', space=sflag, size = 0x4, scoped, tag = 'scoped memory for ann_forward_pallas.1']
    #allocation11 [shape = 'u8[8192]{0}', space=vmem, size = 0x2000, scoped, tag = 'input window, operand 6, single buffered']
    #allocation12 [shape = 's32[1]{0}', space=sflag, size = 0x4, scoped, tag = 'scoped memory for ann_forward_pallas.1']
    #allocation13 [shape = 'u8[4096]{0}', space=vmem, size = 0x1000, scoped, tag = 'input window, operand 7, single buffered']
    #allocation14 [shape = 'u8[2048]{0}', space=vmem, size = 0x800, scoped, tag = 'input window, operand 8, single buffered']
    #allocation15 [shape = 's32[1]{0}', space=sflag, size = 0x4, scoped, tag = 'scoped memory for ann_forward_pallas.1']
    #allocation16 [shape = 'u8[1024]{0}', space=vmem, size = 0x400, scoped, tag = 'input window, operand 9, single buffered']
    #allocation17 [shape = 'u8[512]{0}', space=vmem, size = 0x400, scoped, tag = 'input window, operand 10, single buffered']
    #allocation18 [shape = 's32[1]{0}', space=sflag, size = 0x4, scoped, tag = 'scoped memory for ann_forward_pallas.1']
    %16 = vsyncpa [#allocation10], 0
    %17 = vsyncpa [#allocation12], 0
    %18 = vsyncpa [#allocation15], 0
    %19 = vsyncpa [#allocation18], 0
    // Predicated region
    $region2: #{ann_forward_pallas.1} parent=1 // pred_check
      _
    $region3: #{ann_forward_pallas.1} parent=1 // pred_check_branch
      %21 = sbr.rel (0) target = $region5
    $region4: #{ann_forward_pallas.1} parent=1 // pred_region
      _
    $region5: #{ann_forward_pallas.1} parent=1 // pred_fallthru
      _
    // Predicated region
    $region6: #{ann_forward_pallas.1} parent=1 // pred_check
      _
    $region7: #{ann_forward_pallas.1} parent=1 // pred_check_branch
      %23 = sbr.rel (0) target = $region9
    $region8: #{ann_forward_pallas.1} parent=1 // pred_region
      %s25 = ssub.s32 2048, 2048
      %26 = vsyncadd [#allocation10], %s25
      %s27 = sshll.u32 [#allocation9], 4
      %s28 = int_to_ptr.vmem [resolvable:$true] %s27
      %33 = dma.hbm_to_vmem [thread:$0]  %s5, 2048, %s28, [#allocation10], 64, 64, 4
    $region9: #{ann_forward_pallas.1} parent=1 // pred_fallthru
      _
    // Predicated region
    $region10: #{ann_forward_pallas.1} parent=1 // pred_check
      _
    $region11: #{ann_forward_pallas.1} parent=1 // pred_check_branch
      %35 = sbr.rel (0) target = $region13
    $region12: #{ann_forward_pallas.1} parent=1 // pred_region
      %s37 = ssub.s32 256, 256
      %38 = vsyncadd [#allocation12], %s37
      %s40 = sshll.u32 [#allocation11], 4
      %s41 = int_to_ptr.vmem [resolvable:$true] %s40
      %43 = dma.hbm_to_vmem [thread:$0]  %s6, 256, %s41, [#allocation12]
    $region13: #{ann_forward_pallas.1} parent=1 // pred_fallthru
      _
    // Predicated region
    $region14: #{ann_forward_pallas.1} parent=1 // pred_check
      _
    $region15: #{ann_forward_pallas.1} parent=1 // pred_check_branch
      %45 = sbr.rel (0) target = $region17
    $region16: #{ann_forward_pallas.1} parent=1 // pred_region
      %s47 = ssub.s32 128, 128
      %48 = vsyncadd [#allocation12], %s47
      %s50 = sshll.u32 [#allocation13], 4
      %s51 = int_to_ptr.vmem [resolvable:$true] %s50
      %53 = dma.hbm_to_vmem [thread:$0]  %s7, 128, %s51, [#allocation12]
    $region17: #{ann_forward_pallas.1} parent=1 // pred_fallthru
      _
    // Predicated region
    $region18: #{ann_forward_pallas.1} parent=1 // pred_check
      _
    $region19: #{ann_forward_pallas.1} parent=1 // pred_check_branch
      %55 = sbr.rel (0) target = $region21
    $region20: #{ann_forward_pallas.1} parent=1 // pred_region
      %s57 = ssub.s32 64, 64
      %58 = vsyncadd [#allocation15], %s57
      %s60 = sshll.u32 [#allocation14], 4
      %s61 = int_to_ptr.vmem [resolvable:$true] %s60
      %63 = dma.hbm_to_vmem [thread:$0]  %s8, 64, %s61, [#allocation15]
    $region21: #{ann_forward_pallas.1} parent=1 // pred_fallthru
      _
    // Predicated region
    $region22: #{ann_forward_pallas.1} parent=1 // pred_check
      _
    $region23: #{ann_forward_pallas.1} parent=1 // pred_check_branch
      %65 = sbr.rel (0) target = $region25
    $region24: #{ann_forward_pallas.1} parent=1 // pred_region
      %s67 = ssub.s32 32, 32
      %68 = vsyncadd [#allocation15], %s67
      %s70 = sshll.u32 [#allocation16], 4
      %s71 = int_to_ptr.vmem [resolvable:$true] %s70
      %73 = dma.hbm_to_vmem [thread:$0]  %s9, 32, %s71, [#allocation15]
    $region25: #{ann_forward_pallas.1} parent=1 // pred_fallthru
      _
    // Predicated region
    $region26: #{ann_forward_pallas.1} parent=1 // pred_check
      _
    $region27: #{ann_forward_pallas.1} parent=1 // pred_check_branch
      %75 = sbr.rel (0) target = $region29
    $region28: #{ann_forward_pallas.1} parent=1 // pred_region
      %s77 = ssub.s32 16, 16
      %78 = vsyncadd [#allocation18], %s77
      %s80 = sshll.u32 [#allocation17], 4
      %s81 = int_to_ptr.vmem [resolvable:$true] %s80
      %83 = dma.hbm_to_vmem [thread:$0]  %s10, 16, %s81, [#allocation18]
    $region29: #{ann_forward_pallas.1} parent=1 // pred_fallthru
      _
    // Predicated region
    $region30: #{ann_forward_pallas.1} parent=1 // pred_check
      _
    $region31: #{ann_forward_pallas.1} parent=1 // pred_check_branch
      %85 = sbr.rel (0) target = $region33
    $region32: #{ann_forward_pallas.1} parent=1 // pred_region
      %86 = dma.done [#allocation10], 2048
    $region33: #{ann_forward_pallas.1} parent=1 // pred_fallthru
      _
    // Predicated region
    $region34: #{ann_forward_pallas.1} parent=1 // pred_check
      _
    $region35: #{ann_forward_pallas.1} parent=1 // pred_check_branch
      %88 = sbr.rel (0) target = $region37
    $region36: #{ann_forward_pallas.1} parent=1 // pred_region
      %89 = dma.done [#allocation12], 256
    $region37: #{ann_forward_pallas.1} parent=1 // pred_fallthru
      _
    // Predicated region
    $region38: #{ann_forward_pallas.1} parent=1 // pred_check
      _
    $region39: #{ann_forward_pallas.1} parent=1 // pred_check_branch
      %91 = sbr.rel (0) target = $region41
    $region40: #{ann_forward_pallas.1} parent=1 // pred_region
      %92 = dma.done [#allocation12], 128
    $region41: #{ann_forward_pallas.1} parent=1 // pred_fallthru
      _
    // Predicated region
    $region42: #{ann_forward_pallas.1} parent=1 // pred_check
      _
    $region43: #{ann_forward_pallas.1} parent=1 // pred_check_branch
      %94 = sbr.rel (0) target = $region45
    $region44: #{ann_forward_pallas.1} parent=1 // pred_region
      %95 = dma.done [#allocation15], 64
    $region45: #{ann_forward_pallas.1} parent=1 // pred_fallthru
      _
    // Predicated region
    $region46: #{ann_forward_pallas.1} parent=1 // pred_check
      _
    $region47: #{ann_forward_pallas.1} parent=1 // pred_check_branch
      %97 = sbr.rel (0) target = $region49
    $region48: #{ann_forward_pallas.1} parent=1 // pred_region
      %98 = dma.done [#allocation15], 32
    $region49: #{ann_forward_pallas.1} parent=1 // pred_fallthru
      _
    // Predicated region
    $region50: #{ann_forward_pallas.1} parent=1 // pred_check
      _
    $region51: #{ann_forward_pallas.1} parent=1 // pred_check_branch
      %100 = sbr.rel (0) target = $region53
    $region52: #{ann_forward_pallas.1} parent=1 // pred_region
      %101 = dma.done [#allocation18], 16
    $region53: #{ann_forward_pallas.1} parent=1 // pred_fallthru
      _
    // Predicated region
    $region54: #{ann_forward_pallas.1} parent=1 // pred_check
      _
    $region55: #{ann_forward_pallas.1} parent=1 // pred_check_branch
      %104 = sbr.rel target = $region57
    $region56: #{ann_forward_pallas.1} parent=1 // pred_region
      %105 = sst [smem:[#allocation21]] [#allocation20]
      %106 = sst [smem:[#allocation22]] [#allocation19]
    $region57: #{ann_forward_pallas.1} parent=1 // pred_fallthru
      _
    %108 = shalt.err (0)
    %s110 = sshll.u32 [#allocation4], 4
    %s111 = int_to_ptr.vmem [resolvable:$true] %s110
    %113 = dma.hbm_to_vmem [thread:$0]  %s1, 12288, %s111, [#allocation8]
    %s114 = scalar_lea.hbm %s1, 12288
    %s115 = scalar_lea.vmem [#allocation4], 768
    %s116 = scalar_lea.sflag [#allocation8], 1
    // Predicated region
    $region58: #{ann_forward_pallas.1} parent=1 // pred_check
      _
    $region59: #{ann_forward_pallas.1} parent=1 // pred_check_branch
      %118 = sbr.rel target = $region61
    $region60: #{ann_forward_pallas.1} parent=1 // pred_region
      %119 = sst [smem:[#allocation21]] [#allocation24]
      %120 = sst [smem:[#allocation22]] [#allocation23]
    $region61: #{ann_forward_pallas.1} parent=1 // pred_fallthru
      _
    %122 = shalt.err (0)
    %s124 = sshll.u32 %s115, 4
    %s125 = int_to_ptr.vmem [resolvable:$true] %s124
    %127 = dma.hbm_to_vmem [thread:$0]  %s114, 12288, %s125, %s116
    %s128 = scalar_lea.hbm %s1, 24576
    %s129 = scalar_lea.vmem [#allocation4], 1536
    %s130 = scalar_lea.sflag [#allocation8], 2
    // Predicated region
    $region62: #{ann_forward_pallas.1} parent=1 // pred_check
      _
    $region63: #{ann_forward_pallas.1} parent=1 // pred_check_branch
      %132 = sbr.rel target = $region65
    $region64: #{ann_forward_pallas.1} parent=1 // pred_region
      %133 = sst [smem:[#allocation21]] [#allocation26]
      %134 = sst [smem:[#allocation22]] [#allocation25]
    $region65: #{ann_forward_pallas.1} parent=1 // pred_fallthru
      _
    %136 = shalt.err (0)
    %s138 = sshll.u32 %s129, 4
    %s139 = int_to_ptr.vmem [resolvable:$true] %s138
    %141 = dma.hbm_to_vmem [thread:$0]  %s128, 12288, %s139, %s130
    %s142 = scalar_lea.hbm %s1, 36864
    %s143 = scalar_lea.vmem [#allocation4], 2304
    %s144 = scalar_lea.sflag [#allocation8], 3
    // Predicated region
    $region66: #{ann_forward_pallas.1} parent=1 // pred_check
      _
    $region67: #{ann_forward_pallas.1} parent=1 // pred_check_branch
      %146 = sbr.rel target = $region69
    $region68: #{ann_forward_pallas.1} parent=1 // pred_region
      %147 = sst [smem:[#allocation21]] [#allocation28]
      %148 = sst [smem:[#allocation22]] [#allocation27]
    $region69: #{ann_forward_pallas.1} parent=1 // pred_fallthru
      _
    %150 = shalt.err (0)
    %s152 = sshll.u32 %s143, 4
    %s153 = int_to_ptr.vmem [resolvable:$true] %s152
    %155 = dma.hbm_to_vmem [thread:$0]  %s142, 12288, %s153, %s144
    %s156 = scalar_lea.sflag [#allocation8], 4
    // Predicated region
    $region70: #{ann_forward_pallas.1} parent=1 // pred_check
      _
    $region71: #{ann_forward_pallas.1} parent=1 // pred_check_branch
      %158 = sbr.rel target = $region73
    $region72: #{ann_forward_pallas.1} parent=1 // pred_region
      %159 = sst [smem:[#allocation21]] [#allocation30]
      %160 = sst [smem:[#allocation22]] [#allocation29]
    $region73: #{ann_forward_pallas.1} parent=1 // pred_fallthru
      _
    %162 = shalt.err (0)
    %s164 = sshll.u32 [#allocation5], 4
    %s165 = int_to_ptr.vmem [resolvable:$true] %s164
    %167 = dma.hbm_to_vmem [thread:$0]  %s2, 65536, %s165, %s156
    %s168 = scalar_lea.hbm %s2, 65536
    %s169 = scalar_lea.vmem [#allocation5], 4096
    %s170 = scalar_lea.sflag [#allocation8], 5
    // Predicated region
    $region74: #{ann_forward_pallas.1} parent=1 // pred_check
      _
    $region75: #{ann_forward_pallas.1} parent=1 // pred_check_branch
      %172 = sbr.rel target = $region77
    $region76: #{ann_forward_pallas.1} parent=1 // pred_region
      %173 = sst [smem:[#allocation21]] [#allocation32]
      %174 = sst [smem:[#allocation22]] [#allocation31]
    $region77: #{ann_forward_pallas.1} parent=1 // pred_fallthru
      _
    %176 = shalt.err (0)
    %s178 = sshll.u32 %s169, 4
    %s179 = int_to_ptr.vmem [resolvable:$true] %s178
    %181 = dma.hbm_to_vmem [thread:$0]  %s168, 65536, %s179, %s170
    %s182 = scalar_lea.sflag [#allocation8], 6
    // Predicated region
    $region78: #{ann_forward_pallas.1} parent=1 // pred_check
      _
    $region79: #{ann_forward_pallas.1} parent=1 // pred_check_branch
      %184 = sbr.rel target = $region81
    $region80: #{ann_forward_pallas.1} parent=1 // pred_region
      %185 = sst [smem:[#allocation21]] [#allocation34]
      %186 = sst [smem:[#allocation22]] [#allocation33]
    $region81: #{ann_forward_pallas.1} parent=1 // pred_fallthru
      _
    %188 = shalt.err (0)
    %s190 = sshll.u32 [#allocation6], 4
    %s191 = int_to_ptr.vmem [resolvable:$true] %s190
    %193 = dma.hbm_to_vmem [thread:$0]  %s3, 32768, %s191, %s182
    %s194 = scalar_lea.sflag [#allocation8], 7
    // Predicated region
    $region82: #{ann_forward_pallas.1} parent=1 // pred_check
      _
    $region83: #{ann_forward_pallas.1} parent=1 // pred_check_branch
      %196 = sbr.rel target = $region85
    $region84: #{ann_forward_pallas.1} parent=1 // pred_region
      %197 = sst [smem:[#allocation21]] [#allocation36]
      %198 = sst [smem:[#allocation22]] [#allocation35]
    $region85: #{ann_forward_pallas.1} parent=1 // pred_fallthru
      _
    %200 = shalt.err (0)
    %s202 = sshll.u32 [#allocation7], 4
    %s203 = int_to_ptr.vmem [resolvable:$true] %s202
    %205 = dma.hbm_to_vmem [thread:$0]  %s4, 8192, %s203, %s194
    %v206 = vld [vmem:[%s0] sm:$0xff]
    %v207 = vld [vmem:[%s0 + $0x8] sm:$0xf]
    %s208 = smul.u32 4, 48
    %s209 = smul.u32 %s208, 4
    %s210 = sshll.u32 %s209, 4
    %211 = dma.done [#allocation8], %s210
    %v212 = vld [vmem:[#allocation4] sm:$0xff]
    %v213 = vld [vmem:[#allocation4 + $0x10] sm:$0xff]
    %v214 = vld [vmem:[#allocation4 + $0x20] sm:$0xff]
    %v215 = vld [vmem:[#allocation4 + $0x30] sm:$0xff]
    %v216 = vld [vmem:[#allocation4 + $0x40] sm:$0xff]
    %v217 = vld [vmem:[#allocation4 + $0x50] sm:$0xff]
    %v218 = vld [vmem:[#allocation4 + $0x60] sm:$0xff]
    %v219 = vld [vmem:[#allocation4 + $0x70] sm:$0xff]
    %v220 = vld [vmem:[#allocation4 + $0x80] sm:$0xff]
    %v221 = vld [vmem:[#allocation4 + $0x90] sm:$0xff]
    %v222 = vld [vmem:[#allocation4 + $0xa0] sm:$0xff]
    %v223 = vld [vmem:[#allocation4 + $0xb0] sm:$0xff]
    %v224 = vld [vmem:[#allocation4 + $0xc0] sm:$0xff]
    %v225 = vld [vmem:[#allocation4 + $0xd0] sm:$0xff]
    %v226 = vld [vmem:[#allocation4 + $0xe0] sm:$0xff]
    %v227 = vld [vmem:[#allocation4 + $0xf0] sm:$0xff]
    %v228 = vld [vmem:[#allocation4 + $0x100] sm:$0xff]
    %v229 = vld [vmem:[#allocation4 + $0x110] sm:$0xff]
    %v230 = vld [vmem:[#allocation4 + $0x120] sm:$0xff]
    %v231 = vld [vmem:[#allocation4 + $0x130] sm:$0xff]
    %v232 = vld [vmem:[#allocation4 + $0x140] sm:$0xff]
    %v233 = vld [vmem:[#allocation4 + $0x150] sm:$0xff]
    %v234 = vld [vmem:[#allocation4 + $0x160] sm:$0xff]
    %v235 = vld [vmem:[#allocation4 + $0x170] sm:$0xff]
    %v236 = vld [vmem:[#allocation4 + $0x180] sm:$0xff]
    %v237 = vld [vmem:[#allocation4 + $0x190] sm:$0xff]
    %v238 = vld [vmem:[#allocation4 + $0x1a0] sm:$0xff]
    %v239 = vld [vmem:[#allocation4 + $0x1b0] sm:$0xff]
    %v240 = vld [vmem:[#allocation4 + $0x1c0] sm:$0xff]
    %v241 = vld [vmem:[#allocation4 + $0x1d0] sm:$0xff]
    %v242 = vld [vmem:[#allocation4 + $0x1e0] sm:$0xff]
    %v243 = vld [vmem:[#allocation4 + $0x1f0] sm:$0xff]
    %v244 = vld [vmem:[#allocation4 + $0x200] sm:$0xff]
    %v245 = vld [vmem:[#allocation4 + $0x210] sm:$0xff]
    %v246 = vld [vmem:[#allocation4 + $0x220] sm:$0xff]
    %v247 = vld [vmem:[#allocation4 + $0x230] sm:$0xff]
    %v248 = vld [vmem:[#allocation4 + $0x240] sm:$0xff]
    %v249 = vld [vmem:[#allocation4 + $0x250] sm:$0xff]
    %v250 = vld [vmem:[#allocation4 + $0x260] sm:$0xff]
    %v251 = vld [vmem:[#allocation4 + $0x270] sm:$0xff]
    %v252 = vld [vmem:[#allocation4 + $0x280] sm:$0xff]
    %v253 = vld [vmem:[#allocation4 + $0x290] sm:$0xff]
    %v254 = vld [vmem:[#allocation4 + $0x2a0] sm:$0xff]
    %v255 = vld [vmem:[#allocation4 + $0x2b0] sm:$0xff]
    %v256 = vld [vmem:[#allocation4 + $0x2c0] sm:$0xff]
    %v257 = vld [vmem:[#allocation4 + $0x2d0] sm:$0xff]
    %v258 = vld [vmem:[#allocation4 + $0x2e0] sm:$0xff]
    %v259 = vld [vmem:[#allocation4 + $0x2f0] sm:$0xff]
    %v260 = vld [vmem:[#allocation11] sm:$0x3]
    %v262 = vlaneseq
    %v263 = vshrl.u32 %v262, 7
    %v264 = vsub.s32 0, %v263
    %v265 = vrot.slane %v260, %v264
    %v266 = vlaneseq
    %v267 = vshrl.u32 %v266, 7
    %v268 = vsub.s32 1, %v267
    %v269 = vrot.slane %v260, %v268
    %v274 = vunpack.c.l.b16 %v206
    %v275 = vunpack.c.h.b16 %v206
    %v276 = vunpack.c.l.b16 %v207
    %v277 = vpack.c.b16 %v274, %v274
    %v278 = vpack.c.b16 %v275, %v275
    %v279 = vpack.c.b16 %v276, %v276
    %v331 = vunpack.c.l.b16 %v212
    %v332 = vunpack.c.h.b16 %v212
    %v333 = vunpack.c.l.b16 %v213
    %v334 = vunpack.c.h.b16 %v213
    %v335 = vunpack.c.l.b16 %v214
    %v336 = vunpack.c.h.b16 %v214
    %v337 = vunpack.c.l.b16 %v215
    %v338 = vunpack.c.h.b16 %v215
    %v339 = vunpack.c.l.b16 %v216
    %v340 = vunpack.c.h.b16 %v216
    %v341 = vunpack.c.l.b16 %v217
    %v342 = vunpack.c.h.b16 %v217
    %v343 = vunpack.c.l.b16 %v218
    %v344 = vunpack.c.h.b16 %v218
    %v345 = vunpack.c.l.b16 %v219
    %v346 = vunpack.c.h.b16 %v219
    %v347 = vunpack.c.l.b16 %v220
    %v348 = vunpack.c.h.b16 %v220
    %v349 = vunpack.c.l.b16 %v221
    %v350 = vunpack.c.h.b16 %v221
    %v351 = vunpack.c.l.b16 %v222
    %v352 = vunpack.c.h.b16 %v222
    %v353 = vunpack.c.l.b16 %v223
    %v354 = vunpack.c.h.b16 %v223
    %v355 = vunpack.c.l.b16 %v224
    %v356 = vunpack.c.h.b16 %v224
    %v357 = vunpack.c.l.b16 %v225
    %v358 = vunpack.c.h.b16 %v225
    %v359 = vunpack.c.l.b16 %v226
    %v360 = vunpack.c.h.b16 %v226
    %v361 = vunpack.c.l.b16 %v227
    %v362 = vunpack.c.h.b16 %v227
    %v363 = vunpack.c.l.b16 %v228
    %v364 = vunpack.c.h.b16 %v228
    %v365 = vunpack.c.l.b16 %v229
    %v366 = vunpack.c.h.b16 %v229
    %v367 = vunpack.c.l.b16 %v230
    %v368 = vunpack.c.h.b16 %v230
    %v369 = vunpack.c.l.b16 %v231
    %v370 = vunpack.c.h.b16 %v231
    %v371 = vunpack.c.l.b16 %v232
    %v372 = vunpack.c.h.b16 %v232
    %v373 = vunpack.c.l.b16 %v233
    %v374 = vunpack.c.h.b16 %v233
    %v375 = vunpack.c.l.b16 %v234
    %v376 = vunpack.c.h.b16 %v234
    %v377 = vunpack.c.l.b16 %v235
    %v378 = vunpack.c.h.b16 %v235
    %v379 = vunpack.c.l.b16 %v236
    %v380 = vunpack.c.h.b16 %v236
    %v381 = vunpack.c.l.b16 %v237
    %v382 = vunpack.c.h.b16 %v237
    %v383 = vunpack.c.l.b16 %v238
    %v384 = vunpack.c.h.b16 %v238
    %v385 = vunpack.c.l.b16 %v239
    %v386 = vunpack.c.h.b16 %v239
    %v387 = vunpack.c.l.b16 %v240
    %v388 = vunpack.c.h.b16 %v240
    %v389 = vunpack.c.l.b16 %v241
    %v390 = vunpack.c.h.b16 %v241
    %v391 = vunpack.c.l.b16 %v242
    %v392 = vunpack.c.h.b16 %v242
    %v393 = vunpack.c.l.b16 %v243
    %v394 = vunpack.c.h.b16 %v243
    %v395 = vunpack.c.l.b16 %v244
    %v396 = vunpack.c.h.b16 %v244
    %v397 = vunpack.c.l.b16 %v245
    %v398 = vunpack.c.h.b16 %v245
    %v399 = vunpack.c.l.b16 %v246
    %v400 = vunpack.c.h.b16 %v246
    %v401 = vunpack.c.l.b16 %v247
    %v402 = vunpack.c.h.b16 %v247
    %v403 = vunpack.c.l.b16 %v248
    %v404 = vunpack.c.h.b16 %v248
    %v405 = vunpack.c.l.b16 %v249
    %v406 = vunpack.c.h.b16 %v249
    %v407 = vunpack.c.l.b16 %v250
    %v408 = vunpack.c.h.b16 %v250
    %v409 = vunpack.c.l.b16 %v251
    %v410 = vunpack.c.h.b16 %v251
    %v411 = vunpack.c.l.b16 %v252
    %v412 = vunpack.c.h.b16 %v252
    %v413 = vunpack.c.l.b16 %v253
    %v414 = vunpack.c.h.b16 %v253
    %v415 = vunpack.c.l.b16 %v254
    %v416 = vunpack.c.h.b16 %v254
    %v417 = vunpack.c.l.b16 %v255
    %v418 = vunpack.c.h.b16 %v255
    %v419 = vunpack.c.l.b16 %v256
    %v420 = vunpack.c.h.b16 %v256
    %v421 = vunpack.c.l.b16 %v257
    %v422 = vunpack.c.h.b16 %v257
    %v423 = vunpack.c.l.b16 %v258
    %v424 = vunpack.c.h.b16 %v258
    %v425 = vunpack.c.l.b16 %v259
    %v426 = vunpack.c.h.b16 %v259
    %v427 = vpack.c.b16 %v333, %v331
    %v428 = vpack.c.b16 %v334, %v332
    %v429 = vpack.c.b16 %v337, %v335
    %v430 = vpack.c.b16 %v338, %v336
    %v431 = vpack.c.b16 %v341, %v339
    %v432 = vpack.c.b16 %v342, %v340
    %v433 = vpack.c.b16 %v345, %v343
    %v434 = vpack.c.b16 %v346, %v344
    %v435 = vpack.c.b16 %v349, %v347
    %v436 = vpack.c.b16 %v350, %v348
    %v437 = vpack.c.b16 %v353, %v351
    %v438 = vpack.c.b16 %v354, %v352
    %v439 = vpack.c.b16 %v357, %v355
    %v440 = vpack.c.b16 %v358, %v356
    %v441 = vpack.c.b16 %v361, %v359
    %v442 = vpack.c.b16 %v362, %v360
    %v443 = vpack.c.b16 %v365, %v363
    %v444 = vpack.c.b16 %v366, %v364
    %v445 = vpack.c.b16 %v369, %v367
    %v446 = vpack.c.b16 %v370, %v368
    %v447 = vpack.c.b16 %v373, %v371
    %v448 = vpack.c.b16 %v374, %v372
    %v449 = vpack.c.b16 %v377, %v375
    %v450 = vpack.c.b16 %v378, %v376
    %v451 = vpack.c.b16 %v381, %v379
    %v452 = vpack.c.b16 %v382, %v380
    %v453 = vpack.c.b16 %v385, %v383
    %v454 = vpack.c.b16 %v386, %v384
    %v455 = vpack.c.b16 %v389, %v387
    %v456 = vpack.c.b16 %v390, %v388
    %v457 = vpack.c.b16 %v393, %v391
    %v458 = vpack.c.b16 %v394, %v392
    %v459 = vpack.c.b16 %v397, %v395
    %v460 = vpack.c.b16 %v398, %v396
    %v461 = vpack.c.b16 %v401, %v399
    %v462 = vpack.c.b16 %v402, %v400
    %v463 = vpack.c.b16 %v405, %v403
    %v464 = vpack.c.b16 %v406, %v404
    %v465 = vpack.c.b16 %v409, %v407
    %v466 = vpack.c.b16 %v410, %v408
    %v467 = vpack.c.b16 %v413, %v411
    %v468 = vpack.c.b16 %v414, %v412
    %v469 = vpack.c.b16 %v417, %v415
    %v470 = vpack.c.b16 %v418, %v416
    %v471 = vpack.c.b16 %v421, %v419
    %v472 = vpack.c.b16 %v422, %v420
    %v473 = vpack.c.b16 %v425, %v423
    %v474 = vpack.c.b16 %v426, %v424
    %523 = vmatprep.subr.bf16.mxu0 %v442
    %524 = vmatpush1.bf16.msra.mxu0 %v441
    %525 = vmatprep.subr.bf16.mxu0 %v440
    %526 = vmatpush1.bf16.msra.mxu0 %v439
    %527 = vmatprep.subr.bf16.mxu0 %v438
    %528 = vmatpush1.bf16.msra.mxu0 %v437
    %529 = vmatprep.subr.bf16.mxu0 %v436
    %530 = vmatpush1.bf16.msra.mxu0 %v435
    %531 = vmatprep.subr.bf16.mxu0 %v434
    %532 = vmatpush1.bf16.msra.mxu0 %v433
    %533 = vmatprep.subr.bf16.mxu0 %v432
    %534 = vmatpush1.bf16.msra.mxu0 %v431
    %535 = vmatprep.subr.bf16.mxu0 %v430
    %536 = vmatpush1.bf16.msra.mxu0 %v429
    %537 = vmatprep.subr.bf16.mxu0 %v428
    %538 = vmatpush1.bf16.msra.mxu0 %v427
    %539 = vmatprep.subr.bf16.mxu0 %v458
    %540 = vmatpush2.bf16.msra.mxu0 %v457
    %541 = vmatprep.subr.bf16.mxu0 %v456
    %542 = vmatpush2.bf16.msra.mxu0 %v455
    %543 = vmatprep.subr.bf16.mxu0 %v454
    %544 = vmatpush2.bf16.msra.mxu0 %v453
    %545 = vmatprep.subr.bf16.mxu0 %v452
    %546 = vmatpush2.bf16.msra.mxu0 %v451
    %547 = vmatprep.subr.bf16.mxu0 %v450
    %548 = vmatpush2.bf16.msra.mxu0 %v449
    %549 = vmatprep.subr.bf16.mxu0 %v448
    %550 = vmatpush2.bf16.msra.mxu0 %v447
    %551 = vmatprep.subr.bf16.mxu0 %v446
    %552 = vmatpush2.bf16.msra.mxu0 %v445
    %553 = vmatprep.subr.bf16.mxu0 %v444
    %554 = vmatpush2.bf16.msra.mxu0 %v443
    %555 = vmatprep.mubr.bf16.mxu0 %v278
    %556 = vmatmul.mubr.bf16.gmra.mxu0 %v277
    %v557 = vpop.f32.mrf.mxu0
    %v558 = vadd.f32 %v265, %v557
    %v559 = vpop.f32.mrf.mxu0
    %v560 = vadd.f32 %v269, %v559
    %v561 = vpop.f32.mrf.mxu0
    %v562 = vpop.f32.mrf.mxu0
    %563 = vdwg.mxu0
    %564 = vmatprep.subr.bf16.mxu0 %v474
    %565 = vmatpush1.bf16.msra.mxu0 %v473
    %566 = vmatprep.subr.bf16.mxu0 %v472
    %567 = vmatpush1.bf16.msra.mxu0 %v471
    %568 = vmatprep.subr.bf16.mxu0 %v470
    %569 = vmatpush1.bf16.msra.mxu0 %v469
    %570 = vmatprep.subr.bf16.mxu0 %v468
    %571 = vmatpush1.bf16.msra.mxu0 %v467
    %572 = vmatprep.subr.bf16.mxu0 %v466
    %573 = vmatpush1.bf16.msra.mxu0 %v465
    %574 = vmatprep.subr.bf16.mxu0 %v464
    %575 = vmatpush1.bf16.msra.mxu0 %v463
    %576 = vmatprep.subr.bf16.mxu0 %v462
    %577 = vmatpush1.bf16.msra.mxu0 %v461
    %578 = vmatprep.subr.bf16.mxu0 %v460
    %579 = vmatpush1.bf16.msra.mxu0 %v459
    %580 = vmatprep.subr.bf16.mxu0 0
    %581 = vmatpush2.bf16.msra.mxu0 0
    %582 = vmatprep.subr.bf16.mxu0 0
    %583 = vmatpush2.bf16.msra.mxu0 0
    %584 = vmatprep.subr.bf16.mxu0 0
    %585 = vmatpush2.bf16.msra.mxu0 0
    %586 = vmatprep.subr.bf16.mxu0 0
    %587 = vmatpush2.bf16.msra.mxu0 0
    %588 = vmatprep.subr.bf16.mxu0 0
    %589 = vmatpush2.bf16.msra.mxu0 0
    %590 = vmatprep.subr.bf16.mxu0 0
    %591 = vmatpush2.bf16.msra.mxu0 0
    %592 = vmatprep.subr.bf16.mxu0 0
    %593 = vmatpush2.bf16.msra.mxu0 0
    %594 = vmatprep.subr.bf16.mxu0 0
    %595 = vmatpush2.bf16.msra.mxu0 0
    %596 = vmatprep.mubr.bf16.mxu0 0
    %597 = vmatmul.mubr.bf16.gmra.mxu0 %v279
    %v598 = vpop.f32.mrf.mxu0
    %v599 = vadd.f32 %v558, %v598
    %v600 = vpop.f32.mrf.mxu0
    %v601 = vadd.f32 %v560, %v600
    %v602 = vpop.f32.mrf.mxu0
    %v603 = vpop.f32.mrf.mxu0
    %604 = vdwg.mxu0
    %v605 = vmax.f32 %v599, 0.0
    %v606 = vmax.f32 %v601, 0.0
    %v607 = vpack.c.bf16 %v605, %v605
    %v608 = vpack.c.bf16 %v606, %v606
    %v611 = vunpack.c.l.b16 %v607
    %v612 = vunpack.c.l.b16 %v608
    %v613 = vpack.c.b16 %v612, %v611
    %615 = vst [vmem:[#allocation2] sm:$0xff] %v613
    %v616 = vld [vmem:[#allocation4 + $0x8] sm:$0xff]
    %v617 = vld [vmem:[#allocation4 + $0x18] sm:$0xff]
    %v618 = vld [vmem:[#allocation4 + $0x28] sm:$0xff]
    %v619 = vld [vmem:[#allocation4 + $0x38] sm:$0xff]
    %v620 = vld [vmem:[#allocation4 + $0x48] sm:$0xff]
    %v621 = vld [vmem:[#allocation4 + $0x58] sm:$0xff]
    %v622 = vld [vmem:[#allocation4 + $0x68] sm:$0xff]
    %v623 = vld [vmem:[#allocation4 + $0x78] sm:$0xff]
    %v624 = vld [vmem:[#allocation4 + $0x88] sm:$0xff]
    %v625 = vld [vmem:[#allocation4 + $0x98] sm:$0xff]
    %v626 = vld [vmem:[#allocation4 + $0xa8] sm:$0xff]
    %v627 = vld [vmem:[#allocation4 + $0xb8] sm:$0xff]
    %v628 = vld [vmem:[#allocation4 + $0xc8] sm:$0xff]
    %v629 = vld [vmem:[#allocation4 + $0xd8] sm:$0xff]
    %v630 = vld [vmem:[#allocation4 + $0xe8] sm:$0xff]
    %v631 = vld [vmem:[#allocation4 + $0xf8] sm:$0xff]
    %v632 = vld [vmem:[#allocation4 + $0x108] sm:$0xff]
    %v633 = vld [vmem:[#allocation4 + $0x118] sm:$0xff]
    %v634 = vld [vmem:[#allocation4 + $0x128] sm:$0xff]
    %v635 = vld [vmem:[#allocation4 + $0x138] sm:$0xff]
    %v636 = vld [vmem:[#allocation4 + $0x148] sm:$0xff]
    %v637 = vld [vmem:[#allocation4 + $0x158] sm:$0xff]
    %v638 = vld [vmem:[#allocation4 + $0x168] sm:$0xff]
    %v639 = vld [vmem:[#allocation4 + $0x178] sm:$0xff]
    %v640 = vld [vmem:[#allocation4 + $0x188] sm:$0xff]
    %v641 = vld [vmem:[#allocation4 + $0x198] sm:$0xff]
    %v642 = vld [vmem:[#allocation4 + $0x1a8] sm:$0xff]
    %v643 = vld [vmem:[#allocation4 + $0x1b8] sm:$0xff]
    %v644 = vld [vmem:[#allocation4 + $0x1c8] sm:$0xff]
    %v645 = vld [vmem:[#allocation4 + $0x1d8] sm:$0xff]
    %v646 = vld [vmem:[#allocation4 + $0x1e8] sm:$0xff]
    %v647 = vld [vmem:[#allocation4 + $0x1f8] sm:$0xff]
    %v648 = vld [vmem:[#allocation4 + $0x208] sm:$0xff]
    %v649 = vld [vmem:[#allocation4 + $0x218] sm:$0xff]
    %v650 = vld [vmem:[#allocation4 + $0x228] sm:$0xff]
    %v651 = vld [vmem:[#allocation4 + $0x238] sm:$0xff]
    %v652 = vld [vmem:[#allocation4 + $0x248] sm:$0xff]
    %v653 = vld [vmem:[#allocation4 + $0x258] sm:$0xff]
    %v654 = vld [vmem:[#allocation4 + $0x268] sm:$0xff]
    %v655 = vld [vmem:[#allocation4 + $0x278] sm:$0xff]
    %v656 = vld [vmem:[#allocation4 + $0x288] sm:$0xff]
    %v657 = vld [vmem:[#allocation4 + $0x298] sm:$0xff]
    %v658 = vld [vmem:[#allocation4 + $0x2a8] sm:$0xff]
    %v659 = vld [vmem:[#allocation4 + $0x2b8] sm:$0xff]
    %v660 = vld [vmem:[#allocation4 + $0x2c8] sm:$0xff]
    %v661 = vld [vmem:[#allocation4 + $0x2d8] sm:$0xff]
    %v662 = vld [vmem:[#allocation4 + $0x2e8] sm:$0xff]
    %v663 = vld [vmem:[#allocation4 + $0x2f8] sm:$0xff]
    %v664 = vld [vmem:[#allocation11 + $0x2] sm:$0x3]
    %v666 = vlaneseq
    %v667 = vshrl.u32 %v666, 7
    %v668 = vsub.s32 0, %v667
    %v669 = vrot.slane %v664, %v668
    %v670 = vlaneseq
    %v671 = vshrl.u32 %v670, 7
    %v672 = vsub.s32 1, %v671
    %v673 = vrot.slane %v664, %v672
    %v724 = vunpack.c.l.b16 %v616
    %v725 = vunpack.c.h.b16 %v616
    %v726 = vunpack.c.l.b16 %v617
    %v727 = vunpack.c.h.b16 %v617
    %v728 = vunpack.c.l.b16 %v618
    %v729 = vunpack.c.h.b16 %v618
    %v730 = vunpack.c.l.b16 %v619
    %v731 = vunpack.c.h.b16 %v619
    %v732 = vunpack.c.l.b16 %v620
    %v733 = vunpack.c.h.b16 %v620
    %v734 = vunpack.c.l.b16 %v621
    %v735 = vunpack.c.h.b16 %v621
    %v736 = vunpack.c.l.b16 %v622
    %v737 = vunpack.c.h.b16 %v622
    %v738 = vunpack.c.l.b16 %v623
    %v739 = vunpack.c.h.b16 %v623
    %v740 = vunpack.c.l.b16 %v624
    %v741 = vunpack.c.h.b16 %v624
    %v742 = vunpack.c.l.b16 %v625
    %v743 = vunpack.c.h.b16 %v625
    %v744 = vunpack.c.l.b16 %v626
    %v745 = vunpack.c.h.b16 %v626
    %v746 = vunpack.c.l.b16 %v627
    %v747 = vunpack.c.h.b16 %v627
    %v748 = vunpack.c.l.b16 %v628
    %v749 = vunpack.c.h.b16 %v628
    %v750 = vunpack.c.l.b16 %v629
    %v751 = vunpack.c.h.b16 %v629
    %v752 = vunpack.c.l.b16 %v630
    %v753 = vunpack.c.h.b16 %v630
    %v754 = vunpack.c.l.b16 %v631
    %v755 = vunpack.c.h.b16 %v631
    %v756 = vunpack.c.l.b16 %v632
    %v757 = vunpack.c.h.b16 %v632
    %v758 = vunpack.c.l.b16 %v633
    %v759 = vunpack.c.h.b16 %v633
    %v760 = vunpack.c.l.b16 %v634
    %v761 = vunpack.c.h.b16 %v634
    %v762 = vunpack.c.l.b16 %v635
    %v763 = vunpack.c.h.b16 %v635
    %v764 = vunpack.c.l.b16 %v636
    %v765 = vunpack.c.h.b16 %v636
    %v766 = vunpack.c.l.b16 %v637
    %v767 = vunpack.c.h.b16 %v637
    %v768 = vunpack.c.l.b16 %v638
    %v769 = vunpack.c.h.b16 %v638
    %v770 = vunpack.c.l.b16 %v639
    %v771 = vunpack.c.h.b16 %v639
    %v772 = vunpack.c.l.b16 %v640
    %v773 = vunpack.c.h.b16 %v640
    %v774 = vunpack.c.l.b16 %v641
    %v775 = vunpack.c.h.b16 %v641
    %v776 = vunpack.c.l.b16 %v642
    %v777 = vunpack.c.h.b16 %v642
    %v778 = vunpack.c.l.b16 %v643
    %v779 = vunpack.c.h.b16 %v643
    %v780 = vunpack.c.l.b16 %v644
    %v781 = vunpack.c.h.b16 %v644
    %v782 = vunpack.c.l.b16 %v645
    %v783 = vunpack.c.h.b16 %v645
    %v784 = vunpack.c.l.b16 %v646
    %v785 = vunpack.c.h.b16 %v646
    %v786 = vunpack.c.l.b16 %v647
    %v787 = vunpack.c.h.b16 %v647
    %v788 = vunpack.c.l.b16 %v648
    %v789 = vunpack.c.h.b16 %v648
    %v790 = vunpack.c.l.b16 %v649
    %v791 = vunpack.c.h.b16 %v649
    %v792 = vunpack.c.l.b16 %v650
    %v793 = vunpack.c.h.b16 %v650
    %v794 = vunpack.c.l.b16 %v651
    %v795 = vunpack.c.h.b16 %v651
    %v796 = vunpack.c.l.b16 %v652
    %v797 = vunpack.c.h.b16 %v652
    %v798 = vunpack.c.l.b16 %v653
    %v799 = vunpack.c.h.b16 %v653
    %v800 = vunpack.c.l.b16 %v654
    %v801 = vunpack.c.h.b16 %v654
    %v802 = vunpack.c.l.b16 %v655
    %v803 = vunpack.c.h.b16 %v655
    %v804 = vunpack.c.l.b16 %v656
    %v805 = vunpack.c.h.b16 %v656
    %v806 = vunpack.c.l.b16 %v657
    %v807 = vunpack.c.h.b16 %v657
    %v808 = vunpack.c.l.b16 %v658
    %v809 = vunpack.c.h.b16 %v658
    %v810 = vunpack.c.l.b16 %v659
    %v811 = vunpack.c.h.b16 %v659
    %v812 = vunpack.c.l.b16 %v660
    %v813 = vunpack.c.h.b16 %v660
    %v814 = vunpack.c.l.b16 %v661
    %v815 = vunpack.c.h.b16 %v661
    %v816 = vunpack.c.l.b16 %v662
    %v817 = vunpack.c.h.b16 %v662
    %v818 = vunpack.c.l.b16 %v663
    %v819 = vunpack.c.h.b16 %v663
    %v820 = vpack.c.b16 %v726, %v724
    %v821 = vpack.c.b16 %v727, %v725
    %v822 = vpack.c.b16 %v730, %v728
    %v823 = vpack.c.b16 %v731, %v729
    %v824 = vpack.c.b16 %v734, %v732
    %v825 = vpack.c.b16 %v735, %v733
    %v826 = vpack.c.b16 %v738, %v736
    %v827 = vpack.c.b16 %v739, %v737
    %v828 = vpack.c.b16 %v742, %v740
    %v829 = vpack.c.b16 %v743, %v741
    %v830 = vpack.c.b16 %v746, %v744
    %v831 = vpack.c.b16 %v747, %v745
    %v832 = vpack.c.b16 %v750, %v748
    %v833 = vpack.c.b16 %v751, %v749
    %v834 = vpack.c.b16 %v754, %v752
    %v835 = vpack.c.b16 %v755, %v753
    %v836 = vpack.c.b16 %v758, %v756
    %v837 = vpack.c.b16 %v759, %v757
    %v838 = vpack.c.b16 %v762, %v760
    %v839 = vpack.c.b16 %v763, %v761
    %v840 = vpack.c.b16 %v766, %v764
    %v841 = vpack.c.b16 %v767, %v765
    %v842 = vpack.c.b16 %v770, %v768
    %v843 = vpack.c.b16 %v771, %v769
    %v844 = vpack.c.b16 %v774, %v772
    %v845 = vpack.c.b16 %v775, %v773
    %v846 = vpack.c.b16 %v778, %v776
    %v847 = vpack.c.b16 %v779, %v777
    %v848 = vpack.c.b16 %v782, %v780
    %v849 = vpack.c.b16 %v783, %v781
    %v850 = vpack.c.b16 %v786, %v784
    %v851 = vpack.c.b16 %v787, %v785
    %v852 = vpack.c.b16 %v790, %v788
    %v853 = vpack.c.b16 %v791, %v789
    %v854 = vpack.c.b16 %v794, %v792
    %v855 = vpack.c.b16 %v795, %v793
    %v856 = vpack.c.b16 %v798, %v796
    %v857 = vpack.c.b16 %v799, %v797
    %v858 = vpack.c.b16 %v802, %v800
    %v859 = vpack.c.b16 %v803, %v801
    %v860 = vpack.c.b16 %v806, %v804
    %v861 = vpack.c.b16 %v807, %v805
    %v862 = vpack.c.b16 %v810, %v808
    %v863 = vpack.c.b16 %v811, %v809
    %v864 = vpack.c.b16 %v814, %v812
    %v865 = vpack.c.b16 %v815, %v813
    %v866 = vpack.c.b16 %v818, %v816
    %v867 = vpack.c.b16 %v819, %v817
    %916 = vmatprep.subr.bf16.mxu0 %v835
    %917 = vmatpush1.bf16.msra.mxu0 %v834
    %918 = vmatprep.subr.bf16.mxu0 %v833
    %919 = vmatpush1.bf16.msra.mxu0 %v832
    %920 = vmatprep.subr.bf16.mxu0 %v831
    %921 = vmatpush1.bf16.msra.mxu0 %v830
    %922 = vmatprep.subr.bf16.mxu0 %v829
    %923 = vmatpush1.bf16.msra.mxu0 %v828
    %924 = vmatprep.subr.bf16.mxu0 %v827
    %925 = vmatpush1.bf16.msra.mxu0 %v826
    %926 = vmatprep.subr.bf16.mxu0 %v825
    %927 = vmatpush1.bf16.msra.mxu0 %v824
    %928 = vmatprep.subr.bf16.mxu0 %v823
    %929 = vmatpush1.bf16.msra.mxu0 %v822
    %930 = vmatprep.subr.bf16.mxu0 %v821
    %931 = vmatpush1.bf16.msra.mxu0 %v820
    %932 = vmatprep.subr.bf16.mxu0 %v851
    %933 = vmatpush2.bf16.msra.mxu0 %v850
    %934 = vmatprep.subr.bf16.mxu0 %v849
    %935 = vmatpush2.bf16.msra.mxu0 %v848
    %936 = vmatprep.subr.bf16.mxu0 %v847
    %937 = vmatpush2.bf16.msra.mxu0 %v846
    %938 = vmatprep.subr.bf16.mxu0 %v845
    %939 = vmatpush2.bf16.msra.mxu0 %v844
    %940 = vmatprep.subr.bf16.mxu0 %v843
    %941 = vmatpush2.bf16.msra.mxu0 %v842
    %942 = vmatprep.subr.bf16.mxu0 %v841
    %943 = vmatpush2.bf16.msra.mxu0 %v840
    %944 = vmatprep.subr.bf16.mxu0 %v839
    %945 = vmatpush2.bf16.msra.mxu0 %v838
    %946 = vmatprep.subr.bf16.mxu0 %v837
    %947 = vmatpush2.bf16.msra.mxu0 %v836
    %948 = vmatprep.mubr.bf16.mxu0 %v278
    %949 = vmatmul.mubr.bf16.gmra.mxu0 %v277
    %v950 = vpop.f32.mrf.mxu0
    %v951 = vadd.f32 %v669, %v950
    %v952 = vpop.f32.mrf.mxu0
    %v953 = vadd.f32 %v673, %v952
    %v954 = vpop.f32.mrf.mxu0
    %v955 = vpop.f32.mrf.mxu0
    %956 = vdwg.mxu0
    %957 = vmatprep.subr.bf16.mxu0 %v867
    %958 = vmatpush1.bf16.msra.mxu0 %v866
    %959 = vmatprep.subr.bf16.mxu0 %v865
    %960 = vmatpush1.bf16.msra.mxu0 %v864
    %961 = vmatprep.subr.bf16.mxu0 %v863
    %962 = vmatpush1.bf16.msra.mxu0 %v862
    %963 = vmatprep.subr.bf16.mxu0 %v861
    %964 = vmatpush1.bf16.msra.mxu0 %v860
    %965 = vmatprep.subr.bf16.mxu0 %v859
    %966 = vmatpush1.bf16.msra.mxu0 %v858
    %967 = vmatprep.subr.bf16.mxu0 %v857
    %968 = vmatpush1.bf16.msra.mxu0 %v856
    %969 = vmatprep.subr.bf16.mxu0 %v855
    %970 = vmatpush1.bf16.msra.mxu0 %v854
    %971 = vmatprep.subr.bf16.mxu0 %v853
    %972 = vmatpush1.bf16.msra.mxu0 %v852
    %973 = vmatprep.subr.bf16.mxu0 0
    %974 = vmatpush2.bf16.msra.mxu0 0
    %975 = vmatprep.subr.bf16.mxu0 0
    %976 = vmatpush2.bf16.msra.mxu0 0
    %977 = vmatprep.subr.bf16.mxu0 0
    %978 = vmatpush2.bf16.msra.mxu0 0
    %979 = vmatprep.subr.bf16.mxu0 0
    %980 = vmatpush2.bf16.msra.mxu0 0
    %981 = vmatprep.subr.bf16.mxu0 0
    %982 = vmatpush2.bf16.msra.mxu0 0
    %983 = vmatprep.subr.bf16.mxu0 0
    %984 = vmatpush2.bf16.msra.mxu0 0
    %985 = vmatprep.subr.bf16.mxu0 0
    %986 = vmatpush2.bf16.msra.mxu0 0
    %987 = vmatprep.subr.bf16.mxu0 0
    %988 = vmatpush2.bf16.msra.mxu0 0
    %989 = vmatprep.mubr.bf16.mxu0 0
    %990 = vmatmul.mubr.bf16.gmra.mxu0 %v279
    %v991 = vpop.f32.mrf.mxu0
    %v992 = vadd.f32 %v951, %v991
    %v993 = vpop.f32.mrf.mxu0
    %v994 = vadd.f32 %v953, %v993
    %v995 = vpop.f32.mrf.mxu0
    %v996 = vpop.f32.mrf.mxu0
    %997 = vdwg.mxu0
    %v998 = vmax.f32 %v992, 0.0
    %v999 = vmax.f32 %v994, 0.0
    %v1000 = vpack.c.bf16 %v998, %v998
    %v1001 = vpack.c.bf16 %v999, %v999
    %v1004 = vunpack.c.l.b16 %v1000
    %v1005 = vunpack.c.l.b16 %v1001
    %v1006 = vpack.c.b16 %v1005, %v1004
    %1008 = vst [vmem:[#allocation2 + $0x8] sm:$0xff] %v1006
    %s1009 = sshll.u32 %s209, 4
    %1010 = dma.done %s116, %s1009
    %v1011 = vld [vmem:[%s115] sm:$0xff]
    %v1012 = vld [vmem:[%s115 + $0x10] sm:$0xff]
    %v1013 = vld [vmem:[%s115 + $0x20] sm:$0xff]
    %v1014 = vld [vmem:[%s115 + $0x30] sm:$0xff]
    %v1015 = vld [vmem:[%s115 + $0x40] sm:$0xff]
    %v1016 = vld [vmem:[%s115 + $0x50] sm:$0xff]
    %v1017 = vld [vmem:[%s115 + $0x60] sm:$0xff]
    %v1018 = vld [vmem:[%s115 + $0x70] sm:$0xff]
    %v1019 = vld [vmem:[%s115 + $0x80] sm:$0xff]
    %v1020 = vld [vmem:[%s115 + $0x90] sm:$0xff]
    %v1021 = vld [vmem:[%s115 + $0xa0] sm:$0xff]
    %v1022 = vld [vmem:[%s115 + $0xb0] sm:$0xff]
    %v1023 = vld [vmem:[%s115 + $0xc0] sm:$0xff]
    %v1024 = vld [vmem:[%s115 + $0xd0] sm:$0xff]
    %v1025 = vld [vmem:[%s115 + $0xe0] sm:$0xff]
    %v1026 = vld [vmem:[%s115 + $0xf0] sm:$0xff]
    %v1027 = vld [vmem:[%s115 + $0x100] sm:$0xff]
    %v1028 = vld [vmem:[%s115 + $0x110] sm:$0xff]
    %v1029 = vld [vmem:[%s115 + $0x120] sm:$0xff]
    %v1030 = vld [vmem:[%s115 + $0x130] sm:$0xff]
    %v1031 = vld [vmem:[%s115 + $0x140] sm:$0xff]
    %v1032 = vld [vmem:[%s115 + $0x150] sm:$0xff]
    %v1033 = vld [vmem:[%s115 + $0x160] sm:$0xff]
    %v1034 = vld [vmem:[%s115 + $0x170] sm:$0xff]
    %v1035 = vld [vmem:[%s115 + $0x180] sm:$0xff]
    %v1036 = vld [vmem:[%s115 + $0x190] sm:$0xff]
    %v1037 = vld [vmem:[%s115 + $0x1a0] sm:$0xff]
    %v1038 = vld [vmem:[%s115 + $0x1b0] sm:$0xff]
    %v1039 = vld [vmem:[%s115 + $0x1c0] sm:$0xff]
    %v1040 = vld [vmem:[%s115 + $0x1d0] sm:$0xff]
    %v1041 = vld [vmem:[%s115 + $0x1e0] sm:$0xff]
    %v1042 = vld [vmem:[%s115 + $0x1f0] sm:$0xff]
    %v1043 = vld [vmem:[%s115 + $0x200] sm:$0xff]
    %v1044 = vld [vmem:[%s115 + $0x210] sm:$0xff]
    %v1045 = vld [vmem:[%s115 + $0x220] sm:$0xff]
    %v1046 = vld [vmem:[%s115 + $0x230] sm:$0xff]
    %v1047 = vld [vmem:[%s115 + $0x240] sm:$0xff]
    %v1048 = vld [vmem:[%s115 + $0x250] sm:$0xff]
    %v1049 = vld [vmem:[%s115 + $0x260] sm:$0xff]
    %v1050 = vld [vmem:[%s115 + $0x270] sm:$0xff]
    %v1051 = vld [vmem:[%s115 + $0x280] sm:$0xff]
    %v1052 = vld [vmem:[%s115 + $0x290] sm:$0xff]
    %v1053 = vld [vmem:[%s115 + $0x2a0] sm:$0xff]
    %v1054 = vld [vmem:[%s115 + $0x2b0] sm:$0xff]
    %v1055 = vld [vmem:[%s115 + $0x2c0] sm:$0xff]
    %v1056 = vld [vmem:[%s115 + $0x2d0] sm:$0xff]
    %v1057 = vld [vmem:[%s115 + $0x2e0] sm:$0xff]
    %v1058 = vld [vmem:[%s115 + $0x2f0] sm:$0xff]
    %v1059 = vld [vmem:[#allocation11 + $0x4] sm:$0x3]
    %v1061 = vlaneseq
    %v1062 = vshrl.u32 %v1061, 7
    %v1063 = vsub.s32 0, %v1062
    %v1064 = vrot.slane %v1059, %v1063
    %v1065 = vlaneseq
    %v1066 = vshrl.u32 %v1065, 7
    %v1067 = vsub.s32 1, %v1066
    %v1068 = vrot.slane %v1059, %v1067
    %v1119 = vunpack.c.l.b16 %v1011
    %v1120 = vunpack.c.h.b16 %v1011
    %v1121 = vunpack.c.l.b16 %v1012
    %v1122 = vunpack.c.h.b16 %v1012
    %v1123 = vunpack.c.l.b16 %v1013
    %v1124 = vunpack.c.h.b16 %v1013
    %v1125 = vunpack.c.l.b16 %v1014
    %v1126 = vunpack.c.h.b16 %v1014
    %v1127 = vunpack.c.l.b16 %v1015
    %v1128 = vunpack.c.h.b16 %v1015
    %v1129 = vunpack.c.l.b16 %v1016
    %v1130 = vunpack.c.h.b16 %v1016
    %v1131 = vunpack.c.l.b16 %v1017
    %v1132 = vunpack.c.h.b16 %v1017
    %v1133 = vunpack.c.l.b16 %v1018
    %v1134 = vunpack.c.h.b16 %v1018
    %v1135 = vunpack.c.l.b16 %v1019
    %v1136 = vunpack.c.h.b16 %v1019
    %v1137 = vunpack.c.l.b16 %v1020
    %v1138 = vunpack.c.h.b16 %v1020
    %v1139 = vunpack.c.l.b16 %v1021
    %v1140 = vunpack.c.h.b16 %v1021
    %v1141 = vunpack.c.l.b16 %v1022
    %v1142 = vunpack.c.h.b16 %v1022
    %v1143 = vunpack.c.l.b16 %v1023
    %v1144 = vunpack.c.h.b16 %v1023
    %v1145 = vunpack.c.l.b16 %v1024
    %v1146 = vunpack.c.h.b16 %v1024
    %v1147 = vunpack.c.l.b16 %v1025
    %v1148 = vunpack.c.h.b16 %v1025
    %v1149 = vunpack.c.l.b16 %v1026
    %v1150 = vunpack.c.h.b16 %v1026
    %v1151 = vunpack.c.l.b16 %v1027
    %v1152 = vunpack.c.h.b16 %v1027
    %v1153 = vunpack.c.l.b16 %v1028
    %v1154 = vunpack.c.h.b16 %v1028
    %v1155 = vunpack.c.l.b16 %v1029
    %v1156 = vunpack.c.h.b16 %v1029
    %v1157 = vunpack.c.l.b16 %v1030
    %v1158 = vunpack.c.h.b16 %v1030
    %v1159 = vunpack.c.l.b16 %v1031
    %v1160 = vunpack.c.h.b16 %v1031
    %v1161 = vunpack.c.l.b16 %v1032
    %v1162 = vunpack.c.h.b16 %v1032
    %v1163 = vunpack.c.l.b16 %v1033
    %v1164 = vunpack.c.h.b16 %v1033
    %v1165 = vunpack.c.l.b16 %v1034
    %v1166 = vunpack.c.h.b16 %v1034
    %v1167 = vunpack.c.l.b16 %v1035
    %v1168 = vunpack.c.h.b16 %v1035
    %v1169 = vunpack.c.l.b16 %v1036
    %v1170 = vunpack.c.h.b16 %v1036
    %v1171 = vunpack.c.l.b16 %v1037
    %v1172 = vunpack.c.h.b16 %v1037
    %v1173 = vunpack.c.l.b16 %v1038
    %v1174 = vunpack.c.h.b16 %v1038
    %v1175 = vunpack.c.l.b16 %v1039
    %v1176 = vunpack.c.h.b16 %v1039
    %v1177 = vunpack.c.l.b16 %v1040
    %v1178 = vunpack.c.h.b16 %v1040
    %v1179 = vunpack.c.l.b16 %v1041
    %v1180 = vunpack.c.h.b16 %v1041
    %v1181 = vunpack.c.l.b16 %v1042
    %v1182 = vunpack.c.h.b16 %v1042
    %v1183 = vunpack.c.l.b16 %v1043
    %v1184 = vunpack.c.h.b16 %v1043
    %v1185 = vunpack.c.l.b16 %v1044
    %v1186 = vunpack.c.h.b16 %v1044
    %v1187 = vunpack.c.l.b16 %v1045
    %v1188 = vunpack.c.h.b16 %v1045
    %v1189 = vunpack.c.l.b16 %v1046
    %v1190 = vunpack.c.h.b16 %v1046
    %v1191 = vunpack.c.l.b16 %v1047
    %v1192 = vunpack.c.h.b16 %v1047
    %v1193 = vunpack.c.l.b16 %v1048
    %v1194 = vunpack.c.h.b16 %v1048
    %v1195 = vunpack.c.l.b16 %v1049
    %v1196 = vunpack.c.h.b16 %v1049
    %v1197 = vunpack.c.l.b16 %v1050
    %v1198 = vunpack.c.h.b16 %v1050
    %v1199 = vunpack.c.l.b16 %v1051
    %v1200 = vunpack.c.h.b16 %v1051
    %v1201 = vunpack.c.l.b16 %v1052
    %v1202 = vunpack.c.h.b16 %v1052
    %v1203 = vunpack.c.l.b16 %v1053
    %v1204 = vunpack.c.h.b16 %v1053
    %v1205 = vunpack.c.l.b16 %v1054
    %v1206 = vunpack.c.h.b16 %v1054
    %v1207 = vunpack.c.l.b16 %v1055
    %v1208 = vunpack.c.h.b16 %v1055
    %v1209 = vunpack.c.l.b16 %v1056
    %v1210 = vunpack.c.h.b16 %v1056
    %v1211 = vunpack.c.l.b16 %v1057
    %v1212 = vunpack.c.h.b16 %v1057
    %v1213 = vunpack.c.l.b16 %v1058
    %v1214 = vunpack.c.h.b16 %v1058
    %v1215 = vpack.c.b16 %v1121, %v1119
    %v1216 = vpack.c.b16 %v1122, %v1120
    %v1217 = vpack.c.b16 %v1125, %v1123
    %v1218 = vpack.c.b16 %v1126, %v1124
    %v1219 = vpack.c.b16 %v1129, %v1127
    %v1220 = vpack.c.b16 %v1130, %v1128
    %v1221 = vpack.c.b16 %v1133, %v1131
    %v1222 = vpack.c.b16 %v1134, %v1132
    %v1223 = vpack.c.b16 %v1137, %v1135
    %v1224 = vpack.c.b16 %v1138, %v1136
    %v1225 = vpack.c.b16 %v1141, %v1139
    %v1226 = vpack.c.b16 %v1142, %v1140
    %v1227 = vpack.c.b16 %v1145, %v1143
    %v1228 = vpack.c.b16 %v1146, %v1144
    %v1229 = vpack.c.b16 %v1149, %v1147
    %v1230 = vpack.c.b16 %v1150, %v1148
    %v1231 = vpack.c.b16 %v1153, %v1151
    %v1232 = vpack.c.b16 %v1154, %v1152
    %v1233 = vpack.c.b16 %v1157, %v1155
    %v1234 = vpack.c.b16 %v1158, %v1156
    %v1235 = vpack.c.b16 %v1161, %v1159
    %v1236 = vpack.c.b16 %v1162, %v1160
    %v1237 = vpack.c.b16 %v1165, %v1163
    %v1238 = vpack.c.b16 %v1166, %v1164
    %v1239 = vpack.c.b16 %v1169, %v1167
    %v1240 = vpack.c.b16 %v1170, %v1168
    %v1241 = vpack.c.b16 %v1173, %v1171
    %v1242 = vpack.c.b16 %v1174, %v1172
    %v1243 = vpack.c.b16 %v1177, %v1175
    %v1244 = vpack.c.b16 %v1178, %v1176
    %v1245 = vpack.c.b16 %v1181, %v1179
    %v1246 = vpack.c.b16 %v1182, %v1180
    %v1247 = vpack.c.b16 %v1185, %v1183
    %v1248 = vpack.c.b16 %v1186, %v1184
    %v1249 = vpack.c.b16 %v1189, %v1187
    %v1250 = vpack.c.b16 %v1190, %v1188
    %v1251 = vpack.c.b16 %v1193, %v1191
    %v1252 = vpack.c.b16 %v1194, %v1192
    %v1253 = vpack.c.b16 %v1197, %v1195
    %v1254 = vpack.c.b16 %v1198, %v1196
    %v1255 = vpack.c.b16 %v1201, %v1199
    %v1256 = vpack.c.b16 %v1202, %v1200
    %v1257 = vpack.c.b16 %v1205, %v1203
    %v1258 = vpack.c.b16 %v1206, %v1204
    %v1259 = vpack.c.b16 %v1209, %v1207
    %v1260 = vpack.c.b16 %v1210, %v1208
    %v1261 = vpack.c.b16 %v1213, %v1211
    %v1262 = vpack.c.b16 %v1214, %v1212
    %1311 = vmatprep.subr.bf16.mxu0 %v1230
    %1312 = vmatpush1.bf16.msra.mxu0 %v1229
    %1313 = vmatprep.subr.bf16.mxu0 %v1228
    %1314 = vmatpush1.bf16.msra.mxu0 %v1227
    %1315 = vmatprep.subr.bf16.mxu0 %v1226
    %1316 = vmatpush1.bf16.msra.mxu0 %v1225
    %1317 = vmatprep.subr.bf16.mxu0 %v1224
    %1318 = vmatpush1.bf16.msra.mxu0 %v1223
    %1319 = vmatprep.subr.bf16.mxu0 %v1222
    %1320 = vmatpush1.bf16.msra.mxu0 %v1221
    %1321 = vmatprep.subr.bf16.mxu0 %v1220
    %1322 = vmatpush1.bf16.msra.mxu0 %v1219
    %1323 = vmatprep.subr.bf16.mxu0 %v1218
    %1324 = vmatpush1.bf16.msra.mxu0 %v1217
    %1325 = vmatprep.subr.bf16.mxu0 %v1216
    %1326 = vmatpush1.bf16.msra.mxu0 %v1215
    %1327 = vmatprep.subr.bf16.mxu0 %v1246
    %1328 = vmatpush2.bf16.msra.mxu0 %v1245
    %1329 = vmatprep.subr.bf16.mxu0 %v1244
    %1330 = vmatpush2.bf16.msra.mxu0 %v1243
    %1331 = vmatprep.subr.bf16.mxu0 %v1242
    %1332 = vmatpush2.bf16.msra.mxu0 %v1241
    %1333 = vmatprep.subr.bf16.mxu0 %v1240
    %1334 = vmatpush2.bf16.msra.mxu0 %v1239
    %1335 = vmatprep.subr.bf16.mxu0 %v1238
    %1336 = vmatpush2.bf16.msra.mxu0 %v1237
    %1337 = vmatprep.subr.bf16.mxu0 %v1236
    %1338 = vmatpush2.bf16.msra.mxu0 %v1235
    %1339 = vmatprep.subr.bf16.mxu0 %v1234
    %1340 = vmatpush2.bf16.msra.mxu0 %v1233
    %1341 = vmatprep.subr.bf16.mxu0 %v1232
    %1342 = vmatpush2.bf16.msra.mxu0 %v1231
    %1343 = vmatprep.mubr.bf16.mxu0 %v278
    %1344 = vmatmul.mubr.bf16.gmra.mxu0 %v277
    %v1345 = vpop.f32.mrf.mxu0
    %v1346 = vadd.f32 %v1064, %v1345
    %v1347 = vpop.f32.mrf.mxu0
    %v1348 = vadd.f32 %v1068, %v1347
    %v1349 = vpop.f32.mrf.mxu0
    %v1350 = vpop.f32.mrf.mxu0
    %1351 = vdwg.mxu0
    %1352 = vmatprep.subr.bf16.mxu0 %v1262
    %1353 = vmatpush1.bf16.msra.mxu0 %v1261
    %1354 = vmatprep.subr.bf16.mxu0 %v1260
    %1355 = vmatpush1.bf16.msra.mxu0 %v1259
    %1356 = vmatprep.subr.bf16.mxu0 %v1258
    %1357 = vmatpush1.bf16.msra.mxu0 %v1257
    %1358 = vmatprep.subr.bf16.mxu0 %v1256
    %1359 = vmatpush1.bf16.msra.mxu0 %v1255
    %1360 = vmatprep.subr.bf16.mxu0 %v1254
    %1361 = vmatpush1.bf16.msra.mxu0 %v1253
    %1362 = vmatprep.subr.bf16.mxu0 %v1252
    %1363 = vmatpush1.bf16.msra.mxu0 %v1251
    %1364 = vmatprep.subr.bf16.mxu0 %v1250
    %1365 = vmatpush1.bf16.msra.mxu0 %v1249
    %1366 = vmatprep.subr.bf16.mxu0 %v1248
    %1367 = vmatpush1.bf16.msra.mxu0 %v1247
    %1368 = vmatprep.subr.bf16.mxu0 0
    %1369 = vmatpush2.bf16.msra.mxu0 0
    %1370 = vmatprep.subr.bf16.mxu0 0
    %1371 = vmatpush2.bf16.msra.mxu0 0
    %1372 = vmatprep.subr.bf16.mxu0 0
    %1373 = vmatpush2.bf16.msra.mxu0 0
    %1374 = vmatprep.subr.bf16.mxu0 0
    %1375 = vmatpush2.bf16.msra.mxu0 0
    %1376 = vmatprep.subr.bf16.mxu0 0
    %1377 = vmatpush2.bf16.msra.mxu0 0
    %1378 = vmatprep.subr.bf16.mxu0 0
    %1379 = vmatpush2.bf16.msra.mxu0 0
    %1380 = vmatprep.subr.bf16.mxu0 0
    %1381 = vmatpush2.bf16.msra.mxu0 0
    %1382 = vmatprep.subr.bf16.mxu0 0
    %1383 = vmatpush2.bf16.msra.mxu0 0
    %1384 = vmatprep.mubr.bf16.mxu0 0
    %1385 = vmatmul.mubr.bf16.gmra.mxu0 %v279
    %v1386 = vpop.f32.mrf.mxu0
    %v1387 = vadd.f32 %v1346, %v1386
    %v1388 = vpop.f32.mrf.mxu0
    %v1389 = vadd.f32 %v1348, %v1388
    %v1390 = vpop.f32.mrf.mxu0
    %v1391 = vpop.f32.mrf.mxu0
    %1392 = vdwg.mxu0
    %v1393 = vmax.f32 %v1387, 0.0
    %v1394 = vmax.f32 %v1389, 0.0
    %v1395 = vpack.c.bf16 %v1393, %v1393
    %v1396 = vpack.c.bf16 %v1394, %v1394
    %v1399 = vunpack.c.l.b16 %v1395
    %v1400 = vunpack.c.l.b16 %v1396
    %v1401 = vpack.c.b16 %v1400, %v1399
    %1403 = vst [vmem:[#allocation2 + $0x10] sm:$0xff] %v1401
    %v1404 = vld [vmem:[%s115 + $0x8] sm:$0xff]
    %v1405 = vld [vmem:[%s115 + $0x18] sm:$0xff]
    %v1406 = vld [vmem:[%s115 + $0x28] sm:$0xff]
    %v1407 = vld [vmem:[%s115 + $0x38] sm:$0xff]
    %v1408 = vld [vmem:[%s115 + $0x48] sm:$0xff]
    %v1409 = vld [vmem:[%s115 + $0x58] sm:$0xff]
    %v1410 = vld [vmem:[%s115 + $0x68] sm:$0xff]
    %v1411 = vld [vmem:[%s115 + $0x78] sm:$0xff]
    %v1412 = vld [vmem:[%s115 + $0x88] sm:$0xff]
    %v1413 = vld [vmem:[%s115 + $0x98] sm:$0xff]
    %v1414 = vld [vmem:[%s115 + $0xa8] sm:$0xff]
    %v1415 = vld [vmem:[%s115 + $0xb8] sm:$0xff]
    %v1416 = vld [vmem:[%s115 + $0xc8] sm:$0xff]
    %v1417 = vld [vmem:[%s115 + $0xd8] sm:$0xff]
    %v1418 = vld [vmem:[%s115 + $0xe8] sm:$0xff]
    %v1419 = vld [vmem:[%s115 + $0xf8] sm:$0xff]
    %v1420 = vld [vmem:[%s115 + $0x108] sm:$0xff]
    %v1421 = vld [vmem:[%s115 + $0x118] sm:$0xff]
    %v1422 = vld [vmem:[%s115 + $0x128] sm:$0xff]
    %v1423 = vld [vmem:[%s115 + $0x138] sm:$0xff]
    %v1424 = vld [vmem:[%s115 + $0x148] sm:$0xff]
    %v1425 = vld [vmem:[%s115 + $0x158] sm:$0xff]
    %v1426 = vld [vmem:[%s115 + $0x168] sm:$0xff]
    %v1427 = vld [vmem:[%s115 + $0x178] sm:$0xff]
    %v1428 = vld [vmem:[%s115 + $0x188] sm:$0xff]
    %v1429 = vld [vmem:[%s115 + $0x198] sm:$0xff]
    %v1430 = vld [vmem:[%s115 + $0x1a8] sm:$0xff]
    %v1431 = vld [vmem:[%s115 + $0x1b8] sm:$0xff]
    %v1432 = vld [vmem:[%s115 + $0x1c8] sm:$0xff]
    %v1433 = vld [vmem:[%s115 + $0x1d8] sm:$0xff]
    %v1434 = vld [vmem:[%s115 + $0x1e8] sm:$0xff]
    %v1435 = vld [vmem:[%s115 + $0x1f8] sm:$0xff]
    %v1436 = vld [vmem:[%s115 + $0x208] sm:$0xff]
    %v1437 = vld [vmem:[%s115 + $0x218] sm:$0xff]
    %v1438 = vld [vmem:[%s115 + $0x228] sm:$0xff]
    %v1439 = vld [vmem:[%s115 + $0x238] sm:$0xff]
    %v1440 = vld [vmem:[%s115 + $0x248] sm:$0xff]
    %v1441 = vld [vmem:[%s115 + $0x258] sm:$0xff]
    %v1442 = vld [vmem:[%s115 + $0x268] sm:$0xff]
    %v1443 = vld [vmem:[%s115 + $0x278] sm:$0xff]
    %v1444 = vld [vmem:[%s115 + $0x288] sm:$0xff]
    %v1445 = vld [vmem:[%s115 + $0x298] sm:$0xff]
    %v1446 = vld [vmem:[%s115 + $0x2a8] sm:$0xff]
    %v1447 = vld [vmem:[%s115 + $0x2b8] sm:$0xff]
    %v1448 = vld [vmem:[%s115 + $0x2c8] sm:$0xff]
    %v1449 = vld [vmem:[%s115 + $0x2d8] sm:$0xff]
    %v1450 = vld [vmem:[%s115 + $0x2e8] sm:$0xff]
    %v1451 = vld [vmem:[%s115 + $0x2f8] sm:$0xff]
    %v1452 = vld [vmem:[#allocation11 + $0x6] sm:$0x3]
    %v1454 = vlaneseq
    %v1455 = vshrl.u32 %v1454, 7
    %v1456 = vsub.s32 0, %v1455
    %v1457 = vrot.slane %v1452, %v1456
    %v1458 = vlaneseq
    %v1459 = vshrl.u32 %v1458, 7
    %v1460 = vsub.s32 1, %v1459
    %v1461 = vrot.slane %v1452, %v1460
    %v1512 = vunpack.c.l.b16 %v1404
    %v1513 = vunpack.c.h.b16 %v1404
    %v1514 = vunpack.c.l.b16 %v1405
    %v1515 = vunpack.c.h.b16 %v1405
    %v1516 = vunpack.c.l.b16 %v1406
    %v1517 = vunpack.c.h.b16 %v1406
    %v1518 = vunpack.c.l.b16 %v1407
    %v1519 = vunpack.c.h.b16 %v1407
    %v1520 = vunpack.c.l.b16 %v1408
    %v1521 = vunpack.c.h.b16 %v1408
    %v1522 = vunpack.c.l.b16 %v1409
    %v1523 = vunpack.c.h.b16 %v1409
    %v1524 = vunpack.c.l.b16 %v1410
    %v1525 = vunpack.c.h.b16 %v1410
    %v1526 = vunpack.c.l.b16 %v1411
    %v1527 = vunpack.c.h.b16 %v1411
    %v1528 = vunpack.c.l.b16 %v1412
    %v1529 = vunpack.c.h.b16 %v1412
    %v1530 = vunpack.c.l.b16 %v1413
    %v1531 = vunpack.c.h.b16 %v1413
    %v1532 = vunpack.c.l.b16 %v1414
    %v1533 = vunpack.c.h.b16 %v1414
    %v1534 = vunpack.c.l.b16 %v1415
    %v1535 = vunpack.c.h.b16 %v1415
    %v1536 = vunpack.c.l.b16 %v1416
    %v1537 = vunpack.c.h.b16 %v1416
    %v1538 = vunpack.c.l.b16 %v1417
    %v1539 = vunpack.c.h.b16 %v1417
    %v1540 = vunpack.c.l.b16 %v1418
    %v1541 = vunpack.c.h.b16 %v1418
    %v1542 = vunpack.c.l.b16 %v1419
    %v1543 = vunpack.c.h.b16 %v1419
    %v1544 = vunpack.c.l.b16 %v1420
    %v1545 = vunpack.c.h.b16 %v1420
    %v1546 = vunpack.c.l.b16 %v1421
    %v1547 = vunpack.c.h.b16 %v1421
    %v1548 = vunpack.c.l.b16 %v1422
    %v1549 = vunpack.c.h.b16 %v1422
    %v1550 = vunpack.c.l.b16 %v1423
    %v1551 = vunpack.c.h.b16 %v1423
    %v1552 = vunpack.c.l.b16 %v1424
    %v1553 = vunpack.c.h.b16 %v1424
    %v1554 = vunpack.c.l.b16 %v1425
    %v1555 = vunpack.c.h.b16 %v1425
    %v1556 = vunpack.c.l.b16 %v1426
    %v1557 = vunpack.c.h.b16 %v1426
    %v1558 = vunpack.c.l.b16 %v1427
    %v1559 = vunpack.c.h.b16 %v1427
    %v1560 = vunpack.c.l.b16 %v1428
    %v1561 = vunpack.c.h.b16 %v1428
    %v1562 = vunpack.c.l.b16 %v1429
    %v1563 = vunpack.c.h.b16 %v1429
    %v1564 = vunpack.c.l.b16 %v1430
    %v1565 = vunpack.c.h.b16 %v1430
    %v1566 = vunpack.c.l.b16 %v1431
    %v1567 = vunpack.c.h.b16 %v1431
    %v1568 = vunpack.c.l.b16 %v1432
    %v1569 = vunpack.c.h.b16 %v1432
    %v1570 = vunpack.c.l.b16 %v1433
    %v1571 = vunpack.c.h.b16 %v1433
    %v1572 = vunpack.c.l.b16 %v1434
    %v1573 = vunpack.c.h.b16 %v1434
    %v1574 = vunpack.c.l.b16 %v1435
    %v1575 = vunpack.c.h.b16 %v1435
    %v1576 = vunpack.c.l.b16 %v1436
    %v1577 = vunpack.c.h.b16 %v1436
    %v1578 = vunpack.c.l.b16 %v1437
    %v1579 = vunpack.c.h.b16 %v1437
    %v1580 = vunpack.c.l.b16 %v1438
    %v1581 = vunpack.c.h.b16 %v1438
    %v1582 = vunpack.c.l.b16 %v1439
    %v1583 = vunpack.c.h.b16 %v1439
    %v1584 = vunpack.c.l.b16 %v1440
    %v1585 = vunpack.c.h.b16 %v1440
    %v1586 = vunpack.c.l.b16 %v1441
    %v1587 = vunpack.c.h.b16 %v1441
    %v1588 = vunpack.c.l.b16 %v1442
    %v1589 = vunpack.c.h.b16 %v1442
    %v1590 = vunpack.c.l.b16 %v1443
    %v1591 = vunpack.c.h.b16 %v1443
    %v1592 = vunpack.c.l.b16 %v1444
    %v1593 = vunpack.c.h.b16 %v1444
    %v1594 = vunpack.c.l.b16 %v1445
    %v1595 = vunpack.c.h.b16 %v1445
    %v1596 = vunpack.c.l.b16 %v1446
    %v1597 = vunpack.c.h.b16 %v1446
    %v1598 = vunpack.c.l.b16 %v1447
    %v1599 = vunpack.c.h.b16 %v1447
    %v1600 = vunpack.c.l.b16 %v1448
    %v1601 = vunpack.c.h.b16 %v1448
    %v1602 = vunpack.c.l.b16 %v1449
    %v1603 = vunpack.c.h.b16 %v1449
    %v1604 = vunpack.c.l.b16 %v1450
    %v1605 = vunpack.c.h.b16 %v1450
    %v1606 = vunpack.c.l.b16 %v1451
    %v1607 = vunpack.c.h.b16 %v1451
    %v1608 = vpack.c.b16 %v1514, %v1512
    %v1609 = vpack.c.b16 %v1515, %v1513
    %v1610 = vpack.c.b16 %v1518, %v1516
    %v1611 = vpack.c.b16 %v1519, %v1517
    %v1612 = vpack.c.b16 %v1522, %v1520
    %v1613 = vpack.c.b16 %v1523, %v1521
    %v1614 = vpack.c.b16 %v1526, %v1524
    %v1615 = vpack.c.b16 %v1527, %v1525
    %v1616 = vpack.c.b16 %v1530, %v1528
    %v1617 = vpack.c.b16 %v1531, %v1529
    %v1618 = vpack.c.b16 %v1534, %v1532
    %v1619 = vpack.c.b16 %v1535, %v1533
    %v1620 = vpack.c.b16 %v1538, %v1536
    %v1621 = vpack.c.b16 %v1539, %v1537
    %v1622 = vpack.c.b16 %v1542, %v1540
    %v1623 = vpack.c.b16 %v1543, %v1541
    %v1624 = vpack.c.b16 %v1546, %v1544
    %v1625 = vpack.c.b16 %v1547, %v1545
    %v1626 = vpack.c.b16 %v1550, %v1548
    %v1627 = vpack.c.b16 %v1551, %v1549
    %v1628 = vpack.c.b16 %v1554, %v1552
    %v1629 = vpack.c.b16 %v1555, %v1553
    %v1630 = vpack.c.b16 %v1558, %v1556
    %v1631 = vpack.c.b16 %v1559, %v1557
    %v1632 = vpack.c.b16 %v1562, %v1560
    %v1633 = vpack.c.b16 %v1563, %v1561
    %v1634 = vpack.c.b16 %v1566, %v1564
    %v1635 = vpack.c.b16 %v1567, %v1565
    %v1636 = vpack.c.b16 %v1570, %v1568
    %v1637 = vpack.c.b16 %v1571, %v1569
    %v1638 = vpack.c.b16 %v1574, %v1572
    %v1639 = vpack.c.b16 %v1575, %v1573
    %v1640 = vpack.c.b16 %v1578, %v1576
    %v1641 = vpack.c.b16 %v1579, %v1577
    %v1642 = vpack.c.b16 %v1582, %v1580
    %v1643 = vpack.c.b16 %v1583, %v1581
    %v1644 = vpack.c.b16 %v1586, %v1584
    %v1645 = vpack.c.b16 %v1587, %v1585
    %v1646 = vpack.c.b16 %v1590, %v1588
    %v1647 = vpack.c.b16 %v1591, %v1589
    %v1648 = vpack.c.b16 %v1594, %v1592
    %v1649 = vpack.c.b16 %v1595, %v1593
    %v1650 = vpack.c.b16 %v1598, %v1596
    %v1651 = vpack.c.b16 %v1599, %v1597
    %v1652 = vpack.c.b16 %v1602, %v1600
    %v1653 = vpack.c.b16 %v1603, %v1601
    %v1654 = vpack.c.b16 %v1606, %v1604
    %v1655 = vpack.c.b16 %v1607, %v1605
    %1704 = vmatprep.subr.bf16.mxu0 %v1623
    %1705 = vmatpush1.bf16.msra.mxu0 %v1622
    %1706 = vmatprep.subr.bf16.mxu0 %v1621
    %1707 = vmatpush1.bf16.msra.mxu0 %v1620
    %1708 = vmatprep.subr.bf16.mxu0 %v1619
    %1709 = vmatpush1.bf16.msra.mxu0 %v1618
    %1710 = vmatprep.subr.bf16.mxu0 %v1617
    %1711 = vmatpush1.bf16.msra.mxu0 %v1616
    %1712 = vmatprep.subr.bf16.mxu0 %v1615
    %1713 = vmatpush1.bf16.msra.mxu0 %v1614
    %1714 = vmatprep.subr.bf16.mxu0 %v1613
    %1715 = vmatpush1.bf16.msra.mxu0 %v1612
    %1716 = vmatprep.subr.bf16.mxu0 %v1611
    %1717 = vmatpush1.bf16.msra.mxu0 %v1610
    %1718 = vmatprep.subr.bf16.mxu0 %v1609
    %1719 = vmatpush1.bf16.msra.mxu0 %v1608
    %1720 = vmatprep.subr.bf16.mxu0 %v1639
    %1721 = vmatpush2.bf16.msra.mxu0 %v1638
    %1722 = vmatprep.subr.bf16.mxu0 %v1637
    %1723 = vmatpush2.bf16.msra.mxu0 %v1636
    %1724 = vmatprep.subr.bf16.mxu0 %v1635
    %1725 = vmatpush2.bf16.msra.mxu0 %v1634
    %1726 = vmatprep.subr.bf16.mxu0 %v1633
    %1727 = vmatpush2.bf16.msra.mxu0 %v1632
    %1728 = vmatprep.subr.bf16.mxu0 %v1631
    %1729 = vmatpush2.bf16.msra.mxu0 %v1630
    %1730 = vmatprep.subr.bf16.mxu0 %v1629
    %1731 = vmatpush2.bf16.msra.mxu0 %v1628
    %1732 = vmatprep.subr.bf16.mxu0 %v1627
    %1733 = vmatpush2.bf16.msra.mxu0 %v1626
    %1734 = vmatprep.subr.bf16.mxu0 %v1625
    %1735 = vmatpush2.bf16.msra.mxu0 %v1624
    %1736 = vmatprep.mubr.bf16.mxu0 %v278
    %1737 = vmatmul.mubr.bf16.gmra.mxu0 %v277
    %v1738 = vpop.f32.mrf.mxu0
    %v1739 = vadd.f32 %v1457, %v1738
    %v1740 = vpop.f32.mrf.mxu0
    %v1741 = vadd.f32 %v1461, %v1740
    %v1742 = vpop.f32.mrf.mxu0
    %v1743 = vpop.f32.mrf.mxu0
    %1744 = vdwg.mxu0
    %1745 = vmatprep.subr.bf16.mxu0 %v1655
    %1746 = vmatpush1.bf16.msra.mxu0 %v1654
    %1747 = vmatprep.subr.bf16.mxu0 %v1653
    %1748 = vmatpush1.bf16.msra.mxu0 %v1652
    %1749 = vmatprep.subr.bf16.mxu0 %v1651
    %1750 = vmatpush1.bf16.msra.mxu0 %v1650
    %1751 = vmatprep.subr.bf16.mxu0 %v1649
    %1752 = vmatpush1.bf16.msra.mxu0 %v1648
    %1753 = vmatprep.subr.bf16.mxu0 %v1647
    %1754 = vmatpush1.bf16.msra.mxu0 %v1646
    %1755 = vmatprep.subr.bf16.mxu0 %v1645
    %1756 = vmatpush1.bf16.msra.mxu0 %v1644
    %1757 = vmatprep.subr.bf16.mxu0 %v1643
    %1758 = vmatpush1.bf16.msra.mxu0 %v1642
    %1759 = vmatprep.subr.bf16.mxu0 %v1641
    %1760 = vmatpush1.bf16.msra.mxu0 %v1640
    %1761 = vmatprep.subr.bf16.mxu0 0
    %1762 = vmatpush2.bf16.msra.mxu0 0
    %1763 = vmatprep.subr.bf16.mxu0 0
    %1764 = vmatpush2.bf16.msra.mxu0 0
    %1765 = vmatprep.subr.bf16.mxu0 0
    %1766 = vmatpush2.bf16.msra.mxu0 0
    %1767 = vmatprep.subr.bf16.mxu0 0
    %1768 = vmatpush2.bf16.msra.mxu0 0
    %1769 = vmatprep.subr.bf16.mxu0 0
    %1770 = vmatpush2.bf16.msra.mxu0 0
    %1771 = vmatprep.subr.bf16.mxu0 0
    %1772 = vmatpush2.bf16.msra.mxu0 0
    %1773 = vmatprep.subr.bf16.mxu0 0
    %1774 = vmatpush2.bf16.msra.mxu0 0
    %1775 = vmatprep.subr.bf16.mxu0 0
    %1776 = vmatpush2.bf16.msra.mxu0 0
    %1777 = vmatprep.mubr.bf16.mxu0 0
    %1778 = vmatmul.mubr.bf16.gmra.mxu0 %v279
    %v1779 = vpop.f32.mrf.mxu0
    %v1780 = vadd.f32 %v1739, %v1779
    %v1781 = vpop.f32.mrf.mxu0
    %v1782 = vadd.f32 %v1741, %v1781
    %v1783 = vpop.f32.mrf.mxu0
    %v1784 = vpop.f32.mrf.mxu0
    %1785 = vdwg.mxu0
    %v1786 = vmax.f32 %v1780, 0.0
    %v1787 = vmax.f32 %v1782, 0.0
    %v1788 = vpack.c.bf16 %v1786, %v1786
    %v1789 = vpack.c.bf16 %v1787, %v1787
    %v1792 = vunpack.c.l.b16 %v1788
    %v1793 = vunpack.c.l.b16 %v1789
    %v1794 = vpack.c.b16 %v1793, %v1792
    %1796 = vst [vmem:[#allocation2 + $0x18] sm:$0xff] %v1794
    %s1797 = sshll.u32 %s209, 4
    %1798 = dma.done %s130, %s1797
    %v1799 = vld [vmem:[%s129] sm:$0xff]
    %v1800 = vld [vmem:[%s129 + $0x10] sm:$0xff]
    %v1801 = vld [vmem:[%s129 + $0x20] sm:$0xff]
    %v1802 = vld [vmem:[%s129 + $0x30] sm:$0xff]
    %v1803 = vld [vmem:[%s129 + $0x40] sm:$0xff]
    %v1804 = vld [vmem:[%s129 + $0x50] sm:$0xff]
    %v1805 = vld [vmem:[%s129 + $0x60] sm:$0xff]
    %v1806 = vld [vmem:[%s129 + $0x70] sm:$0xff]
    %v1807 = vld [vmem:[%s129 + $0x80] sm:$0xff]
    %v1808 = vld [vmem:[%s129 + $0x90] sm:$0xff]
    %v1809 = vld [vmem:[%s129 + $0xa0] sm:$0xff]
    %v1810 = vld [vmem:[%s129 + $0xb0] sm:$0xff]
    %v1811 = vld [vmem:[%s129 + $0xc0] sm:$0xff]
    %v1812 = vld [vmem:[%s129 + $0xd0] sm:$0xff]
    %v1813 = vld [vmem:[%s129 + $0xe0] sm:$0xff]
    %v1814 = vld [vmem:[%s129 + $0xf0] sm:$0xff]
    %v1815 = vld [vmem:[%s129 + $0x100] sm:$0xff]
    %v1816 = vld [vmem:[%s129 + $0x110] sm:$0xff]
    %v1817 = vld [vmem:[%s129 + $0x120] sm:$0xff]
    %v1818 = vld [vmem:[%s129 + $0x130] sm:$0xff]
    %v1819 = vld [vmem:[%s129 + $0x140] sm:$0xff]
    %v1820 = vld [vmem:[%s129 + $0x150] sm:$0xff]
    %v1821 = vld [vmem:[%s129 + $0x160] sm:$0xff]
    %v1822 = vld [vmem:[%s129 + $0x170] sm:$0xff]
    %v1823 = vld [vmem:[%s129 + $0x180] sm:$0xff]
    %v1824 = vld [vmem:[%s129 + $0x190] sm:$0xff]
    %v1825 = vld [vmem:[%s129 + $0x1a0] sm:$0xff]
    %v1826 = vld [vmem:[%s129 + $0x1b0] sm:$0xff]
    %v1827 = vld [vmem:[%s129 + $0x1c0] sm:$0xff]
    %v1828 = vld [vmem:[%s129 + $0x1d0] sm:$0xff]
    %v1829 = vld [vmem:[%s129 + $0x1e0] sm:$0xff]
    %v1830 = vld [vmem:[%s129 + $0x1f0] sm:$0xff]
    %v1831 = vld [vmem:[%s129 + $0x200] sm:$0xff]
    %v1832 = vld [vmem:[%s129 + $0x210] sm:$0xff]
    %v1833 = vld [vmem:[%s129 + $0x220] sm:$0xff]
    %v1834 = vld [vmem:[%s129 + $0x230] sm:$0xff]
    %v1835 = vld [vmem:[%s129 + $0x240] sm:$0xff]
    %v1836 = vld [vmem:[%s129 + $0x250] sm:$0xff]
    %v1837 = vld [vmem:[%s129 + $0x260] sm:$0xff]
    %v1838 = vld [vmem:[%s129 + $0x270] sm:$0xff]
    %v1839 = vld [vmem:[%s129 + $0x280] sm:$0xff]
    %v1840 = vld [vmem:[%s129 + $0x290] sm:$0xff]
    %v1841 = vld [vmem:[%s129 + $0x2a0] sm:$0xff]
    %v1842 = vld [vmem:[%s129 + $0x2b0] sm:$0xff]
    %v1843 = vld [vmem:[%s129 + $0x2c0] sm:$0xff]
    %v1844 = vld [vmem:[%s129 + $0x2d0] sm:$0xff]
    %v1845 = vld [vmem:[%s129 + $0x2e0] sm:$0xff]
    %v1846 = vld [vmem:[%s129 + $0x2f0] sm:$0xff]
    %v1847 = vld [vmem:[#allocation11 + $0x8] sm:$0x3]
    %v1849 = vlaneseq
    %v1850 = vshrl.u32 %v1849, 7
    %v1851 = vsub.s32 0, %v1850
    %v1852 = vrot.slane %v1847, %v1851
    %v1853 = vlaneseq
    %v1854 = vshrl.u32 %v1853, 7
    %v1855 = vsub.s32 1, %v1854
    %v1856 = vrot.slane %v1847, %v1855
    %v1907 = vunpack.c.l.b16 %v1799
    %v1908 = vunpack.c.h.b16 %v1799
    %v1909 = vunpack.c.l.b16 %v1800
    %v1910 = vunpack.c.h.b16 %v1800
    %v1911 = vunpack.c.l.b16 %v1801
    %v1912 = vunpack.c.h.b16 %v1801
    %v1913 = vunpack.c.l.b16 %v1802
    %v1914 = vunpack.c.h.b16 %v1802
    %v1915 = vunpack.c.l.b16 %v1803
    %v1916 = vunpack.c.h.b16 %v1803
    %v1917 = vunpack.c.l.b16 %v1804
    %v1918 = vunpack.c.h.b16 %v1804
    %v1919 = vunpack.c.l.b16 %v1805
    %v1920 = vunpack.c.h.b16 %v1805
    %v1921 = vunpack.c.l.b16 %v1806
    %v1922 = vunpack.c.h.b16 %v1806
    %v1923 = vunpack.c.l.b16 %v1807
    %v1924 = vunpack.c.h.b16 %v1807
    %v1925 = vunpack.c.l.b16 %v1808
    %v1926 = vunpack.c.h.b16 %v1808
    %v1927 = vunpack.c.l.b16 %v1809
    %v1928 = vunpack.c.h.b16 %v1809
    %v1929 = vunpack.c.l.b16 %v1810
    %v1930 = vunpack.c.h.b16 %v1810
    %v1931 = vunpack.c.l.b16 %v1811
    %v1932 = vunpack.c.h.b16 %v1811
    %v1933 = vunpack.c.l.b16 %v1812
    %v1934 = vunpack.c.h.b16 %v1812
    %v1935 = vunpack.c.l.b16 %v1813
    %v1936 = vunpack.c.h.b16 %v1813
    %v1937 = vunpack.c.l.b16 %v1814
    %v1938 = vunpack.c.h.b16 %v1814
    %v1939 = vunpack.c.l.b16 %v1815
    %v1940 = vunpack.c.h.b16 %v1815
    %v1941 = vunpack.c.l.b16 %v1816
    %v1942 = vunpack.c.h.b16 %v1816
    %v1943 = vunpack.c.l.b16 %v1817
    %v1944 = vunpack.c.h.b16 %v1817
    %v1945 = vunpack.c.l.b16 %v1818
    %v1946 = vunpack.c.h.b16 %v1818
    %v1947 = vunpack.c.l.b16 %v1819
    %v1948 = vunpack.c.h.b16 %v1819
    %v1949 = vunpack.c.l.b16 %v1820
    %v1950 = vunpack.c.h.b16 %v1820
    %v1951 = vunpack.c.l.b16 %v1821
    %v1952 = vunpack.c.h.b16 %v1821
    %v1953 = vunpack.c.l.b16 %v1822
    %v1954 = vunpack.c.h.b16 %v1822
    %v1955 = vunpack.c.l.b16 %v1823
    %v1956 = vunpack.c.h.b16 %v1823
    %v1957 = vunpack.c.l.b16 %v1824
    %v1958 = vunpack.c.h.b16 %v1824
    %v1959 = vunpack.c.l.b16 %v1825
    %v1960 = vunpack.c.h.b16 %v1825
    %v1961 = vunpack.c.l.b16 %v1826
    %v1962 = vunpack.c.h.b16 %v1826
    %v1963 = vunpack.c.l.b16 %v1827
    %v1964 = vunpack.c.h.b16 %v1827
    %v1965 = vunpack.c.l.b16 %v1828
    %v1966 = vunpack.c.h.b16 %v1828
    %v1967 = vunpack.c.l.b16 %v1829
    %v1968 = vunpack.c.h.b16 %v1829
    %v1969 = vunpack.c.l.b16 %v1830
    %v1970 = vunpack.c.h.b16 %v1830
    %v1971 = vunpack.c.l.b16 %v1831
    %v1972 = vunpack.c.h.b16 %v1831
    %v1973 = vunpack.c.l.b16 %v1832
    %v1974 = vunpack.c.h.b16 %v1832
    %v1975 = vunpack.c.l.b16 %v1833
    %v1976 = vunpack.c.h.b16 %v1833
    %v1977 = vunpack.c.l.b16 %v1834
    %v1978 = vunpack.c.h.b16 %v1834
    %v1979 = vunpack.c.l.b16 %v1835
    %v1980 = vunpack.c.h.b16 %v1835
    %v1981 = vunpack.c.l.b16 %v1836
    %v1982 = vunpack.c.h.b16 %v1836
    %v1983 = vunpack.c.l.b16 %v1837
    %v1984 = vunpack.c.h.b16 %v1837
    %v1985 = vunpack.c.l.b16 %v1838
    %v1986 = vunpack.c.h.b16 %v1838
    %v1987 = vunpack.c.l.b16 %v1839
    %v1988 = vunpack.c.h.b16 %v1839
    %v1989 = vunpack.c.l.b16 %v1840
    %v1990 = vunpack.c.h.b16 %v1840
    %v1991 = vunpack.c.l.b16 %v1841
    %v1992 = vunpack.c.h.b16 %v1841
    %v1993 = vunpack.c.l.b16 %v1842
    %v1994 = vunpack.c.h.b16 %v1842
    %v1995 = vunpack.c.l.b16 %v1843
    %v1996 = vunpack.c.h.b16 %v1843
    %v1997 = vunpack.c.l.b16 %v1844
    %v1998 = vunpack.c.h.b16 %v1844
    %v1999 = vunpack.c.l.b16 %v1845
    %v2000 = vunpack.c.h.b16 %v1845
    %v2001 = vunpack.c.l.b16 %v1846
    %v2002 = vunpack.c.h.b16 %v1846
    %v2003 = vpack.c.b16 %v1909, %v1907
    %v2004 = vpack.c.b16 %v1910, %v1908
    %v2005 = vpack.c.b16 %v1913, %v1911
    %v2006 = vpack.c.b16 %v1914, %v1912
    %v2007 = vpack.c.b16 %v1917, %v1915
    %v2008 = vpack.c.b16 %v1918, %v1916
    %v2009 = vpack.c.b16 %v1921, %v1919
    %v2010 = vpack.c.b16 %v1922, %v1920
    %v2011 = vpack.c.b16 %v1925, %v1923
    %v2012 = vpack.c.b16 %v1926, %v1924
    %v2013 = vpack.c.b16 %v1929, %v1927
    %v2014 = vpack.c.b16 %v1930, %v1928
    %v2015 = vpack.c.b16 %v1933, %v1931
    %v2016 = vpack.c.b16 %v1934, %v1932
    %v2017 = vpack.c.b16 %v1937, %v1935
    %v2018 = vpack.c.b16 %v1938, %v1936
    %v2019 = vpack.c.b16 %v1941, %v1939
    %v2020 = vpack.c.b16 %v1942, %v1940
    %v2021 = vpack.c.b16 %v1945, %v1943
    %v2022 = vpack.c.b16 %v1946, %v1944
    %v2023 = vpack.c.b16 %v1949, %v1947
    %v2024 = vpack.c.b16 %v1950, %v1948
    %v2025 = vpack.c.b16 %v1953, %v1951
    %v2026 = vpack.c.b16 %v1954, %v1952
    %v2027 = vpack.c.b16 %v1957, %v1955
    %v2028 = vpack.c.b16 %v1958, %v1956
    %v2029 = vpack.c.b16 %v1961, %v1959
    %v2030 = vpack.c.b16 %v1962, %v1960
    %v2031 = vpack.c.b16 %v1965, %v1963
    %v2032 = vpack.c.b16 %v1966, %v1964
    %v2033 = vpack.c.b16 %v1969, %v1967
    %v2034 = vpack.c.b16 %v1970, %v1968
    %v2035 = vpack.c.b16 %v1973, %v1971
    %v2036 = vpack.c.b16 %v1974, %v1972
    %v2037 = vpack.c.b16 %v1977, %v1975
    %v2038 = vpack.c.b16 %v1978, %v1976
    %v2039 = vpack.c.b16 %v1981, %v1979
    %v2040 = vpack.c.b16 %v1982, %v1980
    %v2041 = vpack.c.b16 %v1985, %v1983
    %v2042 = vpack.c.b16 %v1986, %v1984
    %v2043 = vpack.c.b16 %v1989, %v1987
    %v2044 = vpack.c.b16 %v1990, %v1988
    %v2045 = vpack.c.b16 %v1993, %v1991
    %v2046 = vpack.c.b16 %v1994, %v1992
    %v2047 = vpack.c.b16 %v1997, %v1995
    %v2048 = vpack.c.b16 %v1998, %v1996
    %v2049 = vpack.c.b16 %v2001, %v1999
    %v2050 = vpack.c.b16 %v2002, %v2000
    %2099 = vmatprep.subr.bf16.mxu0 %v2018
    %2100 = vmatpush1.bf16.msra.mxu0 %v2017
    %2101 = vmatprep.subr.bf16.mxu0 %v2016
    %2102 = vmatpush1.bf16.msra.mxu0 %v2015
    %2103 = vmatprep.subr.bf16.mxu0 %v2014
    %2104 = vmatpush1.bf16.msra.mxu0 %v2013
    %2105 = vmatprep.subr.bf16.mxu0 %v2012
    %2106 = vmatpush1.bf16.msra.mxu0 %v2011
    %2107 = vmatprep.subr.bf16.mxu0 %v2010
    %2108 = vmatpush1.bf16.msra.mxu0 %v2009
    %2109 = vmatprep.subr.bf16.mxu0 %v2008
    %2110 = vmatpush1.bf16.msra.mxu0 %v2007
    %2111 = vmatprep.subr.bf16.mxu0 %v2006
    %2112 = vmatpush1.bf16.msra.mxu0 %v2005
    %2113 = vmatprep.subr.bf16.mxu0 %v2004
    %2114 = vmatpush1.bf16.msra.mxu0 %v2003
    %2115 = vmatprep.subr.bf16.mxu0 %v2034
    %2116 = vmatpush2.bf16.msra.mxu0 %v2033
    %2117 = vmatprep.subr.bf16.mxu0 %v2032
    %2118 = vmatpush2.bf16.msra.mxu0 %v2031
    %2119 = vmatprep.subr.bf16.mxu0 %v2030
    %2120 = vmatpush2.bf16.msra.mxu0 %v2029
    %2121 = vmatprep.subr.bf16.mxu0 %v2028
    %2122 = vmatpush2.bf16.msra.mxu0 %v2027
    %2123 = vmatprep.subr.bf16.mxu0 %v2026
    %2124 = vmatpush2.bf16.msra.mxu0 %v2025
    %2125 = vmatprep.subr.bf16.mxu0 %v2024
    %2126 = vmatpush2.bf16.msra.mxu0 %v2023
    %2127 = vmatprep.subr.bf16.mxu0 %v2022
    %2128 = vmatpush2.bf16.msra.mxu0 %v2021
    %2129 = vmatprep.subr.bf16.mxu0 %v2020
    %2130 = vmatpush2.bf16.msra.mxu0 %v2019
    %2131 = vmatprep.mubr.bf16.mxu0 %v278
    %2132 = vmatmul.mubr.bf16.gmra.mxu0 %v277
    %v2133 = vpop.f32.mrf.mxu0
    %v2134 = vadd.f32 %v1852, %v2133
    %v2135 = vpop.f32.mrf.mxu0
    %v2136 = vadd.f32 %v1856, %v2135
    %v2137 = vpop.f32.mrf.mxu0
    %v2138 = vpop.f32.mrf.mxu0
    %2139 = vdwg.mxu0
    %2140 = vmatprep.subr.bf16.mxu0 %v2050
    %2141 = vmatpush1.bf16.msra.mxu0 %v2049
    %2142 = vmatprep.subr.bf16.mxu0 %v2048
    %2143 = vmatpush1.bf16.msra.mxu0 %v2047
    %2144 = vmatprep.subr.bf16.mxu0 %v2046
    %2145 = vmatpush1.bf16.msra.mxu0 %v2045
    %2146 = vmatprep.subr.bf16.mxu0 %v2044
    %2147 = vmatpush1.bf16.msra.mxu0 %v2043
    %2148 = vmatprep.subr.bf16.mxu0 %v2042
    %2149 = vmatpush1.bf16.msra.mxu0 %v2041
    %2150 = vmatprep.subr.bf16.mxu0 %v2040
    %2151 = vmatpush1.bf16.msra.mxu0 %v2039
    %2152 = vmatprep.subr.bf16.mxu0 %v2038
    %2153 = vmatpush1.bf16.msra.mxu0 %v2037
    %2154 = vmatprep.subr.bf16.mxu0 %v2036
    %2155 = vmatpush1.bf16.msra.mxu0 %v2035
    %2156 = vmatprep.subr.bf16.mxu0 0
    %2157 = vmatpush2.bf16.msra.mxu0 0
    %2158 = vmatprep.subr.bf16.mxu0 0
    %2159 = vmatpush2.bf16.msra.mxu0 0
    %2160 = vmatprep.subr.bf16.mxu0 0
    %2161 = vmatpush2.bf16.msra.mxu0 0
    %2162 = vmatprep.subr.bf16.mxu0 0
    %2163 = vmatpush2.bf16.msra.mxu0 0
    %2164 = vmatprep.subr.bf16.mxu0 0
    %2165 = vmatpush2.bf16.msra.mxu0 0
    %2166 = vmatprep.subr.bf16.mxu0 0
    %2167 = vmatpush2.bf16.msra.mxu0 0
    %2168 = vmatprep.subr.bf16.mxu0 0
    %2169 = vmatpush2.bf16.msra.mxu0 0
    %2170 = vmatprep.subr.bf16.mxu0 0
    %2171 = vmatpush2.bf16.msra.mxu0 0
    %2172 = vmatprep.mubr.bf16.mxu0 0
    %2173 = vmatmul.mubr.bf16.gmra.mxu0 %v279
    %v2174 = vpop.f32.mrf.mxu0
    %v2175 = vadd.f32 %v2134, %v2174
    %v2176 = vpop.f32.mrf.mxu0
    %v2177 = vadd.f32 %v2136, %v2176
    %v2178 = vpop.f32.mrf.mxu0
    %v2179 = vpop.f32.mrf.mxu0
    %2180 = vdwg.mxu0
    %v2181 = vmax.f32 %v2175, 0.0
    %v2182 = vmax.f32 %v2177, 0.0
    %v2183 = vpack.c.bf16 %v2181, %v2181
    %v2184 = vpack.c.bf16 %v2182, %v2182
    %v2187 = vunpack.c.l.b16 %v2183
    %v2188 = vunpack.c.l.b16 %v2184
    %v2189 = vpack.c.b16 %v2188, %v2187
    %2191 = vst [vmem:[#allocation2 + $0x20] sm:$0xff] %v2189
    %v2192 = vld [vmem:[%s129 + $0x8] sm:$0xff]
    %v2193 = vld [vmem:[%s129 + $0x18] sm:$0xff]
    %v2194 = vld [vmem:[%s129 + $0x28] sm:$0xff]
    %v2195 = vld [vmem:[%s129 + $0x38] sm:$0xff]
    %v2196 = vld [vmem:[%s129 + $0x48] sm:$0xff]
    %v2197 = vld [vmem:[%s129 + $0x58] sm:$0xff]
    %v2198 = vld [vmem:[%s129 + $0x68] sm:$0xff]
    %v2199 = vld [vmem:[%s129 + $0x78] sm:$0xff]
    %v2200 = vld [vmem:[%s129 + $0x88] sm:$0xff]
    %v2201 = vld [vmem:[%s129 + $0x98] sm:$0xff]
    %v2202 = vld [vmem:[%s129 + $0xa8] sm:$0xff]
    %v2203 = vld [vmem:[%s129 + $0xb8] sm:$0xff]
    %v2204 = vld [vmem:[%s129 + $0xc8] sm:$0xff]
    %v2205 = vld [vmem:[%s129 + $0xd8] sm:$0xff]
    %v2206 = vld [vmem:[%s129 + $0xe8] sm:$0xff]
    %v2207 = vld [vmem:[%s129 + $0xf8] sm:$0xff]
    %v2208 = vld [vmem:[%s129 + $0x108] sm:$0xff]
    %v2209 = vld [vmem:[%s129 + $0x118] sm:$0xff]
    %v2210 = vld [vmem:[%s129 + $0x128] sm:$0xff]
    %v2211 = vld [vmem:[%s129 + $0x138] sm:$0xff]
    %v2212 = vld [vmem:[%s129 + $0x148] sm:$0xff]
    %v2213 = vld [vmem:[%s129 + $0x158] sm:$0xff]
    %v2214 = vld [vmem:[%s129 + $0x168] sm:$0xff]
    %v2215 = vld [vmem:[%s129 + $0x178] sm:$0xff]
    %v2216 = vld [vmem:[%s129 + $0x188] sm:$0xff]
    %v2217 = vld [vmem:[%s129 + $0x198] sm:$0xff]
    %v2218 = vld [vmem:[%s129 + $0x1a8] sm:$0xff]
    %v2219 = vld [vmem:[%s129 + $0x1b8] sm:$0xff]
    %v2220 = vld [vmem:[%s129 + $0x1c8] sm:$0xff]
    %v2221 = vld [vmem:[%s129 + $0x1d8] sm:$0xff]
    %v2222 = vld [vmem:[%s129 + $0x1e8] sm:$0xff]
    %v2223 = vld [vmem:[%s129 + $0x1f8] sm:$0xff]
    %v2224 = vld [vmem:[%s129 + $0x208] sm:$0xff]
    %v2225 = vld [vmem:[%s129 + $0x218] sm:$0xff]
    %v2226 = vld [vmem:[%s129 + $0x228] sm:$0xff]
    %v2227 = vld [vmem:[%s129 + $0x238] sm:$0xff]
    %v2228 = vld [vmem:[%s129 + $0x248] sm:$0xff]
    %v2229 = vld [vmem:[%s129 + $0x258] sm:$0xff]
    %v2230 = vld [vmem:[%s129 + $0x268] sm:$0xff]
    %v2231 = vld [vmem:[%s129 + $0x278] sm:$0xff]
    %v2232 = vld [vmem:[%s129 + $0x288] sm:$0xff]
    %v2233 = vld [vmem:[%s129 + $0x298] sm:$0xff]
    %v2234 = vld [vmem:[%s129 + $0x2a8] sm:$0xff]
    %v2235 = vld [vmem:[%s129 + $0x2b8] sm:$0xff]
    %v2236 = vld [vmem:[%s129 + $0x2c8] sm:$0xff]
    %v2237 = vld [vmem:[%s129 + $0x2d8] sm:$0xff]
    %v2238 = vld [vmem:[%s129 + $0x2e8] sm:$0xff]
    %v2239 = vld [vmem:[%s129 + $0x2f8] sm:$0xff]
    %v2240 = vld [vmem:[#allocation11 + $0xa] sm:$0x3]
    %v2242 = vlaneseq
    %v2243 = vshrl.u32 %v2242, 7
    %v2244 = vsub.s32 0, %v2243
    %v2245 = vrot.slane %v2240, %v2244
    %v2246 = vlaneseq
    %v2247 = vshrl.u32 %v2246, 7
    %v2248 = vsub.s32 1, %v2247
    %v2249 = vrot.slane %v2240, %v2248
    %v2300 = vunpack.c.l.b16 %v2192
    %v2301 = vunpack.c.h.b16 %v2192
    %v2302 = vunpack.c.l.b16 %v2193
    %v2303 = vunpack.c.h.b16 %v2193
    %v2304 = vunpack.c.l.b16 %v2194
    %v2305 = vunpack.c.h.b16 %v2194
    %v2306 = vunpack.c.l.b16 %v2195
    %v2307 = vunpack.c.h.b16 %v2195
    %v2308 = vunpack.c.l.b16 %v2196
    %v2309 = vunpack.c.h.b16 %v2196
    %v2310 = vunpack.c.l.b16 %v2197
    %v2311 = vunpack.c.h.b16 %v2197
    %v2312 = vunpack.c.l.b16 %v2198
    %v2313 = vunpack.c.h.b16 %v2198
    %v2314 = vunpack.c.l.b16 %v2199
    %v2315 = vunpack.c.h.b16 %v2199
    %v2316 = vunpack.c.l.b16 %v2200
    %v2317 = vunpack.c.h.b16 %v2200
    %v2318 = vunpack.c.l.b16 %v2201
    %v2319 = vunpack.c.h.b16 %v2201
    %v2320 = vunpack.c.l.b16 %v2202
    %v2321 = vunpack.c.h.b16 %v2202
    %v2322 = vunpack.c.l.b16 %v2203
    %v2323 = vunpack.c.h.b16 %v2203
    %v2324 = vunpack.c.l.b16 %v2204
    %v2325 = vunpack.c.h.b16 %v2204
    %v2326 = vunpack.c.l.b16 %v2205
    %v2327 = vunpack.c.h.b16 %v2205
    %v2328 = vunpack.c.l.b16 %v2206
    %v2329 = vunpack.c.h.b16 %v2206
    %v2330 = vunpack.c.l.b16 %v2207
    %v2331 = vunpack.c.h.b16 %v2207
    %v2332 = vunpack.c.l.b16 %v2208
    %v2333 = vunpack.c.h.b16 %v2208
    %v2334 = vunpack.c.l.b16 %v2209
    %v2335 = vunpack.c.h.b16 %v2209
    %v2336 = vunpack.c.l.b16 %v2210
    %v2337 = vunpack.c.h.b16 %v2210
    %v2338 = vunpack.c.l.b16 %v2211
    %v2339 = vunpack.c.h.b16 %v2211
    %v2340 = vunpack.c.l.b16 %v2212
    %v2341 = vunpack.c.h.b16 %v2212
    %v2342 = vunpack.c.l.b16 %v2213
    %v2343 = vunpack.c.h.b16 %v2213
    %v2344 = vunpack.c.l.b16 %v2214
    %v2345 = vunpack.c.h.b16 %v2214
    %v2346 = vunpack.c.l.b16 %v2215
    %v2347 = vunpack.c.h.b16 %v2215
    %v2348 = vunpack.c.l.b16 %v2216
    %v2349 = vunpack.c.h.b16 %v2216
    %v2350 = vunpack.c.l.b16 %v2217
    %v2351 = vunpack.c.h.b16 %v2217
    %v2352 = vunpack.c.l.b16 %v2218
    %v2353 = vunpack.c.h.b16 %v2218
    %v2354 = vunpack.c.l.b16 %v2219
    %v2355 = vunpack.c.h.b16 %v2219
    %v2356 = vunpack.c.l.b16 %v2220
    %v2357 = vunpack.c.h.b16 %v2220
    %v2358 = vunpack.c.l.b16 %v2221
    %v2359 = vunpack.c.h.b16 %v2221
    %v2360 = vunpack.c.l.b16 %v2222
    %v2361 = vunpack.c.h.b16 %v2222
    %v2362 = vunpack.c.l.b16 %v2223
    %v2363 = vunpack.c.h.b16 %v2223
    %v2364 = vunpack.c.l.b16 %v2224
    %v2365 = vunpack.c.h.b16 %v2224
    %v2366 = vunpack.c.l.b16 %v2225
    %v2367 = vunpack.c.h.b16 %v2225
    %v2368 = vunpack.c.l.b16 %v2226
    %v2369 = vunpack.c.h.b16 %v2226
    %v2370 = vunpack.c.l.b16 %v2227
    %v2371 = vunpack.c.h.b16 %v2227
    %v2372 = vunpack.c.l.b16 %v2228
    %v2373 = vunpack.c.h.b16 %v2228
    %v2374 = vunpack.c.l.b16 %v2229
    %v2375 = vunpack.c.h.b16 %v2229
    %v2376 = vunpack.c.l.b16 %v2230
    %v2377 = vunpack.c.h.b16 %v2230
    %v2378 = vunpack.c.l.b16 %v2231
    %v2379 = vunpack.c.h.b16 %v2231
    %v2380 = vunpack.c.l.b16 %v2232
    %v2381 = vunpack.c.h.b16 %v2232
    %v2382 = vunpack.c.l.b16 %v2233
    %v2383 = vunpack.c.h.b16 %v2233
    %v2384 = vunpack.c.l.b16 %v2234
    %v2385 = vunpack.c.h.b16 %v2234
    %v2386 = vunpack.c.l.b16 %v2235
    %v2387 = vunpack.c.h.b16 %v2235
    %v2388 = vunpack.c.l.b16 %v2236
    %v2389 = vunpack.c.h.b16 %v2236
    %v2390 = vunpack.c.l.b16 %v2237
    %v2391 = vunpack.c.h.b16 %v2237
    %v2392 = vunpack.c.l.b16 %v2238
    %v2393 = vunpack.c.h.b16 %v2238
    %v2394 = vunpack.c.l.b16 %v2239
    %v2395 = vunpack.c.h.b16 %v2239
    %v2396 = vpack.c.b16 %v2302, %v2300
    %v2397 = vpack.c.b16 %v2303, %v2301
    %v2398 = vpack.c.b16 %v2306, %v2304
    %v2399 = vpack.c.b16 %v2307, %v2305
    %v2400 = vpack.c.b16 %v2310, %v2308
    %v2401 = vpack.c.b16 %v2311, %v2309
    %v2402 = vpack.c.b16 %v2314, %v2312
    %v2403 = vpack.c.b16 %v2315, %v2313
    %v2404 = vpack.c.b16 %v2318, %v2316
    %v2405 = vpack.c.b16 %v2319, %v2317
    %v2406 = vpack.c.b16 %v2322, %v2320
    %v2407 = vpack.c.b16 %v2323, %v2321
    %v2408 = vpack.c.b16 %v2326, %v2324
    %v2409 = vpack.c.b16 %v2327, %v2325
    %v2410 = vpack.c.b16 %v2330, %v2328
    %v2411 = vpack.c.b16 %v2331, %v2329
    %v2412 = vpack.c.b16 %v2334, %v2332
    %v2413 = vpack.c.b16 %v2335, %v2333
    %v2414 = vpack.c.b16 %v2338, %v2336
    %v2415 = vpack.c.b16 %v2339, %v2337
    %v2416 = vpack.c.b16 %v2342, %v2340
    %v2417 = vpack.c.b16 %v2343, %v2341
    %v2418 = vpack.c.b16 %v2346, %v2344
    %v2419 = vpack.c.b16 %v2347, %v2345
    %v2420 = vpack.c.b16 %v2350, %v2348
    %v2421 = vpack.c.b16 %v2351, %v2349
    %v2422 = vpack.c.b16 %v2354, %v2352
    %v2423 = vpack.c.b16 %v2355, %v2353
    %v2424 = vpack.c.b16 %v2358, %v2356
    %v2425 = vpack.c.b16 %v2359, %v2357
    %v2426 = vpack.c.b16 %v2362, %v2360
    %v2427 = vpack.c.b16 %v2363, %v2361
    %v2428 = vpack.c.b16 %v2366, %v2364
    %v2429 = vpack.c.b16 %v2367, %v2365
    %v2430 = vpack.c.b16 %v2370, %v2368
    %v2431 = vpack.c.b16 %v2371, %v2369
    %v2432 = vpack.c.b16 %v2374, %v2372
    %v2433 = vpack.c.b16 %v2375, %v2373
    %v2434 = vpack.c.b16 %v2378, %v2376
    %v2435 = vpack.c.b16 %v2379, %v2377
    %v2436 = vpack.c.b16 %v2382, %v2380
    %v2437 = vpack.c.b16 %v2383, %v2381
    %v2438 = vpack.c.b16 %v2386, %v2384
    %v2439 = vpack.c.b16 %v2387, %v2385
    %v2440 = vpack.c.b16 %v2390, %v2388
    %v2441 = vpack.c.b16 %v2391, %v2389
    %v2442 = vpack.c.b16 %v2394, %v2392
    %v2443 = vpack.c.b16 %v2395, %v2393
    %2492 = vmatprep.subr.bf16.mxu0 %v2411
    %2493 = vmatpush1.bf16.msra.mxu0 %v2410
    %2494 = vmatprep.subr.bf16.mxu0 %v2409
    %2495 = vmatpush1.bf16.msra.mxu0 %v2408
    %2496 = vmatprep.subr.bf16.mxu0 %v2407
    %2497 = vmatpush1.bf16.msra.mxu0 %v2406
    %2498 = vmatprep.subr.bf16.mxu0 %v2405
    %2499 = vmatpush1.bf16.msra.mxu0 %v2404
    %2500 = vmatprep.subr.bf16.mxu0 %v2403
    %2501 = vmatpush1.bf16.msra.mxu0 %v2402
    %2502 = vmatprep.subr.bf16.mxu0 %v2401
    %2503 = vmatpush1.bf16.msra.mxu0 %v2400
    %2504 = vmatprep.subr.bf16.mxu0 %v2399
    %2505 = vmatpush1.bf16.msra.mxu0 %v2398
    %2506 = vmatprep.subr.bf16.mxu0 %v2397
    %2507 = vmatpush1.bf16.msra.mxu0 %v2396
    %2508 = vmatprep.subr.bf16.mxu0 %v2427
    %2509 = vmatpush2.bf16.msra.mxu0 %v2426
    %2510 = vmatprep.subr.bf16.mxu0 %v2425
    %2511 = vmatpush2.bf16.msra.mxu0 %v2424
    %2512 = vmatprep.subr.bf16.mxu0 %v2423
    %2513 = vmatpush2.bf16.msra.mxu0 %v2422
    %2514 = vmatprep.subr.bf16.mxu0 %v2421
    %2515 = vmatpush2.bf16.msra.mxu0 %v2420
    %2516 = vmatprep.subr.bf16.mxu0 %v2419
    %2517 = vmatpush2.bf16.msra.mxu0 %v2418
    %2518 = vmatprep.subr.bf16.mxu0 %v2417
    %2519 = vmatpush2.bf16.msra.mxu0 %v2416
    %2520 = vmatprep.subr.bf16.mxu0 %v2415
    %2521 = vmatpush2.bf16.msra.mxu0 %v2414
    %2522 = vmatprep.subr.bf16.mxu0 %v2413
    %2523 = vmatpush2.bf16.msra.mxu0 %v2412
    %2524 = vmatprep.mubr.bf16.mxu0 %v278
    %2525 = vmatmul.mubr.bf16.gmra.mxu0 %v277
    %v2526 = vpop.f32.mrf.mxu0
    %v2527 = vadd.f32 %v2245, %v2526
    %v2528 = vpop.f32.mrf.mxu0
    %v2529 = vadd.f32 %v2249, %v2528
    %v2530 = vpop.f32.mrf.mxu0
    %v2531 = vpop.f32.mrf.mxu0
    %2532 = vdwg.mxu0
    %2533 = vmatprep.subr.bf16.mxu0 %v2443
    %2534 = vmatpush1.bf16.msra.mxu0 %v2442
    %2535 = vmatprep.subr.bf16.mxu0 %v2441
    %2536 = vmatpush1.bf16.msra.mxu0 %v2440
    %2537 = vmatprep.subr.bf16.mxu0 %v2439
    %2538 = vmatpush1.bf16.msra.mxu0 %v2438
    %2539 = vmatprep.subr.bf16.mxu0 %v2437
    %2540 = vmatpush1.bf16.msra.mxu0 %v2436
    %2541 = vmatprep.subr.bf16.mxu0 %v2435
    %2542 = vmatpush1.bf16.msra.mxu0 %v2434
    %2543 = vmatprep.subr.bf16.mxu0 %v2433
    %2544 = vmatpush1.bf16.msra.mxu0 %v2432
    %2545 = vmatprep.subr.bf16.mxu0 %v2431
    %2546 = vmatpush1.bf16.msra.mxu0 %v2430
    %2547 = vmatprep.subr.bf16.mxu0 %v2429
    %2548 = vmatpush1.bf16.msra.mxu0 %v2428
    %2549 = vmatprep.subr.bf16.mxu0 0
    %2550 = vmatpush2.bf16.msra.mxu0 0
    %2551 = vmatprep.subr.bf16.mxu0 0
    %2552 = vmatpush2.bf16.msra.mxu0 0
    %2553 = vmatprep.subr.bf16.mxu0 0
    %2554 = vmatpush2.bf16.msra.mxu0 0
    %2555 = vmatprep.subr.bf16.mxu0 0
    %2556 = vmatpush2.bf16.msra.mxu0 0
    %2557 = vmatprep.subr.bf16.mxu0 0
    %2558 = vmatpush2.bf16.msra.mxu0 0
    %2559 = vmatprep.subr.bf16.mxu0 0
    %2560 = vmatpush2.bf16.msra.mxu0 0
    %2561 = vmatprep.subr.bf16.mxu0 0
    %2562 = vmatpush2.bf16.msra.mxu0 0
    %2563 = vmatprep.subr.bf16.mxu0 0
    %2564 = vmatpush2.bf16.msra.mxu0 0
    %2565 = vmatprep.mubr.bf16.mxu0 0
    %2566 = vmatmul.mubr.bf16.gmra.mxu0 %v279
    %v2567 = vpop.f32.mrf.mxu0
    %v2568 = vadd.f32 %v2527, %v2567
    %v2569 = vpop.f32.mrf.mxu0
    %v2570 = vadd.f32 %v2529, %v2569
    %v2571 = vpop.f32.mrf.mxu0
    %v2572 = vpop.f32.mrf.mxu0
    %2573 = vdwg.mxu0
    %v2574 = vmax.f32 %v2568, 0.0
    %v2575 = vmax.f32 %v2570, 0.0
    %v2576 = vpack.c.bf16 %v2574, %v2574
    %v2577 = vpack.c.bf16 %v2575, %v2575
    %v2580 = vunpack.c.l.b16 %v2576
    %v2581 = vunpack.c.l.b16 %v2577
    %v2582 = vpack.c.b16 %v2581, %v2580
    %2584 = vst [vmem:[#allocation2 + $0x28] sm:$0xff] %v2582
    %s2585 = sshll.u32 %s209, 4
    %2586 = dma.done %s144, %s2585
    %v2587 = vld [vmem:[%s143] sm:$0xff]
    %v2588 = vld [vmem:[%s143 + $0x10] sm:$0xff]
    %v2589 = vld [vmem:[%s143 + $0x20] sm:$0xff]
    %v2590 = vld [vmem:[%s143 + $0x30] sm:$0xff]
    %v2591 = vld [vmem:[%s143 + $0x40] sm:$0xff]
    %v2592 = vld [vmem:[%s143 + $0x50] sm:$0xff]
    %v2593 = vld [vmem:[%s143 + $0x60] sm:$0xff]
    %v2594 = vld [vmem:[%s143 + $0x70] sm:$0xff]
    %v2595 = vld [vmem:[%s143 + $0x80] sm:$0xff]
    %v2596 = vld [vmem:[%s143 + $0x90] sm:$0xff]
    %v2597 = vld [vmem:[%s143 + $0xa0] sm:$0xff]
    %v2598 = vld [vmem:[%s143 + $0xb0] sm:$0xff]
    %v2599 = vld [vmem:[%s143 + $0xc0] sm:$0xff]
    %v2600 = vld [vmem:[%s143 + $0xd0] sm:$0xff]
    %v2601 = vld [vmem:[%s143 + $0xe0] sm:$0xff]
    %v2602 = vld [vmem:[%s143 + $0xf0] sm:$0xff]
    %v2603 = vld [vmem:[%s143 + $0x100] sm:$0xff]
    %v2604 = vld [vmem:[%s143 + $0x110] sm:$0xff]
    %v2605 = vld [vmem:[%s143 + $0x120] sm:$0xff]
    %v2606 = vld [vmem:[%s143 + $0x130] sm:$0xff]
    %v2607 = vld [vmem:[%s143 + $0x140] sm:$0xff]
    %v2608 = vld [vmem:[%s143 + $0x150] sm:$0xff]
    %v2609 = vld [vmem:[%s143 + $0x160] sm:$0xff]
    %v2610 = vld [vmem:[%s143 + $0x170] sm:$0xff]
    %v2611 = vld [vmem:[%s143 + $0x180] sm:$0xff]
    %v2612 = vld [vmem:[%s143 + $0x190] sm:$0xff]
    %v2613 = vld [vmem:[%s143 + $0x1a0] sm:$0xff]
    %v2614 = vld [vmem:[%s143 + $0x1b0] sm:$0xff]
    %v2615 = vld [vmem:[%s143 + $0x1c0] sm:$0xff]
    %v2616 = vld [vmem:[%s143 + $0x1d0] sm:$0xff]
    %v2617 = vld [vmem:[%s143 + $0x1e0] sm:$0xff]
    %v2618 = vld [vmem:[%s143 + $0x1f0] sm:$0xff]
    %v2619 = vld [vmem:[%s143 + $0x200] sm:$0xff]
    %v2620 = vld [vmem:[%s143 + $0x210] sm:$0xff]
    %v2621 = vld [vmem:[%s143 + $0x220] sm:$0xff]
    %v2622 = vld [vmem:[%s143 + $0x230] sm:$0xff]
    %v2623 = vld [vmem:[%s143 + $0x240] sm:$0xff]
    %v2624 = vld [vmem:[%s143 + $0x250] sm:$0xff]
    %v2625 = vld [vmem:[%s143 + $0x260] sm:$0xff]
    %v2626 = vld [vmem:[%s143 + $0x270] sm:$0xff]
    %v2627 = vld [vmem:[%s143 + $0x280] sm:$0xff]
    %v2628 = vld [vmem:[%s143 + $0x290] sm:$0xff]
    %v2629 = vld [vmem:[%s143 + $0x2a0] sm:$0xff]
    %v2630 = vld [vmem:[%s143 + $0x2b0] sm:$0xff]
    %v2631 = vld [vmem:[%s143 + $0x2c0] sm:$0xff]
    %v2632 = vld [vmem:[%s143 + $0x2d0] sm:$0xff]
    %v2633 = vld [vmem:[%s143 + $0x2e0] sm:$0xff]
    %v2634 = vld [vmem:[%s143 + $0x2f0] sm:$0xff]
    %v2635 = vld [vmem:[#allocation11 + $0xc] sm:$0x3]
    %v2637 = vlaneseq
    %v2638 = vshrl.u32 %v2637, 7
    %v2639 = vsub.s32 0, %v2638
    %v2640 = vrot.slane %v2635, %v2639
    %v2641 = vlaneseq
    %v2642 = vshrl.u32 %v2641, 7
    %v2643 = vsub.s32 1, %v2642
    %v2644 = vrot.slane %v2635, %v2643
    %v2695 = vunpack.c.l.b16 %v2587
    %v2696 = vunpack.c.h.b16 %v2587
    %v2697 = vunpack.c.l.b16 %v2588
    %v2698 = vunpack.c.h.b16 %v2588
    %v2699 = vunpack.c.l.b16 %v2589
    %v2700 = vunpack.c.h.b16 %v2589
    %v2701 = vunpack.c.l.b16 %v2590
    %v2702 = vunpack.c.h.b16 %v2590
    %v2703 = vunpack.c.l.b16 %v2591
    %v2704 = vunpack.c.h.b16 %v2591
    %v2705 = vunpack.c.l.b16 %v2592
    %v2706 = vunpack.c.h.b16 %v2592
    %v2707 = vunpack.c.l.b16 %v2593
    %v2708 = vunpack.c.h.b16 %v2593
    %v2709 = vunpack.c.l.b16 %v2594
    %v2710 = vunpack.c.h.b16 %v2594
    %v2711 = vunpack.c.l.b16 %v2595
    %v2712 = vunpack.c.h.b16 %v2595
    %v2713 = vunpack.c.l.b16 %v2596
    %v2714 = vunpack.c.h.b16 %v2596
    %v2715 = vunpack.c.l.b16 %v2597
    %v2716 = vunpack.c.h.b16 %v2597
    %v2717 = vunpack.c.l.b16 %v2598
    %v2718 = vunpack.c.h.b16 %v2598
    %v2719 = vunpack.c.l.b16 %v2599
    %v2720 = vunpack.c.h.b16 %v2599
    %v2721 = vunpack.c.l.b16 %v2600
    %v2722 = vunpack.c.h.b16 %v2600
    %v2723 = vunpack.c.l.b16 %v2601
    %v2724 = vunpack.c.h.b16 %v2601
    %v2725 = vunpack.c.l.b16 %v2602
    %v2726 = vunpack.c.h.b16 %v2602
    %v2727 = vunpack.c.l.b16 %v2603
    %v2728 = vunpack.c.h.b16 %v2603
    %v2729 = vunpack.c.l.b16 %v2604
    %v2730 = vunpack.c.h.b16 %v2604
    %v2731 = vunpack.c.l.b16 %v2605
    %v2732 = vunpack.c.h.b16 %v2605
    %v2733 = vunpack.c.l.b16 %v2606
    %v2734 = vunpack.c.h.b16 %v2606
    %v2735 = vunpack.c.l.b16 %v2607
    %v2736 = vunpack.c.h.b16 %v2607
    %v2737 = vunpack.c.l.b16 %v2608
    %v2738 = vunpack.c.h.b16 %v2608
    %v2739 = vunpack.c.l.b16 %v2609
    %v2740 = vunpack.c.h.b16 %v2609
    %v2741 = vunpack.c.l.b16 %v2610
    %v2742 = vunpack.c.h.b16 %v2610
    %v2743 = vunpack.c.l.b16 %v2611
    %v2744 = vunpack.c.h.b16 %v2611
    %v2745 = vunpack.c.l.b16 %v2612
    %v2746 = vunpack.c.h.b16 %v2612
    %v2747 = vunpack.c.l.b16 %v2613
    %v2748 = vunpack.c.h.b16 %v2613
    %v2749 = vunpack.c.l.b16 %v2614
    %v2750 = vunpack.c.h.b16 %v2614
    %v2751 = vunpack.c.l.b16 %v2615
    %v2752 = vunpack.c.h.b16 %v2615
    %v2753 = vunpack.c.l.b16 %v2616
    %v2754 = vunpack.c.h.b16 %v2616
    %v2755 = vunpack.c.l.b16 %v2617
    %v2756 = vunpack.c.h.b16 %v2617
    %v2757 = vunpack.c.l.b16 %v2618
    %v2758 = vunpack.c.h.b16 %v2618
    %v2759 = vunpack.c.l.b16 %v2619
    %v2760 = vunpack.c.h.b16 %v2619
    %v2761 = vunpack.c.l.b16 %v2620
    %v2762 = vunpack.c.h.b16 %v2620
    %v2763 = vunpack.c.l.b16 %v2621
    %v2764 = vunpack.c.h.b16 %v2621
    %v2765 = vunpack.c.l.b16 %v2622
    %v2766 = vunpack.c.h.b16 %v2622
    %v2767 = vunpack.c.l.b16 %v2623
    %v2768 = vunpack.c.h.b16 %v2623
    %v2769 = vunpack.c.l.b16 %v2624
    %v2770 = vunpack.c.h.b16 %v2624
    %v2771 = vunpack.c.l.b16 %v2625
    %v2772 = vunpack.c.h.b16 %v2625
    %v2773 = vunpack.c.l.b16 %v2626
    %v2774 = vunpack.c.h.b16 %v2626
    %v2775 = vunpack.c.l.b16 %v2627
    %v2776 = vunpack.c.h.b16 %v2627
    %v2777 = vunpack.c.l.b16 %v2628
    %v2778 = vunpack.c.h.b16 %v2628
    %v2779 = vunpack.c.l.b16 %v2629
    %v2780 = vunpack.c.h.b16 %v2629
    %v2781 = vunpack.c.l.b16 %v2630
    %v2782 = vunpack.c.h.b16 %v2630
    %v2783 = vunpack.c.l.b16 %v2631
    %v2784 = vunpack.c.h.b16 %v2631
    %v2785 = vunpack.c.l.b16 %v2632
    %v2786 = vunpack.c.h.b16 %v2632
    %v2787 = vunpack.c.l.b16 %v2633
    %v2788 = vunpack.c.h.b16 %v2633
    %v2789 = vunpack.c.l.b16 %v2634
    %v2790 = vunpack.c.h.b16 %v2634
    %v2791 = vpack.c.b16 %v2697, %v2695
    %v2792 = vpack.c.b16 %v2698, %v2696
    %v2793 = vpack.c.b16 %v2701, %v2699
    %v2794 = vpack.c.b16 %v2702, %v2700
    %v2795 = vpack.c.b16 %v2705, %v2703
    %v2796 = vpack.c.b16 %v2706, %v2704
    %v2797 = vpack.c.b16 %v2709, %v2707
    %v2798 = vpack.c.b16 %v2710, %v2708
    %v2799 = vpack.c.b16 %v2713, %v2711
    %v2800 = vpack.c.b16 %v2714, %v2712
    %v2801 = vpack.c.b16 %v2717, %v2715
    %v2802 = vpack.c.b16 %v2718, %v2716
    %v2803 = vpack.c.b16 %v2721, %v2719
    %v2804 = vpack.c.b16 %v2722, %v2720
    %v2805 = vpack.c.b16 %v2725, %v2723
    %v2806 = vpack.c.b16 %v2726, %v2724
    %v2807 = vpack.c.b16 %v2729, %v2727
    %v2808 = vpack.c.b16 %v2730, %v2728
    %v2809 = vpack.c.b16 %v2733, %v2731
    %v2810 = vpack.c.b16 %v2734, %v2732
    %v2811 = vpack.c.b16 %v2737, %v2735
    %v2812 = vpack.c.b16 %v2738, %v2736
    %v2813 = vpack.c.b16 %v2741, %v2739
    %v2814 = vpack.c.b16 %v2742, %v2740
    %v2815 = vpack.c.b16 %v2745, %v2743
    %v2816 = vpack.c.b16 %v2746, %v2744
    %v2817 = vpack.c.b16 %v2749, %v2747
    %v2818 = vpack.c.b16 %v2750, %v2748
    %v2819 = vpack.c.b16 %v2753, %v2751
    %v2820 = vpack.c.b16 %v2754, %v2752
    %v2821 = vpack.c.b16 %v2757, %v2755
    %v2822 = vpack.c.b16 %v2758, %v2756
    %v2823 = vpack.c.b16 %v2761, %v2759
    %v2824 = vpack.c.b16 %v2762, %v2760
    %v2825 = vpack.c.b16 %v2765, %v2763
    %v2826 = vpack.c.b16 %v2766, %v2764
    %v2827 = vpack.c.b16 %v2769, %v2767
    %v2828 = vpack.c.b16 %v2770, %v2768
    %v2829 = vpack.c.b16 %v2773, %v2771
    %v2830 = vpack.c.b16 %v2774, %v2772
    %v2831 = vpack.c.b16 %v2777, %v2775
    %v2832 = vpack.c.b16 %v2778, %v2776
    %v2833 = vpack.c.b16 %v2781, %v2779
    %v2834 = vpack.c.b16 %v2782, %v2780
    %v2835 = vpack.c.b16 %v2785, %v2783
    %v2836 = vpack.c.b16 %v2786, %v2784
    %v2837 = vpack.c.b16 %v2789, %v2787
    %v2838 = vpack.c.b16 %v2790, %v2788
    %2887 = vmatprep.subr.bf16.mxu0 %v2806
    %2888 = vmatpush1.bf16.msra.mxu0 %v2805
    %2889 = vmatprep.subr.bf16.mxu0 %v2804
    %2890 = vmatpush1.bf16.msra.mxu0 %v2803
    %2891 = vmatprep.subr.bf16.mxu0 %v2802
    %2892 = vmatpush1.bf16.msra.mxu0 %v2801
    %2893 = vmatprep.subr.bf16.mxu0 %v2800
    %2894 = vmatpush1.bf16.msra.mxu0 %v2799
    %2895 = vmatprep.subr.bf16.mxu0 %v2798
    %2896 = vmatpush1.bf16.msra.mxu0 %v2797
    %2897 = vmatprep.subr.bf16.mxu0 %v2796
    %2898 = vmatpush1.bf16.msra.mxu0 %v2795
    %2899 = vmatprep.subr.bf16.mxu0 %v2794
    %2900 = vmatpush1.bf16.msra.mxu0 %v2793
    %2901 = vmatprep.subr.bf16.mxu0 %v2792
    %2902 = vmatpush1.bf16.msra.mxu0 %v2791
    %2903 = vmatprep.subr.bf16.mxu0 %v2822
    %2904 = vmatpush2.bf16.msra.mxu0 %v2821
    %2905 = vmatprep.subr.bf16.mxu0 %v2820
    %2906 = vmatpush2.bf16.msra.mxu0 %v2819
    %2907 = vmatprep.subr.bf16.mxu0 %v2818
    %2908 = vmatpush2.bf16.msra.mxu0 %v2817
    %2909 = vmatprep.subr.bf16.mxu0 %v2816
    %2910 = vmatpush2.bf16.msra.mxu0 %v2815
    %2911 = vmatprep.subr.bf16.mxu0 %v2814
    %2912 = vmatpush2.bf16.msra.mxu0 %v2813
    %2913 = vmatprep.subr.bf16.mxu0 %v2812
    %2914 = vmatpush2.bf16.msra.mxu0 %v2811
    %2915 = vmatprep.subr.bf16.mxu0 %v2810
    %2916 = vmatpush2.bf16.msra.mxu0 %v2809
    %2917 = vmatprep.subr.bf16.mxu0 %v2808
    %2918 = vmatpush2.bf16.msra.mxu0 %v2807
    %2919 = vmatprep.mubr.bf16.mxu0 %v278
    %2920 = vmatmul.mubr.bf16.gmra.mxu0 %v277
    %v2921 = vpop.f32.mrf.mxu0
    %v2922 = vadd.f32 %v2640, %v2921
    %v2923 = vpop.f32.mrf.mxu0
    %v2924 = vadd.f32 %v2644, %v2923
    %v2925 = vpop.f32.mrf.mxu0
    %v2926 = vpop.f32.mrf.mxu0
    %2927 = vdwg.mxu0
    %2928 = vmatprep.subr.bf16.mxu0 %v2838
    %2929 = vmatpush1.bf16.msra.mxu0 %v2837
    %2930 = vmatprep.subr.bf16.mxu0 %v2836
    %2931 = vmatpush1.bf16.msra.mxu0 %v2835
    %2932 = vmatprep.subr.bf16.mxu0 %v2834
    %2933 = vmatpush1.bf16.msra.mxu0 %v2833
    %2934 = vmatprep.subr.bf16.mxu0 %v2832
    %2935 = vmatpush1.bf16.msra.mxu0 %v2831
    %2936 = vmatprep.subr.bf16.mxu0 %v2830
    %2937 = vmatpush1.bf16.msra.mxu0 %v2829
    %2938 = vmatprep.subr.bf16.mxu0 %v2828
    %2939 = vmatpush1.bf16.msra.mxu0 %v2827
    %2940 = vmatprep.subr.bf16.mxu0 %v2826
    %2941 = vmatpush1.bf16.msra.mxu0 %v2825
    %2942 = vmatprep.subr.bf16.mxu0 %v2824
    %2943 = vmatpush1.bf16.msra.mxu0 %v2823
    %2944 = vmatprep.subr.bf16.mxu0 0
    %2945 = vmatpush2.bf16.msra.mxu0 0
    %2946 = vmatprep.subr.bf16.mxu0 0
    %2947 = vmatpush2.bf16.msra.mxu0 0
    %2948 = vmatprep.subr.bf16.mxu0 0
    %2949 = vmatpush2.bf16.msra.mxu0 0
    %2950 = vmatprep.subr.bf16.mxu0 0
    %2951 = vmatpush2.bf16.msra.mxu0 0
    %2952 = vmatprep.subr.bf16.mxu0 0
    %2953 = vmatpush2.bf16.msra.mxu0 0
    %2954 = vmatprep.subr.bf16.mxu0 0
    %2955 = vmatpush2.bf16.msra.mxu0 0
    %2956 = vmatprep.subr.bf16.mxu0 0
    %2957 = vmatpush2.bf16.msra.mxu0 0
    %2958 = vmatprep.subr.bf16.mxu0 0
    %2959 = vmatpush2.bf16.msra.mxu0 0
    %2960 = vmatprep.mubr.bf16.mxu0 0
    %2961 = vmatmul.mubr.bf16.gmra.mxu0 %v279
    %v2962 = vpop.f32.mrf.mxu0
    %v2963 = vadd.f32 %v2922, %v2962
    %v2964 = vpop.f32.mrf.mxu0
    %v2965 = vadd.f32 %v2924, %v2964
    %v2966 = vpop.f32.mrf.mxu0
    %v2967 = vpop.f32.mrf.mxu0
    %2968 = vdwg.mxu0
    %v2969 = vmax.f32 %v2963, 0.0
    %v2970 = vmax.f32 %v2965, 0.0
    %v2971 = vpack.c.bf16 %v2969, %v2969
    %v2972 = vpack.c.bf16 %v2970, %v2970
    %v2975 = vunpack.c.l.b16 %v2971
    %v2976 = vunpack.c.l.b16 %v2972
    %v2977 = vpack.c.b16 %v2976, %v2975
    %2979 = vst [vmem:[#allocation2 + $0x30] sm:$0xff] %v2977
    %v2980 = vld [vmem:[%s143 + $0x8] sm:$0xff]
    %v2981 = vld [vmem:[%s143 + $0x18] sm:$0xff]
    %v2982 = vld [vmem:[%s143 + $0x28] sm:$0xff]
    %v2983 = vld [vmem:[%s143 + $0x38] sm:$0xff]
    %v2984 = vld [vmem:[%s143 + $0x48] sm:$0xff]
    %v2985 = vld [vmem:[%s143 + $0x58] sm:$0xff]
    %v2986 = vld [vmem:[%s143 + $0x68] sm:$0xff]
    %v2987 = vld [vmem:[%s143 + $0x78] sm:$0xff]
    %v2988 = vld [vmem:[%s143 + $0x88] sm:$0xff]
    %v2989 = vld [vmem:[%s143 + $0x98] sm:$0xff]
    %v2990 = vld [vmem:[%s143 + $0xa8] sm:$0xff]
    %v2991 = vld [vmem:[%s143 + $0xb8] sm:$0xff]
    %v2992 = vld [vmem:[%s143 + $0xc8] sm:$0xff]
    %v2993 = vld [vmem:[%s143 + $0xd8] sm:$0xff]
    %v2994 = vld [vmem:[%s143 + $0xe8] sm:$0xff]
    %v2995 = vld [vmem:[%s143 + $0xf8] sm:$0xff]
    %v2996 = vld [vmem:[%s143 + $0x108] sm:$0xff]
    %v2997 = vld [vmem:[%s143 + $0x118] sm:$0xff]
    %v2998 = vld [vmem:[%s143 + $0x128] sm:$0xff]
    %v2999 = vld [vmem:[%s143 + $0x138] sm:$0xff]
    %v3000 = vld [vmem:[%s143 + $0x148] sm:$0xff]
    %v3001 = vld [vmem:[%s143 + $0x158] sm:$0xff]
    %v3002 = vld [vmem:[%s143 + $0x168] sm:$0xff]
    %v3003 = vld [vmem:[%s143 + $0x178] sm:$0xff]
    %v3004 = vld [vmem:[%s143 + $0x188] sm:$0xff]
    %v3005 = vld [vmem:[%s143 + $0x198] sm:$0xff]
    %v3006 = vld [vmem:[%s143 + $0x1a8] sm:$0xff]
    %v3007 = vld [vmem:[%s143 + $0x1b8] sm:$0xff]
    %v3008 = vld [vmem:[%s143 + $0x1c8] sm:$0xff]
    %v3009 = vld [vmem:[%s143 + $0x1d8] sm:$0xff]
    %v3010 = vld [vmem:[%s143 + $0x1e8] sm:$0xff]
    %v3011 = vld [vmem:[%s143 + $0x1f8] sm:$0xff]
    %v3012 = vld [vmem:[%s143 + $0x208] sm:$0xff]
    %v3013 = vld [vmem:[%s143 + $0x218] sm:$0xff]
    %v3014 = vld [vmem:[%s143 + $0x228] sm:$0xff]
    %v3015 = vld [vmem:[%s143 + $0x238] sm:$0xff]
    %v3016 = vld [vmem:[%s143 + $0x248] sm:$0xff]
    %v3017 = vld [vmem:[%s143 + $0x258] sm:$0xff]
    %v3018 = vld [vmem:[%s143 + $0x268] sm:$0xff]
    %v3019 = vld [vmem:[%s143 + $0x278] sm:$0xff]
    %v3020 = vld [vmem:[%s143 + $0x288] sm:$0xff]
    %v3021 = vld [vmem:[%s143 + $0x298] sm:$0xff]
    %v3022 = vld [vmem:[%s143 + $0x2a8] sm:$0xff]
    %v3023 = vld [vmem:[%s143 + $0x2b8] sm:$0xff]
    %v3024 = vld [vmem:[%s143 + $0x2c8] sm:$0xff]
    %v3025 = vld [vmem:[%s143 + $0x2d8] sm:$0xff]
    %v3026 = vld [vmem:[%s143 + $0x2e8] sm:$0xff]
    %v3027 = vld [vmem:[%s143 + $0x2f8] sm:$0xff]
    %v3028 = vld [vmem:[#allocation11 + $0xe] sm:$0x3]
    %v3030 = vlaneseq
    %v3031 = vshrl.u32 %v3030, 7
    %v3032 = vsub.s32 0, %v3031
    %v3033 = vrot.slane %v3028, %v3032
    %v3034 = vlaneseq
    %v3035 = vshrl.u32 %v3034, 7
    %v3036 = vsub.s32 1, %v3035
    %v3037 = vrot.slane %v3028, %v3036
    %v3088 = vunpack.c.l.b16 %v2980
    %v3089 = vunpack.c.h.b16 %v2980
    %v3090 = vunpack.c.l.b16 %v2981
    %v3091 = vunpack.c.h.b16 %v2981
    %v3092 = vunpack.c.l.b16 %v2982
    %v3093 = vunpack.c.h.b16 %v2982
    %v3094 = vunpack.c.l.b16 %v2983
    %v3095 = vunpack.c.h.b16 %v2983
    %v3096 = vunpack.c.l.b16 %v2984
    %v3097 = vunpack.c.h.b16 %v2984
    %v3098 = vunpack.c.l.b16 %v2985
    %v3099 = vunpack.c.h.b16 %v2985
    %v3100 = vunpack.c.l.b16 %v2986
    %v3101 = vunpack.c.h.b16 %v2986
    %v3102 = vunpack.c.l.b16 %v2987
    %v3103 = vunpack.c.h.b16 %v2987
    %v3104 = vunpack.c.l.b16 %v2988
    %v3105 = vunpack.c.h.b16 %v2988
    %v3106 = vunpack.c.l.b16 %v2989
    %v3107 = vunpack.c.h.b16 %v2989
    %v3108 = vunpack.c.l.b16 %v2990
    %v3109 = vunpack.c.h.b16 %v2990
    %v3110 = vunpack.c.l.b16 %v2991
    %v3111 = vunpack.c.h.b16 %v2991
    %v3112 = vunpack.c.l.b16 %v2992
    %v3113 = vunpack.c.h.b16 %v2992
    %v3114 = vunpack.c.l.b16 %v2993
    %v3115 = vunpack.c.h.b16 %v2993
    %v3116 = vunpack.c.l.b16 %v2994
    %v3117 = vunpack.c.h.b16 %v2994
    %v3118 = vunpack.c.l.b16 %v2995
    %v3119 = vunpack.c.h.b16 %v2995
    %v3120 = vunpack.c.l.b16 %v2996
    %v3121 = vunpack.c.h.b16 %v2996
    %v3122 = vunpack.c.l.b16 %v2997
    %v3123 = vunpack.c.h.b16 %v2997
    %v3124 = vunpack.c.l.b16 %v2998
    %v3125 = vunpack.c.h.b16 %v2998
    %v3126 = vunpack.c.l.b16 %v2999
    %v3127 = vunpack.c.h.b16 %v2999
    %v3128 = vunpack.c.l.b16 %v3000
    %v3129 = vunpack.c.h.b16 %v3000
    %v3130 = vunpack.c.l.b16 %v3001
    %v3131 = vunpack.c.h.b16 %v3001
    %v3132 = vunpack.c.l.b16 %v3002
    %v3133 = vunpack.c.h.b16 %v3002
    %v3134 = vunpack.c.l.b16 %v3003
    %v3135 = vunpack.c.h.b16 %v3003
    %v3136 = vunpack.c.l.b16 %v3004
    %v3137 = vunpack.c.h.b16 %v3004
    %v3138 = vunpack.c.l.b16 %v3005
    %v3139 = vunpack.c.h.b16 %v3005
    %v3140 = vunpack.c.l.b16 %v3006
    %v3141 = vunpack.c.h.b16 %v3006
    %v3142 = vunpack.c.l.b16 %v3007
    %v3143 = vunpack.c.h.b16 %v3007
    %v3144 = vunpack.c.l.b16 %v3008
    %v3145 = vunpack.c.h.b16 %v3008
    %v3146 = vunpack.c.l.b16 %v3009
    %v3147 = vunpack.c.h.b16 %v3009
    %v3148 = vunpack.c.l.b16 %v3010
    %v3149 = vunpack.c.h.b16 %v3010
    %v3150 = vunpack.c.l.b16 %v3011
    %v3151 = vunpack.c.h.b16 %v3011
    %v3152 = vunpack.c.l.b16 %v3012
    %v3153 = vunpack.c.h.b16 %v3012
    %v3154 = vunpack.c.l.b16 %v3013
    %v3155 = vunpack.c.h.b16 %v3013
    %v3156 = vunpack.c.l.b16 %v3014
    %v3157 = vunpack.c.h.b16 %v3014
    %v3158 = vunpack.c.l.b16 %v3015
    %v3159 = vunpack.c.h.b16 %v3015
    %v3160 = vunpack.c.l.b16 %v3016
    %v3161 = vunpack.c.h.b16 %v3016
    %v3162 = vunpack.c.l.b16 %v3017
    %v3163 = vunpack.c.h.b16 %v3017
    %v3164 = vunpack.c.l.b16 %v3018
    %v3165 = vunpack.c.h.b16 %v3018
    %v3166 = vunpack.c.l.b16 %v3019
    %v3167 = vunpack.c.h.b16 %v3019
    %v3168 = vunpack.c.l.b16 %v3020
    %v3169 = vunpack.c.h.b16 %v3020
    %v3170 = vunpack.c.l.b16 %v3021
    %v3171 = vunpack.c.h.b16 %v3021
    %v3172 = vunpack.c.l.b16 %v3022
    %v3173 = vunpack.c.h.b16 %v3022
    %v3174 = vunpack.c.l.b16 %v3023
    %v3175 = vunpack.c.h.b16 %v3023
    %v3176 = vunpack.c.l.b16 %v3024
    %v3177 = vunpack.c.h.b16 %v3024
    %v3178 = vunpack.c.l.b16 %v3025
    %v3179 = vunpack.c.h.b16 %v3025
    %v3180 = vunpack.c.l.b16 %v3026
    %v3181 = vunpack.c.h.b16 %v3026
    %v3182 = vunpack.c.l.b16 %v3027
    %v3183 = vunpack.c.h.b16 %v3027
    %v3184 = vpack.c.b16 %v3090, %v3088
    %v3185 = vpack.c.b16 %v3091, %v3089
    %v3186 = vpack.c.b16 %v3094, %v3092
    %v3187 = vpack.c.b16 %v3095, %v3093
    %v3188 = vpack.c.b16 %v3098, %v3096
    %v3189 = vpack.c.b16 %v3099, %v3097
    %v3190 = vpack.c.b16 %v3102, %v3100
    %v3191 = vpack.c.b16 %v3103, %v3101
    %v3192 = vpack.c.b16 %v3106, %v3104
    %v3193 = vpack.c.b16 %v3107, %v3105
    %v3194 = vpack.c.b16 %v3110, %v3108
    %v3195 = vpack.c.b16 %v3111, %v3109
    %v3196 = vpack.c.b16 %v3114, %v3112
    %v3197 = vpack.c.b16 %v3115, %v3113
    %v3198 = vpack.c.b16 %v3118, %v3116
    %v3199 = vpack.c.b16 %v3119, %v3117
    %v3200 = vpack.c.b16 %v3122, %v3120
    %v3201 = vpack.c.b16 %v3123, %v3121
    %v3202 = vpack.c.b16 %v3126, %v3124
    %v3203 = vpack.c.b16 %v3127, %v3125
    %v3204 = vpack.c.b16 %v3130, %v3128
    %v3205 = vpack.c.b16 %v3131, %v3129
    %v3206 = vpack.c.b16 %v3134, %v3132
    %v3207 = vpack.c.b16 %v3135, %v3133
    %v3208 = vpack.c.b16 %v3138, %v3136
    %v3209 = vpack.c.b16 %v3139, %v3137
    %v3210 = vpack.c.b16 %v3142, %v3140
    %v3211 = vpack.c.b16 %v3143, %v3141
    %v3212 = vpack.c.b16 %v3146, %v3144
    %v3213 = vpack.c.b16 %v3147, %v3145
    %v3214 = vpack.c.b16 %v3150, %v3148
    %v3215 = vpack.c.b16 %v3151, %v3149
    %v3216 = vpack.c.b16 %v3154, %v3152
    %v3217 = vpack.c.b16 %v3155, %v3153
    %v3218 = vpack.c.b16 %v3158, %v3156
    %v3219 = vpack.c.b16 %v3159, %v3157
    %v3220 = vpack.c.b16 %v3162, %v3160
    %v3221 = vpack.c.b16 %v3163, %v3161
    %v3222 = vpack.c.b16 %v3166, %v3164
    %v3223 = vpack.c.b16 %v3167, %v3165
    %v3224 = vpack.c.b16 %v3170, %v3168
    %v3225 = vpack.c.b16 %v3171, %v3169
    %v3226 = vpack.c.b16 %v3174, %v3172
    %v3227 = vpack.c.b16 %v3175, %v3173
    %v3228 = vpack.c.b16 %v3178, %v3176
    %v3229 = vpack.c.b16 %v3179, %v3177
    %v3230 = vpack.c.b16 %v3182, %v3180
    %v3231 = vpack.c.b16 %v3183, %v3181
    %3280 = vmatprep.subr.bf16.mxu0 %v3199
    %3281 = vmatpush1.bf16.msra.mxu0 %v3198
    %3282 = vmatprep.subr.bf16.mxu0 %v3197
    %3283 = vmatpush1.bf16.msra.mxu0 %v3196
    %3284 = vmatprep.subr.bf16.mxu0 %v3195
    %3285 = vmatpush1.bf16.msra.mxu0 %v3194
    %3286 = vmatprep.subr.bf16.mxu0 %v3193
    %3287 = vmatpush1.bf16.msra.mxu0 %v3192
    %3288 = vmatprep.subr.bf16.mxu0 %v3191
    %3289 = vmatpush1.bf16.msra.mxu0 %v3190
    %3290 = vmatprep.subr.bf16.mxu0 %v3189
    %3291 = vmatpush1.bf16.msra.mxu0 %v3188
    %3292 = vmatprep.subr.bf16.mxu0 %v3187
    %3293 = vmatpush1.bf16.msra.mxu0 %v3186
    %3294 = vmatprep.subr.bf16.mxu0 %v3185
    %3295 = vmatpush1.bf16.msra.mxu0 %v3184
    %3296 = vmatprep.subr.bf16.mxu0 %v3215
    %3297 = vmatpush2.bf16.msra.mxu0 %v3214
    %3298 = vmatprep.subr.bf16.mxu0 %v3213
    %3299 = vmatpush2.bf16.msra.mxu0 %v3212
    %3300 = vmatprep.subr.bf16.mxu0 %v3211
    %3301 = vmatpush2.bf16.msra.mxu0 %v3210
    %3302 = vmatprep.subr.bf16.mxu0 %v3209
    %3303 = vmatpush2.bf16.msra.mxu0 %v3208
    %3304 = vmatprep.subr.bf16.mxu0 %v3207
    %3305 = vmatpush2.bf16.msra.mxu0 %v3206
    %3306 = vmatprep.subr.bf16.mxu0 %v3205
    %3307 = vmatpush2.bf16.msra.mxu0 %v3204
    %3308 = vmatprep.subr.bf16.mxu0 %v3203
    %3309 = vmatpush2.bf16.msra.mxu0 %v3202
    %3310 = vmatprep.subr.bf16.mxu0 %v3201
    %3311 = vmatpush2.bf16.msra.mxu0 %v3200
    %3312 = vmatprep.mubr.bf16.mxu0 %v278
    %3313 = vmatmul.mubr.bf16.gmra.mxu0 %v277
    %v3314 = vpop.f32.mrf.mxu0
    %v3315 = vadd.f32 %v3033, %v3314
    %v3316 = vpop.f32.mrf.mxu0
    %v3317 = vadd.f32 %v3037, %v3316
    %v3318 = vpop.f32.mrf.mxu0
    %v3319 = vpop.f32.mrf.mxu0
    %3320 = vdwg.mxu0
    %3321 = vmatprep.subr.bf16.mxu0 %v3231
    %3322 = vmatpush1.bf16.msra.mxu0 %v3230
    %3323 = vmatprep.subr.bf16.mxu0 %v3229
    %3324 = vmatpush1.bf16.msra.mxu0 %v3228
    %3325 = vmatprep.subr.bf16.mxu0 %v3227
    %3326 = vmatpush1.bf16.msra.mxu0 %v3226
    %3327 = vmatprep.subr.bf16.mxu0 %v3225
    %3328 = vmatpush1.bf16.msra.mxu0 %v3224
    %3329 = vmatprep.subr.bf16.mxu0 %v3223
    %3330 = vmatpush1.bf16.msra.mxu0 %v3222
    %3331 = vmatprep.subr.bf16.mxu0 %v3221
    %3332 = vmatpush1.bf16.msra.mxu0 %v3220
    %3333 = vmatprep.subr.bf16.mxu0 %v3219
    %3334 = vmatpush1.bf16.msra.mxu0 %v3218
    %3335 = vmatprep.subr.bf16.mxu0 %v3217
    %3336 = vmatpush1.bf16.msra.mxu0 %v3216
    %3337 = vmatprep.subr.bf16.mxu0 0
    %3338 = vmatpush2.bf16.msra.mxu0 0
    %3339 = vmatprep.subr.bf16.mxu0 0
    %3340 = vmatpush2.bf16.msra.mxu0 0
    %3341 = vmatprep.subr.bf16.mxu0 0
    %3342 = vmatpush2.bf16.msra.mxu0 0
    %3343 = vmatprep.subr.bf16.mxu0 0
    %3344 = vmatpush2.bf16.msra.mxu0 0
    %3345 = vmatprep.subr.bf16.mxu0 0
    %3346 = vmatpush2.bf16.msra.mxu0 0
    %3347 = vmatprep.subr.bf16.mxu0 0
    %3348 = vmatpush2.bf16.msra.mxu0 0
    %3349 = vmatprep.subr.bf16.mxu0 0
    %3350 = vmatpush2.bf16.msra.mxu0 0
    %3351 = vmatprep.subr.bf16.mxu0 0
    %3352 = vmatpush2.bf16.msra.mxu0 0
    %3353 = vmatprep.mubr.bf16.mxu0 0
    %3354 = vmatmul.mubr.bf16.gmra.mxu0 %v279
    %v3355 = vpop.f32.mrf.mxu0
    %v3356 = vadd.f32 %v3315, %v3355
    %v3357 = vpop.f32.mrf.mxu0
    %v3358 = vadd.f32 %v3317, %v3357
    %v3359 = vpop.f32.mrf.mxu0
    %v3360 = vpop.f32.mrf.mxu0
    %3361 = vdwg.mxu0
    %v3362 = vmax.f32 %v3356, 0.0
    %v3363 = vmax.f32 %v3358, 0.0
    %v3364 = vpack.c.bf16 %v3362, %v3362
    %v3365 = vpack.c.bf16 %v3363, %v3363
    %v3368 = vunpack.c.l.b16 %v3364
    %v3369 = vunpack.c.l.b16 %v3365
    %v3370 = vpack.c.b16 %v3369, %v3368
    %3372 = vst [vmem:[#allocation2 + $0x38] sm:$0xff] %v3370
    %v3373 = vld [vmem:[#allocation2] sm:$0xff]
    %v3374 = vld [vmem:[#allocation2 + $0x8] sm:$0xff]
    %v3375 = vld [vmem:[#allocation2 + $0x10] sm:$0xff]
    %v3376 = vld [vmem:[#allocation2 + $0x18] sm:$0xff]
    %v3377 = vld [vmem:[#allocation2 + $0x20] sm:$0xff]
    %v3378 = vld [vmem:[#allocation2 + $0x28] sm:$0xff]
    %v3379 = vld [vmem:[#allocation2 + $0x30] sm:$0xff]
    %v3380 = vld [vmem:[#allocation2 + $0x38] sm:$0xff]
    %s3381 = smul.u32 4, 256
    %s3382 = smul.u32 %s3381, 4
    %s3383 = sshll.u32 %s3382, 4
    %3384 = dma.done %s156, %s3383
    %v3385 = vld [vmem:[#allocation5] sm:$0xff]
    %v3386 = vld [vmem:[#allocation5 + $0x10] sm:$0xff]
    %v3387 = vld [vmem:[#allocation5 + $0x20] sm:$0xff]
    %v3388 = vld [vmem:[#allocation5 + $0x30] sm:$0xff]
    %v3389 = vld [vmem:[#allocation5 + $0x40] sm:$0xff]
    %v3390 = vld [vmem:[#allocation5 + $0x50] sm:$0xff]
    %v3391 = vld [vmem:[#allocation5 + $0x60] sm:$0xff]
    %v3392 = vld [vmem:[#allocation5 + $0x70] sm:$0xff]
    %v3393 = vld [vmem:[#allocation5 + $0x80] sm:$0xff]
    %v3394 = vld [vmem:[#allocation5 + $0x90] sm:$0xff]
    %v3395 = vld [vmem:[#allocation5 + $0xa0] sm:$0xff]
    %v3396 = vld [vmem:[#allocation5 + $0xb0] sm:$0xff]
    %v3397 = vld [vmem:[#allocation5 + $0xc0] sm:$0xff]
    %v3398 = vld [vmem:[#allocation5 + $0xd0] sm:$0xff]
    %v3399 = vld [vmem:[#allocation5 + $0xe0] sm:$0xff]
    %v3400 = vld [vmem:[#allocation5 + $0xf0] sm:$0xff]
    %v3401 = vld [vmem:[#allocation5 + $0x100] sm:$0xff]
    %v3402 = vld [vmem:[#allocation5 + $0x110] sm:$0xff]
    %v3403 = vld [vmem:[#allocation5 + $0x120] sm:$0xff]
    %v3404 = vld [vmem:[#allocation5 + $0x130] sm:$0xff]
    %v3405 = vld [vmem:[#allocation5 + $0x140] sm:$0xff]
    %v3406 = vld [vmem:[#allocation5 + $0x150] sm:$0xff]
    %v3407 = vld [vmem:[#allocation5 + $0x160] sm:$0xff]
    %v3408 = vld [vmem:[#allocation5 + $0x170] sm:$0xff]
    %v3409 = vld [vmem:[#allocation5 + $0x180] sm:$0xff]
    %v3410 = vld [vmem:[#allocation5 + $0x190] sm:$0xff]
    %v3411 = vld [vmem:[#allocation5 + $0x1a0] sm:$0xff]
    %v3412 = vld [vmem:[#allocation5 + $0x1b0] sm:$0xff]
    %v3413 = vld [vmem:[#allocation5 + $0x1c0] sm:$0xff]
    %v3414 = vld [vmem:[#allocation5 + $0x1d0] sm:$0xff]
    %v3415 = vld [vmem:[#allocation5 + $0x1e0] sm:$0xff]
    %v3416 = vld [vmem:[#allocation5 + $0x1f0] sm:$0xff]
    %v3417 = vld [vmem:[#allocation5 + $0x200] sm:$0xff]
    %v3418 = vld [vmem:[#allocation5 + $0x210] sm:$0xff]
    %v3419 = vld [vmem:[#allocation5 + $0x220] sm:$0xff]
    %v3420 = vld [vmem:[#allocation5 + $0x230] sm:$0xff]
    %v3421 = vld [vmem:[#allocation5 + $0x240] sm:$0xff]
    %v3422 = vld [vmem:[#allocation5 + $0x250] sm:$0xff]
    %v3423 = vld [vmem:[#allocation5 + $0x260] sm:$0xff]
    %v3424 = vld [vmem:[#allocation5 + $0x270] sm:$0xff]
    %v3425 = vld [vmem:[#allocation5 + $0x280] sm:$0xff]
    %v3426 = vld [vmem:[#allocation5 + $0x290] sm:$0xff]
    %v3427 = vld [vmem:[#allocation5 + $0x2a0] sm:$0xff]
    %v3428 = vld [vmem:[#allocation5 + $0x2b0] sm:$0xff]
    %v3429 = vld [vmem:[#allocation5 + $0x2c0] sm:$0xff]
    %v3430 = vld [vmem:[#allocation5 + $0x2d0] sm:$0xff]
    %v3431 = vld [vmem:[#allocation5 + $0x2e0] sm:$0xff]
    %v3432 = vld [vmem:[#allocation5 + $0x2f0] sm:$0xff]
    %v3433 = vld [vmem:[#allocation5 + $0x300] sm:$0xff]
    %v3434 = vld [vmem:[#allocation5 + $0x310] sm:$0xff]
    %v3435 = vld [vmem:[#allocation5 + $0x320] sm:$0xff]
    %v3436 = vld [vmem:[#allocation5 + $0x330] sm:$0xff]
    %v3437 = vld [vmem:[#allocation5 + $0x340] sm:$0xff]
    %v3438 = vld [vmem:[#allocation5 + $0x350] sm:$0xff]
    %v3439 = vld [vmem:[#allocation5 + $0x360] sm:$0xff]
    %v3440 = vld [vmem:[#allocation5 + $0x370] sm:$0xff]
    %v3441 = vld [vmem:[#allocation5 + $0x380] sm:$0xff]
    %v3442 = vld [vmem:[#allocation5 + $0x390] sm:$0xff]
    %v3443 = vld [vmem:[#allocation5 + $0x3a0] sm:$0xff]
    %v3444 = vld [vmem:[#allocation5 + $0x3b0] sm:$0xff]
    %v3445 = vld [vmem:[#allocation5 + $0x3c0] sm:$0xff]
    %v3446 = vld [vmem:[#allocation5 + $0x3d0] sm:$0xff]
    %v3447 = vld [vmem:[#allocation5 + $0x3e0] sm:$0xff]
    %v3448 = vld [vmem:[#allocation5 + $0x3f0] sm:$0xff]
    %v3449 = vld [vmem:[#allocation5 + $0x400] sm:$0xff]
    %v3450 = vld [vmem:[#allocation5 + $0x410] sm:$0xff]
    %v3451 = vld [vmem:[#allocation5 + $0x420] sm:$0xff]
    %v3452 = vld [vmem:[#allocation5 + $0x430] sm:$0xff]
    %v3453 = vld [vmem:[#allocation5 + $0x440] sm:$0xff]
    %v3454 = vld [vmem:[#allocation5 + $0x450] sm:$0xff]
    %v3455 = vld [vmem:[#allocation5 + $0x460] sm:$0xff]
    %v3456 = vld [vmem:[#allocation5 + $0x470] sm:$0xff]
    %v3457 = vld [vmem:[#allocation5 + $0x480] sm:$0xff]
    %v3458 = vld [vmem:[#allocation5 + $0x490] sm:$0xff]
    %v3459 = vld [vmem:[#allocation5 + $0x4a0] sm:$0xff]
    %v3460 = vld [vmem:[#allocation5 + $0x4b0] sm:$0xff]
    %v3461 = vld [vmem:[#allocation5 + $0x4c0] sm:$0xff]
    %v3462 = vld [vmem:[#allocation5 + $0x4d0] sm:$0xff]
    %v3463 = vld [vmem:[#allocation5 + $0x4e0] sm:$0xff]
    %v3464 = vld [vmem:[#allocation5 + $0x4f0] sm:$0xff]
    %v3465 = vld [vmem:[#allocation5 + $0x500] sm:$0xff]
    %v3466 = vld [vmem:[#allocation5 + $0x510] sm:$0xff]
    %v3467 = vld [vmem:[#allocation5 + $0x520] sm:$0xff]
    %v3468 = vld [vmem:[#allocation5 + $0x530] sm:$0xff]
    %v3469 = vld [vmem:[#allocation5 + $0x540] sm:$0xff]
    %v3470 = vld [vmem:[#allocation5 + $0x550] sm:$0xff]
    %v3471 = vld [vmem:[#allocation5 + $0x560] sm:$0xff]
    %v3472 = vld [vmem:[#allocation5 + $0x570] sm:$0xff]
    %v3473 = vld [vmem:[#allocation5 + $0x580] sm:$0xff]
    %v3474 = vld [vmem:[#allocation5 + $0x590] sm:$0xff]
    %v3475 = vld [vmem:[#allocation5 + $0x5a0] sm:$0xff]
    %v3476 = vld [vmem:[#allocation5 + $0x5b0] sm:$0xff]
    %v3477 = vld [vmem:[#allocation5 + $0x5c0] sm:$0xff]
    %v3478 = vld [vmem:[#allocation5 + $0x5d0] sm:$0xff]
    %v3479 = vld [vmem:[#allocation5 + $0x5e0] sm:$0xff]
    %v3480 = vld [vmem:[#allocation5 + $0x5f0] sm:$0xff]
    %v3481 = vld [vmem:[#allocation5 + $0x600] sm:$0xff]
    %v3482 = vld [vmem:[#allocation5 + $0x610] sm:$0xff]
    %v3483 = vld [vmem:[#allocation5 + $0x620] sm:$0xff]
    %v3484 = vld [vmem:[#allocation5 + $0x630] sm:$0xff]
    %v3485 = vld [vmem:[#allocation5 + $0x640] sm:$0xff]
    %v3486 = vld [vmem:[#allocation5 + $0x650] sm:$0xff]
    %v3487 = vld [vmem:[#allocation5 + $0x660] sm:$0xff]
    %v3488 = vld [vmem:[#allocation5 + $0x670] sm:$0xff]
    %v3489 = vld [vmem:[#allocation5 + $0x680] sm:$0xff]
    %v3490 = vld [vmem:[#allocation5 + $0x690] sm:$0xff]
    %v3491 = vld [vmem:[#allocation5 + $0x6a0] sm:$0xff]
    %v3492 = vld [vmem:[#allocation5 + $0x6b0] sm:$0xff]
    %v3493 = vld [vmem:[#allocation5 + $0x6c0] sm:$0xff]
    %v3494 = vld [vmem:[#allocation5 + $0x6d0] sm:$0xff]
    %v3495 = vld [vmem:[#allocation5 + $0x6e0] sm:$0xff]
    %v3496 = vld [vmem:[#allocation5 + $0x6f0] sm:$0xff]
    %v3497 = vld [vmem:[#allocation5 + $0x700] sm:$0xff]
    %v3498 = vld [vmem:[#allocation5 + $0x710] sm:$0xff]
    %v3499 = vld [vmem:[#allocation5 + $0x720] sm:$0xff]
    %v3500 = vld [vmem:[#allocation5 + $0x730] sm:$0xff]
    %v3501 = vld [vmem:[#allocation5 + $0x740] sm:$0xff]
    %v3502 = vld [vmem:[#allocation5 + $0x750] sm:$0xff]
    %v3503 = vld [vmem:[#allocation5 + $0x760] sm:$0xff]
    %v3504 = vld [vmem:[#allocation5 + $0x770] sm:$0xff]
    %v3505 = vld [vmem:[#allocation5 + $0x780] sm:$0xff]
    %v3506 = vld [vmem:[#allocation5 + $0x790] sm:$0xff]
    %v3507 = vld [vmem:[#allocation5 + $0x7a0] sm:$0xff]
    %v3508 = vld [vmem:[#allocation5 + $0x7b0] sm:$0xff]
    %v3509 = vld [vmem:[#allocation5 + $0x7c0] sm:$0xff]
    %v3510 = vld [vmem:[#allocation5 + $0x7d0] sm:$0xff]
    %v3511 = vld [vmem:[#allocation5 + $0x7e0] sm:$0xff]
    %v3512 = vld [vmem:[#allocation5 + $0x7f0] sm:$0xff]
    %v3513 = vld [vmem:[#allocation5 + $0x800] sm:$0xff]
    %v3514 = vld [vmem:[#allocation5 + $0x810] sm:$0xff]
    %v3515 = vld [vmem:[#allocation5 + $0x820] sm:$0xff]
    %v3516 = vld [vmem:[#allocation5 + $0x830] sm:$0xff]
    %v3517 = vld [vmem:[#allocation5 + $0x840] sm:$0xff]
    %v3518 = vld [vmem:[#allocation5 + $0x850] sm:$0xff]
    %v3519 = vld [vmem:[#allocation5 + $0x860] sm:$0xff]
    %v3520 = vld [vmem:[#allocation5 + $0x870] sm:$0xff]
    %v3521 = vld [vmem:[#allocation5 + $0x880] sm:$0xff]
    %v3522 = vld [vmem:[#allocation5 + $0x890] sm:$0xff]
    %v3523 = vld [vmem:[#allocation5 + $0x8a0] sm:$0xff]
    %v3524 = vld [vmem:[#allocation5 + $0x8b0] sm:$0xff]
    %v3525 = vld [vmem:[#allocation5 + $0x8c0] sm:$0xff]
    %v3526 = vld [vmem:[#allocation5 + $0x8d0] sm:$0xff]
    %v3527 = vld [vmem:[#allocation5 + $0x8e0] sm:$0xff]
    %v3528 = vld [vmem:[#allocation5 + $0x8f0] sm:$0xff]
    %v3529 = vld [vmem:[#allocation5 + $0x900] sm:$0xff]
    %v3530 = vld [vmem:[#allocation5 + $0x910] sm:$0xff]
    %v3531 = vld [vmem:[#allocation5 + $0x920] sm:$0xff]
    %v3532 = vld [vmem:[#allocation5 + $0x930] sm:$0xff]
    %v3533 = vld [vmem:[#allocation5 + $0x940] sm:$0xff]
    %v3534 = vld [vmem:[#allocation5 + $0x950] sm:$0xff]
    %v3535 = vld [vmem:[#allocation5 + $0x960] sm:$0xff]
    %v3536 = vld [vmem:[#allocation5 + $0x970] sm:$0xff]
    %v3537 = vld [vmem:[#allocation5 + $0x980] sm:$0xff]
    %v3538 = vld [vmem:[#allocation5 + $0x990] sm:$0xff]
    %v3539 = vld [vmem:[#allocation5 + $0x9a0] sm:$0xff]
    %v3540 = vld [vmem:[#allocation5 + $0x9b0] sm:$0xff]
    %v3541 = vld [vmem:[#allocation5 + $0x9c0] sm:$0xff]
    %v3542 = vld [vmem:[#allocation5 + $0x9d0] sm:$0xff]
    %v3543 = vld [vmem:[#allocation5 + $0x9e0] sm:$0xff]
    %v3544 = vld [vmem:[#allocation5 + $0x9f0] sm:$0xff]
    %v3545 = vld [vmem:[#allocation5 + $0xa00] sm:$0xff]
    %v3546 = vld [vmem:[#allocation5 + $0xa10] sm:$0xff]
    %v3547 = vld [vmem:[#allocation5 + $0xa20] sm:$0xff]
    %v3548 = vld [vmem:[#allocation5 + $0xa30] sm:$0xff]
    %v3549 = vld [vmem:[#allocation5 + $0xa40] sm:$0xff]
    %v3550 = vld [vmem:[#allocation5 + $0xa50] sm:$0xff]
    %v3551 = vld [vmem:[#allocation5 + $0xa60] sm:$0xff]
    %v3552 = vld [vmem:[#allocation5 + $0xa70] sm:$0xff]
    %v3553 = vld [vmem:[#allocation5 + $0xa80] sm:$0xff]
    %v3554 = vld [vmem:[#allocation5 + $0xa90] sm:$0xff]
    %v3555 = vld [vmem:[#allocation5 + $0xaa0] sm:$0xff]
    %v3556 = vld [vmem:[#allocation5 + $0xab0] sm:$0xff]
    %v3557 = vld [vmem:[#allocation5 + $0xac0] sm:$0xff]
    %v3558 = vld [vmem:[#allocation5 + $0xad0] sm:$0xff]
    %v3559 = vld [vmem:[#allocation5 + $0xae0] sm:$0xff]
    %v3560 = vld [vmem:[#allocation5 + $0xaf0] sm:$0xff]
    %v3561 = vld [vmem:[#allocation5 + $0xb00] sm:$0xff]
    %v3562 = vld [vmem:[#allocation5 + $0xb10] sm:$0xff]
    %v3563 = vld [vmem:[#allocation5 + $0xb20] sm:$0xff]
    %v3564 = vld [vmem:[#allocation5 + $0xb30] sm:$0xff]
    %v3565 = vld [vmem:[#allocation5 + $0xb40] sm:$0xff]
    %v3566 = vld [vmem:[#allocation5 + $0xb50] sm:$0xff]
    %v3567 = vld [vmem:[#allocation5 + $0xb60] sm:$0xff]
    %v3568 = vld [vmem:[#allocation5 + $0xb70] sm:$0xff]
    %v3569 = vld [vmem:[#allocation5 + $0xb80] sm:$0xff]
    %v3570 = vld [vmem:[#allocation5 + $0xb90] sm:$0xff]
    %v3571 = vld [vmem:[#allocation5 + $0xba0] sm:$0xff]
    %v3572 = vld [vmem:[#allocation5 + $0xbb0] sm:$0xff]
    %v3573 = vld [vmem:[#allocation5 + $0xbc0] sm:$0xff]
    %v3574 = vld [vmem:[#allocation5 + $0xbd0] sm:$0xff]
    %v3575 = vld [vmem:[#allocation5 + $0xbe0] sm:$0xff]
    %v3576 = vld [vmem:[#allocation5 + $0xbf0] sm:$0xff]
    %v3577 = vld [vmem:[#allocation5 + $0xc00] sm:$0xff]
    %v3578 = vld [vmem:[#allocation5 + $0xc10] sm:$0xff]
    %v3579 = vld [vmem:[#allocation5 + $0xc20] sm:$0xff]
    %v3580 = vld [vmem:[#allocation5 + $0xc30] sm:$0xff]
    %v3581 = vld [vmem:[#allocation5 + $0xc40] sm:$0xff]
    %v3582 = vld [vmem:[#allocation5 + $0xc50] sm:$0xff]
    %v3583 = vld [vmem:[#allocation5 + $0xc60] sm:$0xff]
    %v3584 = vld [vmem:[#allocation5 + $0xc70] sm:$0xff]
    %v3585 = vld [vmem:[#allocation5 + $0xc80] sm:$0xff]
    %v3586 = vld [vmem:[#allocation5 + $0xc90] sm:$0xff]
    %v3587 = vld [vmem:[#allocation5 + $0xca0] sm:$0xff]
    %v3588 = vld [vmem:[#allocation5 + $0xcb0] sm:$0xff]
    %v3589 = vld [vmem:[#allocation5 + $0xcc0] sm:$0xff]
    %v3590 = vld [vmem:[#allocation5 + $0xcd0] sm:$0xff]
    %v3591 = vld [vmem:[#allocation5 + $0xce0] sm:$0xff]
    %v3592 = vld [vmem:[#allocation5 + $0xcf0] sm:$0xff]
    %v3593 = vld [vmem:[#allocation5 + $0xd00] sm:$0xff]
    %v3594 = vld [vmem:[#allocation5 + $0xd10] sm:$0xff]
    %v3595 = vld [vmem:[#allocation5 + $0xd20] sm:$0xff]
    %v3596 = vld [vmem:[#allocation5 + $0xd30] sm:$0xff]
    %v3597 = vld [vmem:[#allocation5 + $0xd40] sm:$0xff]
    %v3598 = vld [vmem:[#allocation5 + $0xd50] sm:$0xff]
    %v3599 = vld [vmem:[#allocation5 + $0xd60] sm:$0xff]
    %v3600 = vld [vmem:[#allocation5 + $0xd70] sm:$0xff]
    %v3601 = vld [vmem:[#allocation5 + $0xd80] sm:$0xff]
    %v3602 = vld [vmem:[#allocation5 + $0xd90] sm:$0xff]
    %v3603 = vld [vmem:[#allocation5 + $0xda0] sm:$0xff]
    %v3604 = vld [vmem:[#allocation5 + $0xdb0] sm:$0xff]
    %v3605 = vld [vmem:[#allocation5 + $0xdc0] sm:$0xff]
    %v3606 = vld [vmem:[#allocation5 + $0xdd0] sm:$0xff]
    %v3607 = vld [vmem:[#allocation5 + $0xde0] sm:$0xff]
    %v3608 = vld [vmem:[#allocation5 + $0xdf0] sm:$0xff]
    %v3609 = vld [vmem:[#allocation5 + $0xe00] sm:$0xff]
    %v3610 = vld [vmem:[#allocation5 + $0xe10] sm:$0xff]
    %v3611 = vld [vmem:[#allocation5 + $0xe20] sm:$0xff]
    %v3612 = vld [vmem:[#allocation5 + $0xe30] sm:$0xff]
    %v3613 = vld [vmem:[#allocation5 + $0xe40] sm:$0xff]
    %v3614 = vld [vmem:[#allocation5 + $0xe50] sm:$0xff]
    %v3615 = vld [vmem:[#allocation5 + $0xe60] sm:$0xff]
    %v3616 = vld [vmem:[#allocation5 + $0xe70] sm:$0xff]
    %v3617 = vld [vmem:[#allocation5 + $0xe80] sm:$0xff]
    %v3618 = vld [vmem:[#allocation5 + $0xe90] sm:$0xff]
    %v3619 = vld [vmem:[#allocation5 + $0xea0] sm:$0xff]
    %v3620 = vld [vmem:[#allocation5 + $0xeb0] sm:$0xff]
    %v3621 = vld [vmem:[#allocation5 + $0xec0] sm:$0xff]
    %v3622 = vld [vmem:[#allocation5 + $0xed0] sm:$0xff]
    %v3623 = vld [vmem:[#allocation5 + $0xee0] sm:$0xff]
    %v3624 = vld [vmem:[#allocation5 + $0xef0] sm:$0xff]
    %v3625 = vld [vmem:[#allocation5 + $0xf00] sm:$0xff]
    %v3626 = vld [vmem:[#allocation5 + $0xf10] sm:$0xff]
    %v3627 = vld [vmem:[#allocation5 + $0xf20] sm:$0xff]
    %v3628 = vld [vmem:[#allocation5 + $0xf30] sm:$0xff]
    %v3629 = vld [vmem:[#allocation5 + $0xf40] sm:$0xff]
    %v3630 = vld [vmem:[#allocation5 + $0xf50] sm:$0xff]
    %v3631 = vld [vmem:[#allocation5 + $0xf60] sm:$0xff]
    %v3632 = vld [vmem:[#allocation5 + $0xf70] sm:$0xff]
    %v3633 = vld [vmem:[#allocation5 + $0xf80] sm:$0xff]
    %v3634 = vld [vmem:[#allocation5 + $0xf90] sm:$0xff]
    %v3635 = vld [vmem:[#allocation5 + $0xfa0] sm:$0xff]
    %v3636 = vld [vmem:[#allocation5 + $0xfb0] sm:$0xff]
    %v3637 = vld [vmem:[#allocation5 + $0xfc0] sm:$0xff]
    %v3638 = vld [vmem:[#allocation5 + $0xfd0] sm:$0xff]
    %v3639 = vld [vmem:[#allocation5 + $0xfe0] sm:$0xff]
    %v3640 = vld [vmem:[#allocation5 + $0xff0] sm:$0xff]
    %v3641 = vld [vmem:[#allocation13] sm:$0x3]
    %v3643 = vlaneseq
    %v3644 = vshrl.u32 %v3643, 7
    %v3645 = vsub.s32 0, %v3644
    %v3646 = vrot.slane %v3641, %v3645
    %v3647 = vlaneseq
    %v3648 = vshrl.u32 %v3647, 7
    %v3649 = vsub.s32 1, %v3648
    %v3650 = vrot.slane %v3641, %v3649
    %v3661 = vunpack.c.l.b16 %v3373
    %v3662 = vunpack.c.h.b16 %v3373
    %v3663 = vunpack.c.l.b16 %v3374
    %v3664 = vunpack.c.h.b16 %v3374
    %v3665 = vunpack.c.l.b16 %v3375
    %v3666 = vunpack.c.h.b16 %v3375
    %v3667 = vunpack.c.l.b16 %v3376
    %v3668 = vunpack.c.h.b16 %v3376
    %v3669 = vunpack.c.l.b16 %v3377
    %v3670 = vunpack.c.h.b16 %v3377
    %v3671 = vunpack.c.l.b16 %v3378
    %v3672 = vunpack.c.h.b16 %v3378
    %v3673 = vunpack.c.l.b16 %v3379
    %v3674 = vunpack.c.h.b16 %v3379
    %v3675 = vunpack.c.l.b16 %v3380
    %v3676 = vunpack.c.h.b16 %v3380
    %v3677 = vpack.c.b16 %v3661, %v3661
    %v3678 = vpack.c.b16 %v3662, %v3662
    %v3679 = vpack.c.b16 %v3663, %v3663
    %v3680 = vpack.c.b16 %v3664, %v3664
    %v3681 = vpack.c.b16 %v3665, %v3665
    %v3682 = vpack.c.b16 %v3666, %v3666
    %v3683 = vpack.c.b16 %v3667, %v3667
    %v3684 = vpack.c.b16 %v3668, %v3668
    %v3685 = vpack.c.b16 %v3669, %v3669
    %v3686 = vpack.c.b16 %v3670, %v3670
    %v3687 = vpack.c.b16 %v3671, %v3671
    %v3688 = vpack.c.b16 %v3672, %v3672
    %v3689 = vpack.c.b16 %v3673, %v3673
    %v3690 = vpack.c.b16 %v3674, %v3674
    %v3691 = vpack.c.b16 %v3675, %v3675
    %v3692 = vpack.c.b16 %v3676, %v3676
    %v3965 = vunpack.c.l.b16 %v3385
    %v3966 = vunpack.c.h.b16 %v3385
    %v3967 = vunpack.c.l.b16 %v3386
    %v3968 = vunpack.c.h.b16 %v3386
    %v3969 = vunpack.c.l.b16 %v3387
    %v3970 = vunpack.c.h.b16 %v3387
    %v3971 = vunpack.c.l.b16 %v3388
    %v3972 = vunpack.c.h.b16 %v3388
    %v3973 = vunpack.c.l.b16 %v3389
    %v3974 = vunpack.c.h.b16 %v3389
    %v3975 = vunpack.c.l.b16 %v3390
    %v3976 = vunpack.c.h.b16 %v3390
    %v3977 = vunpack.c.l.b16 %v3391
    %v3978 = vunpack.c.h.b16 %v3391
    %v3979 = vunpack.c.l.b16 %v3392
    %v3980 = vunpack.c.h.b16 %v3392
    %v3981 = vunpack.c.l.b16 %v3393
    %v3982 = vunpack.c.h.b16 %v3393
    %v3983 = vunpack.c.l.b16 %v3394
    %v3984 = vunpack.c.h.b16 %v3394
    %v3985 = vunpack.c.l.b16 %v3395
    %v3986 = vunpack.c.h.b16 %v3395
    %v3987 = vunpack.c.l.b16 %v3396
    %v3988 = vunpack.c.h.b16 %v3396
    %v3989 = vunpack.c.l.b16 %v3397
    %v3990 = vunpack.c.h.b16 %v3397
    %v3991 = vunpack.c.l.b16 %v3398
    %v3992 = vunpack.c.h.b16 %v3398
    %v3993 = vunpack.c.l.b16 %v3399
    %v3994 = vunpack.c.h.b16 %v3399
    %v3995 = vunpack.c.l.b16 %v3400
    %v3996 = vunpack.c.h.b16 %v3400
    %v3997 = vunpack.c.l.b16 %v3401
    %v3998 = vunpack.c.h.b16 %v3401
    %v3999 = vunpack.c.l.b16 %v3402
    %v4000 = vunpack.c.h.b16 %v3402
    %v4001 = vunpack.c.l.b16 %v3403
    %v4002 = vunpack.c.h.b16 %v3403
    %v4003 = vunpack.c.l.b16 %v3404
    %v4004 = vunpack.c.h.b16 %v3404
    %v4005 = vunpack.c.l.b16 %v3405
    %v4006 = vunpack.c.h.b16 %v3405
    %v4007 = vunpack.c.l.b16 %v3406
    %v4008 = vunpack.c.h.b16 %v3406
    %v4009 = vunpack.c.l.b16 %v3407
    %v4010 = vunpack.c.h.b16 %v3407
    %v4011 = vunpack.c.l.b16 %v3408
    %v4012 = vunpack.c.h.b16 %v3408
    %v4013 = vunpack.c.l.b16 %v3409
    %v4014 = vunpack.c.h.b16 %v3409
    %v4015 = vunpack.c.l.b16 %v3410
    %v4016 = vunpack.c.h.b16 %v3410
    %v4017 = vunpack.c.l.b16 %v3411
    %v4018 = vunpack.c.h.b16 %v3411
    %v4019 = vunpack.c.l.b16 %v3412
    %v4020 = vunpack.c.h.b16 %v3412
    %v4021 = vunpack.c.l.b16 %v3413
    %v4022 = vunpack.c.h.b16 %v3413
    %v4023 = vunpack.c.l.b16 %v3414
    %v4024 = vunpack.c.h.b16 %v3414
    %v4025 = vunpack.c.l.b16 %v3415
    %v4026 = vunpack.c.h.b16 %v3415
    %v4027 = vunpack.c.l.b16 %v3416
    %v4028 = vunpack.c.h.b16 %v3416
    %v4029 = vunpack.c.l.b16 %v3417
    %v4030 = vunpack.c.h.b16 %v3417
    %v4031 = vunpack.c.l.b16 %v3418
    %v4032 = vunpack.c.h.b16 %v3418
    %v4033 = vunpack.c.l.b16 %v3419
    %v4034 = vunpack.c.h.b16 %v3419
    %v4035 = vunpack.c.l.b16 %v3420
    %v4036 = vunpack.c.h.b16 %v3420
    %v4037 = vunpack.c.l.b16 %v3421
    %v4038 = vunpack.c.h.b16 %v3421
    %v4039 = vunpack.c.l.b16 %v3422
    %v4040 = vunpack.c.h.b16 %v3422
    %v4041 = vunpack.c.l.b16 %v3423
    %v4042 = vunpack.c.h.b16 %v3423
    %v4043 = vunpack.c.l.b16 %v3424
    %v4044 = vunpack.c.h.b16 %v3424
    %v4045 = vunpack.c.l.b16 %v3425
    %v4046 = vunpack.c.h.b16 %v3425
    %v4047 = vunpack.c.l.b16 %v3426
    %v4048 = vunpack.c.h.b16 %v3426
    %v4049 = vunpack.c.l.b16 %v3427
    %v4050 = vunpack.c.h.b16 %v3427
    %v4051 = vunpack.c.l.b16 %v3428
    %v4052 = vunpack.c.h.b16 %v3428
    %v4053 = vunpack.c.l.b16 %v3429
    %v4054 = vunpack.c.h.b16 %v3429
    %v4055 = vunpack.c.l.b16 %v3430
    %v4056 = vunpack.c.h.b16 %v3430
    %v4057 = vunpack.c.l.b16 %v3431
    %v4058 = vunpack.c.h.b16 %v3431
    %v4059 = vunpack.c.l.b16 %v3432
    %v4060 = vunpack.c.h.b16 %v3432
    %v4061 = vunpack.c.l.b16 %v3433
    %v4062 = vunpack.c.h.b16 %v3433
    %v4063 = vunpack.c.l.b16 %v3434
    %v4064 = vunpack.c.h.b16 %v3434
    %v4065 = vunpack.c.l.b16 %v3435
    %v4066 = vunpack.c.h.b16 %v3435
    %v4067 = vunpack.c.l.b16 %v3436
    %v4068 = vunpack.c.h.b16 %v3436
    %v4069 = vunpack.c.l.b16 %v3437
    %v4070 = vunpack.c.h.b16 %v3437
    %v4071 = vunpack.c.l.b16 %v3438
    %v4072 = vunpack.c.h.b16 %v3438
    %v4073 = vunpack.c.l.b16 %v3439
    %v4074 = vunpack.c.h.b16 %v3439
    %v4075 = vunpack.c.l.b16 %v3440
    %v4076 = vunpack.c.h.b16 %v3440
    %v4077 = vunpack.c.l.b16 %v3441
    %v4078 = vunpack.c.h.b16 %v3441
    %v4079 = vunpack.c.l.b16 %v3442
    %v4080 = vunpack.c.h.b16 %v3442
    %v4081 = vunpack.c.l.b16 %v3443
    %v4082 = vunpack.c.h.b16 %v3443
    %v4083 = vunpack.c.l.b16 %v3444
    %v4084 = vunpack.c.h.b16 %v3444
    %v4085 = vunpack.c.l.b16 %v3445
    %v4086 = vunpack.c.h.b16 %v3445
    %v4087 = vunpack.c.l.b16 %v3446
    %v4088 = vunpack.c.h.b16 %v3446
    %v4089 = vunpack.c.l.b16 %v3447
    %v4090 = vunpack.c.h.b16 %v3447
    %v4091 = vunpack.c.l.b16 %v3448
    %v4092 = vunpack.c.h.b16 %v3448
    %v4093 = vunpack.c.l.b16 %v3449
    %v4094 = vunpack.c.h.b16 %v3449
    %v4095 = vunpack.c.l.b16 %v3450
    %v4096 = vunpack.c.h.b16 %v3450
    %v4097 = vunpack.c.l.b16 %v3451
    %v4098 = vunpack.c.h.b16 %v3451
    %v4099 = vunpack.c.l.b16 %v3452
    %v4100 = vunpack.c.h.b16 %v3452
    %v4101 = vunpack.c.l.b16 %v3453
    %v4102 = vunpack.c.h.b16 %v3453
    %v4103 = vunpack.c.l.b16 %v3454
    %v4104 = vunpack.c.h.b16 %v3454
    %v4105 = vunpack.c.l.b16 %v3455
    %v4106 = vunpack.c.h.b16 %v3455
    %v4107 = vunpack.c.l.b16 %v3456
    %v4108 = vunpack.c.h.b16 %v3456
    %v4109 = vunpack.c.l.b16 %v3457
    %v4110 = vunpack.c.h.b16 %v3457
    %v4111 = vunpack.c.l.b16 %v3458
    %v4112 = vunpack.c.h.b16 %v3458
    %v4113 = vunpack.c.l.b16 %v3459
    %v4114 = vunpack.c.h.b16 %v3459
    %v4115 = vunpack.c.l.b16 %v3460
    %v4116 = vunpack.c.h.b16 %v3460
    %v4117 = vunpack.c.l.b16 %v3461
    %v4118 = vunpack.c.h.b16 %v3461
    %v4119 = vunpack.c.l.b16 %v3462
    %v4120 = vunpack.c.h.b16 %v3462
    %v4121 = vunpack.c.l.b16 %v3463
    %v4122 = vunpack.c.h.b16 %v3463
    %v4123 = vunpack.c.l.b16 %v3464
    %v4124 = vunpack.c.h.b16 %v3464
    %v4125 = vunpack.c.l.b16 %v3465
    %v4126 = vunpack.c.h.b16 %v3465
    %v4127 = vunpack.c.l.b16 %v3466
    %v4128 = vunpack.c.h.b16 %v3466
    %v4129 = vunpack.c.l.b16 %v3467
    %v4130 = vunpack.c.h.b16 %v3467
    %v4131 = vunpack.c.l.b16 %v3468
    %v4132 = vunpack.c.h.b16 %v3468
    %v4133 = vunpack.c.l.b16 %v3469
    %v4134 = vunpack.c.h.b16 %v3469
    %v4135 = vunpack.c.l.b16 %v3470
    %v4136 = vunpack.c.h.b16 %v3470
    %v4137 = vunpack.c.l.b16 %v3471
    %v4138 = vunpack.c.h.b16 %v3471
    %v4139 = vunpack.c.l.b16 %v3472
    %v4140 = vunpack.c.h.b16 %v3472
    %v4141 = vunpack.c.l.b16 %v3473
    %v4142 = vunpack.c.h.b16 %v3473
    %v4143 = vunpack.c.l.b16 %v3474
    %v4144 = vunpack.c.h.b16 %v3474
    %v4145 = vunpack.c.l.b16 %v3475
    %v4146 = vunpack.c.h.b16 %v3475
    %v4147 = vunpack.c.l.b16 %v3476
    %v4148 = vunpack.c.h.b16 %v3476
    %v4149 = vunpack.c.l.b16 %v3477
    %v4150 = vunpack.c.h.b16 %v3477
    %v4151 = vunpack.c.l.b16 %v3478
    %v4152 = vunpack.c.h.b16 %v3478
    %v4153 = vunpack.c.l.b16 %v3479
    %v4154 = vunpack.c.h.b16 %v3479
    %v4155 = vunpack.c.l.b16 %v3480
    %v4156 = vunpack.c.h.b16 %v3480
    %v4157 = vunpack.c.l.b16 %v3481
    %v4158 = vunpack.c.h.b16 %v3481
    %v4159 = vunpack.c.l.b16 %v3482
    %v4160 = vunpack.c.h.b16 %v3482
    %v4161 = vunpack.c.l.b16 %v3483
    %v4162 = vunpack.c.h.b16 %v3483
    %v4163 = vunpack.c.l.b16 %v3484
    %v4164 = vunpack.c.h.b16 %v3484
    %v4165 = vunpack.c.l.b16 %v3485
    %v4166 = vunpack.c.h.b16 %v3485
    %v4167 = vunpack.c.l.b16 %v3486
    %v4168 = vunpack.c.h.b16 %v3486
    %v4169 = vunpack.c.l.b16 %v3487
    %v4170 = vunpack.c.h.b16 %v3487
    %v4171 = vunpack.c.l.b16 %v3488
    %v4172 = vunpack.c.h.b16 %v3488
    %v4173 = vunpack.c.l.b16 %v3489
    %v4174 = vunpack.c.h.b16 %v3489
    %v4175 = vunpack.c.l.b16 %v3490
    %v4176 = vunpack.c.h.b16 %v3490
    %v4177 = vunpack.c.l.b16 %v3491
    %v4178 = vunpack.c.h.b16 %v3491
    %v4179 = vunpack.c.l.b16 %v3492
    %v4180 = vunpack.c.h.b16 %v3492
    %v4181 = vunpack.c.l.b16 %v3493
    %v4182 = vunpack.c.h.b16 %v3493
    %v4183 = vunpack.c.l.b16 %v3494
    %v4184 = vunpack.c.h.b16 %v3494
    %v4185 = vunpack.c.l.b16 %v3495
    %v4186 = vunpack.c.h.b16 %v3495
    %v4187 = vunpack.c.l.b16 %v3496
    %v4188 = vunpack.c.h.b16 %v3496
    %v4189 = vunpack.c.l.b16 %v3497
    %v4190 = vunpack.c.h.b16 %v3497
    %v4191 = vunpack.c.l.b16 %v3498
    %v4192 = vunpack.c.h.b16 %v3498
    %v4193 = vunpack.c.l.b16 %v3499
    %v4194 = vunpack.c.h.b16 %v3499
    %v4195 = vunpack.c.l.b16 %v3500
    %v4196 = vunpack.c.h.b16 %v3500
    %v4197 = vunpack.c.l.b16 %v3501
    %v4198 = vunpack.c.h.b16 %v3501
    %v4199 = vunpack.c.l.b16 %v3502
    %v4200 = vunpack.c.h.b16 %v3502
    %v4201 = vunpack.c.l.b16 %v3503
    %v4202 = vunpack.c.h.b16 %v3503
    %v4203 = vunpack.c.l.b16 %v3504
    %v4204 = vunpack.c.h.b16 %v3504
    %v4205 = vunpack.c.l.b16 %v3505
    %v4206 = vunpack.c.h.b16 %v3505
    %v4207 = vunpack.c.l.b16 %v3506
    %v4208 = vunpack.c.h.b16 %v3506
    %v4209 = vunpack.c.l.b16 %v3507
    %v4210 = vunpack.c.h.b16 %v3507
    %v4211 = vunpack.c.l.b16 %v3508
    %v4212 = vunpack.c.h.b16 %v3508
    %v4213 = vunpack.c.l.b16 %v3509
    %v4214 = vunpack.c.h.b16 %v3509
    %v4215 = vunpack.c.l.b16 %v3510
    %v4216 = vunpack.c.h.b16 %v3510
    %v4217 = vunpack.c.l.b16 %v3511
    %v4218 = vunpack.c.h.b16 %v3511
    %v4219 = vunpack.c.l.b16 %v3512
    %v4220 = vunpack.c.h.b16 %v3512
    %v4221 = vunpack.c.l.b16 %v3513
    %v4222 = vunpack.c.h.b16 %v3513
    %v4223 = vunpack.c.l.b16 %v3514
    %v4224 = vunpack.c.h.b16 %v3514
    %v4225 = vunpack.c.l.b16 %v3515
    %v4226 = vunpack.c.h.b16 %v3515
    %v4227 = vunpack.c.l.b16 %v3516
    %v4228 = vunpack.c.h.b16 %v3516
    %v4229 = vunpack.c.l.b16 %v3517
    %v4230 = vunpack.c.h.b16 %v3517
    %v4231 = vunpack.c.l.b16 %v3518
    %v4232 = vunpack.c.h.b16 %v3518
    %v4233 = vunpack.c.l.b16 %v3519
    %v4234 = vunpack.c.h.b16 %v3519
    %v4235 = vunpack.c.l.b16 %v3520
    %v4236 = vunpack.c.h.b16 %v3520
    %v4237 = vunpack.c.l.b16 %v3521
    %v4238 = vunpack.c.h.b16 %v3521
    %v4239 = vunpack.c.l.b16 %v3522
    %v4240 = vunpack.c.h.b16 %v3522
    %v4241 = vunpack.c.l.b16 %v3523
    %v4242 = vunpack.c.h.b16 %v3523
    %v4243 = vunpack.c.l.b16 %v3524
    %v4244 = vunpack.c.h.b16 %v3524
    %v4245 = vunpack.c.l.b16 %v3525
    %v4246 = vunpack.c.h.b16 %v3525
    %v4247 = vunpack.c.l.b16 %v3526
    %v4248 = vunpack.c.h.b16 %v3526
    %v4249 = vunpack.c.l.b16 %v3527
    %v4250 = vunpack.c.h.b16 %v3527
    %v4251 = vunpack.c.l.b16 %v3528
    %v4252 = vunpack.c.h.b16 %v3528
    %v4253 = vunpack.c.l.b16 %v3529
    %v4254 = vunpack.c.h.b16 %v3529
    %v4255 = vunpack.c.l.b16 %v3530
    %v4256 = vunpack.c.h.b16 %v3530
    %v4257 = vunpack.c.l.b16 %v3531
    %v4258 = vunpack.c.h.b16 %v3531
    %v4259 = vunpack.c.l.b16 %v3532
    %v4260 = vunpack.c.h.b16 %v3532
    %v4261 = vunpack.c.l.b16 %v3533
    %v4262 = vunpack.c.h.b16 %v3533
    %v4263 = vunpack.c.l.b16 %v3534
    %v4264 = vunpack.c.h.b16 %v3534
    %v4265 = vunpack.c.l.b16 %v3535
    %v4266 = vunpack.c.h.b16 %v3535
    %v4267 = vunpack.c.l.b16 %v3536
    %v4268 = vunpack.c.h.b16 %v3536
    %v4269 = vunpack.c.l.b16 %v3537
    %v4270 = vunpack.c.h.b16 %v3537
    %v4271 = vunpack.c.l.b16 %v3538
    %v4272 = vunpack.c.h.b16 %v3538
    %v4273 = vunpack.c.l.b16 %v3539
    %v4274 = vunpack.c.h.b16 %v3539
    %v4275 = vunpack.c.l.b16 %v3540
    %v4276 = vunpack.c.h.b16 %v3540
    %v4277 = vunpack.c.l.b16 %v3541
    %v4278 = vunpack.c.h.b16 %v3541
    %v4279 = vunpack.c.l.b16 %v3542
    %v4280 = vunpack.c.h.b16 %v3542
    %v4281 = vunpack.c.l.b16 %v3543
    %v4282 = vunpack.c.h.b16 %v3543
    %v4283 = vunpack.c.l.b16 %v3544
    %v4284 = vunpack.c.h.b16 %v3544
    %v4285 = vunpack.c.l.b16 %v3545
    %v4286 = vunpack.c.h.b16 %v3545
    %v4287 = vunpack.c.l.b16 %v3546
    %v4288 = vunpack.c.h.b16 %v3546
    %v4289 = vunpack.c.l.b16 %v3547
    %v4290 = vunpack.c.h.b16 %v3547
    %v4291 = vunpack.c.l.b16 %v3548
    %v4292 = vunpack.c.h.b16 %v3548
    %v4293 = vunpack.c.l.b16 %v3549
    %v4294 = vunpack.c.h.b16 %v3549
    %v4295 = vunpack.c.l.b16 %v3550
    %v4296 = vunpack.c.h.b16 %v3550
    %v4297 = vunpack.c.l.b16 %v3551
    %v4298 = vunpack.c.h.b16 %v3551
    %v4299 = vunpack.c.l.b16 %v3552
    %v4300 = vunpack.c.h.b16 %v3552
    %v4301 = vunpack.c.l.b16 %v3553
    %v4302 = vunpack.c.h.b16 %v3553
    %v4303 = vunpack.c.l.b16 %v3554
    %v4304 = vunpack.c.h.b16 %v3554
    %v4305 = vunpack.c.l.b16 %v3555
    %v4306 = vunpack.c.h.b16 %v3555
    %v4307 = vunpack.c.l.b16 %v3556
    %v4308 = vunpack.c.h.b16 %v3556
    %v4309 = vunpack.c.l.b16 %v3557
    %v4310 = vunpack.c.h.b16 %v3557
    %v4311 = vunpack.c.l.b16 %v3558
    %v4312 = vunpack.c.h.b16 %v3558
    %v4313 = vunpack.c.l.b16 %v3559
    %v4314 = vunpack.c.h.b16 %v3559
    %v4315 = vunpack.c.l.b16 %v3560
    %v4316 = vunpack.c.h.b16 %v3560
    %v4317 = vunpack.c.l.b16 %v3561
    %v4318 = vunpack.c.h.b16 %v3561
    %v4319 = vunpack.c.l.b16 %v3562
    %v4320 = vunpack.c.h.b16 %v3562
    %v4321 = vunpack.c.l.b16 %v3563
    %v4322 = vunpack.c.h.b16 %v3563
    %v4323 = vunpack.c.l.b16 %v3564
    %v4324 = vunpack.c.h.b16 %v3564
    %v4325 = vunpack.c.l.b16 %v3565
    %v4326 = vunpack.c.h.b16 %v3565
    %v4327 = vunpack.c.l.b16 %v3566
    %v4328 = vunpack.c.h.b16 %v3566
    %v4329 = vunpack.c.l.b16 %v3567
    %v4330 = vunpack.c.h.b16 %v3567
    %v4331 = vunpack.c.l.b16 %v3568
    %v4332 = vunpack.c.h.b16 %v3568
    %v4333 = vunpack.c.l.b16 %v3569
    %v4334 = vunpack.c.h.b16 %v3569
    %v4335 = vunpack.c.l.b16 %v3570
    %v4336 = vunpack.c.h.b16 %v3570
    %v4337 = vunpack.c.l.b16 %v3571
    %v4338 = vunpack.c.h.b16 %v3571
    %v4339 = vunpack.c.l.b16 %v3572
    %v4340 = vunpack.c.h.b16 %v3572
    %v4341 = vunpack.c.l.b16 %v3573
    %v4342 = vunpack.c.h.b16 %v3573
    %v4343 = vunpack.c.l.b16 %v3574
    %v4344 = vunpack.c.h.b16 %v3574
    %v4345 = vunpack.c.l.b16 %v3575
    %v4346 = vunpack.c.h.b16 %v3575
    %v4347 = vunpack.c.l.b16 %v3576
    %v4348 = vunpack.c.h.b16 %v3576
    %v4349 = vunpack.c.l.b16 %v3577
    %v4350 = vunpack.c.h.b16 %v3577
    %v4351 = vunpack.c.l.b16 %v3578
    %v4352 = vunpack.c.h.b16 %v3578
    %v4353 = vunpack.c.l.b16 %v3579
    %v4354 = vunpack.c.h.b16 %v3579
    %v4355 = vunpack.c.l.b16 %v3580
    %v4356 = vunpack.c.h.b16 %v3580
    %v4357 = vunpack.c.l.b16 %v3581
    %v4358 = vunpack.c.h.b16 %v3581
    %v4359 = vunpack.c.l.b16 %v3582
    %v4360 = vunpack.c.h.b16 %v3582
    %v4361 = vunpack.c.l.b16 %v3583
    %v4362 = vunpack.c.h.b16 %v3583
    %v4363 = vunpack.c.l.b16 %v3584
    %v4364 = vunpack.c.h.b16 %v3584
    %v4365 = vunpack.c.l.b16 %v3585
    %v4366 = vunpack.c.h.b16 %v3585
    %v4367 = vunpack.c.l.b16 %v3586
    %v4368 = vunpack.c.h.b16 %v3586
    %v4369 = vunpack.c.l.b16 %v3587
    %v4370 = vunpack.c.h.b16 %v3587
    %v4371 = vunpack.c.l.b16 %v3588
    %v4372 = vunpack.c.h.b16 %v3588
    %v4373 = vunpack.c.l.b16 %v3589
    %v4374 = vunpack.c.h.b16 %v3589
    %v4375 = vunpack.c.l.b16 %v3590
    %v4376 = vunpack.c.h.b16 %v3590
    %v4377 = vunpack.c.l.b16 %v3591
    %v4378 = vunpack.c.h.b16 %v3591
    %v4379 = vunpack.c.l.b16 %v3592
    %v4380 = vunpack.c.h.b16 %v3592
    %v4381 = vunpack.c.l.b16 %v3593
    %v4382 = vunpack.c.h.b16 %v3593
    %v4383 = vunpack.c.l.b16 %v3594
    %v4384 = vunpack.c.h.b16 %v3594
    %v4385 = vunpack.c.l.b16 %v3595
    %v4386 = vunpack.c.h.b16 %v3595
    %v4387 = vunpack.c.l.b16 %v3596
    %v4388 = vunpack.c.h.b16 %v3596
    %v4389 = vunpack.c.l.b16 %v3597
    %v4390 = vunpack.c.h.b16 %v3597
    %v4391 = vunpack.c.l.b16 %v3598
    %v4392 = vunpack.c.h.b16 %v3598
    %v4393 = vunpack.c.l.b16 %v3599
    %v4394 = vunpack.c.h.b16 %v3599
    %v4395 = vunpack.c.l.b16 %v3600
    %v4396 = vunpack.c.h.b16 %v3600
    %v4397 = vunpack.c.l.b16 %v3601
    %v4398 = vunpack.c.h.b16 %v3601
    %v4399 = vunpack.c.l.b16 %v3602
    %v4400 = vunpack.c.h.b16 %v3602
    %v4401 = vunpack.c.l.b16 %v3603
    %v4402 = vunpack.c.h.b16 %v3603
    %v4403 = vunpack.c.l.b16 %v3604
    %v4404 = vunpack.c.h.b16 %v3604
    %v4405 = vunpack.c.l.b16 %v3605
    %v4406 = vunpack.c.h.b16 %v3605
    %v4407 = vunpack.c.l.b16 %v3606
    %v4408 = vunpack.c.h.b16 %v3606
    %v4409 = vunpack.c.l.b16 %v3607
    %v4410 = vunpack.c.h.b16 %v3607
    %v4411 = vunpack.c.l.b16 %v3608
    %v4412 = vunpack.c.h.b16 %v3608
    %v4413 = vunpack.c.l.b16 %v3609
    %v4414 = vunpack.c.h.b16 %v3609
    %v4415 = vunpack.c.l.b16 %v3610
    %v4416 = vunpack.c.h.b16 %v3610
    %v4417 = vunpack.c.l.b16 %v3611
    %v4418 = vunpack.c.h.b16 %v3611
    %v4419 = vunpack.c.l.b16 %v3612
    %v4420 = vunpack.c.h.b16 %v3612
    %v4421 = vunpack.c.l.b16 %v3613
    %v4422 = vunpack.c.h.b16 %v3613
    %v4423 = vunpack.c.l.b16 %v3614
    %v4424 = vunpack.c.h.b16 %v3614
    %v4425 = vunpack.c.l.b16 %v3615
    %v4426 = vunpack.c.h.b16 %v3615
    %v4427 = vunpack.c.l.b16 %v3616
    %v4428 = vunpack.c.h.b16 %v3616
    %v4429 = vunpack.c.l.b16 %v3617
    %v4430 = vunpack.c.h.b16 %v3617
    %v4431 = vunpack.c.l.b16 %v3618
    %v4432 = vunpack.c.h.b16 %v3618
    %v4433 = vunpack.c.l.b16 %v3619
    %v4434 = vunpack.c.h.b16 %v3619
    %v4435 = vunpack.c.l.b16 %v3620
    %v4436 = vunpack.c.h.b16 %v3620
    %v4437 = vunpack.c.l.b16 %v3621
    %v4438 = vunpack.c.h.b16 %v3621
    %v4439 = vunpack.c.l.b16 %v3622
    %v4440 = vunpack.c.h.b16 %v3622
    %v4441 = vunpack.c.l.b16 %v3623
    %v4442 = vunpack.c.h.b16 %v3623
    %v4443 = vunpack.c.l.b16 %v3624
    %v4444 = vunpack.c.h.b16 %v3624
    %v4445 = vunpack.c.l.b16 %v3625
    %v4446 = vunpack.c.h.b16 %v3625
    %v4447 = vunpack.c.l.b16 %v3626
    %v4448 = vunpack.c.h.b16 %v3626
    %v4449 = vunpack.c.l.b16 %v3627
    %v4450 = vunpack.c.h.b16 %v3627
    %v4451 = vunpack.c.l.b16 %v3628
    %v4452 = vunpack.c.h.b16 %v3628
    %v4453 = vunpack.c.l.b16 %v3629
    %v4454 = vunpack.c.h.b16 %v3629
    %v4455 = vunpack.c.l.b16 %v3630
    %v4456 = vunpack.c.h.b16 %v3630
    %v4457 = vunpack.c.l.b16 %v3631
    %v4458 = vunpack.c.h.b16 %v3631
    %v4459 = vunpack.c.l.b16 %v3632
    %v4460 = vunpack.c.h.b16 %v3632
    %v4461 = vunpack.c.l.b16 %v3633
    %v4462 = vunpack.c.h.b16 %v3633
    %v4463 = vunpack.c.l.b16 %v3634
    %v4464 = vunpack.c.h.b16 %v3634
    %v4465 = vunpack.c.l.b16 %v3635
    %v4466 = vunpack.c.h.b16 %v3635
    %v4467 = vunpack.c.l.b16 %v3636
    %v4468 = vunpack.c.h.b16 %v3636
    %v4469 = vunpack.c.l.b16 %v3637
    %v4470 = vunpack.c.h.b16 %v3637
    %v4471 = vunpack.c.l.b16 %v3638
    %v4472 = vunpack.c.h.b16 %v3638
    %v4473 = vunpack.c.l.b16 %v3639
    %v4474 = vunpack.c.h.b16 %v3639
    %v4475 = vunpack.c.l.b16 %v3640
    %v4476 = vunpack.c.h.b16 %v3640
    %v4477 = vpack.c.b16 %v3967, %v3965
    %v4478 = vpack.c.b16 %v3968, %v3966
    %v4479 = vpack.c.b16 %v3971, %v3969
    %v4480 = vpack.c.b16 %v3972, %v3970
    %v4481 = vpack.c.b16 %v3975, %v3973
    %v4482 = vpack.c.b16 %v3976, %v3974
    %v4483 = vpack.c.b16 %v3979, %v3977
    %v4484 = vpack.c.b16 %v3980, %v3978
    %v4485 = vpack.c.b16 %v3983, %v3981
    %v4486 = vpack.c.b16 %v3984, %v3982
    %v4487 = vpack.c.b16 %v3987, %v3985
    %v4488 = vpack.c.b16 %v3988, %v3986
    %v4489 = vpack.c.b16 %v3991, %v3989
    %v4490 = vpack.c.b16 %v3992, %v3990
    %v4491 = vpack.c.b16 %v3995, %v3993
    %v4492 = vpack.c.b16 %v3996, %v3994
    %v4493 = vpack.c.b16 %v3999, %v3997
    %v4494 = vpack.c.b16 %v4000, %v3998
    %v4495 = vpack.c.b16 %v4003, %v4001
    %v4496 = vpack.c.b16 %v4004, %v4002
    %v4497 = vpack.c.b16 %v4007, %v4005
    %v4498 = vpack.c.b16 %v4008, %v4006
    %v4499 = vpack.c.b16 %v4011, %v4009
    %v4500 = vpack.c.b16 %v4012, %v4010
    %v4501 = vpack.c.b16 %v4015, %v4013
    %v4502 = vpack.c.b16 %v4016, %v4014
    %v4503 = vpack.c.b16 %v4019, %v4017
    %v4504 = vpack.c.b16 %v4020, %v4018
    %v4505 = vpack.c.b16 %v4023, %v4021
    %v4506 = vpack.c.b16 %v4024, %v4022
    %v4507 = vpack.c.b16 %v4027, %v4025
    %v4508 = vpack.c.b16 %v4028, %v4026
    %v4509 = vpack.c.b16 %v4031, %v4029
    %v4510 = vpack.c.b16 %v4032, %v4030
    %v4511 = vpack.c.b16 %v4035, %v4033
    %v4512 = vpack.c.b16 %v4036, %v4034
    %v4513 = vpack.c.b16 %v4039, %v4037
    %v4514 = vpack.c.b16 %v4040, %v4038
    %v4515 = vpack.c.b16 %v4043, %v4041
    %v4516 = vpack.c.b16 %v4044, %v4042
    %v4517 = vpack.c.b16 %v4047, %v4045
    %v4518 = vpack.c.b16 %v4048, %v4046
    %v4519 = vpack.c.b16 %v4051, %v4049
    %v4520 = vpack.c.b16 %v4052, %v4050
    %v4521 = vpack.c.b16 %v4055, %v4053
    %v4522 = vpack.c.b16 %v4056, %v4054
    %v4523 = vpack.c.b16 %v4059, %v4057
    %v4524 = vpack.c.b16 %v4060, %v4058
    %v4525 = vpack.c.b16 %v4063, %v4061
    %v4526 = vpack.c.b16 %v4064, %v4062
    %v4527 = vpack.c.b16 %v4067, %v4065
    %v4528 = vpack.c.b16 %v4068, %v4066
    %v4529 = vpack.c.b16 %v4071, %v4069
    %v4530 = vpack.c.b16 %v4072, %v4070
    %v4531 = vpack.c.b16 %v4075, %v4073
    %v4532 = vpack.c.b16 %v4076, %v4074
    %v4533 = vpack.c.b16 %v4079, %v4077
    %v4534 = vpack.c.b16 %v4080, %v4078
    %v4535 = vpack.c.b16 %v4083, %v4081
    %v4536 = vpack.c.b16 %v4084, %v4082
    %v4537 = vpack.c.b16 %v4087, %v4085
    %v4538 = vpack.c.b16 %v4088, %v4086
    %v4539 = vpack.c.b16 %v4091, %v4089
    %v4540 = vpack.c.b16 %v4092, %v4090
    %v4541 = vpack.c.b16 %v4095, %v4093
    %v4542 = vpack.c.b16 %v4096, %v4094
    %v4543 = vpack.c.b16 %v4099, %v4097
    %v4544 = vpack.c.b16 %v4100, %v4098
    %v4545 = vpack.c.b16 %v4103, %v4101
    %v4546 = vpack.c.b16 %v4104, %v4102
    %v4547 = vpack.c.b16 %v4107, %v4105
    %v4548 = vpack.c.b16 %v4108, %v4106
    %v4549 = vpack.c.b16 %v4111, %v4109
    %v4550 = vpack.c.b16 %v4112, %v4110
    %v4551 = vpack.c.b16 %v4115, %v4113
    %v4552 = vpack.c.b16 %v4116, %v4114
    %v4553 = vpack.c.b16 %v4119, %v4117
    %v4554 = vpack.c.b16 %v4120, %v4118
    %v4555 = vpack.c.b16 %v4123, %v4121
    %v4556 = vpack.c.b16 %v4124, %v4122
    %v4557 = vpack.c.b16 %v4127, %v4125
    %v4558 = vpack.c.b16 %v4128, %v4126
    %v4559 = vpack.c.b16 %v4131, %v4129
    %v4560 = vpack.c.b16 %v4132, %v4130
    %v4561 = vpack.c.b16 %v4135, %v4133
    %v4562 = vpack.c.b16 %v4136, %v4134
    %v4563 = vpack.c.b16 %v4139, %v4137
    %v4564 = vpack.c.b16 %v4140, %v4138
    %v4565 = vpack.c.b16 %v4143, %v4141
    %v4566 = vpack.c.b16 %v4144, %v4142
    %v4567 = vpack.c.b16 %v4147, %v4145
    %v4568 = vpack.c.b16 %v4148, %v4146
    %v4569 = vpack.c.b16 %v4151, %v4149
    %v4570 = vpack.c.b16 %v4152, %v4150
    %v4571 = vpack.c.b16 %v4155, %v4153
    %v4572 = vpack.c.b16 %v4156, %v4154
    %v4573 = vpack.c.b16 %v4159, %v4157
    %v4574 = vpack.c.b16 %v4160, %v4158
    %v4575 = vpack.c.b16 %v4163, %v4161
    %v4576 = vpack.c.b16 %v4164, %v4162
    %v4577 = vpack.c.b16 %v4167, %v4165
    %v4578 = vpack.c.b16 %v4168, %v4166
    %v4579 = vpack.c.b16 %v4171, %v4169
    %v4580 = vpack.c.b16 %v4172, %v4170
    %v4581 = vpack.c.b16 %v4175, %v4173
    %v4582 = vpack.c.b16 %v4176, %v4174
    %v4583 = vpack.c.b16 %v4179, %v4177
    %v4584 = vpack.c.b16 %v4180, %v4178
    %v4585 = vpack.c.b16 %v4183, %v4181
    %v4586 = vpack.c.b16 %v4184, %v4182
    %v4587 = vpack.c.b16 %v4187, %v4185
    %v4588 = vpack.c.b16 %v4188, %v4186
    %v4589 = vpack.c.b16 %v4191, %v4189
    %v4590 = vpack.c.b16 %v4192, %v4190
    %v4591 = vpack.c.b16 %v4195, %v4193
    %v4592 = vpack.c.b16 %v4196, %v4194
    %v4593 = vpack.c.b16 %v4199, %v4197
    %v4594 = vpack.c.b16 %v4200, %v4198
    %v4595 = vpack.c.b16 %v4203, %v4201
    %v4596 = vpack.c.b16 %v4204, %v4202
    %v4597 = vpack.c.b16 %v4207, %v4205
    %v4598 = vpack.c.b16 %v4208, %v4206
    %v4599 = vpack.c.b16 %v4211, %v4209
    %v4600 = vpack.c.b16 %v4212, %v4210
    %v4601 = vpack.c.b16 %v4215, %v4213
    %v4602 = vpack.c.b16 %v4216, %v4214
    %v4603 = vpack.c.b16 %v4219, %v4217
    %v4604 = vpack.c.b16 %v4220, %v4218
    %v4605 = vpack.c.b16 %v4223, %v4221
    %v4606 = vpack.c.b16 %v4224, %v4222
    %v4607 = vpack.c.b16 %v4227, %v4225
    %v4608 = vpack.c.b16 %v4228, %v4226
    %v4609 = vpack.c.b16 %v4231, %v4229
    %v4610 = vpack.c.b16 %v4232, %v4230
    %v4611 = vpack.c.b16 %v4235, %v4233
    %v4612 = vpack.c.b16 %v4236, %v4234
    %v4613 = vpack.c.b16 %v4239, %v4237
    %v4614 = vpack.c.b16 %v4240, %v4238
    %v4615 = vpack.c.b16 %v4243, %v4241
    %v4616 = vpack.c.b16 %v4244, %v4242
    %v4617 = vpack.c.b16 %v4247, %v4245
    %v4618 = vpack.c.b16 %v4248, %v4246
    %v4619 = vpack.c.b16 %v4251, %v4249
    %v4620 = vpack.c.b16 %v4252, %v4250
    %v4621 = vpack.c.b16 %v4255, %v4253
    %v4622 = vpack.c.b16 %v4256, %v4254
    %v4623 = vpack.c.b16 %v4259, %v4257
    %v4624 = vpack.c.b16 %v4260, %v4258
    %v4625 = vpack.c.b16 %v4263, %v4261
    %v4626 = vpack.c.b16 %v4264, %v4262
    %v4627 = vpack.c.b16 %v4267, %v4265
    %v4628 = vpack.c.b16 %v4268, %v4266
    %v4629 = vpack.c.b16 %v4271, %v4269
    %v4630 = vpack.c.b16 %v4272, %v4270
    %v4631 = vpack.c.b16 %v4275, %v4273
    %v4632 = vpack.c.b16 %v4276, %v4274
    %v4633 = vpack.c.b16 %v4279, %v4277
    %v4634 = vpack.c.b16 %v4280, %v4278
    %v4635 = vpack.c.b16 %v4283, %v4281
    %v4636 = vpack.c.b16 %v4284, %v4282
    %v4637 = vpack.c.b16 %v4287, %v4285
    %v4638 = vpack.c.b16 %v4288, %v4286
    %v4639 = vpack.c.b16 %v4291, %v4289
    %v4640 = vpack.c.b16 %v4292, %v4290
    %v4641 = vpack.c.b16 %v4295, %v4293
    %v4642 = vpack.c.b16 %v4296, %v4294
    %v4643 = vpack.c.b16 %v4299, %v4297
    %v4644 = vpack.c.b16 %v4300, %v4298
    %v4645 = vpack.c.b16 %v4303, %v4301
    %v4646 = vpack.c.b16 %v4304, %v4302
    %v4647 = vpack.c.b16 %v4307, %v4305
    %v4648 = vpack.c.b16 %v4308, %v4306
    %v4649 = vpack.c.b16 %v4311, %v4309
    %v4650 = vpack.c.b16 %v4312, %v4310
    %v4651 = vpack.c.b16 %v4315, %v4313
    %v4652 = vpack.c.b16 %v4316, %v4314
    %v4653 = vpack.c.b16 %v4319, %v4317
    %v4654 = vpack.c.b16 %v4320, %v4318
    %v4655 = vpack.c.b16 %v4323, %v4321
    %v4656 = vpack.c.b16 %v4324, %v4322
    %v4657 = vpack.c.b16 %v4327, %v4325
    %v4658 = vpack.c.b16 %v4328, %v4326
    %v4659 = vpack.c.b16 %v4331, %v4329
    %v4660 = vpack.c.b16 %v4332, %v4330
    %v4661 = vpack.c.b16 %v4335, %v4333
    %v4662 = vpack.c.b16 %v4336, %v4334
    %v4663 = vpack.c.b16 %v4339, %v4337
    %v4664 = vpack.c.b16 %v4340, %v4338
    %v4665 = vpack.c.b16 %v4343, %v4341
    %v4666 = vpack.c.b16 %v4344, %v4342
    %v4667 = vpack.c.b16 %v4347, %v4345
    %v4668 = vpack.c.b16 %v4348, %v4346
    %v4669 = vpack.c.b16 %v4351, %v4349
    %v4670 = vpack.c.b16 %v4352, %v4350
    %v4671 = vpack.c.b16 %v4355, %v4353
    %v4672 = vpack.c.b16 %v4356, %v4354
    %v4673 = vpack.c.b16 %v4359, %v4357
    %v4674 = vpack.c.b16 %v4360, %v4358
    %v4675 = vpack.c.b16 %v4363, %v4361
    %v4676 = vpack.c.b16 %v4364, %v4362
    %v4677 = vpack.c.b16 %v4367, %v4365
    %v4678 = vpack.c.b16 %v4368, %v4366
    %v4679 = vpack.c.b16 %v4371, %v4369
    %v4680 = vpack.c.b16 %v4372, %v4370
    %v4681 = vpack.c.b16 %v4375, %v4373
    %v4682 = vpack.c.b16 %v4376, %v4374
    %v4683 = vpack.c.b16 %v4379, %v4377
    %v4684 = vpack.c.b16 %v4380, %v4378
    %v4685 = vpack.c.b16 %v4383, %v4381
    %v4686 = vpack.c.b16 %v4384, %v4382
    %v4687 = vpack.c.b16 %v4387, %v4385
    %v4688 = vpack.c.b16 %v4388, %v4386
    %v4689 = vpack.c.b16 %v4391, %v4389
    %v4690 = vpack.c.b16 %v4392, %v4390
    %v4691 = vpack.c.b16 %v4395, %v4393
    %v4692 = vpack.c.b16 %v4396, %v4394
    %v4693 = vpack.c.b16 %v4399, %v4397
    %v4694 = vpack.c.b16 %v4400, %v4398
    %v4695 = vpack.c.b16 %v4403, %v4401
    %v4696 = vpack.c.b16 %v4404, %v4402
    %v4697 = vpack.c.b16 %v4407, %v4405
    %v4698 = vpack.c.b16 %v4408, %v4406
    %v4699 = vpack.c.b16 %v4411, %v4409
    %v4700 = vpack.c.b16 %v4412, %v4410
    %v4701 = vpack.c.b16 %v4415, %v4413
    %v4702 = vpack.c.b16 %v4416, %v4414
    %v4703 = vpack.c.b16 %v4419, %v4417
    %v4704 = vpack.c.b16 %v4420, %v4418
    %v4705 = vpack.c.b16 %v4423, %v4421
    %v4706 = vpack.c.b16 %v4424, %v4422
    %v4707 = vpack.c.b16 %v4427, %v4425
    %v4708 = vpack.c.b16 %v4428, %v4426
    %v4709 = vpack.c.b16 %v4431, %v4429
    %v4710 = vpack.c.b16 %v4432, %v4430
    %v4711 = vpack.c.b16 %v4435, %v4433
    %v4712 = vpack.c.b16 %v4436, %v4434
    %v4713 = vpack.c.b16 %v4439, %v4437
    %v4714 = vpack.c.b16 %v4440, %v4438
    %v4715 = vpack.c.b16 %v4443, %v4441
    %v4716 = vpack.c.b16 %v4444, %v4442
    %v4717 = vpack.c.b16 %v4447, %v4445
    %v4718 = vpack.c.b16 %v4448, %v4446
    %v4719 = vpack.c.b16 %v4451, %v4449
    %v4720 = vpack.c.b16 %v4452, %v4450
    %v4721 = vpack.c.b16 %v4455, %v4453
    %v4722 = vpack.c.b16 %v4456, %v4454
    %v4723 = vpack.c.b16 %v4459, %v4457
    %v4724 = vpack.c.b16 %v4460, %v4458
    %v4725 = vpack.c.b16 %v4463, %v4461
    %v4726 = vpack.c.b16 %v4464, %v4462
    %v4727 = vpack.c.b16 %v4467, %v4465
    %v4728 = vpack.c.b16 %v4468, %v4466
    %v4729 = vpack.c.b16 %v4471, %v4469
    %v4730 = vpack.c.b16 %v4472, %v4470
    %v4731 = vpack.c.b16 %v4475, %v4473
    %v4732 = vpack.c.b16 %v4476, %v4474
    %4989 = vmatprep.subr.bf16.mxu0 %v4492
    %4990 = vmatpush1.bf16.msra.mxu0 %v4491
    %4991 = vmatprep.subr.bf16.mxu0 %v4490
    %4992 = vmatpush1.bf16.msra.mxu0 %v4489
    %4993 = vmatprep.subr.bf16.mxu0 %v4488
    %4994 = vmatpush1.bf16.msra.mxu0 %v4487
    %4995 = vmatprep.subr.bf16.mxu0 %v4486
    %4996 = vmatpush1.bf16.msra.mxu0 %v4485
    %4997 = vmatprep.subr.bf16.mxu0 %v4484
    %4998 = vmatpush1.bf16.msra.mxu0 %v4483
    %4999 = vmatprep.subr.bf16.mxu0 %v4482
    %5000 = vmatpush1.bf16.msra.mxu0 %v4481
    %5001 = vmatprep.subr.bf16.mxu0 %v4480
    %5002 = vmatpush1.bf16.msra.mxu0 %v4479
    %5003 = vmatprep.subr.bf16.mxu0 %v4478
    %5004 = vmatpush1.bf16.msra.mxu0 %v4477
    %5005 = vmatprep.subr.bf16.mxu0 %v4508
    %5006 = vmatpush2.bf16.msra.mxu0 %v4507
    %5007 = vmatprep.subr.bf16.mxu0 %v4506
    %5008 = vmatpush2.bf16.msra.mxu0 %v4505
    %5009 = vmatprep.subr.bf16.mxu0 %v4504
    %5010 = vmatpush2.bf16.msra.mxu0 %v4503
    %5011 = vmatprep.subr.bf16.mxu0 %v4502
    %5012 = vmatpush2.bf16.msra.mxu0 %v4501
    %5013 = vmatprep.subr.bf16.mxu0 %v4500
    %5014 = vmatpush2.bf16.msra.mxu0 %v4499
    %5015 = vmatprep.subr.bf16.mxu0 %v4498
    %5016 = vmatpush2.bf16.msra.mxu0 %v4497
    %5017 = vmatprep.subr.bf16.mxu0 %v4496
    %5018 = vmatpush2.bf16.msra.mxu0 %v4495
    %5019 = vmatprep.subr.bf16.mxu0 %v4494
    %5020 = vmatpush2.bf16.msra.mxu0 %v4493
    %5021 = vmatprep.mubr.bf16.mxu0 %v3678
    %5022 = vmatmul.mubr.bf16.gmra.mxu0 %v3677
    %v5023 = vpop.f32.mrf.mxu0
    %v5024 = vadd.f32 %v3646, %v5023
    %v5025 = vpop.f32.mrf.mxu0
    %v5026 = vadd.f32 %v3650, %v5025
    %v5027 = vpop.f32.mrf.mxu0
    %v5028 = vpop.f32.mrf.mxu0
    %5029 = vdwg.mxu0
    %5030 = vmatprep.subr.bf16.mxu0 %v4524
    %5031 = vmatpush1.bf16.msra.mxu0 %v4523
    %5032 = vmatprep.subr.bf16.mxu0 %v4522
    %5033 = vmatpush1.bf16.msra.mxu0 %v4521
    %5034 = vmatprep.subr.bf16.mxu0 %v4520
    %5035 = vmatpush1.bf16.msra.mxu0 %v4519
    %5036 = vmatprep.subr.bf16.mxu0 %v4518
    %5037 = vmatpush1.bf16.msra.mxu0 %v4517
    %5038 = vmatprep.subr.bf16.mxu0 %v4516
    %5039 = vmatpush1.bf16.msra.mxu0 %v4515
    %5040 = vmatprep.subr.bf16.mxu0 %v4514
    %5041 = vmatpush1.bf16.msra.mxu0 %v4513
    %5042 = vmatprep.subr.bf16.mxu0 %v4512
    %5043 = vmatpush1.bf16.msra.mxu0 %v4511
    %5044 = vmatprep.subr.bf16.mxu0 %v4510
    %5045 = vmatpush1.bf16.msra.mxu0 %v4509
    %5046 = vmatprep.subr.bf16.mxu0 %v4540
    %5047 = vmatpush2.bf16.msra.mxu0 %v4539
    %5048 = vmatprep.subr.bf16.mxu0 %v4538
    %5049 = vmatpush2.bf16.msra.mxu0 %v4537
    %5050 = vmatprep.subr.bf16.mxu0 %v4536
    %5051 = vmatpush2.bf16.msra.mxu0 %v4535
    %5052 = vmatprep.subr.bf16.mxu0 %v4534
    %5053 = vmatpush2.bf16.msra.mxu0 %v4533
    %5054 = vmatprep.subr.bf16.mxu0 %v4532
    %5055 = vmatpush2.bf16.msra.mxu0 %v4531
    %5056 = vmatprep.subr.bf16.mxu0 %v4530
    %5057 = vmatpush2.bf16.msra.mxu0 %v4529
    %5058 = vmatprep.subr.bf16.mxu0 %v4528
    %5059 = vmatpush2.bf16.msra.mxu0 %v4527
    %5060 = vmatprep.subr.bf16.mxu0 %v4526
    %5061 = vmatpush2.bf16.msra.mxu0 %v4525
    %5062 = vmatprep.mubr.bf16.mxu0 %v3680
    %5063 = vmatmul.mubr.bf16.gmra.mxu0 %v3679
    %v5064 = vpop.f32.mrf.mxu0
    %v5065 = vadd.f32 %v5024, %v5064
    %v5066 = vpop.f32.mrf.mxu0
    %v5067 = vadd.f32 %v5026, %v5066
    %v5068 = vpop.f32.mrf.mxu0
    %v5069 = vpop.f32.mrf.mxu0
    %5070 = vdwg.mxu0
    %5071 = vmatprep.subr.bf16.mxu0 %v4556
    %5072 = vmatpush1.bf16.msra.mxu0 %v4555
    %5073 = vmatprep.subr.bf16.mxu0 %v4554
    %5074 = vmatpush1.bf16.msra.mxu0 %v4553
    %5075 = vmatprep.subr.bf16.mxu0 %v4552
    %5076 = vmatpush1.bf16.msra.mxu0 %v4551
    %5077 = vmatprep.subr.bf16.mxu0 %v4550
    %5078 = vmatpush1.bf16.msra.mxu0 %v4549
    %5079 = vmatprep.subr.bf16.mxu0 %v4548
    %5080 = vmatpush1.bf16.msra.mxu0 %v4547
    %5081 = vmatprep.subr.bf16.mxu0 %v4546
    %5082 = vmatpush1.bf16.msra.mxu0 %v4545
    %5083 = vmatprep.subr.bf16.mxu0 %v4544
    %5084 = vmatpush1.bf16.msra.mxu0 %v4543
    %5085 = vmatprep.subr.bf16.mxu0 %v4542
    %5086 = vmatpush1.bf16.msra.mxu0 %v4541
    %5087 = vmatprep.subr.bf16.mxu0 %v4572
    %5088 = vmatpush2.bf16.msra.mxu0 %v4571
    %5089 = vmatprep.subr.bf16.mxu0 %v4570
    %5090 = vmatpush2.bf16.msra.mxu0 %v4569
    %5091 = vmatprep.subr.bf16.mxu0 %v4568
    %5092 = vmatpush2.bf16.msra.mxu0 %v4567
    %5093 = vmatprep.subr.bf16.mxu0 %v4566
    %5094 = vmatpush2.bf16.msra.mxu0 %v4565
    %5095 = vmatprep.subr.bf16.mxu0 %v4564
    %5096 = vmatpush2.bf16.msra.mxu0 %v4563
    %5097 = vmatprep.subr.bf16.mxu0 %v4562
    %5098 = vmatpush2.bf16.msra.mxu0 %v4561
    %5099 = vmatprep.subr.bf16.mxu0 %v4560
    %5100 = vmatpush2.bf16.msra.mxu0 %v4559
    %5101 = vmatprep.subr.bf16.mxu0 %v4558
    %5102 = vmatpush2.bf16.msra.mxu0 %v4557
    %5103 = vmatprep.mubr.bf16.mxu0 %v3682
    %5104 = vmatmul.mubr.bf16.gmra.mxu0 %v3681
    %v5105 = vpop.f32.mrf.mxu0
    %v5106 = vadd.f32 %v5065, %v5105
    %v5107 = vpop.f32.mrf.mxu0
    %v5108 = vadd.f32 %v5067, %v5107
    %v5109 = vpop.f32.mrf.mxu0
    %v5110 = vpop.f32.mrf.mxu0
    %5111 = vdwg.mxu0
    %5112 = vmatprep.subr.bf16.mxu0 %v4588
    %5113 = vmatpush1.bf16.msra.mxu0 %v4587
    %5114 = vmatprep.subr.bf16.mxu0 %v4586
    %5115 = vmatpush1.bf16.msra.mxu0 %v4585
    %5116 = vmatprep.subr.bf16.mxu0 %v4584
    %5117 = vmatpush1.bf16.msra.mxu0 %v4583
    %5118 = vmatprep.subr.bf16.mxu0 %v4582
    %5119 = vmatpush1.bf16.msra.mxu0 %v4581
    %5120 = vmatprep.subr.bf16.mxu0 %v4580
    %5121 = vmatpush1.bf16.msra.mxu0 %v4579
    %5122 = vmatprep.subr.bf16.mxu0 %v4578
    %5123 = vmatpush1.bf16.msra.mxu0 %v4577
    %5124 = vmatprep.subr.bf16.mxu0 %v4576
    %5125 = vmatpush1.bf16.msra.mxu0 %v4575
    %5126 = vmatprep.subr.bf16.mxu0 %v4574
    %5127 = vmatpush1.bf16.msra.mxu0 %v4573
    %5128 = vmatprep.subr.bf16.mxu0 %v4604
    %5129 = vmatpush2.bf16.msra.mxu0 %v4603
    %5130 = vmatprep.subr.bf16.mxu0 %v4602
    %5131 = vmatpush2.bf16.msra.mxu0 %v4601
    %5132 = vmatprep.subr.bf16.mxu0 %v4600
    %5133 = vmatpush2.bf16.msra.mxu0 %v4599
    %5134 = vmatprep.subr.bf16.mxu0 %v4598
    %5135 = vmatpush2.bf16.msra.mxu0 %v4597
    %5136 = vmatprep.subr.bf16.mxu0 %v4596
    %5137 = vmatpush2.bf16.msra.mxu0 %v4595
    %5138 = vmatprep.subr.bf16.mxu0 %v4594
    %5139 = vmatpush2.bf16.msra.mxu0 %v4593
    %5140 = vmatprep.subr.bf16.mxu0 %v4592
    %5141 = vmatpush2.bf16.msra.mxu0 %v4591
    %5142 = vmatprep.subr.bf16.mxu0 %v4590
    %5143 = vmatpush2.bf16.msra.mxu0 %v4589
    %5144 = vmatprep.mubr.bf16.mxu0 %v3684
    %5145 = vmatmul.mubr.bf16.gmra.mxu0 %v3683
    %v5146 = vpop.f32.mrf.mxu0
    %v5147 = vadd.f32 %v5106, %v5146
    %v5148 = vpop.f32.mrf.mxu0
    %v5149 = vadd.f32 %v5108, %v5148
    %v5150 = vpop.f32.mrf.mxu0
    %v5151 = vpop.f32.mrf.mxu0
    %5152 = vdwg.mxu0
    %5153 = vmatprep.subr.bf16.mxu0 %v4620
    %5154 = vmatpush1.bf16.msra.mxu0 %v4619
    %5155 = vmatprep.subr.bf16.mxu0 %v4618
    %5156 = vmatpush1.bf16.msra.mxu0 %v4617
    %5157 = vmatprep.subr.bf16.mxu0 %v4616
    %5158 = vmatpush1.bf16.msra.mxu0 %v4615
    %5159 = vmatprep.subr.bf16.mxu0 %v4614
    %5160 = vmatpush1.bf16.msra.mxu0 %v4613
    %5161 = vmatprep.subr.bf16.mxu0 %v4612
    %5162 = vmatpush1.bf16.msra.mxu0 %v4611
    %5163 = vmatprep.subr.bf16.mxu0 %v4610
    %5164 = vmatpush1.bf16.msra.mxu0 %v4609
    %5165 = vmatprep.subr.bf16.mxu0 %v4608
    %5166 = vmatpush1.bf16.msra.mxu0 %v4607
    %5167 = vmatprep.subr.bf16.mxu0 %v4606
    %5168 = vmatpush1.bf16.msra.mxu0 %v4605
    %5169 = vmatprep.subr.bf16.mxu0 %v4636
    %5170 = vmatpush2.bf16.msra.mxu0 %v4635
    %5171 = vmatprep.subr.bf16.mxu0 %v4634
    %5172 = vmatpush2.bf16.msra.mxu0 %v4633
    %5173 = vmatprep.subr.bf16.mxu0 %v4632
    %5174 = vmatpush2.bf16.msra.mxu0 %v4631
    %5175 = vmatprep.subr.bf16.mxu0 %v4630
    %5176 = vmatpush2.bf16.msra.mxu0 %v4629
    %5177 = vmatprep.subr.bf16.mxu0 %v4628
    %5178 = vmatpush2.bf16.msra.mxu0 %v4627
    %5179 = vmatprep.subr.bf16.mxu0 %v4626
    %5180 = vmatpush2.bf16.msra.mxu0 %v4625
    %5181 = vmatprep.subr.bf16.mxu0 %v4624
    %5182 = vmatpush2.bf16.msra.mxu0 %v4623
    %5183 = vmatprep.subr.bf16.mxu0 %v4622
    %5184 = vmatpush2.bf16.msra.mxu0 %v4621
    %5185 = vmatprep.mubr.bf16.mxu0 %v3686
    %5186 = vmatmul.mubr.bf16.gmra.mxu0 %v3685
    %v5187 = vpop.f32.mrf.mxu0
    %v5188 = vadd.f32 %v5147, %v5187
    %v5189 = vpop.f32.mrf.mxu0
    %v5190 = vadd.f32 %v5149, %v5189
    %v5191 = vpop.f32.mrf.mxu0
    %v5192 = vpop.f32.mrf.mxu0
    %5193 = vdwg.mxu0
    %5194 = vmatprep.subr.bf16.mxu0 %v4652
    %5195 = vmatpush1.bf16.msra.mxu0 %v4651
    %5196 = vmatprep.subr.bf16.mxu0 %v4650
    %5197 = vmatpush1.bf16.msra.mxu0 %v4649
    %5198 = vmatprep.subr.bf16.mxu0 %v4648
    %5199 = vmatpush1.bf16.msra.mxu0 %v4647
    %5200 = vmatprep.subr.bf16.mxu0 %v4646
    %5201 = vmatpush1.bf16.msra.mxu0 %v4645
    %5202 = vmatprep.subr.bf16.mxu0 %v4644
    %5203 = vmatpush1.bf16.msra.mxu0 %v4643
    %5204 = vmatprep.subr.bf16.mxu0 %v4642
    %5205 = vmatpush1.bf16.msra.mxu0 %v4641
    %5206 = vmatprep.subr.bf16.mxu0 %v4640
    %5207 = vmatpush1.bf16.msra.mxu0 %v4639
    %5208 = vmatprep.subr.bf16.mxu0 %v4638
    %5209 = vmatpush1.bf16.msra.mxu0 %v4637
    %5210 = vmatprep.subr.bf16.mxu0 %v4668
    %5211 = vmatpush2.bf16.msra.mxu0 %v4667
    %5212 = vmatprep.subr.bf16.mxu0 %v4666
    %5213 = vmatpush2.bf16.msra.mxu0 %v4665
    %5214 = vmatprep.subr.bf16.mxu0 %v4664
    %5215 = vmatpush2.bf16.msra.mxu0 %v4663
    %5216 = vmatprep.subr.bf16.mxu0 %v4662
    %5217 = vmatpush2.bf16.msra.mxu0 %v4661
    %5218 = vmatprep.subr.bf16.mxu0 %v4660
    %5219 = vmatpush2.bf16.msra.mxu0 %v4659
    %5220 = vmatprep.subr.bf16.mxu0 %v4658
    %5221 = vmatpush2.bf16.msra.mxu0 %v4657
    %5222 = vmatprep.subr.bf16.mxu0 %v4656
    %5223 = vmatpush2.bf16.msra.mxu0 %v4655
    %5224 = vmatprep.subr.bf16.mxu0 %v4654
    %5225 = vmatpush2.bf16.msra.mxu0 %v4653
    %5226 = vmatprep.mubr.bf16.mxu0 %v3688
    %5227 = vmatmul.mubr.bf16.gmra.mxu0 %v3687
    %v5228 = vpop.f32.mrf.mxu0
    %v5229 = vadd.f32 %v5188, %v5228
    %v5230 = vpop.f32.mrf.mxu0
    %v5231 = vadd.f32 %v5190, %v5230
    %v5232 = vpop.f32.mrf.mxu0
    %v5233 = vpop.f32.mrf.mxu0
    %5234 = vdwg.mxu0
    %5235 = vmatprep.subr.bf16.mxu0 %v4684
    %5236 = vmatpush1.bf16.msra.mxu0 %v4683
    %5237 = vmatprep.subr.bf16.mxu0 %v4682
    %5238 = vmatpush1.bf16.msra.mxu0 %v4681
    %5239 = vmatprep.subr.bf16.mxu0 %v4680
    %5240 = vmatpush1.bf16.msra.mxu0 %v4679
    %5241 = vmatprep.subr.bf16.mxu0 %v4678
    %5242 = vmatpush1.bf16.msra.mxu0 %v4677
    %5243 = vmatprep.subr.bf16.mxu0 %v4676
    %5244 = vmatpush1.bf16.msra.mxu0 %v4675
    %5245 = vmatprep.subr.bf16.mxu0 %v4674
    %5246 = vmatpush1.bf16.msra.mxu0 %v4673
    %5247 = vmatprep.subr.bf16.mxu0 %v4672
    %5248 = vmatpush1.bf16.msra.mxu0 %v4671
    %5249 = vmatprep.subr.bf16.mxu0 %v4670
    %5250 = vmatpush1.bf16.msra.mxu0 %v4669
    %5251 = vmatprep.subr.bf16.mxu0 %v4700
    %5252 = vmatpush2.bf16.msra.mxu0 %v4699
    %5253 = vmatprep.subr.bf16.mxu0 %v4698
    %5254 = vmatpush2.bf16.msra.mxu0 %v4697
    %5255 = vmatprep.subr.bf16.mxu0 %v4696
    %5256 = vmatpush2.bf16.msra.mxu0 %v4695
    %5257 = vmatprep.subr.bf16.mxu0 %v4694
    %5258 = vmatpush2.bf16.msra.mxu0 %v4693
    %5259 = vmatprep.subr.bf16.mxu0 %v4692
    %5260 = vmatpush2.bf16.msra.mxu0 %v4691
    %5261 = vmatprep.subr.bf16.mxu0 %v4690
    %5262 = vmatpush2.bf16.msra.mxu0 %v4689
    %5263 = vmatprep.subr.bf16.mxu0 %v4688
    %5264 = vmatpush2.bf16.msra.mxu0 %v4687
    %5265 = vmatprep.subr.bf16.mxu0 %v4686
    %5266 = vmatpush2.bf16.msra.mxu0 %v4685
    %5267 = vmatprep.mubr.bf16.mxu0 %v3690
    %5268 = vmatmul.mubr.bf16.gmra.mxu0 %v3689
    %v5269 = vpop.f32.mrf.mxu0
    %v5270 = vadd.f32 %v5229, %v5269
    %v5271 = vpop.f32.mrf.mxu0
    %v5272 = vadd.f32 %v5231, %v5271
    %v5273 = vpop.f32.mrf.mxu0
    %v5274 = vpop.f32.mrf.mxu0
    %5275 = vdwg.mxu0
    %5276 = vmatprep.subr.bf16.mxu0 %v4716
    %5277 = vmatpush1.bf16.msra.mxu0 %v4715
    %5278 = vmatprep.subr.bf16.mxu0 %v4714
    %5279 = vmatpush1.bf16.msra.mxu0 %v4713
    %5280 = vmatprep.subr.bf16.mxu0 %v4712
    %5281 = vmatpush1.bf16.msra.mxu0 %v4711
    %5282 = vmatprep.subr.bf16.mxu0 %v4710
    %5283 = vmatpush1.bf16.msra.mxu0 %v4709
    %5284 = vmatprep.subr.bf16.mxu0 %v4708
    %5285 = vmatpush1.bf16.msra.mxu0 %v4707
    %5286 = vmatprep.subr.bf16.mxu0 %v4706
    %5287 = vmatpush1.bf16.msra.mxu0 %v4705
    %5288 = vmatprep.subr.bf16.mxu0 %v4704
    %5289 = vmatpush1.bf16.msra.mxu0 %v4703
    %5290 = vmatprep.subr.bf16.mxu0 %v4702
    %5291 = vmatpush1.bf16.msra.mxu0 %v4701
    %5292 = vmatprep.subr.bf16.mxu0 %v4732
    %5293 = vmatpush2.bf16.msra.mxu0 %v4731
    %5294 = vmatprep.subr.bf16.mxu0 %v4730
    %5295 = vmatpush2.bf16.msra.mxu0 %v4729
    %5296 = vmatprep.subr.bf16.mxu0 %v4728
    %5297 = vmatpush2.bf16.msra.mxu0 %v4727
    %5298 = vmatprep.subr.bf16.mxu0 %v4726
    %5299 = vmatpush2.bf16.msra.mxu0 %v4725
    %5300 = vmatprep.subr.bf16.mxu0 %v4724
    %5301 = vmatpush2.bf16.msra.mxu0 %v4723
    %5302 = vmatprep.subr.bf16.mxu0 %v4722
    %5303 = vmatpush2.bf16.msra.mxu0 %v4721
    %5304 = vmatprep.subr.bf16.mxu0 %v4720
    %5305 = vmatpush2.bf16.msra.mxu0 %v4719
    %5306 = vmatprep.subr.bf16.mxu0 %v4718
    %5307 = vmatpush2.bf16.msra.mxu0 %v4717
    %5308 = vmatprep.mubr.bf16.mxu0 %v3692
    %5309 = vmatmul.mubr.bf16.gmra.mxu0 %v3691
    %v5310 = vpop.f32.mrf.mxu0
    %v5311 = vadd.f32 %v5270, %v5310
    %v5312 = vpop.f32.mrf.mxu0
    %v5313 = vadd.f32 %v5272, %v5312
    %v5314 = vpop.f32.mrf.mxu0
    %v5315 = vpop.f32.mrf.mxu0
    %5316 = vdwg.mxu0
    %v5317 = vmax.f32 %v5311, 0.0
    %v5318 = vmax.f32 %v5313, 0.0
    %v5319 = vpack.c.bf16 %v5317, %v5317
    %v5320 = vpack.c.bf16 %v5318, %v5318
    %v5323 = vunpack.c.l.b16 %v5319
    %v5324 = vunpack.c.l.b16 %v5320
    %v5325 = vpack.c.b16 %v5324, %v5323
    %5327 = vst [vmem:[#allocation3] sm:$0xff] %v5325
    %v5328 = vld [vmem:[#allocation5 + $0x8] sm:$0xff]
    %v5329 = vld [vmem:[#allocation5 + $0x18] sm:$0xff]
    %v5330 = vld [vmem:[#allocation5 + $0x28] sm:$0xff]
    %v5331 = vld [vmem:[#allocation5 + $0x38] sm:$0xff]
    %v5332 = vld [vmem:[#allocation5 + $0x48] sm:$0xff]
    %v5333 = vld [vmem:[#allocation5 + $0x58] sm:$0xff]
    %v5334 = vld [vmem:[#allocation5 + $0x68] sm:$0xff]
    %v5335 = vld [vmem:[#allocation5 + $0x78] sm:$0xff]
    %v5336 = vld [vmem:[#allocation5 + $0x88] sm:$0xff]
    %v5337 = vld [vmem:[#allocation5 + $0x98] sm:$0xff]
    %v5338 = vld [vmem:[#allocation5 + $0xa8] sm:$0xff]
    %v5339 = vld [vmem:[#allocation5 + $0xb8] sm:$0xff]
    %v5340 = vld [vmem:[#allocation5 + $0xc8] sm:$0xff]
    %v5341 = vld [vmem:[#allocation5 + $0xd8] sm:$0xff]
    %v5342 = vld [vmem:[#allocation5 + $0xe8] sm:$0xff]
    %v5343 = vld [vmem:[#allocation5 + $0xf8] sm:$0xff]
    %v5344 = vld [vmem:[#allocation5 + $0x108] sm:$0xff]
    %v5345 = vld [vmem:[#allocation5 + $0x118] sm:$0xff]
    %v5346 = vld [vmem:[#allocation5 + $0x128] sm:$0xff]
    %v5347 = vld [vmem:[#allocation5 + $0x138] sm:$0xff]
    %v5348 = vld [vmem:[#allocation5 + $0x148] sm:$0xff]
    %v5349 = vld [vmem:[#allocation5 + $0x158] sm:$0xff]
    %v5350 = vld [vmem:[#allocation5 + $0x168] sm:$0xff]
    %v5351 = vld [vmem:[#allocation5 + $0x178] sm:$0xff]
    %v5352 = vld [vmem:[#allocation5 + $0x188] sm:$0xff]
    %v5353 = vld [vmem:[#allocation5 + $0x198] sm:$0xff]
    %v5354 = vld [vmem:[#allocation5 + $0x1a8] sm:$0xff]
    %v5355 = vld [vmem:[#allocation5 + $0x1b8] sm:$0xff]
    %v5356 = vld [vmem:[#allocation5 + $0x1c8] sm:$0xff]
    %v5357 = vld [vmem:[#allocation5 + $0x1d8] sm:$0xff]
    %v5358 = vld [vmem:[#allocation5 + $0x1e8] sm:$0xff]
    %v5359 = vld [vmem:[#allocation5 + $0x1f8] sm:$0xff]
    %v5360 = vld [vmem:[#allocation5 + $0x208] sm:$0xff]
    %v5361 = vld [vmem:[#allocation5 + $0x218] sm:$0xff]
    %v5362 = vld [vmem:[#allocation5 + $0x228] sm:$0xff]
    %v5363 = vld [vmem:[#allocation5 + $0x238] sm:$0xff]
    %v5364 = vld [vmem:[#allocation5 + $0x248] sm:$0xff]
    %v5365 = vld [vmem:[#allocation5 + $0x258] sm:$0xff]
    %v5366 = vld [vmem:[#allocation5 + $0x268] sm:$0xff]
    %v5367 = vld [vmem:[#allocation5 + $0x278] sm:$0xff]
    %v5368 = vld [vmem:[#allocation5 + $0x288] sm:$0xff]
    %v5369 = vld [vmem:[#allocation5 + $0x298] sm:$0xff]
    %v5370 = vld [vmem:[#allocation5 + $0x2a8] sm:$0xff]
    %v5371 = vld [vmem:[#allocation5 + $0x2b8] sm:$0xff]
    %v5372 = vld [vmem:[#allocation5 + $0x2c8] sm:$0xff]
    %v5373 = vld [vmem:[#allocation5 + $0x2d8] sm:$0xff]
    %v5374 = vld [vmem:[#allocation5 + $0x2e8] sm:$0xff]
    %v5375 = vld [vmem:[#allocation5 + $0x2f8] sm:$0xff]
    %v5376 = vld [vmem:[#allocation5 + $0x308] sm:$0xff]
    %v5377 = vld [vmem:[#allocation5 + $0x318] sm:$0xff]
    %v5378 = vld [vmem:[#allocation5 + $0x328] sm:$0xff]
    %v5379 = vld [vmem:[#allocation5 + $0x338] sm:$0xff]
    %v5380 = vld [vmem:[#allocation5 + $0x348] sm:$0xff]
    %v5381 = vld [vmem:[#allocation5 + $0x358] sm:$0xff]
    %v5382 = vld [vmem:[#allocation5 + $0x368] sm:$0xff]
    %v5383 = vld [vmem:[#allocation5 + $0x378] sm:$0xff]
    %v5384 = vld [vmem:[#allocation5 + $0x388] sm:$0xff]
    %v5385 = vld [vmem:[#allocation5 + $0x398] sm:$0xff]
    %v5386 = vld [vmem:[#allocation5 + $0x3a8] sm:$0xff]
    %v5387 = vld [vmem:[#allocation5 + $0x3b8] sm:$0xff]
    %v5388 = vld [vmem:[#allocation5 + $0x3c8] sm:$0xff]
    %v5389 = vld [vmem:[#allocation5 + $0x3d8] sm:$0xff]
    %v5390 = vld [vmem:[#allocation5 + $0x3e8] sm:$0xff]
    %v5391 = vld [vmem:[#allocation5 + $0x3f8] sm:$0xff]
    %v5392 = vld [vmem:[#allocation5 + $0x408] sm:$0xff]
    %v5393 = vld [vmem:[#allocation5 + $0x418] sm:$0xff]
    %v5394 = vld [vmem:[#allocation5 + $0x428] sm:$0xff]
    %v5395 = vld [vmem:[#allocation5 + $0x438] sm:$0xff]
    %v5396 = vld [vmem:[#allocation5 + $0x448] sm:$0xff]
    %v5397 = vld [vmem:[#allocation5 + $0x458] sm:$0xff]
    %v5398 = vld [vmem:[#allocation5 + $0x468] sm:$0xff]
    %v5399 = vld [vmem:[#allocation5 + $0x478] sm:$0xff]
    %v5400 = vld [vmem:[#allocation5 + $0x488] sm:$0xff]
    %v5401 = vld [vmem:[#allocation5 + $0x498] sm:$0xff]
    %v5402 = vld [vmem:[#allocation5 + $0x4a8] sm:$0xff]
    %v5403 = vld [vmem:[#allocation5 + $0x4b8] sm:$0xff]
    %v5404 = vld [vmem:[#allocation5 + $0x4c8] sm:$0xff]
    %v5405 = vld [vmem:[#allocation5 + $0x4d8] sm:$0xff]
    %v5406 = vld [vmem:[#allocation5 + $0x4e8] sm:$0xff]
    %v5407 = vld [vmem:[#allocation5 + $0x4f8] sm:$0xff]
    %v5408 = vld [vmem:[#allocation5 + $0x508] sm:$0xff]
    %v5409 = vld [vmem:[#allocation5 + $0x518] sm:$0xff]
    %v5410 = vld [vmem:[#allocation5 + $0x528] sm:$0xff]
    %v5411 = vld [vmem:[#allocation5 + $0x538] sm:$0xff]
    %v5412 = vld [vmem:[#allocation5 + $0x548] sm:$0xff]
    %v5413 = vld [vmem:[#allocation5 + $0x558] sm:$0xff]
    %v5414 = vld [vmem:[#allocation5 + $0x568] sm:$0xff]
    %v5415 = vld [vmem:[#allocation5 + $0x578] sm:$0xff]
    %v5416 = vld [vmem:[#allocation5 + $0x588] sm:$0xff]
    %v5417 = vld [vmem:[#allocation5 + $0x598] sm:$0xff]
    %v5418 = vld [vmem:[#allocation5 + $0x5a8] sm:$0xff]
    %v5419 = vld [vmem:[#allocation5 + $0x5b8] sm:$0xff]
    %v5420 = vld [vmem:[#allocation5 + $0x5c8] sm:$0xff]
    %v5421 = vld [vmem:[#allocation5 + $0x5d8] sm:$0xff]
    %v5422 = vld [vmem:[#allocation5 + $0x5e8] sm:$0xff]
    %v5423 = vld [vmem:[#allocation5 + $0x5f8] sm:$0xff]
    %v5424 = vld [vmem:[#allocation5 + $0x608] sm:$0xff]
    %v5425 = vld [vmem:[#allocation5 + $0x618] sm:$0xff]
    %v5426 = vld [vmem:[#allocation5 + $0x628] sm:$0xff]
    %v5427 = vld [vmem:[#allocation5 + $0x638] sm:$0xff]
    %v5428 = vld [vmem:[#allocation5 + $0x648] sm:$0xff]
    %v5429 = vld [vmem:[#allocation5 + $0x658] sm:$0xff]
    %v5430 = vld [vmem:[#allocation5 + $0x668] sm:$0xff]
    %v5431 = vld [vmem:[#allocation5 + $0x678] sm:$0xff]
    %v5432 = vld [vmem:[#allocation5 + $0x688] sm:$0xff]
    %v5433 = vld [vmem:[#allocation5 + $0x698] sm:$0xff]
    %v5434 = vld [vmem:[#allocation5 + $0x6a8] sm:$0xff]
    %v5435 = vld [vmem:[#allocation5 + $0x6b8] sm:$0xff]
    %v5436 = vld [vmem:[#allocation5 + $0x6c8] sm:$0xff]
    %v5437 = vld [vmem:[#allocation5 + $0x6d8] sm:$0xff]
    %v5438 = vld [vmem:[#allocation5 + $0x6e8] sm:$0xff]
    %v5439 = vld [vmem:[#allocation5 + $0x6f8] sm:$0xff]
    %v5440 = vld [vmem:[#allocation5 + $0x708] sm:$0xff]
    %v5441 = vld [vmem:[#allocation5 + $0x718] sm:$0xff]
    %v5442 = vld [vmem:[#allocation5 + $0x728] sm:$0xff]
    %v5443 = vld [vmem:[#allocation5 + $0x738] sm:$0xff]
    %v5444 = vld [vmem:[#allocation5 + $0x748] sm:$0xff]
    %v5445 = vld [vmem:[#allocation5 + $0x758] sm:$0xff]
    %v5446 = vld [vmem:[#allocation5 + $0x768] sm:$0xff]
    %v5447 = vld [vmem:[#allocation5 + $0x778] sm:$0xff]
    %v5448 = vld [vmem:[#allocation5 + $0x788] sm:$0xff]
    %v5449 = vld [vmem:[#allocation5 + $0x798] sm:$0xff]
    %v5450 = vld [vmem:[#allocation5 + $0x7a8] sm:$0xff]
    %v5451 = vld [vmem:[#allocation5 + $0x7b8] sm:$0xff]
    %v5452 = vld [vmem:[#allocation5 + $0x7c8] sm:$0xff]
    %v5453 = vld [vmem:[#allocation5 + $0x7d8] sm:$0xff]
    %v5454 = vld [vmem:[#allocation5 + $0x7e8] sm:$0xff]
    %v5455 = vld [vmem:[#allocation5 + $0x7f8] sm:$0xff]
    %v5456 = vld [vmem:[#allocation5 + $0x808] sm:$0xff]
    %v5457 = vld [vmem:[#allocation5 + $0x818] sm:$0xff]
    %v5458 = vld [vmem:[#allocation5 + $0x828] sm:$0xff]
    %v5459 = vld [vmem:[#allocation5 + $0x838] sm:$0xff]
    %v5460 = vld [vmem:[#allocation5 + $0x848] sm:$0xff]
    %v5461 = vld [vmem:[#allocation5 + $0x858] sm:$0xff]
    %v5462 = vld [vmem:[#allocation5 + $0x868] sm:$0xff]
    %v5463 = vld [vmem:[#allocation5 + $0x878] sm:$0xff]
    %v5464 = vld [vmem:[#allocation5 + $0x888] sm:$0xff]
    %v5465 = vld [vmem:[#allocation5 + $0x898] sm:$0xff]
    %v5466 = vld [vmem:[#allocation5 + $0x8a8] sm:$0xff]
    %v5467 = vld [vmem:[#allocation5 + $0x8b8] sm:$0xff]
    %v5468 = vld [vmem:[#allocation5 + $0x8c8] sm:$0xff]
    %v5469 = vld [vmem:[#allocation5 + $0x8d8] sm:$0xff]
    %v5470 = vld [vmem:[#allocation5 + $0x8e8] sm:$0xff]
    %v5471 = vld [vmem:[#allocation5 + $0x8f8] sm:$0xff]
    %v5472 = vld [vmem:[#allocation5 + $0x908] sm:$0xff]
    %v5473 = vld [vmem:[#allocation5 + $0x918] sm:$0xff]
    %v5474 = vld [vmem:[#allocation5 + $0x928] sm:$0xff]
    %v5475 = vld [vmem:[#allocation5 + $0x938] sm:$0xff]
    %v5476 = vld [vmem:[#allocation5 + $0x948] sm:$0xff]
    %v5477 = vld [vmem:[#allocation5 + $0x958] sm:$0xff]
    %v5478 = vld [vmem:[#allocation5 + $0x968] sm:$0xff]
    %v5479 = vld [vmem:[#allocation5 + $0x978] sm:$0xff]
    %v5480 = vld [vmem:[#allocation5 + $0x988] sm:$0xff]
    %v5481 = vld [vmem:[#allocation5 + $0x998] sm:$0xff]
    %v5482 = vld [vmem:[#allocation5 + $0x9a8] sm:$0xff]
    %v5483 = vld [vmem:[#allocation5 + $0x9b8] sm:$0xff]
    %v5484 = vld [vmem:[#allocation5 + $0x9c8] sm:$0xff]
    %v5485 = vld [vmem:[#allocation5 + $0x9d8] sm:$0xff]
    %v5486 = vld [vmem:[#allocation5 + $0x9e8] sm:$0xff]
    %v5487 = vld [vmem:[#allocation5 + $0x9f8] sm:$0xff]
    %v5488 = vld [vmem:[#allocation5 + $0xa08] sm:$0xff]
    %v5489 = vld [vmem:[#allocation5 + $0xa18] sm:$0xff]
    %v5490 = vld [vmem:[#allocation5 + $0xa28] sm:$0xff]
    %v5491 = vld [vmem:[#allocation5 + $0xa38] sm:$0xff]
    %v5492 = vld [vmem:[#allocation5 + $0xa48] sm:$0xff]
    %v5493 = vld [vmem:[#allocation5 + $0xa58] sm:$0xff]
    %v5494 = vld [vmem:[#allocation5 + $0xa68] sm:$0xff]
    %v5495 = vld [vmem:[#allocation5 + $0xa78] sm:$0xff]
    %v5496 = vld [vmem:[#allocation5 + $0xa88] sm:$0xff]
    %v5497 = vld [vmem:[#allocation5 + $0xa98] sm:$0xff]
    %v5498 = vld [vmem:[#allocation5 + $0xaa8] sm:$0xff]
    %v5499 = vld [vmem:[#allocation5 + $0xab8] sm:$0xff]
    %v5500 = vld [vmem:[#allocation5 + $0xac8] sm:$0xff]
    %v5501 = vld [vmem:[#allocation5 + $0xad8] sm:$0xff]
    %v5502 = vld [vmem:[#allocation5 + $0xae8] sm:$0xff]
    %v5503 = vld [vmem:[#allocation5 + $0xaf8] sm:$0xff]
    %v5504 = vld [vmem:[#allocation5 + $0xb08] sm:$0xff]
    %v5505 = vld [vmem:[#allocation5 + $0xb18] sm:$0xff]
    %v5506 = vld [vmem:[#allocation5 + $0xb28] sm:$0xff]
    %v5507 = vld [vmem:[#allocation5 + $0xb38] sm:$0xff]
    %v5508 = vld [vmem:[#allocation5 + $0xb48] sm:$0xff]
    %v5509 = vld [vmem:[#allocation5 + $0xb58] sm:$0xff]
    %v5510 = vld [vmem:[#allocation5 + $0xb68] sm:$0xff]
    %v5511 = vld [vmem:[#allocation5 + $0xb78] sm:$0xff]
    %v5512 = vld [vmem:[#allocation5 + $0xb88] sm:$0xff]
    %v5513 = vld [vmem:[#allocation5 + $0xb98] sm:$0xff]
    %v5514 = vld [vmem:[#allocation5 + $0xba8] sm:$0xff]
    %v5515 = vld [vmem:[#allocation5 + $0xbb8] sm:$0xff]
    %v5516 = vld [vmem:[#allocation5 + $0xbc8] sm:$0xff]
    %v5517 = vld [vmem:[#allocation5 + $0xbd8] sm:$0xff]
    %v5518 = vld [vmem:[#allocation5 + $0xbe8] sm:$0xff]
    %v5519 = vld [vmem:[#allocation5 + $0xbf8] sm:$0xff]
    %v5520 = vld [vmem:[#allocation5 + $0xc08] sm:$0xff]
    %v5521 = vld [vmem:[#allocation5 + $0xc18] sm:$0xff]
    %v5522 = vld [vmem:[#allocation5 + $0xc28] sm:$0xff]
    %v5523 = vld [vmem:[#allocation5 + $0xc38] sm:$0xff]
    %v5524 = vld [vmem:[#allocation5 + $0xc48] sm:$0xff]
    %v5525 = vld [vmem:[#allocation5 + $0xc58] sm:$0xff]
    %v5526 = vld [vmem:[#allocation5 + $0xc68] sm:$0xff]
    %v5527 = vld [vmem:[#allocation5 + $0xc78] sm:$0xff]
    %v5528 = vld [vmem:[#allocation5 + $0xc88] sm:$0xff]
    %v5529 = vld [vmem:[#allocation5 + $0xc98] sm:$0xff]
    %v5530 = vld [vmem:[#allocation5 + $0xca8] sm:$0xff]
    %v5531 = vld [vmem:[#allocation5 + $0xcb8] sm:$0xff]
    %v5532 = vld [vmem:[#allocation5 + $0xcc8] sm:$0xff]
    %v5533 = vld [vmem:[#allocation5 + $0xcd8] sm:$0xff]
    %v5534 = vld [vmem:[#allocation5 + $0xce8] sm:$0xff]
    %v5535 = vld [vmem:[#allocation5 + $0xcf8] sm:$0xff]
    %v5536 = vld [vmem:[#allocation5 + $0xd08] sm:$0xff]
    %v5537 = vld [vmem:[#allocation5 + $0xd18] sm:$0xff]
    %v5538 = vld [vmem:[#allocation5 + $0xd28] sm:$0xff]
    %v5539 = vld [vmem:[#allocation5 + $0xd38] sm:$0xff]
    %v5540 = vld [vmem:[#allocation5 + $0xd48] sm:$0xff]
    %v5541 = vld [vmem:[#allocation5 + $0xd58] sm:$0xff]
    %v5542 = vld [vmem:[#allocation5 + $0xd68] sm:$0xff]
    %v5543 = vld [vmem:[#allocation5 + $0xd78] sm:$0xff]
    %v5544 = vld [vmem:[#allocation5 + $0xd88] sm:$0xff]
    %v5545 = vld [vmem:[#allocation5 + $0xd98] sm:$0xff]
    %v5546 = vld [vmem:[#allocation5 + $0xda8] sm:$0xff]
    %v5547 = vld [vmem:[#allocation5 + $0xdb8] sm:$0xff]
    %v5548 = vld [vmem:[#allocation5 + $0xdc8] sm:$0xff]
    %v5549 = vld [vmem:[#allocation5 + $0xdd8] sm:$0xff]
    %v5550 = vld [vmem:[#allocation5 + $0xde8] sm:$0xff]
    %v5551 = vld [vmem:[#allocation5 + $0xdf8] sm:$0xff]
    %v5552 = vld [vmem:[#allocation5 + $0xe08] sm:$0xff]
    %v5553 = vld [vmem:[#allocation5 + $0xe18] sm:$0xff]
    %v5554 = vld [vmem:[#allocation5 + $0xe28] sm:$0xff]
    %v5555 = vld [vmem:[#allocation5 + $0xe38] sm:$0xff]
    %v5556 = vld [vmem:[#allocation5 + $0xe48] sm:$0xff]
    %v5557 = vld [vmem:[#allocation5 + $0xe58] sm:$0xff]
    %v5558 = vld [vmem:[#allocation5 + $0xe68] sm:$0xff]
    %v5559 = vld [vmem:[#allocation5 + $0xe78] sm:$0xff]
    %v5560 = vld [vmem:[#allocation5 + $0xe88] sm:$0xff]
    %v5561 = vld [vmem:[#allocation5 + $0xe98] sm:$0xff]
    %v5562 = vld [vmem:[#allocation5 + $0xea8] sm:$0xff]
    %v5563 = vld [vmem:[#allocation5 + $0xeb8] sm:$0xff]
    %v5564 = vld [vmem:[#allocation5 + $0xec8] sm:$0xff]
    %v5565 = vld [vmem:[#allocation5 + $0xed8] sm:$0xff]
    %v5566 = vld [vmem:[#allocation5 + $0xee8] sm:$0xff]
    %v5567 = vld [vmem:[#allocation5 + $0xef8] sm:$0xff]
    %v5568 = vld [vmem:[#allocation5 + $0xf08] sm:$0xff]
    %v5569 = vld [vmem:[#allocation5 + $0xf18] sm:$0xff]
    %v5570 = vld [vmem:[#allocation5 + $0xf28] sm:$0xff]
    %v5571 = vld [vmem:[#allocation5 + $0xf38] sm:$0xff]
    %v5572 = vld [vmem:[#allocation5 + $0xf48] sm:$0xff]
    %v5573 = vld [vmem:[#allocation5 + $0xf58] sm:$0xff]
    %v5574 = vld [vmem:[#allocation5 + $0xf68] sm:$0xff]
    %v5575 = vld [vmem:[#allocation5 + $0xf78] sm:$0xff]
    %v5576 = vld [vmem:[#allocation5 + $0xf88] sm:$0xff]
    %v5577 = vld [vmem:[#allocation5 + $0xf98] sm:$0xff]
    %v5578 = vld [vmem:[#allocation5 + $0xfa8] sm:$0xff]
    %v5579 = vld [vmem:[#allocation5 + $0xfb8] sm:$0xff]
    %v5580 = vld [vmem:[#allocation5 + $0xfc8] sm:$0xff]
    %v5581 = vld [vmem:[#allocation5 + $0xfd8] sm:$0xff]
    %v5582 = vld [vmem:[#allocation5 + $0xfe8] sm:$0xff]
    %v5583 = vld [vmem:[#allocation5 + $0xff8] sm:$0xff]
    %v5584 = vld [vmem:[#allocation13 + $0x2] sm:$0x3]
    %v5586 = vlaneseq
    %v5587 = vshrl.u32 %v5586, 7
    %v5588 = vsub.s32 0, %v5587
    %v5589 = vrot.slane %v5584, %v5588
    %v5590 = vlaneseq
    %v5591 = vshrl.u32 %v5590, 7
    %v5592 = vsub.s32 1, %v5591
    %v5593 = vrot.slane %v5584, %v5592
    %v5852 = vunpack.c.l.b16 %v5328
    %v5853 = vunpack.c.h.b16 %v5328
    %v5854 = vunpack.c.l.b16 %v5329
    %v5855 = vunpack.c.h.b16 %v5329
    %v5856 = vunpack.c.l.b16 %v5330
    %v5857 = vunpack.c.h.b16 %v5330
    %v5858 = vunpack.c.l.b16 %v5331
    %v5859 = vunpack.c.h.b16 %v5331
    %v5860 = vunpack.c.l.b16 %v5332
    %v5861 = vunpack.c.h.b16 %v5332
    %v5862 = vunpack.c.l.b16 %v5333
    %v5863 = vunpack.c.h.b16 %v5333
    %v5864 = vunpack.c.l.b16 %v5334
    %v5865 = vunpack.c.h.b16 %v5334
    %v5866 = vunpack.c.l.b16 %v5335
    %v5867 = vunpack.c.h.b16 %v5335
    %v5868 = vunpack.c.l.b16 %v5336
    %v5869 = vunpack.c.h.b16 %v5336
    %v5870 = vunpack.c.l.b16 %v5337
    %v5871 = vunpack.c.h.b16 %v5337
    %v5872 = vunpack.c.l.b16 %v5338
    %v5873 = vunpack.c.h.b16 %v5338
    %v5874 = vunpack.c.l.b16 %v5339
    %v5875 = vunpack.c.h.b16 %v5339
    %v5876 = vunpack.c.l.b16 %v5340
    %v5877 = vunpack.c.h.b16 %v5340
    %v5878 = vunpack.c.l.b16 %v5341
    %v5879 = vunpack.c.h.b16 %v5341
    %v5880 = vunpack.c.l.b16 %v5342
    %v5881 = vunpack.c.h.b16 %v5342
    %v5882 = vunpack.c.l.b16 %v5343
    %v5883 = vunpack.c.h.b16 %v5343
    %v5884 = vunpack.c.l.b16 %v5344
    %v5885 = vunpack.c.h.b16 %v5344
    %v5886 = vunpack.c.l.b16 %v5345
    %v5887 = vunpack.c.h.b16 %v5345
    %v5888 = vunpack.c.l.b16 %v5346
    %v5889 = vunpack.c.h.b16 %v5346
    %v5890 = vunpack.c.l.b16 %v5347
    %v5891 = vunpack.c.h.b16 %v5347
    %v5892 = vunpack.c.l.b16 %v5348
    %v5893 = vunpack.c.h.b16 %v5348
    %v5894 = vunpack.c.l.b16 %v5349
    %v5895 = vunpack.c.h.b16 %v5349
    %v5896 = vunpack.c.l.b16 %v5350
    %v5897 = vunpack.c.h.b16 %v5350
    %v5898 = vunpack.c.l.b16 %v5351
    %v5899 = vunpack.c.h.b16 %v5351
    %v5900 = vunpack.c.l.b16 %v5352
    %v5901 = vunpack.c.h.b16 %v5352
    %v5902 = vunpack.c.l.b16 %v5353
    %v5903 = vunpack.c.h.b16 %v5353
    %v5904 = vunpack.c.l.b16 %v5354
    %v5905 = vunpack.c.h.b16 %v5354
    %v5906 = vunpack.c.l.b16 %v5355
    %v5907 = vunpack.c.h.b16 %v5355
    %v5908 = vunpack.c.l.b16 %v5356
    %v5909 = vunpack.c.h.b16 %v5356
    %v5910 = vunpack.c.l.b16 %v5357
    %v5911 = vunpack.c.h.b16 %v5357
    %v5912 = vunpack.c.l.b16 %v5358
    %v5913 = vunpack.c.h.b16 %v5358
    %v5914 = vunpack.c.l.b16 %v5359
    %v5915 = vunpack.c.h.b16 %v5359
    %v5916 = vunpack.c.l.b16 %v5360
    %v5917 = vunpack.c.h.b16 %v5360
    %v5918 = vunpack.c.l.b16 %v5361
    %v5919 = vunpack.c.h.b16 %v5361
    %v5920 = vunpack.c.l.b16 %v5362
    %v5921 = vunpack.c.h.b16 %v5362
    %v5922 = vunpack.c.l.b16 %v5363
    %v5923 = vunpack.c.h.b16 %v5363
    %v5924 = vunpack.c.l.b16 %v5364
    %v5925 = vunpack.c.h.b16 %v5364
    %v5926 = vunpack.c.l.b16 %v5365
    %v5927 = vunpack.c.h.b16 %v5365
    %v5928 = vunpack.c.l.b16 %v5366
    %v5929 = vunpack.c.h.b16 %v5366
    %v5930 = vunpack.c.l.b16 %v5367
    %v5931 = vunpack.c.h.b16 %v5367
    %v5932 = vunpack.c.l.b16 %v5368
    %v5933 = vunpack.c.h.b16 %v5368
    %v5934 = vunpack.c.l.b16 %v5369
    %v5935 = vunpack.c.h.b16 %v5369
    %v5936 = vunpack.c.l.b16 %v5370
    %v5937 = vunpack.c.h.b16 %v5370
    %v5938 = vunpack.c.l.b16 %v5371
    %v5939 = vunpack.c.h.b16 %v5371
    %v5940 = vunpack.c.l.b16 %v5372
    %v5941 = vunpack.c.h.b16 %v5372
    %v5942 = vunpack.c.l.b16 %v5373
    %v5943 = vunpack.c.h.b16 %v5373
    %v5944 = vunpack.c.l.b16 %v5374
    %v5945 = vunpack.c.h.b16 %v5374
    %v5946 = vunpack.c.l.b16 %v5375
    %v5947 = vunpack.c.h.b16 %v5375
    %v5948 = vunpack.c.l.b16 %v5376
    %v5949 = vunpack.c.h.b16 %v5376
    %v5950 = vunpack.c.l.b16 %v5377
    %v5951 = vunpack.c.h.b16 %v5377
    %v5952 = vunpack.c.l.b16 %v5378
    %v5953 = vunpack.c.h.b16 %v5378
    %v5954 = vunpack.c.l.b16 %v5379
    %v5955 = vunpack.c.h.b16 %v5379
    %v5956 = vunpack.c.l.b16 %v5380
    %v5957 = vunpack.c.h.b16 %v5380
    %v5958 = vunpack.c.l.b16 %v5381
    %v5959 = vunpack.c.h.b16 %v5381
    %v5960 = vunpack.c.l.b16 %v5382
    %v5961 = vunpack.c.h.b16 %v5382
    %v5962 = vunpack.c.l.b16 %v5383
    %v5963 = vunpack.c.h.b16 %v5383
    %v5964 = vunpack.c.l.b16 %v5384
    %v5965 = vunpack.c.h.b16 %v5384
    %v5966 = vunpack.c.l.b16 %v5385
    %v5967 = vunpack.c.h.b16 %v5385
    %v5968 = vunpack.c.l.b16 %v5386
    %v5969 = vunpack.c.h.b16 %v5386
    %v5970 = vunpack.c.l.b16 %v5387
    %v5971 = vunpack.c.h.b16 %v5387
    %v5972 = vunpack.c.l.b16 %v5388
    %v5973 = vunpack.c.h.b16 %v5388
    %v5974 = vunpack.c.l.b16 %v5389
    %v5975 = vunpack.c.h.b16 %v5389
    %v5976 = vunpack.c.l.b16 %v5390
    %v5977 = vunpack.c.h.b16 %v5390
    %v5978 = vunpack.c.l.b16 %v5391
    %v5979 = vunpack.c.h.b16 %v5391
    %v5980 = vunpack.c.l.b16 %v5392
    %v5981 = vunpack.c.h.b16 %v5392
    %v5982 = vunpack.c.l.b16 %v5393
    %v5983 = vunpack.c.h.b16 %v5393
    %v5984 = vunpack.c.l.b16 %v5394
    %v5985 = vunpack.c.h.b16 %v5394
    %v5986 = vunpack.c.l.b16 %v5395
    %v5987 = vunpack.c.h.b16 %v5395
    %v5988 = vunpack.c.l.b16 %v5396
    %v5989 = vunpack.c.h.b16 %v5396
    %v5990 = vunpack.c.l.b16 %v5397
    %v5991 = vunpack.c.h.b16 %v5397
    %v5992 = vunpack.c.l.b16 %v5398
    %v5993 = vunpack.c.h.b16 %v5398
    %v5994 = vunpack.c.l.b16 %v5399
    %v5995 = vunpack.c.h.b16 %v5399
    %v5996 = vunpack.c.l.b16 %v5400
    %v5997 = vunpack.c.h.b16 %v5400
    %v5998 = vunpack.c.l.b16 %v5401
    %v5999 = vunpack.c.h.b16 %v5401
    %v6000 = vunpack.c.l.b16 %v5402
    %v6001 = vunpack.c.h.b16 %v5402
    %v6002 = vunpack.c.l.b16 %v5403
    %v6003 = vunpack.c.h.b16 %v5403
    %v6004 = vunpack.c.l.b16 %v5404
    %v6005 = vunpack.c.h.b16 %v5404
    %v6006 = vunpack.c.l.b16 %v5405
    %v6007 = vunpack.c.h.b16 %v5405
    %v6008 = vunpack.c.l.b16 %v5406
    %v6009 = vunpack.c.h.b16 %v5406
    %v6010 = vunpack.c.l.b16 %v5407
    %v6011 = vunpack.c.h.b16 %v5407
    %v6012 = vunpack.c.l.b16 %v5408
    %v6013 = vunpack.c.h.b16 %v5408
    %v6014 = vunpack.c.l.b16 %v5409
    %v6015 = vunpack.c.h.b16 %v5409
    %v6016 = vunpack.c.l.b16 %v5410
    %v6017 = vunpack.c.h.b16 %v5410
    %v6018 = vunpack.c.l.b16 %v5411
    %v6019 = vunpack.c.h.b16 %v5411
    %v6020 = vunpack.c.l.b16 %v5412
    %v6021 = vunpack.c.h.b16 %v5412
    %v6022 = vunpack.c.l.b16 %v5413
    %v6023 = vunpack.c.h.b16 %v5413
    %v6024 = vunpack.c.l.b16 %v5414
    %v6025 = vunpack.c.h.b16 %v5414
    %v6026 = vunpack.c.l.b16 %v5415
    %v6027 = vunpack.c.h.b16 %v5415
    %v6028 = vunpack.c.l.b16 %v5416
    %v6029 = vunpack.c.h.b16 %v5416
    %v6030 = vunpack.c.l.b16 %v5417
    %v6031 = vunpack.c.h.b16 %v5417
    %v6032 = vunpack.c.l.b16 %v5418
    %v6033 = vunpack.c.h.b16 %v5418
    %v6034 = vunpack.c.l.b16 %v5419
    %v6035 = vunpack.c.h.b16 %v5419
    %v6036 = vunpack.c.l.b16 %v5420
    %v6037 = vunpack.c.h.b16 %v5420
    %v6038 = vunpack.c.l.b16 %v5421
    %v6039 = vunpack.c.h.b16 %v5421
    %v6040 = vunpack.c.l.b16 %v5422
    %v6041 = vunpack.c.h.b16 %v5422
    %v6042 = vunpack.c.l.b16 %v5423
    %v6043 = vunpack.c.h.b16 %v5423
    %v6044 = vunpack.c.l.b16 %v5424
    %v6045 = vunpack.c.h.b16 %v5424
    %v6046 = vunpack.c.l.b16 %v5425
    %v6047 = vunpack.c.h.b16 %v5425
    %v6048 = vunpack.c.l.b16 %v5426
    %v6049 = vunpack.c.h.b16 %v5426
    %v6050 = vunpack.c.l.b16 %v5427
    %v6051 = vunpack.c.h.b16 %v5427
    %v6052 = vunpack.c.l.b16 %v5428
    %v6053 = vunpack.c.h.b16 %v5428
    %v6054 = vunpack.c.l.b16 %v5429
    %v6055 = vunpack.c.h.b16 %v5429
    %v6056 = vunpack.c.l.b16 %v5430
    %v6057 = vunpack.c.h.b16 %v5430
    %v6058 = vunpack.c.l.b16 %v5431
    %v6059 = vunpack.c.h.b16 %v5431
    %v6060 = vunpack.c.l.b16 %v5432
    %v6061 = vunpack.c.h.b16 %v5432
    %v6062 = vunpack.c.l.b16 %v5433
    %v6063 = vunpack.c.h.b16 %v5433
    %v6064 = vunpack.c.l.b16 %v5434
    %v6065 = vunpack.c.h.b16 %v5434
    %v6066 = vunpack.c.l.b16 %v5435
    %v6067 = vunpack.c.h.b16 %v5435
    %v6068 = vunpack.c.l.b16 %v5436
    %v6069 = vunpack.c.h.b16 %v5436
    %v6070 = vunpack.c.l.b16 %v5437
    %v6071 = vunpack.c.h.b16 %v5437
    %v6072 = vunpack.c.l.b16 %v5438
    %v6073 = vunpack.c.h.b16 %v5438
    %v6074 = vunpack.c.l.b16 %v5439
    %v6075 = vunpack.c.h.b16 %v5439
    %v6076 = vunpack.c.l.b16 %v5440
    %v6077 = vunpack.c.h.b16 %v5440
    %v6078 = vunpack.c.l.b16 %v5441
    %v6079 = vunpack.c.h.b16 %v5441
    %v6080 = vunpack.c.l.b16 %v5442
    %v6081 = vunpack.c.h.b16 %v5442
    %v6082 = vunpack.c.l.b16 %v5443
    %v6083 = vunpack.c.h.b16 %v5443
    %v6084 = vunpack.c.l.b16 %v5444
    %v6085 = vunpack.c.h.b16 %v5444
    %v6086 = vunpack.c.l.b16 %v5445
    %v6087 = vunpack.c.h.b16 %v5445
    %v6088 = vunpack.c.l.b16 %v5446
    %v6089 = vunpack.c.h.b16 %v5446
    %v6090 = vunpack.c.l.b16 %v5447
    %v6091 = vunpack.c.h.b16 %v5447
    %v6092 = vunpack.c.l.b16 %v5448
    %v6093 = vunpack.c.h.b16 %v5448
    %v6094 = vunpack.c.l.b16 %v5449
    %v6095 = vunpack.c.h.b16 %v5449
    %v6096 = vunpack.c.l.b16 %v5450
    %v6097 = vunpack.c.h.b16 %v5450
    %v6098 = vunpack.c.l.b16 %v5451
    %v6099 = vunpack.c.h.b16 %v5451
    %v6100 = vunpack.c.l.b16 %v5452
    %v6101 = vunpack.c.h.b16 %v5452
    %v6102 = vunpack.c.l.b16 %v5453
    %v6103 = vunpack.c.h.b16 %v5453
    %v6104 = vunpack.c.l.b16 %v5454
    %v6105 = vunpack.c.h.b16 %v5454
    %v6106 = vunpack.c.l.b16 %v5455
    %v6107 = vunpack.c.h.b16 %v5455
    %v6108 = vunpack.c.l.b16 %v5456
    %v6109 = vunpack.c.h.b16 %v5456
    %v6110 = vunpack.c.l.b16 %v5457
    %v6111 = vunpack.c.h.b16 %v5457
    %v6112 = vunpack.c.l.b16 %v5458
    %v6113 = vunpack.c.h.b16 %v5458
    %v6114 = vunpack.c.l.b16 %v5459
    %v6115 = vunpack.c.h.b16 %v5459
    %v6116 = vunpack.c.l.b16 %v5460
    %v6117 = vunpack.c.h.b16 %v5460
    %v6118 = vunpack.c.l.b16 %v5461
    %v6119 = vunpack.c.h.b16 %v5461
    %v6120 = vunpack.c.l.b16 %v5462
    %v6121 = vunpack.c.h.b16 %v5462
    %v6122 = vunpack.c.l.b16 %v5463
    %v6123 = vunpack.c.h.b16 %v5463
    %v6124 = vunpack.c.l.b16 %v5464
    %v6125 = vunpack.c.h.b16 %v5464
    %v6126 = vunpack.c.l.b16 %v5465
    %v6127 = vunpack.c.h.b16 %v5465
    %v6128 = vunpack.c.l.b16 %v5466
    %v6129 = vunpack.c.h.b16 %v5466
    %v6130 = vunpack.c.l.b16 %v5467
    %v6131 = vunpack.c.h.b16 %v5467
    %v6132 = vunpack.c.l.b16 %v5468
    %v6133 = vunpack.c.h.b16 %v5468
    %v6134 = vunpack.c.l.b16 %v5469
    %v6135 = vunpack.c.h.b16 %v5469
    %v6136 = vunpack.c.l.b16 %v5470
    %v6137 = vunpack.c.h.b16 %v5470
    %v6138 = vunpack.c.l.b16 %v5471
    %v6139 = vunpack.c.h.b16 %v5471
    %v6140 = vunpack.c.l.b16 %v5472
    %v6141 = vunpack.c.h.b16 %v5472
    %v6142 = vunpack.c.l.b16 %v5473
    %v6143 = vunpack.c.h.b16 %v5473
    %v6144 = vunpack.c.l.b16 %v5474
    %v6145 = vunpack.c.h.b16 %v5474
    %v6146 = vunpack.c.l.b16 %v5475
    %v6147 = vunpack.c.h.b16 %v5475
    %v6148 = vunpack.c.l.b16 %v5476
    %v6149 = vunpack.c.h.b16 %v5476
    %v6150 = vunpack.c.l.b16 %v5477
    %v6151 = vunpack.c.h.b16 %v5477
    %v6152 = vunpack.c.l.b16 %v5478
    %v6153 = vunpack.c.h.b16 %v5478
    %v6154 = vunpack.c.l.b16 %v5479
    %v6155 = vunpack.c.h.b16 %v5479
    %v6156 = vunpack.c.l.b16 %v5480
    %v6157 = vunpack.c.h.b16 %v5480
    %v6158 = vunpack.c.l.b16 %v5481
    %v6159 = vunpack.c.h.b16 %v5481
    %v6160 = vunpack.c.l.b16 %v5482
    %v6161 = vunpack.c.h.b16 %v5482
    %v6162 = vunpack.c.l.b16 %v5483
    %v6163 = vunpack.c.h.b16 %v5483
    %v6164 = vunpack.c.l.b16 %v5484
    %v6165 = vunpack.c.h.b16 %v5484
    %v6166 = vunpack.c.l.b16 %v5485
    %v6167 = vunpack.c.h.b16 %v5485
    %v6168 = vunpack.c.l.b16 %v5486
    %v6169 = vunpack.c.h.b16 %v5486
    %v6170 = vunpack.c.l.b16 %v5487
    %v6171 = vunpack.c.h.b16 %v5487
    %v6172 = vunpack.c.l.b16 %v5488
    %v6173 = vunpack.c.h.b16 %v5488
    %v6174 = vunpack.c.l.b16 %v5489
    %v6175 = vunpack.c.h.b16 %v5489
    %v6176 = vunpack.c.l.b16 %v5490
    %v6177 = vunpack.c.h.b16 %v5490
    %v6178 = vunpack.c.l.b16 %v5491
    %v6179 = vunpack.c.h.b16 %v5491
    %v6180 = vunpack.c.l.b16 %v5492
    %v6181 = vunpack.c.h.b16 %v5492
    %v6182 = vunpack.c.l.b16 %v5493
    %v6183 = vunpack.c.h.b16 %v5493
    %v6184 = vunpack.c.l.b16 %v5494
    %v6185 = vunpack.c.h.b16 %v5494
    %v6186 = vunpack.c.l.b16 %v5495
    %v6187 = vunpack.c.h.b16 %v5495
    %v6188 = vunpack.c.l.b16 %v5496
    %v6189 = vunpack.c.h.b16 %v5496
    %v6190 = vunpack.c.l.b16 %v5497
    %v6191 = vunpack.c.h.b16 %v5497
    %v6192 = vunpack.c.l.b16 %v5498
    %v6193 = vunpack.c.h.b16 %v5498
    %v6194 = vunpack.c.l.b16 %v5499
    %v6195 = vunpack.c.h.b16 %v5499
    %v6196 = vunpack.c.l.b16 %v5500
    %v6197 = vunpack.c.h.b16 %v5500
    %v6198 = vunpack.c.l.b16 %v5501
    %v6199 = vunpack.c.h.b16 %v5501
    %v6200 = vunpack.c.l.b16 %v5502
    %v6201 = vunpack.c.h.b16 %v5502
    %v6202 = vunpack.c.l.b16 %v5503
    %v6203 = vunpack.c.h.b16 %v5503
    %v6204 = vunpack.c.l.b16 %v5504
    %v6205 = vunpack.c.h.b16 %v5504
    %v6206 = vunpack.c.l.b16 %v5505
    %v6207 = vunpack.c.h.b16 %v5505
    %v6208 = vunpack.c.l.b16 %v5506
    %v6209 = vunpack.c.h.b16 %v5506
    %v6210 = vunpack.c.l.b16 %v5507
    %v6211 = vunpack.c.h.b16 %v5507
    %v6212 = vunpack.c.l.b16 %v5508
    %v6213 = vunpack.c.h.b16 %v5508
    %v6214 = vunpack.c.l.b16 %v5509
    %v6215 = vunpack.c.h.b16 %v5509
    %v6216 = vunpack.c.l.b16 %v5510
    %v6217 = vunpack.c.h.b16 %v5510
    %v6218 = vunpack.c.l.b16 %v5511
    %v6219 = vunpack.c.h.b16 %v5511
    %v6220 = vunpack.c.l.b16 %v5512
    %v6221 = vunpack.c.h.b16 %v5512
    %v6222 = vunpack.c.l.b16 %v5513
    %v6223 = vunpack.c.h.b16 %v5513
    %v6224 = vunpack.c.l.b16 %v5514
    %v6225 = vunpack.c.h.b16 %v5514
    %v6226 = vunpack.c.l.b16 %v5515
    %v6227 = vunpack.c.h.b16 %v5515
    %v6228 = vunpack.c.l.b16 %v5516
    %v6229 = vunpack.c.h.b16 %v5516
    %v6230 = vunpack.c.l.b16 %v5517
    %v6231 = vunpack.c.h.b16 %v5517
    %v6232 = vunpack.c.l.b16 %v5518
    %v6233 = vunpack.c.h.b16 %v5518
    %v6234 = vunpack.c.l.b16 %v5519
    %v6235 = vunpack.c.h.b16 %v5519
    %v6236 = vunpack.c.l.b16 %v5520
    %v6237 = vunpack.c.h.b16 %v5520
    %v6238 = vunpack.c.l.b16 %v5521
    %v6239 = vunpack.c.h.b16 %v5521
    %v6240 = vunpack.c.l.b16 %v5522
    %v6241 = vunpack.c.h.b16 %v5522
    %v6242 = vunpack.c.l.b16 %v5523
    %v6243 = vunpack.c.h.b16 %v5523
    %v6244 = vunpack.c.l.b16 %v5524
    %v6245 = vunpack.c.h.b16 %v5524
    %v6246 = vunpack.c.l.b16 %v5525
    %v6247 = vunpack.c.h.b16 %v5525
    %v6248 = vunpack.c.l.b16 %v5526
    %v6249 = vunpack.c.h.b16 %v5526
    %v6250 = vunpack.c.l.b16 %v5527
    %v6251 = vunpack.c.h.b16 %v5527
    %v6252 = vunpack.c.l.b16 %v5528
    %v6253 = vunpack.c.h.b16 %v5528
    %v6254 = vunpack.c.l.b16 %v5529
    %v6255 = vunpack.c.h.b16 %v5529
    %v6256 = vunpack.c.l.b16 %v5530
    %v6257 = vunpack.c.h.b16 %v5530
    %v6258 = vunpack.c.l.b16 %v5531
    %v6259 = vunpack.c.h.b16 %v5531
    %v6260 = vunpack.c.l.b16 %v5532
    %v6261 = vunpack.c.h.b16 %v5532
    %v6262 = vunpack.c.l.b16 %v5533
    %v6263 = vunpack.c.h.b16 %v5533
    %v6264 = vunpack.c.l.b16 %v5534
    %v6265 = vunpack.c.h.b16 %v5534
    %v6266 = vunpack.c.l.b16 %v5535
    %v6267 = vunpack.c.h.b16 %v5535
    %v6268 = vunpack.c.l.b16 %v5536
    %v6269 = vunpack.c.h.b16 %v5536
    %v6270 = vunpack.c.l.b16 %v5537
    %v6271 = vunpack.c.h.b16 %v5537
    %v6272 = vunpack.c.l.b16 %v5538
    %v6273 = vunpack.c.h.b16 %v5538
    %v6274 = vunpack.c.l.b16 %v5539
    %v6275 = vunpack.c.h.b16 %v5539
    %v6276 = vunpack.c.l.b16 %v5540
    %v6277 = vunpack.c.h.b16 %v5540
    %v6278 = vunpack.c.l.b16 %v5541
    %v6279 = vunpack.c.h.b16 %v5541
    %v6280 = vunpack.c.l.b16 %v5542
    %v6281 = vunpack.c.h.b16 %v5542
    %v6282 = vunpack.c.l.b16 %v5543
    %v6283 = vunpack.c.h.b16 %v5543
    %v6284 = vunpack.c.l.b16 %v5544
    %v6285 = vunpack.c.h.b16 %v5544
    %v6286 = vunpack.c.l.b16 %v5545
    %v6287 = vunpack.c.h.b16 %v5545
    %v6288 = vunpack.c.l.b16 %v5546
    %v6289 = vunpack.c.h.b16 %v5546
    %v6290 = vunpack.c.l.b16 %v5547
    %v6291 = vunpack.c.h.b16 %v5547
    %v6292 = vunpack.c.l.b16 %v5548
    %v6293 = vunpack.c.h.b16 %v5548
    %v6294 = vunpack.c.l.b16 %v5549
    %v6295 = vunpack.c.h.b16 %v5549
    %v6296 = vunpack.c.l.b16 %v5550
    %v6297 = vunpack.c.h.b16 %v5550
    %v6298 = vunpack.c.l.b16 %v5551
    %v6299 = vunpack.c.h.b16 %v5551
    %v6300 = vunpack.c.l.b16 %v5552
    %v6301 = vunpack.c.h.b16 %v5552
    %v6302 = vunpack.c.l.b16 %v5553
    %v6303 = vunpack.c.h.b16 %v5553
    %v6304 = vunpack.c.l.b16 %v5554
    %v6305 = vunpack.c.h.b16 %v5554
    %v6306 = vunpack.c.l.b16 %v5555
    %v6307 = vunpack.c.h.b16 %v5555
    %v6308 = vunpack.c.l.b16 %v5556
    %v6309 = vunpack.c.h.b16 %v5556
    %v6310 = vunpack.c.l.b16 %v5557
    %v6311 = vunpack.c.h.b16 %v5557
    %v6312 = vunpack.c.l.b16 %v5558
    %v6313 = vunpack.c.h.b16 %v5558
    %v6314 = vunpack.c.l.b16 %v5559
    %v6315 = vunpack.c.h.b16 %v5559
    %v6316 = vunpack.c.l.b16 %v5560
    %v6317 = vunpack.c.h.b16 %v5560
    %v6318 = vunpack.c.l.b16 %v5561
    %v6319 = vunpack.c.h.b16 %v5561
    %v6320 = vunpack.c.l.b16 %v5562
    %v6321 = vunpack.c.h.b16 %v5562
    %v6322 = vunpack.c.l.b16 %v5563
    %v6323 = vunpack.c.h.b16 %v5563
    %v6324 = vunpack.c.l.b16 %v5564
    %v6325 = vunpack.c.h.b16 %v5564
    %v6326 = vunpack.c.l.b16 %v5565
    %v6327 = vunpack.c.h.b16 %v5565
    %v6328 = vunpack.c.l.b16 %v5566
    %v6329 = vunpack.c.h.b16 %v5566
    %v6330 = vunpack.c.l.b16 %v5567
    %v6331 = vunpack.c.h.b16 %v5567
    %v6332 = vunpack.c.l.b16 %v5568
    %v6333 = vunpack.c.h.b16 %v5568
    %v6334 = vunpack.c.l.b16 %v5569
    %v6335 = vunpack.c.h.b16 %v5569
    %v6336 = vunpack.c.l.b16 %v5570
    %v6337 = vunpack.c.h.b16 %v5570
    %v6338 = vunpack.c.l.b16 %v5571
    %v6339 = vunpack.c.h.b16 %v5571
    %v6340 = vunpack.c.l.b16 %v5572
    %v6341 = vunpack.c.h.b16 %v5572
    %v6342 = vunpack.c.l.b16 %v5573
    %v6343 = vunpack.c.h.b16 %v5573
    %v6344 = vunpack.c.l.b16 %v5574
    %v6345 = vunpack.c.h.b16 %v5574
    %v6346 = vunpack.c.l.b16 %v5575
    %v6347 = vunpack.c.h.b16 %v5575
    %v6348 = vunpack.c.l.b16 %v5576
    %v6349 = vunpack.c.h.b16 %v5576
    %v6350 = vunpack.c.l.b16 %v5577
    %v6351 = vunpack.c.h.b16 %v5577
    %v6352 = vunpack.c.l.b16 %v5578
    %v6353 = vunpack.c.h.b16 %v5578
    %v6354 = vunpack.c.l.b16 %v5579
    %v6355 = vunpack.c.h.b16 %v5579
    %v6356 = vunpack.c.l.b16 %v5580
    %v6357 = vunpack.c.h.b16 %v5580
    %v6358 = vunpack.c.l.b16 %v5581
    %v6359 = vunpack.c.h.b16 %v5581
    %v6360 = vunpack.c.l.b16 %v5582
    %v6361 = vunpack.c.h.b16 %v5582
    %v6362 = vunpack.c.l.b16 %v5583
    %v6363 = vunpack.c.h.b16 %v5583
    %v6364 = vpack.c.b16 %v5854, %v5852
    %v6365 = vpack.c.b16 %v5855, %v5853
    %v6366 = vpack.c.b16 %v5858, %v5856
    %v6367 = vpack.c.b16 %v5859, %v5857
    %v6368 = vpack.c.b16 %v5862, %v5860
    %v6369 = vpack.c.b16 %v5863, %v5861
    %v6370 = vpack.c.b16 %v5866, %v5864
    %v6371 = vpack.c.b16 %v5867, %v5865
    %v6372 = vpack.c.b16 %v5870, %v5868
    %v6373 = vpack.c.b16 %v5871, %v5869
    %v6374 = vpack.c.b16 %v5874, %v5872
    %v6375 = vpack.c.b16 %v5875, %v5873
    %v6376 = vpack.c.b16 %v5878, %v5876
    %v6377 = vpack.c.b16 %v5879, %v5877
    %v6378 = vpack.c.b16 %v5882, %v5880
    %v6379 = vpack.c.b16 %v5883, %v5881
    %v6380 = vpack.c.b16 %v5886, %v5884
    %v6381 = vpack.c.b16 %v5887, %v5885
    %v6382 = vpack.c.b16 %v5890, %v5888
    %v6383 = vpack.c.b16 %v5891, %v5889
    %v6384 = vpack.c.b16 %v5894, %v5892
    %v6385 = vpack.c.b16 %v5895, %v5893
    %v6386 = vpack.c.b16 %v5898, %v5896
    %v6387 = vpack.c.b16 %v5899, %v5897
    %v6388 = vpack.c.b16 %v5902, %v5900
    %v6389 = vpack.c.b16 %v5903, %v5901
    %v6390 = vpack.c.b16 %v5906, %v5904
    %v6391 = vpack.c.b16 %v5907, %v5905
    %v6392 = vpack.c.b16 %v5910, %v5908
    %v6393 = vpack.c.b16 %v5911, %v5909
    %v6394 = vpack.c.b16 %v5914, %v5912
    %v6395 = vpack.c.b16 %v5915, %v5913
    %v6396 = vpack.c.b16 %v5918, %v5916
    %v6397 = vpack.c.b16 %v5919, %v5917
    %v6398 = vpack.c.b16 %v5922, %v5920
    %v6399 = vpack.c.b16 %v5923, %v5921
    %v6400 = vpack.c.b16 %v5926, %v5924
    %v6401 = vpack.c.b16 %v5927, %v5925
    %v6402 = vpack.c.b16 %v5930, %v5928
    %v6403 = vpack.c.b16 %v5931, %v5929
    %v6404 = vpack.c.b16 %v5934, %v5932
    %v6405 = vpack.c.b16 %v5935, %v5933
    %v6406 = vpack.c.b16 %v5938, %v5936
    %v6407 = vpack.c.b16 %v5939, %v5937
    %v6408 = vpack.c.b16 %v5942, %v5940
    %v6409 = vpack.c.b16 %v5943, %v5941
    %v6410 = vpack.c.b16 %v5946, %v5944
    %v6411 = vpack.c.b16 %v5947, %v5945
    %v6412 = vpack.c.b16 %v5950, %v5948
    %v6413 = vpack.c.b16 %v5951, %v5949
    %v6414 = vpack.c.b16 %v5954, %v5952
    %v6415 = vpack.c.b16 %v5955, %v5953
    %v6416 = vpack.c.b16 %v5958, %v5956
    %v6417 = vpack.c.b16 %v5959, %v5957
    %v6418 = vpack.c.b16 %v5962, %v5960
    %v6419 = vpack.c.b16 %v5963, %v5961
    %v6420 = vpack.c.b16 %v5966, %v5964
    %v6421 = vpack.c.b16 %v5967, %v5965
    %v6422 = vpack.c.b16 %v5970, %v5968
    %v6423 = vpack.c.b16 %v5971, %v5969
    %v6424 = vpack.c.b16 %v5974, %v5972
    %v6425 = vpack.c.b16 %v5975, %v5973
    %v6426 = vpack.c.b16 %v5978, %v5976
    %v6427 = vpack.c.b16 %v5979, %v5977
    %v6428 = vpack.c.b16 %v5982, %v5980
    %v6429 = vpack.c.b16 %v5983, %v5981
    %v6430 = vpack.c.b16 %v5986, %v5984
    %v6431 = vpack.c.b16 %v5987, %v5985
    %v6432 = vpack.c.b16 %v5990, %v5988
    %v6433 = vpack.c.b16 %v5991, %v5989
    %v6434 = vpack.c.b16 %v5994, %v5992
    %v6435 = vpack.c.b16 %v5995, %v5993
    %v6436 = vpack.c.b16 %v5998, %v5996
    %v6437 = vpack.c.b16 %v5999, %v5997
    %v6438 = vpack.c.b16 %v6002, %v6000
    %v6439 = vpack.c.b16 %v6003, %v6001
    %v6440 = vpack.c.b16 %v6006, %v6004
    %v6441 = vpack.c.b16 %v6007, %v6005
    %v6442 = vpack.c.b16 %v6010, %v6008
    %v6443 = vpack.c.b16 %v6011, %v6009
    %v6444 = vpack.c.b16 %v6014, %v6012
    %v6445 = vpack.c.b16 %v6015, %v6013
    %v6446 = vpack.c.b16 %v6018, %v6016
    %v6447 = vpack.c.b16 %v6019, %v6017
    %v6448 = vpack.c.b16 %v6022, %v6020
    %v6449 = vpack.c.b16 %v6023, %v6021
    %v6450 = vpack.c.b16 %v6026, %v6024
    %v6451 = vpack.c.b16 %v6027, %v6025
    %v6452 = vpack.c.b16 %v6030, %v6028
    %v6453 = vpack.c.b16 %v6031, %v6029
    %v6454 = vpack.c.b16 %v6034, %v6032
    %v6455 = vpack.c.b16 %v6035, %v6033
    %v6456 = vpack.c.b16 %v6038, %v6036
    %v6457 = vpack.c.b16 %v6039, %v6037
    %v6458 = vpack.c.b16 %v6042, %v6040
    %v6459 = vpack.c.b16 %v6043, %v6041
    %v6460 = vpack.c.b16 %v6046, %v6044
    %v6461 = vpack.c.b16 %v6047, %v6045
    %v6462 = vpack.c.b16 %v6050, %v6048
    %v6463 = vpack.c.b16 %v6051, %v6049
    %v6464 = vpack.c.b16 %v6054, %v6052
    %v6465 = vpack.c.b16 %v6055, %v6053
    %v6466 = vpack.c.b16 %v6058, %v6056
    %v6467 = vpack.c.b16 %v6059, %v6057
    %v6468 = vpack.c.b16 %v6062, %v6060
    %v6469 = vpack.c.b16 %v6063, %v6061
    %v6470 = vpack.c.b16 %v6066, %v6064
    %v6471 = vpack.c.b16 %v6067, %v6065
    %v6472 = vpack.c.b16 %v6070, %v6068
    %v6473 = vpack.c.b16 %v6071, %v6069
    %v6474 = vpack.c.b16 %v6074, %v6072
    %v6475 = vpack.c.b16 %v6075, %v6073
    %v6476 = vpack.c.b16 %v6078, %v6076
    %v6477 = vpack.c.b16 %v6079, %v6077
    %v6478 = vpack.c.b16 %v6082, %v6080
    %v6479 = vpack.c.b16 %v6083, %v6081
    %v6480 = vpack.c.b16 %v6086, %v6084
    %v6481 = vpack.c.b16 %v6087, %v6085
    %v6482 = vpack.c.b16 %v6090, %v6088
    %v6483 = vpack.c.b16 %v6091, %v6089
    %v6484 = vpack.c.b16 %v6094, %v6092
    %v6485 = vpack.c.b16 %v6095, %v6093
    %v6486 = vpack.c.b16 %v6098, %v6096
    %v6487 = vpack.c.b16 %v6099, %v6097
    %v6488 = vpack.c.b16 %v6102, %v6100
    %v6489 = vpack.c.b16 %v6103, %v6101
    %v6490 = vpack.c.b16 %v6106, %v6104
    %v6491 = vpack.c.b16 %v6107, %v6105
    %v6492 = vpack.c.b16 %v6110, %v6108
    %v6493 = vpack.c.b16 %v6111, %v6109
    %v6494 = vpack.c.b16 %v6114, %v6112
    %v6495 = vpack.c.b16 %v6115, %v6113
    %v6496 = vpack.c.b16 %v6118, %v6116
    %v6497 = vpack.c.b16 %v6119, %v6117
    %v6498 = vpack.c.b16 %v6122, %v6120
    %v6499 = vpack.c.b16 %v6123, %v6121
    %v6500 = vpack.c.b16 %v6126, %v6124
    %v6501 = vpack.c.b16 %v6127, %v6125
    %v6502 = vpack.c.b16 %v6130, %v6128
    %v6503 = vpack.c.b16 %v6131, %v6129
    %v6504 = vpack.c.b16 %v6134, %v6132
    %v6505 = vpack.c.b16 %v6135, %v6133
    %v6506 = vpack.c.b16 %v6138, %v6136
    %v6507 = vpack.c.b16 %v6139, %v6137
    %v6508 = vpack.c.b16 %v6142, %v6140
    %v6509 = vpack.c.b16 %v6143, %v6141
    %v6510 = vpack.c.b16 %v6146, %v6144
    %v6511 = vpack.c.b16 %v6147, %v6145
    %v6512 = vpack.c.b16 %v6150, %v6148
    %v6513 = vpack.c.b16 %v6151, %v6149
    %v6514 = vpack.c.b16 %v6154, %v6152
    %v6515 = vpack.c.b16 %v6155, %v6153
    %v6516 = vpack.c.b16 %v6158, %v6156
    %v6517 = vpack.c.b16 %v6159, %v6157
    %v6518 = vpack.c.b16 %v6162, %v6160
    %v6519 = vpack.c.b16 %v6163, %v6161
    %v6520 = vpack.c.b16 %v6166, %v6164
    %v6521 = vpack.c.b16 %v6167, %v6165
    %v6522 = vpack.c.b16 %v6170, %v6168
    %v6523 = vpack.c.b16 %v6171, %v6169
    %v6524 = vpack.c.b16 %v6174, %v6172
    %v6525 = vpack.c.b16 %v6175, %v6173
    %v6526 = vpack.c.b16 %v6178, %v6176
    %v6527 = vpack.c.b16 %v6179, %v6177
    %v6528 = vpack.c.b16 %v6182, %v6180
    %v6529 = vpack.c.b16 %v6183, %v6181
    %v6530 = vpack.c.b16 %v6186, %v6184
    %v6531 = vpack.c.b16 %v6187, %v6185
    %v6532 = vpack.c.b16 %v6190, %v6188
    %v6533 = vpack.c.b16 %v6191, %v6189
    %v6534 = vpack.c.b16 %v6194, %v6192
    %v6535 = vpack.c.b16 %v6195, %v6193
    %v6536 = vpack.c.b16 %v6198, %v6196
    %v6537 = vpack.c.b16 %v6199, %v6197
    %v6538 = vpack.c.b16 %v6202, %v6200
    %v6539 = vpack.c.b16 %v6203, %v6201
    %v6540 = vpack.c.b16 %v6206, %v6204
    %v6541 = vpack.c.b16 %v6207, %v6205
    %v6542 = vpack.c.b16 %v6210, %v6208
    %v6543 = vpack.c.b16 %v6211, %v6209
    %v6544 = vpack.c.b16 %v6214, %v6212
    %v6545 = vpack.c.b16 %v6215, %v6213
    %v6546 = vpack.c.b16 %v6218, %v6216
    %v6547 = vpack.c.b16 %v6219, %v6217
    %v6548 = vpack.c.b16 %v6222, %v6220
    %v6549 = vpack.c.b16 %v6223, %v6221
    %v6550 = vpack.c.b16 %v6226, %v6224
    %v6551 = vpack.c.b16 %v6227, %v6225
    %v6552 = vpack.c.b16 %v6230, %v6228
    %v6553 = vpack.c.b16 %v6231, %v6229
    %v6554 = vpack.c.b16 %v6234, %v6232
    %v6555 = vpack.c.b16 %v6235, %v6233
    %v6556 = vpack.c.b16 %v6238, %v6236
    %v6557 = vpack.c.b16 %v6239, %v6237
    %v6558 = vpack.c.b16 %v6242, %v6240
    %v6559 = vpack.c.b16 %v6243, %v6241
    %v6560 = vpack.c.b16 %v6246, %v6244
    %v6561 = vpack.c.b16 %v6247, %v6245
    %v6562 = vpack.c.b16 %v6250, %v6248
    %v6563 = vpack.c.b16 %v6251, %v6249
    %v6564 = vpack.c.b16 %v6254, %v6252
    %v6565 = vpack.c.b16 %v6255, %v6253
    %v6566 = vpack.c.b16 %v6258, %v6256
    %v6567 = vpack.c.b16 %v6259, %v6257
    %v6568 = vpack.c.b16 %v6262, %v6260
    %v6569 = vpack.c.b16 %v6263, %v6261
    %v6570 = vpack.c.b16 %v6266, %v6264
    %v6571 = vpack.c.b16 %v6267, %v6265
    %v6572 = vpack.c.b16 %v6270, %v6268
    %v6573 = vpack.c.b16 %v6271, %v6269
    %v6574 = vpack.c.b16 %v6274, %v6272
    %v6575 = vpack.c.b16 %v6275, %v6273
    %v6576 = vpack.c.b16 %v6278, %v6276
    %v6577 = vpack.c.b16 %v6279, %v6277
    %v6578 = vpack.c.b16 %v6282, %v6280
    %v6579 = vpack.c.b16 %v6283, %v6281
    %v6580 = vpack.c.b16 %v6286, %v6284
    %v6581 = vpack.c.b16 %v6287, %v6285
    %v6582 = vpack.c.b16 %v6290, %v6288
    %v6583 = vpack.c.b16 %v6291, %v6289
    %v6584 = vpack.c.b16 %v6294, %v6292
    %v6585 = vpack.c.b16 %v6295, %v6293
    %v6586 = vpack.c.b16 %v6298, %v6296
    %v6587 = vpack.c.b16 %v6299, %v6297
    %v6588 = vpack.c.b16 %v6302, %v6300
    %v6589 = vpack.c.b16 %v6303, %v6301
    %v6590 = vpack.c.b16 %v6306, %v6304
    %v6591 = vpack.c.b16 %v6307, %v6305
    %v6592 = vpack.c.b16 %v6310, %v6308
    %v6593 = vpack.c.b16 %v6311, %v6309
    %v6594 = vpack.c.b16 %v6314, %v6312
    %v6595 = vpack.c.b16 %v6315, %v6313
    %v6596 = vpack.c.b16 %v6318, %v6316
    %v6597 = vpack.c.b16 %v6319, %v6317
    %v6598 = vpack.c.b16 %v6322, %v6320
    %v6599 = vpack.c.b16 %v6323, %v6321
    %v6600 = vpack.c.b16 %v6326, %v6324
    %v6601 = vpack.c.b16 %v6327, %v6325
    %v6602 = vpack.c.b16 %v6330, %v6328
    %v6603 = vpack.c.b16 %v6331, %v6329
    %v6604 = vpack.c.b16 %v6334, %v6332
    %v6605 = vpack.c.b16 %v6335, %v6333
    %v6606 = vpack.c.b16 %v6338, %v6336
    %v6607 = vpack.c.b16 %v6339, %v6337
    %v6608 = vpack.c.b16 %v6342, %v6340
    %v6609 = vpack.c.b16 %v6343, %v6341
    %v6610 = vpack.c.b16 %v6346, %v6344
    %v6611 = vpack.c.b16 %v6347, %v6345
    %v6612 = vpack.c.b16 %v6350, %v6348
    %v6613 = vpack.c.b16 %v6351, %v6349
    %v6614 = vpack.c.b16 %v6354, %v6352
    %v6615 = vpack.c.b16 %v6355, %v6353
    %v6616 = vpack.c.b16 %v6358, %v6356
    %v6617 = vpack.c.b16 %v6359, %v6357
    %v6618 = vpack.c.b16 %v6362, %v6360
    %v6619 = vpack.c.b16 %v6363, %v6361
    %6876 = vmatprep.subr.bf16.mxu0 %v6379
    %6877 = vmatpush1.bf16.msra.mxu0 %v6378
    %6878 = vmatprep.subr.bf16.mxu0 %v6377
    %6879 = vmatpush1.bf16.msra.mxu0 %v6376
    %6880 = vmatprep.subr.bf16.mxu0 %v6375
    %6881 = vmatpush1.bf16.msra.mxu0 %v6374
    %6882 = vmatprep.subr.bf16.mxu0 %v6373
    %6883 = vmatpush1.bf16.msra.mxu0 %v6372
    %6884 = vmatprep.subr.bf16.mxu0 %v6371
    %6885 = vmatpush1.bf16.msra.mxu0 %v6370
    %6886 = vmatprep.subr.bf16.mxu0 %v6369
    %6887 = vmatpush1.bf16.msra.mxu0 %v6368
    %6888 = vmatprep.subr.bf16.mxu0 %v6367
    %6889 = vmatpush1.bf16.msra.mxu0 %v6366
    %6890 = vmatprep.subr.bf16.mxu0 %v6365
    %6891 = vmatpush1.bf16.msra.mxu0 %v6364
    %6892 = vmatprep.subr.bf16.mxu0 %v6395
    %6893 = vmatpush2.bf16.msra.mxu0 %v6394
    %6894 = vmatprep.subr.bf16.mxu0 %v6393
    %6895 = vmatpush2.bf16.msra.mxu0 %v6392
    %6896 = vmatprep.subr.bf16.mxu0 %v6391
    %6897 = vmatpush2.bf16.msra.mxu0 %v6390
    %6898 = vmatprep.subr.bf16.mxu0 %v6389
    %6899 = vmatpush2.bf16.msra.mxu0 %v6388
    %6900 = vmatprep.subr.bf16.mxu0 %v6387
    %6901 = vmatpush2.bf16.msra.mxu0 %v6386
    %6902 = vmatprep.subr.bf16.mxu0 %v6385
    %6903 = vmatpush2.bf16.msra.mxu0 %v6384
    %6904 = vmatprep.subr.bf16.mxu0 %v6383
    %6905 = vmatpush2.bf16.msra.mxu0 %v6382
    %6906 = vmatprep.subr.bf16.mxu0 %v6381
    %6907 = vmatpush2.bf16.msra.mxu0 %v6380
    %6908 = vmatprep.mubr.bf16.mxu0 %v3678
    %6909 = vmatmul.mubr.bf16.gmra.mxu0 %v3677
    %v6910 = vpop.f32.mrf.mxu0
    %v6911 = vadd.f32 %v5589, %v6910
    %v6912 = vpop.f32.mrf.mxu0
    %v6913 = vadd.f32 %v5593, %v6912
    %v6914 = vpop.f32.mrf.mxu0
    %v6915 = vpop.f32.mrf.mxu0
    %6916 = vdwg.mxu0
    %6917 = vmatprep.subr.bf16.mxu0 %v6411
    %6918 = vmatpush1.bf16.msra.mxu0 %v6410
    %6919 = vmatprep.subr.bf16.mxu0 %v6409
    %6920 = vmatpush1.bf16.msra.mxu0 %v6408
    %6921 = vmatprep.subr.bf16.mxu0 %v6407
    %6922 = vmatpush1.bf16.msra.mxu0 %v6406
    %6923 = vmatprep.subr.bf16.mxu0 %v6405
    %6924 = vmatpush1.bf16.msra.mxu0 %v6404
    %6925 = vmatprep.subr.bf16.mxu0 %v6403
    %6926 = vmatpush1.bf16.msra.mxu0 %v6402
    %6927 = vmatprep.subr.bf16.mxu0 %v6401
    %6928 = vmatpush1.bf16.msra.mxu0 %v6400
    %6929 = vmatprep.subr.bf16.mxu0 %v6399
    %6930 = vmatpush1.bf16.msra.mxu0 %v6398
    %6931 = vmatprep.subr.bf16.mxu0 %v6397
    %6932 = vmatpush1.bf16.msra.mxu0 %v6396
    %6933 = vmatprep.subr.bf16.mxu0 %v6427
    %6934 = vmatpush2.bf16.msra.mxu0 %v6426
    %6935 = vmatprep.subr.bf16.mxu0 %v6425
    %6936 = vmatpush2.bf16.msra.mxu0 %v6424
    %6937 = vmatprep.subr.bf16.mxu0 %v6423
    %6938 = vmatpush2.bf16.msra.mxu0 %v6422
    %6939 = vmatprep.subr.bf16.mxu0 %v6421
    %6940 = vmatpush2.bf16.msra.mxu0 %v6420
    %6941 = vmatprep.subr.bf16.mxu0 %v6419
    %6942 = vmatpush2.bf16.msra.mxu0 %v6418
    %6943 = vmatprep.subr.bf16.mxu0 %v6417
    %6944 = vmatpush2.bf16.msra.mxu0 %v6416
    %6945 = vmatprep.subr.bf16.mxu0 %v6415
    %6946 = vmatpush2.bf16.msra.mxu0 %v6414
    %6947 = vmatprep.subr.bf16.mxu0 %v6413
    %6948 = vmatpush2.bf16.msra.mxu0 %v6412
    %6949 = vmatprep.mubr.bf16.mxu0 %v3680
    %6950 = vmatmul.mubr.bf16.gmra.mxu0 %v3679
    %v6951 = vpop.f32.mrf.mxu0
    %v6952 = vadd.f32 %v6911, %v6951
    %v6953 = vpop.f32.mrf.mxu0
    %v6954 = vadd.f32 %v6913, %v6953
    %v6955 = vpop.f32.mrf.mxu0
    %v6956 = vpop.f32.mrf.mxu0
    %6957 = vdwg.mxu0
    %6958 = vmatprep.subr.bf16.mxu0 %v6443
    %6959 = vmatpush1.bf16.msra.mxu0 %v6442
    %6960 = vmatprep.subr.bf16.mxu0 %v6441
    %6961 = vmatpush1.bf16.msra.mxu0 %v6440
    %6962 = vmatprep.subr.bf16.mxu0 %v6439
    %6963 = vmatpush1.bf16.msra.mxu0 %v6438
    %6964 = vmatprep.subr.bf16.mxu0 %v6437
    %6965 = vmatpush1.bf16.msra.mxu0 %v6436
    %6966 = vmatprep.subr.bf16.mxu0 %v6435
    %6967 = vmatpush1.bf16.msra.mxu0 %v6434
    %6968 = vmatprep.subr.bf16.mxu0 %v6433
    %6969 = vmatpush1.bf16.msra.mxu0 %v6432
    %6970 = vmatprep.subr.bf16.mxu0 %v6431
    %6971 = vmatpush1.bf16.msra.mxu0 %v6430
    %6972 = vmatprep.subr.bf16.mxu0 %v6429
    %6973 = vmatpush1.bf16.msra.mxu0 %v6428
    %6974 = vmatprep.subr.bf16.mxu0 %v6459
    %6975 = vmatpush2.bf16.msra.mxu0 %v6458
    %6976 = vmatprep.subr.bf16.mxu0 %v6457
    %6977 = vmatpush2.bf16.msra.mxu0 %v6456
    %6978 = vmatprep.subr.bf16.mxu0 %v6455
    %6979 = vmatpush2.bf16.msra.mxu0 %v6454
    %6980 = vmatprep.subr.bf16.mxu0 %v6453
    %6981 = vmatpush2.bf16.msra.mxu0 %v6452
    %6982 = vmatprep.subr.bf16.mxu0 %v6451
    %6983 = vmatpush2.bf16.msra.mxu0 %v6450
    %6984 = vmatprep.subr.bf16.mxu0 %v6449
    %6985 = vmatpush2.bf16.msra.mxu0 %v6448
    %6986 = vmatprep.subr.bf16.mxu0 %v6447
    %6987 = vmatpush2.bf16.msra.mxu0 %v6446
    %6988 = vmatprep.subr.bf16.mxu0 %v6445
    %6989 = vmatpush2.bf16.msra.mxu0 %v6444
    %6990 = vmatprep.mubr.bf16.mxu0 %v3682
    %6991 = vmatmul.mubr.bf16.gmra.mxu0 %v3681
    %v6992 = vpop.f32.mrf.mxu0
    %v6993 = vadd.f32 %v6952, %v6992
    %v6994 = vpop.f32.mrf.mxu0
    %v6995 = vadd.f32 %v6954, %v6994
    %v6996 = vpop.f32.mrf.mxu0
    %v6997 = vpop.f32.mrf.mxu0
    %6998 = vdwg.mxu0
    %6999 = vmatprep.subr.bf16.mxu0 %v6475
    %7000 = vmatpush1.bf16.msra.mxu0 %v6474
    %7001 = vmatprep.subr.bf16.mxu0 %v6473
    %7002 = vmatpush1.bf16.msra.mxu0 %v6472
    %7003 = vmatprep.subr.bf16.mxu0 %v6471
    %7004 = vmatpush1.bf16.msra.mxu0 %v6470
    %7005 = vmatprep.subr.bf16.mxu0 %v6469
    %7006 = vmatpush1.bf16.msra.mxu0 %v6468
    %7007 = vmatprep.subr.bf16.mxu0 %v6467
    %7008 = vmatpush1.bf16.msra.mxu0 %v6466
    %7009 = vmatprep.subr.bf16.mxu0 %v6465
    %7010 = vmatpush1.bf16.msra.mxu0 %v6464
    %7011 = vmatprep.subr.bf16.mxu0 %v6463
    %7012 = vmatpush1.bf16.msra.mxu0 %v6462
    %7013 = vmatprep.subr.bf16.mxu0 %v6461
    %7014 = vmatpush1.bf16.msra.mxu0 %v6460
    %7015 = vmatprep.subr.bf16.mxu0 %v6491
    %7016 = vmatpush2.bf16.msra.mxu0 %v6490
    %7017 = vmatprep.subr.bf16.mxu0 %v6489
    %7018 = vmatpush2.bf16.msra.mxu0 %v6488
    %7019 = vmatprep.subr.bf16.mxu0 %v6487
    %7020 = vmatpush2.bf16.msra.mxu0 %v6486
    %7021 = vmatprep.subr.bf16.mxu0 %v6485
    %7022 = vmatpush2.bf16.msra.mxu0 %v6484
    %7023 = vmatprep.subr.bf16.mxu0 %v6483
    %7024 = vmatpush2.bf16.msra.mxu0 %v6482
    %7025 = vmatprep.subr.bf16.mxu0 %v6481
    %7026 = vmatpush2.bf16.msra.mxu0 %v6480
    %7027 = vmatprep.subr.bf16.mxu0 %v6479
    %7028 = vmatpush2.bf16.msra.mxu0 %v6478
    %7029 = vmatprep.subr.bf16.mxu0 %v6477
    %7030 = vmatpush2.bf16.msra.mxu0 %v6476
    %7031 = vmatprep.mubr.bf16.mxu0 %v3684
    %7032 = vmatmul.mubr.bf16.gmra.mxu0 %v3683
    %v7033 = vpop.f32.mrf.mxu0
    %v7034 = vadd.f32 %v6993, %v7033
    %v7035 = vpop.f32.mrf.mxu0
    %v7036 = vadd.f32 %v6995, %v7035
    %v7037 = vpop.f32.mrf.mxu0
    %v7038 = vpop.f32.mrf.mxu0
    %7039 = vdwg.mxu0
    %7040 = vmatprep.subr.bf16.mxu0 %v6507
    %7041 = vmatpush1.bf16.msra.mxu0 %v6506
    %7042 = vmatprep.subr.bf16.mxu0 %v6505
    %7043 = vmatpush1.bf16.msra.mxu0 %v6504
    %7044 = vmatprep.subr.bf16.mxu0 %v6503
    %7045 = vmatpush1.bf16.msra.mxu0 %v6502
    %7046 = vmatprep.subr.bf16.mxu0 %v6501
    %7047 = vmatpush1.bf16.msra.mxu0 %v6500
    %7048 = vmatprep.subr.bf16.mxu0 %v6499
    %7049 = vmatpush1.bf16.msra.mxu0 %v6498
    %7050 = vmatprep.subr.bf16.mxu0 %v6497
    %7051 = vmatpush1.bf16.msra.mxu0 %v6496
    %7052 = vmatprep.subr.bf16.mxu0 %v6495
    %7053 = vmatpush1.bf16.msra.mxu0 %v6494
    %7054 = vmatprep.subr.bf16.mxu0 %v6493
    %7055 = vmatpush1.bf16.msra.mxu0 %v6492
    %7056 = vmatprep.subr.bf16.mxu0 %v6523
    %7057 = vmatpush2.bf16.msra.mxu0 %v6522
    %7058 = vmatprep.subr.bf16.mxu0 %v6521
    %7059 = vmatpush2.bf16.msra.mxu0 %v6520
    %7060 = vmatprep.subr.bf16.mxu0 %v6519
    %7061 = vmatpush2.bf16.msra.mxu0 %v6518
    %7062 = vmatprep.subr.bf16.mxu0 %v6517
    %7063 = vmatpush2.bf16.msra.mxu0 %v6516
    %7064 = vmatprep.subr.bf16.mxu0 %v6515
    %7065 = vmatpush2.bf16.msra.mxu0 %v6514
    %7066 = vmatprep.subr.bf16.mxu0 %v6513
    %7067 = vmatpush2.bf16.msra.mxu0 %v6512
    %7068 = vmatprep.subr.bf16.mxu0 %v6511
    %7069 = vmatpush2.bf16.msra.mxu0 %v6510
    %7070 = vmatprep.subr.bf16.mxu0 %v6509
    %7071 = vmatpush2.bf16.msra.mxu0 %v6508
    %7072 = vmatprep.mubr.bf16.mxu0 %v3686
    %7073 = vmatmul.mubr.bf16.gmra.mxu0 %v3685
    %v7074 = vpop.f32.mrf.mxu0
    %v7075 = vadd.f32 %v7034, %v7074
    %v7076 = vpop.f32.mrf.mxu0
    %v7077 = vadd.f32 %v7036, %v7076
    %v7078 = vpop.f32.mrf.mxu0
    %v7079 = vpop.f32.mrf.mxu0
    %7080 = vdwg.mxu0
    %7081 = vmatprep.subr.bf16.mxu0 %v6539
    %7082 = vmatpush1.bf16.msra.mxu0 %v6538
    %7083 = vmatprep.subr.bf16.mxu0 %v6537
    %7084 = vmatpush1.bf16.msra.mxu0 %v6536
    %7085 = vmatprep.subr.bf16.mxu0 %v6535
    %7086 = vmatpush1.bf16.msra.mxu0 %v6534
    %7087 = vmatprep.subr.bf16.mxu0 %v6533
    %7088 = vmatpush1.bf16.msra.mxu0 %v6532
    %7089 = vmatprep.subr.bf16.mxu0 %v6531
    %7090 = vmatpush1.bf16.msra.mxu0 %v6530
    %7091 = vmatprep.subr.bf16.mxu0 %v6529
    %7092 = vmatpush1.bf16.msra.mxu0 %v6528
    %7093 = vmatprep.subr.bf16.mxu0 %v6527
    %7094 = vmatpush1.bf16.msra.mxu0 %v6526
    %7095 = vmatprep.subr.bf16.mxu0 %v6525
    %7096 = vmatpush1.bf16.msra.mxu0 %v6524
    %7097 = vmatprep.subr.bf16.mxu0 %v6555
    %7098 = vmatpush2.bf16.msra.mxu0 %v6554
    %7099 = vmatprep.subr.bf16.mxu0 %v6553
    %7100 = vmatpush2.bf16.msra.mxu0 %v6552
    %7101 = vmatprep.subr.bf16.mxu0 %v6551
    %7102 = vmatpush2.bf16.msra.mxu0 %v6550
    %7103 = vmatprep.subr.bf16.mxu0 %v6549
    %7104 = vmatpush2.bf16.msra.mxu0 %v6548
    %7105 = vmatprep.subr.bf16.mxu0 %v6547
    %7106 = vmatpush2.bf16.msra.mxu0 %v6546
    %7107 = vmatprep.subr.bf16.mxu0 %v6545
    %7108 = vmatpush2.bf16.msra.mxu0 %v6544
    %7109 = vmatprep.subr.bf16.mxu0 %v6543
    %7110 = vmatpush2.bf16.msra.mxu0 %v6542
    %7111 = vmatprep.subr.bf16.mxu0 %v6541
    %7112 = vmatpush2.bf16.msra.mxu0 %v6540
    %7113 = vmatprep.mubr.bf16.mxu0 %v3688
    %7114 = vmatmul.mubr.bf16.gmra.mxu0 %v3687
    %v7115 = vpop.f32.mrf.mxu0
    %v7116 = vadd.f32 %v7075, %v7115
    %v7117 = vpop.f32.mrf.mxu0
    %v7118 = vadd.f32 %v7077, %v7117
    %v7119 = vpop.f32.mrf.mxu0
    %v7120 = vpop.f32.mrf.mxu0
    %7121 = vdwg.mxu0
    %7122 = vmatprep.subr.bf16.mxu0 %v6571
    %7123 = vmatpush1.bf16.msra.mxu0 %v6570
    %7124 = vmatprep.subr.bf16.mxu0 %v6569
    %7125 = vmatpush1.bf16.msra.mxu0 %v6568
    %7126 = vmatprep.subr.bf16.mxu0 %v6567
    %7127 = vmatpush1.bf16.msra.mxu0 %v6566
    %7128 = vmatprep.subr.bf16.mxu0 %v6565
    %7129 = vmatpush1.bf16.msra.mxu0 %v6564
    %7130 = vmatprep.subr.bf16.mxu0 %v6563
    %7131 = vmatpush1.bf16.msra.mxu0 %v6562
    %7132 = vmatprep.subr.bf16.mxu0 %v6561
    %7133 = vmatpush1.bf16.msra.mxu0 %v6560
    %7134 = vmatprep.subr.bf16.mxu0 %v6559
    %7135 = vmatpush1.bf16.msra.mxu0 %v6558
    %7136 = vmatprep.subr.bf16.mxu0 %v6557
    %7137 = vmatpush1.bf16.msra.mxu0 %v6556
    %7138 = vmatprep.subr.bf16.mxu0 %v6587
    %7139 = vmatpush2.bf16.msra.mxu0 %v6586
    %7140 = vmatprep.subr.bf16.mxu0 %v6585
    %7141 = vmatpush2.bf16.msra.mxu0 %v6584
    %7142 = vmatprep.subr.bf16.mxu0 %v6583
    %7143 = vmatpush2.bf16.msra.mxu0 %v6582
    %7144 = vmatprep.subr.bf16.mxu0 %v6581
    %7145 = vmatpush2.bf16.msra.mxu0 %v6580
    %7146 = vmatprep.subr.bf16.mxu0 %v6579
    %7147 = vmatpush2.bf16.msra.mxu0 %v6578
    %7148 = vmatprep.subr.bf16.mxu0 %v6577
    %7149 = vmatpush2.bf16.msra.mxu0 %v6576
    %7150 = vmatprep.subr.bf16.mxu0 %v6575
    %7151 = vmatpush2.bf16.msra.mxu0 %v6574
    %7152 = vmatprep.subr.bf16.mxu0 %v6573
    %7153 = vmatpush2.bf16.msra.mxu0 %v6572
    %7154 = vmatprep.mubr.bf16.mxu0 %v3690
    %7155 = vmatmul.mubr.bf16.gmra.mxu0 %v3689
    %v7156 = vpop.f32.mrf.mxu0
    %v7157 = vadd.f32 %v7116, %v7156
    %v7158 = vpop.f32.mrf.mxu0
    %v7159 = vadd.f32 %v7118, %v7158
    %v7160 = vpop.f32.mrf.mxu0
    %v7161 = vpop.f32.mrf.mxu0
    %7162 = vdwg.mxu0
    %7163 = vmatprep.subr.bf16.mxu0 %v6603
    %7164 = vmatpush1.bf16.msra.mxu0 %v6602
    %7165 = vmatprep.subr.bf16.mxu0 %v6601
    %7166 = vmatpush1.bf16.msra.mxu0 %v6600
    %7167 = vmatprep.subr.bf16.mxu0 %v6599
    %7168 = vmatpush1.bf16.msra.mxu0 %v6598
    %7169 = vmatprep.subr.bf16.mxu0 %v6597
    %7170 = vmatpush1.bf16.msra.mxu0 %v6596
    %7171 = vmatprep.subr.bf16.mxu0 %v6595
    %7172 = vmatpush1.bf16.msra.mxu0 %v6594
    %7173 = vmatprep.subr.bf16.mxu0 %v6593
    %7174 = vmatpush1.bf16.msra.mxu0 %v6592
    %7175 = vmatprep.subr.bf16.mxu0 %v6591
    %7176 = vmatpush1.bf16.msra.mxu0 %v6590
    %7177 = vmatprep.subr.bf16.mxu0 %v6589
    %7178 = vmatpush1.bf16.msra.mxu0 %v6588
    %7179 = vmatprep.subr.bf16.mxu0 %v6619
    %7180 = vmatpush2.bf16.msra.mxu0 %v6618
    %7181 = vmatprep.subr.bf16.mxu0 %v6617
    %7182 = vmatpush2.bf16.msra.mxu0 %v6616
    %7183 = vmatprep.subr.bf16.mxu0 %v6615
    %7184 = vmatpush2.bf16.msra.mxu0 %v6614
    %7185 = vmatprep.subr.bf16.mxu0 %v6613
    %7186 = vmatpush2.bf16.msra.mxu0 %v6612
    %7187 = vmatprep.subr.bf16.mxu0 %v6611
    %7188 = vmatpush2.bf16.msra.mxu0 %v6610
    %7189 = vmatprep.subr.bf16.mxu0 %v6609
    %7190 = vmatpush2.bf16.msra.mxu0 %v6608
    %7191 = vmatprep.subr.bf16.mxu0 %v6607
    %7192 = vmatpush2.bf16.msra.mxu0 %v6606
    %7193 = vmatprep.subr.bf16.mxu0 %v6605
    %7194 = vmatpush2.bf16.msra.mxu0 %v6604
    %7195 = vmatprep.mubr.bf16.mxu0 %v3692
    %7196 = vmatmul.mubr.bf16.gmra.mxu0 %v3691
    %v7197 = vpop.f32.mrf.mxu0
    %v7198 = vadd.f32 %v7157, %v7197
    %v7199 = vpop.f32.mrf.mxu0
    %v7200 = vadd.f32 %v7159, %v7199
    %v7201 = vpop.f32.mrf.mxu0
    %v7202 = vpop.f32.mrf.mxu0
    %7203 = vdwg.mxu0
    %v7204 = vmax.f32 %v7198, 0.0
    %v7205 = vmax.f32 %v7200, 0.0
    %v7206 = vpack.c.bf16 %v7204, %v7204
    %v7207 = vpack.c.bf16 %v7205, %v7205
    %v7210 = vunpack.c.l.b16 %v7206
    %v7211 = vunpack.c.l.b16 %v7207
    %v7212 = vpack.c.b16 %v7211, %v7210
    %7214 = vst [vmem:[#allocation3 + $0x8] sm:$0xff] %v7212
    %s7215 = sshll.u32 %s3382, 4
    %7216 = dma.done %s170, %s7215
    %v7217 = vld [vmem:[%s169] sm:$0xff]
    %v7218 = vld [vmem:[%s169 + $0x10] sm:$0xff]
    %v7219 = vld [vmem:[%s169 + $0x20] sm:$0xff]
    %v7220 = vld [vmem:[%s169 + $0x30] sm:$0xff]
    %v7221 = vld [vmem:[%s169 + $0x40] sm:$0xff]
    %v7222 = vld [vmem:[%s169 + $0x50] sm:$0xff]
    %v7223 = vld [vmem:[%s169 + $0x60] sm:$0xff]
    %v7224 = vld [vmem:[%s169 + $0x70] sm:$0xff]
    %v7225 = vld [vmem:[%s169 + $0x80] sm:$0xff]
    %v7226 = vld [vmem:[%s169 + $0x90] sm:$0xff]
    %v7227 = vld [vmem:[%s169 + $0xa0] sm:$0xff]
    %v7228 = vld [vmem:[%s169 + $0xb0] sm:$0xff]
    %v7229 = vld [vmem:[%s169 + $0xc0] sm:$0xff]
    %v7230 = vld [vmem:[%s169 + $0xd0] sm:$0xff]
    %v7231 = vld [vmem:[%s169 + $0xe0] sm:$0xff]
    %v7232 = vld [vmem:[%s169 + $0xf0] sm:$0xff]
    %v7233 = vld [vmem:[%s169 + $0x100] sm:$0xff]
    %v7234 = vld [vmem:[%s169 + $0x110] sm:$0xff]
    %v7235 = vld [vmem:[%s169 + $0x120] sm:$0xff]
    %v7236 = vld [vmem:[%s169 + $0x130] sm:$0xff]
    %v7237 = vld [vmem:[%s169 + $0x140] sm:$0xff]
    %v7238 = vld [vmem:[%s169 + $0x150] sm:$0xff]
    %v7239 = vld [vmem:[%s169 + $0x160] sm:$0xff]
    %v7240 = vld [vmem:[%s169 + $0x170] sm:$0xff]
    %v7241 = vld [vmem:[%s169 + $0x180] sm:$0xff]
    %v7242 = vld [vmem:[%s169 + $0x190] sm:$0xff]
    %v7243 = vld [vmem:[%s169 + $0x1a0] sm:$0xff]
    %v7244 = vld [vmem:[%s169 + $0x1b0] sm:$0xff]
    %v7245 = vld [vmem:[%s169 + $0x1c0] sm:$0xff]
    %v7246 = vld [vmem:[%s169 + $0x1d0] sm:$0xff]
    %v7247 = vld [vmem:[%s169 + $0x1e0] sm:$0xff]
    %v7248 = vld [vmem:[%s169 + $0x1f0] sm:$0xff]
    %v7249 = vld [vmem:[%s169 + $0x200] sm:$0xff]
    %v7250 = vld [vmem:[%s169 + $0x210] sm:$0xff]
    %v7251 = vld [vmem:[%s169 + $0x220] sm:$0xff]
    %v7252 = vld [vmem:[%s169 + $0x230] sm:$0xff]
    %v7253 = vld [vmem:[%s169 + $0x240] sm:$0xff]
    %v7254 = vld [vmem:[%s169 + $0x250] sm:$0xff]
    %v7255 = vld [vmem:[%s169 + $0x260] sm:$0xff]
    %v7256 = vld [vmem:[%s169 + $0x270] sm:$0xff]
    %v7257 = vld [vmem:[%s169 + $0x280] sm:$0xff]
    %v7258 = vld [vmem:[%s169 + $0x290] sm:$0xff]
    %v7259 = vld [vmem:[%s169 + $0x2a0] sm:$0xff]
    %v7260 = vld [vmem:[%s169 + $0x2b0] sm:$0xff]
    %v7261 = vld [vmem:[%s169 + $0x2c0] sm:$0xff]
    %v7262 = vld [vmem:[%s169 + $0x2d0] sm:$0xff]
    %v7263 = vld [vmem:[%s169 + $0x2e0] sm:$0xff]
    %v7264 = vld [vmem:[%s169 + $0x2f0] sm:$0xff]
    %v7265 = vld [vmem:[%s169 + $0x300] sm:$0xff]
    %v7266 = vld [vmem:[%s169 + $0x310] sm:$0xff]
    %v7267 = vld [vmem:[%s169 + $0x320] sm:$0xff]
    %v7268 = vld [vmem:[%s169 + $0x330] sm:$0xff]
    %v7269 = vld [vmem:[%s169 + $0x340] sm:$0xff]
    %v7270 = vld [vmem:[%s169 + $0x350] sm:$0xff]
    %v7271 = vld [vmem:[%s169 + $0x360] sm:$0xff]
    %v7272 = vld [vmem:[%s169 + $0x370] sm:$0xff]
    %v7273 = vld [vmem:[%s169 + $0x380] sm:$0xff]
    %v7274 = vld [vmem:[%s169 + $0x390] sm:$0xff]
    %v7275 = vld [vmem:[%s169 + $0x3a0] sm:$0xff]
    %v7276 = vld [vmem:[%s169 + $0x3b0] sm:$0xff]
    %v7277 = vld [vmem:[%s169 + $0x3c0] sm:$0xff]
    %v7278 = vld [vmem:[%s169 + $0x3d0] sm:$0xff]
    %v7279 = vld [vmem:[%s169 + $0x3e0] sm:$0xff]
    %v7280 = vld [vmem:[%s169 + $0x3f0] sm:$0xff]
    %v7281 = vld [vmem:[%s169 + $0x400] sm:$0xff]
    %v7282 = vld [vmem:[%s169 + $0x410] sm:$0xff]
    %v7283 = vld [vmem:[%s169 + $0x420] sm:$0xff]
    %v7284 = vld [vmem:[%s169 + $0x430] sm:$0xff]
    %v7285 = vld [vmem:[%s169 + $0x440] sm:$0xff]
    %v7286 = vld [vmem:[%s169 + $0x450] sm:$0xff]
    %v7287 = vld [vmem:[%s169 + $0x460] sm:$0xff]
    %v7288 = vld [vmem:[%s169 + $0x470] sm:$0xff]
    %v7289 = vld [vmem:[%s169 + $0x480] sm:$0xff]
    %v7290 = vld [vmem:[%s169 + $0x490] sm:$0xff]
    %v7291 = vld [vmem:[%s169 + $0x4a0] sm:$0xff]
    %v7292 = vld [vmem:[%s169 + $0x4b0] sm:$0xff]
    %v7293 = vld [vmem:[%s169 + $0x4c0] sm:$0xff]
    %v7294 = vld [vmem:[%s169 + $0x4d0] sm:$0xff]
    %v7295 = vld [vmem:[%s169 + $0x4e0] sm:$0xff]
    %v7296 = vld [vmem:[%s169 + $0x4f0] sm:$0xff]
    %v7297 = vld [vmem:[%s169 + $0x500] sm:$0xff]
    %v7298 = vld [vmem:[%s169 + $0x510] sm:$0xff]
    %v7299 = vld [vmem:[%s169 + $0x520] sm:$0xff]
    %v7300 = vld [vmem:[%s169 + $0x530] sm:$0xff]
    %v7301 = vld [vmem:[%s169 + $0x540] sm:$0xff]
    %v7302 = vld [vmem:[%s169 + $0x550] sm:$0xff]
    %v7303 = vld [vmem:[%s169 + $0x560] sm:$0xff]
    %v7304 = vld [vmem:[%s169 + $0x570] sm:$0xff]
    %v7305 = vld [vmem:[%s169 + $0x580] sm:$0xff]
    %v7306 = vld [vmem:[%s169 + $0x590] sm:$0xff]
    %v7307 = vld [vmem:[%s169 + $0x5a0] sm:$0xff]
    %v7308 = vld [vmem:[%s169 + $0x5b0] sm:$0xff]
    %v7309 = vld [vmem:[%s169 + $0x5c0] sm:$0xff]
    %v7310 = vld [vmem:[%s169 + $0x5d0] sm:$0xff]
    %v7311 = vld [vmem:[%s169 + $0x5e0] sm:$0xff]
    %v7312 = vld [vmem:[%s169 + $0x5f0] sm:$0xff]
    %v7313 = vld [vmem:[%s169 + $0x600] sm:$0xff]
    %v7314 = vld [vmem:[%s169 + $0x610] sm:$0xff]
    %v7315 = vld [vmem:[%s169 + $0x620] sm:$0xff]
    %v7316 = vld [vmem:[%s169 + $0x630] sm:$0xff]
    %v7317 = vld [vmem:[%s169 + $0x640] sm:$0xff]
    %v7318 = vld [vmem:[%s169 + $0x650] sm:$0xff]
    %v7319 = vld [vmem:[%s169 + $0x660] sm:$0xff]
    %v7320 = vld [vmem:[%s169 + $0x670] sm:$0xff]
    %v7321 = vld [vmem:[%s169 + $0x680] sm:$0xff]
    %v7322 = vld [vmem:[%s169 + $0x690] sm:$0xff]
    %v7323 = vld [vmem:[%s169 + $0x6a0] sm:$0xff]
    %v7324 = vld [vmem:[%s169 + $0x6b0] sm:$0xff]
    %v7325 = vld [vmem:[%s169 + $0x6c0] sm:$0xff]
    %v7326 = vld [vmem:[%s169 + $0x6d0] sm:$0xff]
    %v7327 = vld [vmem:[%s169 + $0x6e0] sm:$0xff]
    %v7328 = vld [vmem:[%s169 + $0x6f0] sm:$0xff]
    %v7329 = vld [vmem:[%s169 + $0x700] sm:$0xff]
    %v7330 = vld [vmem:[%s169 + $0x710] sm:$0xff]
    %v7331 = vld [vmem:[%s169 + $0x720] sm:$0xff]
    %v7332 = vld [vmem:[%s169 + $0x730] sm:$0xff]
    %v7333 = vld [vmem:[%s169 + $0x740] sm:$0xff]
    %v7334 = vld [vmem:[%s169 + $0x750] sm:$0xff]
    %v7335 = vld [vmem:[%s169 + $0x760] sm:$0xff]
    %v7336 = vld [vmem:[%s169 + $0x770] sm:$0xff]
    %v7337 = vld [vmem:[%s169 + $0x780] sm:$0xff]
    %v7338 = vld [vmem:[%s169 + $0x790] sm:$0xff]
    %v7339 = vld [vmem:[%s169 + $0x7a0] sm:$0xff]
    %v7340 = vld [vmem:[%s169 + $0x7b0] sm:$0xff]
    %v7341 = vld [vmem:[%s169 + $0x7c0] sm:$0xff]
    %v7342 = vld [vmem:[%s169 + $0x7d0] sm:$0xff]
    %v7343 = vld [vmem:[%s169 + $0x7e0] sm:$0xff]
    %v7344 = vld [vmem:[%s169 + $0x7f0] sm:$0xff]
    %v7345 = vld [vmem:[%s169 + $0x800] sm:$0xff]
    %v7346 = vld [vmem:[%s169 + $0x810] sm:$0xff]
    %v7347 = vld [vmem:[%s169 + $0x820] sm:$0xff]
    %v7348 = vld [vmem:[%s169 + $0x830] sm:$0xff]
    %v7349 = vld [vmem:[%s169 + $0x840] sm:$0xff]
    %v7350 = vld [vmem:[%s169 + $0x850] sm:$0xff]
    %v7351 = vld [vmem:[%s169 + $0x860] sm:$0xff]
    %v7352 = vld [vmem:[%s169 + $0x870] sm:$0xff]
    %v7353 = vld [vmem:[%s169 + $0x880] sm:$0xff]
    %v7354 = vld [vmem:[%s169 + $0x890] sm:$0xff]
    %v7355 = vld [vmem:[%s169 + $0x8a0] sm:$0xff]
    %v7356 = vld [vmem:[%s169 + $0x8b0] sm:$0xff]
    %v7357 = vld [vmem:[%s169 + $0x8c0] sm:$0xff]
    %v7358 = vld [vmem:[%s169 + $0x8d0] sm:$0xff]
    %v7359 = vld [vmem:[%s169 + $0x8e0] sm:$0xff]
    %v7360 = vld [vmem:[%s169 + $0x8f0] sm:$0xff]
    %v7361 = vld [vmem:[%s169 + $0x900] sm:$0xff]
    %v7362 = vld [vmem:[%s169 + $0x910] sm:$0xff]
    %v7363 = vld [vmem:[%s169 + $0x920] sm:$0xff]
    %v7364 = vld [vmem:[%s169 + $0x930] sm:$0xff]
    %v7365 = vld [vmem:[%s169 + $0x940] sm:$0xff]
    %v7366 = vld [vmem:[%s169 + $0x950] sm:$0xff]
    %v7367 = vld [vmem:[%s169 + $0x960] sm:$0xff]
    %v7368 = vld [vmem:[%s169 + $0x970] sm:$0xff]
    %v7369 = vld [vmem:[%s169 + $0x980] sm:$0xff]
    %v7370 = vld [vmem:[%s169 + $0x990] sm:$0xff]
    %v7371 = vld [vmem:[%s169 + $0x9a0] sm:$0xff]
    %v7372 = vld [vmem:[%s169 + $0x9b0] sm:$0xff]
    %v7373 = vld [vmem:[%s169 + $0x9c0] sm:$0xff]
    %v7374 = vld [vmem:[%s169 + $0x9d0] sm:$0xff]
    %v7375 = vld [vmem:[%s169 + $0x9e0] sm:$0xff]
    %v7376 = vld [vmem:[%s169 + $0x9f0] sm:$0xff]
    %v7377 = vld [vmem:[%s169 + $0xa00] sm:$0xff]
    %v7378 = vld [vmem:[%s169 + $0xa10] sm:$0xff]
    %v7379 = vld [vmem:[%s169 + $0xa20] sm:$0xff]
    %v7380 = vld [vmem:[%s169 + $0xa30] sm:$0xff]
    %v7381 = vld [vmem:[%s169 + $0xa40] sm:$0xff]
    %v7382 = vld [vmem:[%s169 + $0xa50] sm:$0xff]
    %v7383 = vld [vmem:[%s169 + $0xa60] sm:$0xff]
    %v7384 = vld [vmem:[%s169 + $0xa70] sm:$0xff]
    %v7385 = vld [vmem:[%s169 + $0xa80] sm:$0xff]
    %v7386 = vld [vmem:[%s169 + $0xa90] sm:$0xff]
    %v7387 = vld [vmem:[%s169 + $0xaa0] sm:$0xff]
    %v7388 = vld [vmem:[%s169 + $0xab0] sm:$0xff]
    %v7389 = vld [vmem:[%s169 + $0xac0] sm:$0xff]
    %v7390 = vld [vmem:[%s169 + $0xad0] sm:$0xff]
    %v7391 = vld [vmem:[%s169 + $0xae0] sm:$0xff]
    %v7392 = vld [vmem:[%s169 + $0xaf0] sm:$0xff]
    %v7393 = vld [vmem:[%s169 + $0xb00] sm:$0xff]
    %v7394 = vld [vmem:[%s169 + $0xb10] sm:$0xff]
    %v7395 = vld [vmem:[%s169 + $0xb20] sm:$0xff]
    %v7396 = vld [vmem:[%s169 + $0xb30] sm:$0xff]
    %v7397 = vld [vmem:[%s169 + $0xb40] sm:$0xff]
    %v7398 = vld [vmem:[%s169 + $0xb50] sm:$0xff]
    %v7399 = vld [vmem:[%s169 + $0xb60] sm:$0xff]
    %v7400 = vld [vmem:[%s169 + $0xb70] sm:$0xff]
    %v7401 = vld [vmem:[%s169 + $0xb80] sm:$0xff]
    %v7402 = vld [vmem:[%s169 + $0xb90] sm:$0xff]
    %v7403 = vld [vmem:[%s169 + $0xba0] sm:$0xff]
    %v7404 = vld [vmem:[%s169 + $0xbb0] sm:$0xff]
    %v7405 = vld [vmem:[%s169 + $0xbc0] sm:$0xff]
    %v7406 = vld [vmem:[%s169 + $0xbd0] sm:$0xff]
    %v7407 = vld [vmem:[%s169 + $0xbe0] sm:$0xff]
    %v7408 = vld [vmem:[%s169 + $0xbf0] sm:$0xff]
    %v7409 = vld [vmem:[%s169 + $0xc00] sm:$0xff]
    %v7410 = vld [vmem:[%s169 + $0xc10] sm:$0xff]
    %v7411 = vld [vmem:[%s169 + $0xc20] sm:$0xff]
    %v7412 = vld [vmem:[%s169 + $0xc30] sm:$0xff]
    %v7413 = vld [vmem:[%s169 + $0xc40] sm:$0xff]
    %v7414 = vld [vmem:[%s169 + $0xc50] sm:$0xff]
    %v7415 = vld [vmem:[%s169 + $0xc60] sm:$0xff]
    %v7416 = vld [vmem:[%s169 + $0xc70] sm:$0xff]
    %v7417 = vld [vmem:[%s169 + $0xc80] sm:$0xff]
    %v7418 = vld [vmem:[%s169 + $0xc90] sm:$0xff]
    %v7419 = vld [vmem:[%s169 + $0xca0] sm:$0xff]
    %v7420 = vld [vmem:[%s169 + $0xcb0] sm:$0xff]
    %v7421 = vld [vmem:[%s169 + $0xcc0] sm:$0xff]
    %v7422 = vld [vmem:[%s169 + $0xcd0] sm:$0xff]
    %v7423 = vld [vmem:[%s169 + $0xce0] sm:$0xff]
    %v7424 = vld [vmem:[%s169 + $0xcf0] sm:$0xff]
    %v7425 = vld [vmem:[%s169 + $0xd00] sm:$0xff]
    %v7426 = vld [vmem:[%s169 + $0xd10] sm:$0xff]
    %v7427 = vld [vmem:[%s169 + $0xd20] sm:$0xff]
    %v7428 = vld [vmem:[%s169 + $0xd30] sm:$0xff]
    %v7429 = vld [vmem:[%s169 + $0xd40] sm:$0xff]
    %v7430 = vld [vmem:[%s169 + $0xd50] sm:$0xff]
    %v7431 = vld [vmem:[%s169 + $0xd60] sm:$0xff]
    %v7432 = vld [vmem:[%s169 + $0xd70] sm:$0xff]
    %v7433 = vld [vmem:[%s169 + $0xd80] sm:$0xff]
    %v7434 = vld [vmem:[%s169 + $0xd90] sm:$0xff]
    %v7435 = vld [vmem:[%s169 + $0xda0] sm:$0xff]
    %v7436 = vld [vmem:[%s169 + $0xdb0] sm:$0xff]
    %v7437 = vld [vmem:[%s169 + $0xdc0] sm:$0xff]
    %v7438 = vld [vmem:[%s169 + $0xdd0] sm:$0xff]
    %v7439 = vld [vmem:[%s169 + $0xde0] sm:$0xff]
    %v7440 = vld [vmem:[%s169 + $0xdf0] sm:$0xff]
    %v7441 = vld [vmem:[%s169 + $0xe00] sm:$0xff]
    %v7442 = vld [vmem:[%s169 + $0xe10] sm:$0xff]
    %v7443 = vld [vmem:[%s169 + $0xe20] sm:$0xff]
    %v7444 = vld [vmem:[%s169 + $0xe30] sm:$0xff]
    %v7445 = vld [vmem:[%s169 + $0xe40] sm:$0xff]
    %v7446 = vld [vmem:[%s169 + $0xe50] sm:$0xff]
    %v7447 = vld [vmem:[%s169 + $0xe60] sm:$0xff]
    %v7448 = vld [vmem:[%s169 + $0xe70] sm:$0xff]
    %v7449 = vld [vmem:[%s169 + $0xe80] sm:$0xff]
    %v7450 = vld [vmem:[%s169 + $0xe90] sm:$0xff]
    %v7451 = vld [vmem:[%s169 + $0xea0] sm:$0xff]
    %v7452 = vld [vmem:[%s169 + $0xeb0] sm:$0xff]
    %v7453 = vld [vmem:[%s169 + $0xec0] sm:$0xff]
    %v7454 = vld [vmem:[%s169 + $0xed0] sm:$0xff]
    %v7455 = vld [vmem:[%s169 + $0xee0] sm:$0xff]
    %v7456 = vld [vmem:[%s169 + $0xef0] sm:$0xff]
    %v7457 = vld [vmem:[%s169 + $0xf00] sm:$0xff]
    %v7458 = vld [vmem:[%s169 + $0xf10] sm:$0xff]
    %v7459 = vld [vmem:[%s169 + $0xf20] sm:$0xff]
    %v7460 = vld [vmem:[%s169 + $0xf30] sm:$0xff]
    %v7461 = vld [vmem:[%s169 + $0xf40] sm:$0xff]
    %v7462 = vld [vmem:[%s169 + $0xf50] sm:$0xff]
    %v7463 = vld [vmem:[%s169 + $0xf60] sm:$0xff]
    %v7464 = vld [vmem:[%s169 + $0xf70] sm:$0xff]
    %v7465 = vld [vmem:[%s169 + $0xf80] sm:$0xff]
    %v7466 = vld [vmem:[%s169 + $0xf90] sm:$0xff]
    %v7467 = vld [vmem:[%s169 + $0xfa0] sm:$0xff]
    %v7468 = vld [vmem:[%s169 + $0xfb0] sm:$0xff]
    %v7469 = vld [vmem:[%s169 + $0xfc0] sm:$0xff]
    %v7470 = vld [vmem:[%s169 + $0xfd0] sm:$0xff]
    %v7471 = vld [vmem:[%s169 + $0xfe0] sm:$0xff]
    %v7472 = vld [vmem:[%s169 + $0xff0] sm:$0xff]
    %v7473 = vld [vmem:[#allocation13 + $0x4] sm:$0x3]
    %v7475 = vlaneseq
    %v7476 = vshrl.u32 %v7475, 7
    %v7477 = vsub.s32 0, %v7476
    %v7478 = vrot.slane %v7473, %v7477
    %v7479 = vlaneseq
    %v7480 = vshrl.u32 %v7479, 7
    %v7481 = vsub.s32 1, %v7480
    %v7482 = vrot.slane %v7473, %v7481
    %v7741 = vunpack.c.l.b16 %v7217
    %v7742 = vunpack.c.h.b16 %v7217
    %v7743 = vunpack.c.l.b16 %v7218
    %v7744 = vunpack.c.h.b16 %v7218
    %v7745 = vunpack.c.l.b16 %v7219
    %v7746 = vunpack.c.h.b16 %v7219
    %v7747 = vunpack.c.l.b16 %v7220
    %v7748 = vunpack.c.h.b16 %v7220
    %v7749 = vunpack.c.l.b16 %v7221
    %v7750 = vunpack.c.h.b16 %v7221
    %v7751 = vunpack.c.l.b16 %v7222
    %v7752 = vunpack.c.h.b16 %v7222
    %v7753 = vunpack.c.l.b16 %v7223
    %v7754 = vunpack.c.h.b16 %v7223
    %v7755 = vunpack.c.l.b16 %v7224
    %v7756 = vunpack.c.h.b16 %v7224
    %v7757 = vunpack.c.l.b16 %v7225
    %v7758 = vunpack.c.h.b16 %v7225
    %v7759 = vunpack.c.l.b16 %v7226
    %v7760 = vunpack.c.h.b16 %v7226
    %v7761 = vunpack.c.l.b16 %v7227
    %v7762 = vunpack.c.h.b16 %v7227
    %v7763 = vunpack.c.l.b16 %v7228
    %v7764 = vunpack.c.h.b16 %v7228
    %v7765 = vunpack.c.l.b16 %v7229
    %v7766 = vunpack.c.h.b16 %v7229
    %v7767 = vunpack.c.l.b16 %v7230
    %v7768 = vunpack.c.h.b16 %v7230
    %v7769 = vunpack.c.l.b16 %v7231
    %v7770 = vunpack.c.h.b16 %v7231
    %v7771 = vunpack.c.l.b16 %v7232
    %v7772 = vunpack.c.h.b16 %v7232
    %v7773 = vunpack.c.l.b16 %v7233
    %v7774 = vunpack.c.h.b16 %v7233
    %v7775 = vunpack.c.l.b16 %v7234
    %v7776 = vunpack.c.h.b16 %v7234
    %v7777 = vunpack.c.l.b16 %v7235
    %v7778 = vunpack.c.h.b16 %v7235
    %v7779 = vunpack.c.l.b16 %v7236
    %v7780 = vunpack.c.h.b16 %v7236
    %v7781 = vunpack.c.l.b16 %v7237
    %v7782 = vunpack.c.h.b16 %v7237
    %v7783 = vunpack.c.l.b16 %v7238
    %v7784 = vunpack.c.h.b16 %v7238
    %v7785 = vunpack.c.l.b16 %v7239
    %v7786 = vunpack.c.h.b16 %v7239
    %v7787 = vunpack.c.l.b16 %v7240
    %v7788 = vunpack.c.h.b16 %v7240
    %v7789 = vunpack.c.l.b16 %v7241
    %v7790 = vunpack.c.h.b16 %v7241
    %v7791 = vunpack.c.l.b16 %v7242
    %v7792 = vunpack.c.h.b16 %v7242
    %v7793 = vunpack.c.l.b16 %v7243
    %v7794 = vunpack.c.h.b16 %v7243
    %v7795 = vunpack.c.l.b16 %v7244
    %v7796 = vunpack.c.h.b16 %v7244
    %v7797 = vunpack.c.l.b16 %v7245
    %v7798 = vunpack.c.h.b16 %v7245
    %v7799 = vunpack.c.l.b16 %v7246
    %v7800 = vunpack.c.h.b16 %v7246
    %v7801 = vunpack.c.l.b16 %v7247
    %v7802 = vunpack.c.h.b16 %v7247
    %v7803 = vunpack.c.l.b16 %v7248
    %v7804 = vunpack.c.h.b16 %v7248
    %v7805 = vunpack.c.l.b16 %v7249
    %v7806 = vunpack.c.h.b16 %v7249
    %v7807 = vunpack.c.l.b16 %v7250
    %v7808 = vunpack.c.h.b16 %v7250
    %v7809 = vunpack.c.l.b16 %v7251
    %v7810 = vunpack.c.h.b16 %v7251
    %v7811 = vunpack.c.l.b16 %v7252
    %v7812 = vunpack.c.h.b16 %v7252
    %v7813 = vunpack.c.l.b16 %v7253
    %v7814 = vunpack.c.h.b16 %v7253
    %v7815 = vunpack.c.l.b16 %v7254
    %v7816 = vunpack.c.h.b16 %v7254
    %v7817 = vunpack.c.l.b16 %v7255
    %v7818 = vunpack.c.h.b16 %v7255
    %v7819 = vunpack.c.l.b16 %v7256
    %v7820 = vunpack.c.h.b16 %v7256
    %v7821 = vunpack.c.l.b16 %v7257
    %v7822 = vunpack.c.h.b16 %v7257
    %v7823 = vunpack.c.l.b16 %v7258
    %v7824 = vunpack.c.h.b16 %v7258
    %v7825 = vunpack.c.l.b16 %v7259
    %v7826 = vunpack.c.h.b16 %v7259
    %v7827 = vunpack.c.l.b16 %v7260
    %v7828 = vunpack.c.h.b16 %v7260
    %v7829 = vunpack.c.l.b16 %v7261
    %v7830 = vunpack.c.h.b16 %v7261
    %v7831 = vunpack.c.l.b16 %v7262
    %v7832 = vunpack.c.h.b16 %v7262
    %v7833 = vunpack.c.l.b16 %v7263
    %v7834 = vunpack.c.h.b16 %v7263
    %v7835 = vunpack.c.l.b16 %v7264
    %v7836 = vunpack.c.h.b16 %v7264
    %v7837 = vunpack.c.l.b16 %v7265
    %v7838 = vunpack.c.h.b16 %v7265
    %v7839 = vunpack.c.l.b16 %v7266
    %v7840 = vunpack.c.h.b16 %v7266
    %v7841 = vunpack.c.l.b16 %v7267
    %v7842 = vunpack.c.h.b16 %v7267
    %v7843 = vunpack.c.l.b16 %v7268
    %v7844 = vunpack.c.h.b16 %v7268
    %v7845 = vunpack.c.l.b16 %v7269
    %v7846 = vunpack.c.h.b16 %v7269
    %v7847 = vunpack.c.l.b16 %v7270
    %v7848 = vunpack.c.h.b16 %v7270
    %v7849 = vunpack.c.l.b16 %v7271
    %v7850 = vunpack.c.h.b16 %v7271
    %v7851 = vunpack.c.l.b16 %v7272
    %v7852 = vunpack.c.h.b16 %v7272
    %v7853 = vunpack.c.l.b16 %v7273
    %v7854 = vunpack.c.h.b16 %v7273
    %v7855 = vunpack.c.l.b16 %v7274
    %v7856 = vunpack.c.h.b16 %v7274
    %v7857 = vunpack.c.l.b16 %v7275
    %v7858 = vunpack.c.h.b16 %v7275
    %v7859 = vunpack.c.l.b16 %v7276
    %v7860 = vunpack.c.h.b16 %v7276
    %v7861 = vunpack.c.l.b16 %v7277
    %v7862 = vunpack.c.h.b16 %v7277
    %v7863 = vunpack.c.l.b16 %v7278
    %v7864 = vunpack.c.h.b16 %v7278
    %v7865 = vunpack.c.l.b16 %v7279
    %v7866 = vunpack.c.h.b16 %v7279
    %v7867 = vunpack.c.l.b16 %v7280
    %v7868 = vunpack.c.h.b16 %v7280
    %v7869 = vunpack.c.l.b16 %v7281
    %v7870 = vunpack.c.h.b16 %v7281
    %v7871 = vunpack.c.l.b16 %v7282
    %v7872 = vunpack.c.h.b16 %v7282
    %v7873 = vunpack.c.l.b16 %v7283
    %v7874 = vunpack.c.h.b16 %v7283
    %v7875 = vunpack.c.l.b16 %v7284
    %v7876 = vunpack.c.h.b16 %v7284
    %v7877 = vunpack.c.l.b16 %v7285
    %v7878 = vunpack.c.h.b16 %v7285
    %v7879 = vunpack.c.l.b16 %v7286
    %v7880 = vunpack.c.h.b16 %v7286
    %v7881 = vunpack.c.l.b16 %v7287
    %v7882 = vunpack.c.h.b16 %v7287
    %v7883 = vunpack.c.l.b16 %v7288
    %v7884 = vunpack.c.h.b16 %v7288
    %v7885 = vunpack.c.l.b16 %v7289
    %v7886 = vunpack.c.h.b16 %v7289
    %v7887 = vunpack.c.l.b16 %v7290
    %v7888 = vunpack.c.h.b16 %v7290
    %v7889 = vunpack.c.l.b16 %v7291
    %v7890 = vunpack.c.h.b16 %v7291
    %v7891 = vunpack.c.l.b16 %v7292
    %v7892 = vunpack.c.h.b16 %v7292
    %v7893 = vunpack.c.l.b16 %v7293
    %v7894 = vunpack.c.h.b16 %v7293
    %v7895 = vunpack.c.l.b16 %v7294
    %v7896 = vunpack.c.h.b16 %v7294
    %v7897 = vunpack.c.l.b16 %v7295
    %v7898 = vunpack.c.h.b16 %v7295
    %v7899 = vunpack.c.l.b16 %v7296
    %v7900 = vunpack.c.h.b16 %v7296
    %v7901 = vunpack.c.l.b16 %v7297
    %v7902 = vunpack.c.h.b16 %v7297
    %v7903 = vunpack.c.l.b16 %v7298
    %v7904 = vunpack.c.h.b16 %v7298
    %v7905 = vunpack.c.l.b16 %v7299
    %v7906 = vunpack.c.h.b16 %v7299
    %v7907 = vunpack.c.l.b16 %v7300
    %v7908 = vunpack.c.h.b16 %v7300
    %v7909 = vunpack.c.l.b16 %v7301
    %v7910 = vunpack.c.h.b16 %v7301
    %v7911 = vunpack.c.l.b16 %v7302
    %v7912 = vunpack.c.h.b16 %v7302
    %v7913 = vunpack.c.l.b16 %v7303
    %v7914 = vunpack.c.h.b16 %v7303
    %v7915 = vunpack.c.l.b16 %v7304
    %v7916 = vunpack.c.h.b16 %v7304
    %v7917 = vunpack.c.l.b16 %v7305
    %v7918 = vunpack.c.h.b16 %v7305
    %v7919 = vunpack.c.l.b16 %v7306
    %v7920 = vunpack.c.h.b16 %v7306
    %v7921 = vunpack.c.l.b16 %v7307
    %v7922 = vunpack.c.h.b16 %v7307
    %v7923 = vunpack.c.l.b16 %v7308
    %v7924 = vunpack.c.h.b16 %v7308
    %v7925 = vunpack.c.l.b16 %v7309
    %v7926 = vunpack.c.h.b16 %v7309
    %v7927 = vunpack.c.l.b16 %v7310
    %v7928 = vunpack.c.h.b16 %v7310
    %v7929 = vunpack.c.l.b16 %v7311
    %v7930 = vunpack.c.h.b16 %v7311
    %v7931 = vunpack.c.l.b16 %v7312
    %v7932 = vunpack.c.h.b16 %v7312
    %v7933 = vunpack.c.l.b16 %v7313
    %v7934 = vunpack.c.h.b16 %v7313
    %v7935 = vunpack.c.l.b16 %v7314
    %v7936 = vunpack.c.h.b16 %v7314
    %v7937 = vunpack.c.l.b16 %v7315
    %v7938 = vunpack.c.h.b16 %v7315
    %v7939 = vunpack.c.l.b16 %v7316
    %v7940 = vunpack.c.h.b16 %v7316
    %v7941 = vunpack.c.l.b16 %v7317
    %v7942 = vunpack.c.h.b16 %v7317
    %v7943 = vunpack.c.l.b16 %v7318
    %v7944 = vunpack.c.h.b16 %v7318
    %v7945 = vunpack.c.l.b16 %v7319
    %v7946 = vunpack.c.h.b16 %v7319
    %v7947 = vunpack.c.l.b16 %v7320
    %v7948 = vunpack.c.h.b16 %v7320
    %v7949 = vunpack.c.l.b16 %v7321
    %v7950 = vunpack.c.h.b16 %v7321
    %v7951 = vunpack.c.l.b16 %v7322
    %v7952 = vunpack.c.h.b16 %v7322
    %v7953 = vunpack.c.l.b16 %v7323
    %v7954 = vunpack.c.h.b16 %v7323
    %v7955 = vunpack.c.l.b16 %v7324
    %v7956 = vunpack.c.h.b16 %v7324
    %v7957 = vunpack.c.l.b16 %v7325
    %v7958 = vunpack.c.h.b16 %v7325
    %v7959 = vunpack.c.l.b16 %v7326
    %v7960 = vunpack.c.h.b16 %v7326
    %v7961 = vunpack.c.l.b16 %v7327
    %v7962 = vunpack.c.h.b16 %v7327
    %v7963 = vunpack.c.l.b16 %v7328
    %v7964 = vunpack.c.h.b16 %v7328
    %v7965 = vunpack.c.l.b16 %v7329
    %v7966 = vunpack.c.h.b16 %v7329
    %v7967 = vunpack.c.l.b16 %v7330
    %v7968 = vunpack.c.h.b16 %v7330
    %v7969 = vunpack.c.l.b16 %v7331
    %v7970 = vunpack.c.h.b16 %v7331
    %v7971 = vunpack.c.l.b16 %v7332
    %v7972 = vunpack.c.h.b16 %v7332
    %v7973 = vunpack.c.l.b16 %v7333
    %v7974 = vunpack.c.h.b16 %v7333
    %v7975 = vunpack.c.l.b16 %v7334
    %v7976 = vunpack.c.h.b16 %v7334
    %v7977 = vunpack.c.l.b16 %v7335
    %v7978 = vunpack.c.h.b16 %v7335
    %v7979 = vunpack.c.l.b16 %v7336
    %v7980 = vunpack.c.h.b16 %v7336
    %v7981 = vunpack.c.l.b16 %v7337
    %v7982 = vunpack.c.h.b16 %v7337
    %v7983 = vunpack.c.l.b16 %v7338
    %v7984 = vunpack.c.h.b16 %v7338
    %v7985 = vunpack.c.l.b16 %v7339
    %v7986 = vunpack.c.h.b16 %v7339
    %v7987 = vunpack.c.l.b16 %v7340
    %v7988 = vunpack.c.h.b16 %v7340
    %v7989 = vunpack.c.l.b16 %v7341
    %v7990 = vunpack.c.h.b16 %v7341
    %v7991 = vunpack.c.l.b16 %v7342
    %v7992 = vunpack.c.h.b16 %v7342
    %v7993 = vunpack.c.l.b16 %v7343
    %v7994 = vunpack.c.h.b16 %v7343
    %v7995 = vunpack.c.l.b16 %v7344
    %v7996 = vunpack.c.h.b16 %v7344
    %v7997 = vunpack.c.l.b16 %v7345
    %v7998 = vunpack.c.h.b16 %v7345
    %v7999 = vunpack.c.l.b16 %v7346
    %v8000 = vunpack.c.h.b16 %v7346
    %v8001 = vunpack.c.l.b16 %v7347
    %v8002 = vunpack.c.h.b16 %v7347
    %v8003 = vunpack.c.l.b16 %v7348
    %v8004 = vunpack.c.h.b16 %v7348
    %v8005 = vunpack.c.l.b16 %v7349
    %v8006 = vunpack.c.h.b16 %v7349
    %v8007 = vunpack.c.l.b16 %v7350
    %v8008 = vunpack.c.h.b16 %v7350
    %v8009 = vunpack.c.l.b16 %v7351
    %v8010 = vunpack.c.h.b16 %v7351
    %v8011 = vunpack.c.l.b16 %v7352
    %v8012 = vunpack.c.h.b16 %v7352
    %v8013 = vunpack.c.l.b16 %v7353
    %v8014 = vunpack.c.h.b16 %v7353
    %v8015 = vunpack.c.l.b16 %v7354
    %v8016 = vunpack.c.h.b16 %v7354
    %v8017 = vunpack.c.l.b16 %v7355
    %v8018 = vunpack.c.h.b16 %v7355
    %v8019 = vunpack.c.l.b16 %v7356
    %v8020 = vunpack.c.h.b16 %v7356
    %v8021 = vunpack.c.l.b16 %v7357
    %v8022 = vunpack.c.h.b16 %v7357
    %v8023 = vunpack.c.l.b16 %v7358
    %v8024 = vunpack.c.h.b16 %v7358
    %v8025 = vunpack.c.l.b16 %v7359
    %v8026 = vunpack.c.h.b16 %v7359
    %v8027 = vunpack.c.l.b16 %v7360
    %v8028 = vunpack.c.h.b16 %v7360
    %v8029 = vunpack.c.l.b16 %v7361
    %v8030 = vunpack.c.h.b16 %v7361
    %v8031 = vunpack.c.l.b16 %v7362
    %v8032 = vunpack.c.h.b16 %v7362
    %v8033 = vunpack.c.l.b16 %v7363
    %v8034 = vunpack.c.h.b16 %v7363
    %v8035 = vunpack.c.l.b16 %v7364
    %v8036 = vunpack.c.h.b16 %v7364
    %v8037 = vunpack.c.l.b16 %v7365
    %v8038 = vunpack.c.h.b16 %v7365
    %v8039 = vunpack.c.l.b16 %v7366
    %v8040 = vunpack.c.h.b16 %v7366
    %v8041 = vunpack.c.l.b16 %v7367
    %v8042 = vunpack.c.h.b16 %v7367
    %v8043 = vunpack.c.l.b16 %v7368
    %v8044 = vunpack.c.h.b16 %v7368
    %v8045 = vunpack.c.l.b16 %v7369
    %v8046 = vunpack.c.h.b16 %v7369
    %v8047 = vunpack.c.l.b16 %v7370
    %v8048 = vunpack.c.h.b16 %v7370
    %v8049 = vunpack.c.l.b16 %v7371
    %v8050 = vunpack.c.h.b16 %v7371
    %v8051 = vunpack.c.l.b16 %v7372
    %v8052 = vunpack.c.h.b16 %v7372
    %v8053 = vunpack.c.l.b16 %v7373
    %v8054 = vunpack.c.h.b16 %v7373
    %v8055 = vunpack.c.l.b16 %v7374
    %v8056 = vunpack.c.h.b16 %v7374
    %v8057 = vunpack.c.l.b16 %v7375
    %v8058 = vunpack.c.h.b16 %v7375
    %v8059 = vunpack.c.l.b16 %v7376
    %v8060 = vunpack.c.h.b16 %v7376
    %v8061 = vunpack.c.l.b16 %v7377
    %v8062 = vunpack.c.h.b16 %v7377
    %v8063 = vunpack.c.l.b16 %v7378
    %v8064 = vunpack.c.h.b16 %v7378
    %v8065 = vunpack.c.l.b16 %v7379
    %v8066 = vunpack.c.h.b16 %v7379
    %v8067 = vunpack.c.l.b16 %v7380
    %v8068 = vunpack.c.h.b16 %v7380
    %v8069 = vunpack.c.l.b16 %v7381
    %v8070 = vunpack.c.h.b16 %v7381
    %v8071 = vunpack.c.l.b16 %v7382
    %v8072 = vunpack.c.h.b16 %v7382
    %v8073 = vunpack.c.l.b16 %v7383
    %v8074 = vunpack.c.h.b16 %v7383
    %v8075 = vunpack.c.l.b16 %v7384
    %v8076 = vunpack.c.h.b16 %v7384
    %v8077 = vunpack.c.l.b16 %v7385
    %v8078 = vunpack.c.h.b16 %v7385
    %v8079 = vunpack.c.l.b16 %v7386
    %v8080 = vunpack.c.h.b16 %v7386
    %v8081 = vunpack.c.l.b16 %v7387
    %v8082 = vunpack.c.h.b16 %v7387
    %v8083 = vunpack.c.l.b16 %v7388
    %v8084 = vunpack.c.h.b16 %v7388
    %v8085 = vunpack.c.l.b16 %v7389
    %v8086 = vunpack.c.h.b16 %v7389
    %v8087 = vunpack.c.l.b16 %v7390
    %v8088 = vunpack.c.h.b16 %v7390
    %v8089 = vunpack.c.l.b16 %v7391
    %v8090 = vunpack.c.h.b16 %v7391
    %v8091 = vunpack.c.l.b16 %v7392
    %v8092 = vunpack.c.h.b16 %v7392
    %v8093 = vunpack.c.l.b16 %v7393
    %v8094 = vunpack.c.h.b16 %v7393
    %v8095 = vunpack.c.l.b16 %v7394
    %v8096 = vunpack.c.h.b16 %v7394
    %v8097 = vunpack.c.l.b16 %v7395
    %v8098 = vunpack.c.h.b16 %v7395
    %v8099 = vunpack.c.l.b16 %v7396
    %v8100 = vunpack.c.h.b16 %v7396
    %v8101 = vunpack.c.l.b16 %v7397
    %v8102 = vunpack.c.h.b16 %v7397
    %v8103 = vunpack.c.l.b16 %v7398
    %v8104 = vunpack.c.h.b16 %v7398
    %v8105 = vunpack.c.l.b16 %v7399
    %v8106 = vunpack.c.h.b16 %v7399
    %v8107 = vunpack.c.l.b16 %v7400
    %v8108 = vunpack.c.h.b16 %v7400
    %v8109 = vunpack.c.l.b16 %v7401
    %v8110 = vunpack.c.h.b16 %v7401
    %v8111 = vunpack.c.l.b16 %v7402
    %v8112 = vunpack.c.h.b16 %v7402
    %v8113 = vunpack.c.l.b16 %v7403
    %v8114 = vunpack.c.h.b16 %v7403
    %v8115 = vunpack.c.l.b16 %v7404
    %v8116 = vunpack.c.h.b16 %v7404
    %v8117 = vunpack.c.l.b16 %v7405
    %v8118 = vunpack.c.h.b16 %v7405
    %v8119 = vunpack.c.l.b16 %v7406
    %v8120 = vunpack.c.h.b16 %v7406
    %v8121 = vunpack.c.l.b16 %v7407
    %v8122 = vunpack.c.h.b16 %v7407
    %v8123 = vunpack.c.l.b16 %v7408
    %v8124 = vunpack.c.h.b16 %v7408
    %v8125 = vunpack.c.l.b16 %v7409
    %v8126 = vunpack.c.h.b16 %v7409
    %v8127 = vunpack.c.l.b16 %v7410
    %v8128 = vunpack.c.h.b16 %v7410
    %v8129 = vunpack.c.l.b16 %v7411
    %v8130 = vunpack.c.h.b16 %v7411
    %v8131 = vunpack.c.l.b16 %v7412
    %v8132 = vunpack.c.h.b16 %v7412
    %v8133 = vunpack.c.l.b16 %v7413
    %v8134 = vunpack.c.h.b16 %v7413
    %v8135 = vunpack.c.l.b16 %v7414
    %v8136 = vunpack.c.h.b16 %v7414
    %v8137 = vunpack.c.l.b16 %v7415
    %v8138 = vunpack.c.h.b16 %v7415
    %v8139 = vunpack.c.l.b16 %v7416
    %v8140 = vunpack.c.h.b16 %v7416
    %v8141 = vunpack.c.l.b16 %v7417
    %v8142 = vunpack.c.h.b16 %v7417
    %v8143 = vunpack.c.l.b16 %v7418
    %v8144 = vunpack.c.h.b16 %v7418
    %v8145 = vunpack.c.l.b16 %v7419
    %v8146 = vunpack.c.h.b16 %v7419
    %v8147 = vunpack.c.l.b16 %v7420
    %v8148 = vunpack.c.h.b16 %v7420
    %v8149 = vunpack.c.l.b16 %v7421
    %v8150 = vunpack.c.h.b16 %v7421
    %v8151 = vunpack.c.l.b16 %v7422
    %v8152 = vunpack.c.h.b16 %v7422
    %v8153 = vunpack.c.l.b16 %v7423
    %v8154 = vunpack.c.h.b16 %v7423
    %v8155 = vunpack.c.l.b16 %v7424
    %v8156 = vunpack.c.h.b16 %v7424
    %v8157 = vunpack.c.l.b16 %v7425
    %v8158 = vunpack.c.h.b16 %v7425
    %v8159 = vunpack.c.l.b16 %v7426
    %v8160 = vunpack.c.h.b16 %v7426
    %v8161 = vunpack.c.l.b16 %v7427
    %v8162 = vunpack.c.h.b16 %v7427
    %v8163 = vunpack.c.l.b16 %v7428
    %v8164 = vunpack.c.h.b16 %v7428
    %v8165 = vunpack.c.l.b16 %v7429
    %v8166 = vunpack.c.h.b16 %v7429
    %v8167 = vunpack.c.l.b16 %v7430
    %v8168 = vunpack.c.h.b16 %v7430
    %v8169 = vunpack.c.l.b16 %v7431
    %v8170 = vunpack.c.h.b16 %v7431
    %v8171 = vunpack.c.l.b16 %v7432
    %v8172 = vunpack.c.h.b16 %v7432
    %v8173 = vunpack.c.l.b16 %v7433
    %v8174 = vunpack.c.h.b16 %v7433
    %v8175 = vunpack.c.l.b16 %v7434
    %v8176 = vunpack.c.h.b16 %v7434
    %v8177 = vunpack.c.l.b16 %v7435
    %v8178 = vunpack.c.h.b16 %v7435
    %v8179 = vunpack.c.l.b16 %v7436
    %v8180 = vunpack.c.h.b16 %v7436
    %v8181 = vunpack.c.l.b16 %v7437
    %v8182 = vunpack.c.h.b16 %v7437
    %v8183 = vunpack.c.l.b16 %v7438
    %v8184 = vunpack.c.h.b16 %v7438
    %v8185 = vunpack.c.l.b16 %v7439
    %v8186 = vunpack.c.h.b16 %v7439
    %v8187 = vunpack.c.l.b16 %v7440
    %v8188 = vunpack.c.h.b16 %v7440
    %v8189 = vunpack.c.l.b16 %v7441
    %v8190 = vunpack.c.h.b16 %v7441
    %v8191 = vunpack.c.l.b16 %v7442
    %v8192 = vunpack.c.h.b16 %v7442
    %v8193 = vunpack.c.l.b16 %v7443
    %v8194 = vunpack.c.h.b16 %v7443
    %v8195 = vunpack.c.l.b16 %v7444
    %v8196 = vunpack.c.h.b16 %v7444
    %v8197 = vunpack.c.l.b16 %v7445
    %v8198 = vunpack.c.h.b16 %v7445
    %v8199 = vunpack.c.l.b16 %v7446
    %v8200 = vunpack.c.h.b16 %v7446
    %v8201 = vunpack.c.l.b16 %v7447
    %v8202 = vunpack.c.h.b16 %v7447
    %v8203 = vunpack.c.l.b16 %v7448
    %v8204 = vunpack.c.h.b16 %v7448
    %v8205 = vunpack.c.l.b16 %v7449
    %v8206 = vunpack.c.h.b16 %v7449
    %v8207 = vunpack.c.l.b16 %v7450
    %v8208 = vunpack.c.h.b16 %v7450
    %v8209 = vunpack.c.l.b16 %v7451
    %v8210 = vunpack.c.h.b16 %v7451
    %v8211 = vunpack.c.l.b16 %v7452
    %v8212 = vunpack.c.h.b16 %v7452
    %v8213 = vunpack.c.l.b16 %v7453
    %v8214 = vunpack.c.h.b16 %v7453
    %v8215 = vunpack.c.l.b16 %v7454
    %v8216 = vunpack.c.h.b16 %v7454
    %v8217 = vunpack.c.l.b16 %v7455
    %v8218 = vunpack.c.h.b16 %v7455
    %v8219 = vunpack.c.l.b16 %v7456
    %v8220 = vunpack.c.h.b16 %v7456
    %v8221 = vunpack.c.l.b16 %v7457
    %v8222 = vunpack.c.h.b16 %v7457
    %v8223 = vunpack.c.l.b16 %v7458
    %v8224 = vunpack.c.h.b16 %v7458
    %v8225 = vunpack.c.l.b16 %v7459
    %v8226 = vunpack.c.h.b16 %v7459
    %v8227 = vunpack.c.l.b16 %v7460
    %v8228 = vunpack.c.h.b16 %v7460
    %v8229 = vunpack.c.l.b16 %v7461
    %v8230 = vunpack.c.h.b16 %v7461
    %v8231 = vunpack.c.l.b16 %v7462
    %v8232 = vunpack.c.h.b16 %v7462
    %v8233 = vunpack.c.l.b16 %v7463
    %v8234 = vunpack.c.h.b16 %v7463
    %v8235 = vunpack.c.l.b16 %v7464
    %v8236 = vunpack.c.h.b16 %v7464
    %v8237 = vunpack.c.l.b16 %v7465
    %v8238 = vunpack.c.h.b16 %v7465
    %v8239 = vunpack.c.l.b16 %v7466
    %v8240 = vunpack.c.h.b16 %v7466
    %v8241 = vunpack.c.l.b16 %v7467
    %v8242 = vunpack.c.h.b16 %v7467
    %v8243 = vunpack.c.l.b16 %v7468
    %v8244 = vunpack.c.h.b16 %v7468
    %v8245 = vunpack.c.l.b16 %v7469
    %v8246 = vunpack.c.h.b16 %v7469
    %v8247 = vunpack.c.l.b16 %v7470
    %v8248 = vunpack.c.h.b16 %v7470
    %v8249 = vunpack.c.l.b16 %v7471
    %v8250 = vunpack.c.h.b16 %v7471
    %v8251 = vunpack.c.l.b16 %v7472
    %v8252 = vunpack.c.h.b16 %v7472
    %v8253 = vpack.c.b16 %v7743, %v7741
    %v8254 = vpack.c.b16 %v7744, %v7742
    %v8255 = vpack.c.b16 %v7747, %v7745
    %v8256 = vpack.c.b16 %v7748, %v7746
    %v8257 = vpack.c.b16 %v7751, %v7749
    %v8258 = vpack.c.b16 %v7752, %v7750
    %v8259 = vpack.c.b16 %v7755, %v7753
    %v8260 = vpack.c.b16 %v7756, %v7754
    %v8261 = vpack.c.b16 %v7759, %v7757
    %v8262 = vpack.c.b16 %v7760, %v7758
    %v8263 = vpack.c.b16 %v7763, %v7761
    %v8264 = vpack.c.b16 %v7764, %v7762
    %v8265 = vpack.c.b16 %v7767, %v7765
    %v8266 = vpack.c.b16 %v7768, %v7766
    %v8267 = vpack.c.b16 %v7771, %v7769
    %v8268 = vpack.c.b16 %v7772, %v7770
    %v8269 = vpack.c.b16 %v7775, %v7773
    %v8270 = vpack.c.b16 %v7776, %v7774
    %v8271 = vpack.c.b16 %v7779, %v7777
    %v8272 = vpack.c.b16 %v7780, %v7778
    %v8273 = vpack.c.b16 %v7783, %v7781
    %v8274 = vpack.c.b16 %v7784, %v7782
    %v8275 = vpack.c.b16 %v7787, %v7785
    %v8276 = vpack.c.b16 %v7788, %v7786
    %v8277 = vpack.c.b16 %v7791, %v7789
    %v8278 = vpack.c.b16 %v7792, %v7790
    %v8279 = vpack.c.b16 %v7795, %v7793
    %v8280 = vpack.c.b16 %v7796, %v7794
    %v8281 = vpack.c.b16 %v7799, %v7797
    %v8282 = vpack.c.b16 %v7800, %v7798
    %v8283 = vpack.c.b16 %v7803, %v7801
    %v8284 = vpack.c.b16 %v7804, %v7802
    %v8285 = vpack.c.b16 %v7807, %v7805
    %v8286 = vpack.c.b16 %v7808, %v7806
    %v8287 = vpack.c.b16 %v7811, %v7809
    %v8288 = vpack.c.b16 %v7812, %v7810
    %v8289 = vpack.c.b16 %v7815, %v7813
    %v8290 = vpack.c.b16 %v7816, %v7814
    %v8291 = vpack.c.b16 %v7819, %v7817
    %v8292 = vpack.c.b16 %v7820, %v7818
    %v8293 = vpack.c.b16 %v7823, %v7821
    %v8294 = vpack.c.b16 %v7824, %v7822
    %v8295 = vpack.c.b16 %v7827, %v7825
    %v8296 = vpack.c.b16 %v7828, %v7826
    %v8297 = vpack.c.b16 %v7831, %v7829
    %v8298 = vpack.c.b16 %v7832, %v7830
    %v8299 = vpack.c.b16 %v7835, %v7833
    %v8300 = vpack.c.b16 %v7836, %v7834
    %v8301 = vpack.c.b16 %v7839, %v7837
    %v8302 = vpack.c.b16 %v7840, %v7838
    %v8303 = vpack.c.b16 %v7843, %v7841
    %v8304 = vpack.c.b16 %v7844, %v7842
    %v8305 = vpack.c.b16 %v7847, %v7845
    %v8306 = vpack.c.b16 %v7848, %v7846
    %v8307 = vpack.c.b16 %v7851, %v7849
    %v8308 = vpack.c.b16 %v7852, %v7850
    %v8309 = vpack.c.b16 %v7855, %v7853
    %v8310 = vpack.c.b16 %v7856, %v7854
    %v8311 = vpack.c.b16 %v7859, %v7857
    %v8312 = vpack.c.b16 %v7860, %v7858
    %v8313 = vpack.c.b16 %v7863, %v7861
    %v8314 = vpack.c.b16 %v7864, %v7862
    %v8315 = vpack.c.b16 %v7867, %v7865
    %v8316 = vpack.c.b16 %v7868, %v7866
    %v8317 = vpack.c.b16 %v7871, %v7869
    %v8318 = vpack.c.b16 %v7872, %v7870
    %v8319 = vpack.c.b16 %v7875, %v7873
    %v8320 = vpack.c.b16 %v7876, %v7874
    %v8321 = vpack.c.b16 %v7879, %v7877
    %v8322 = vpack.c.b16 %v7880, %v7878
    %v8323 = vpack.c.b16 %v7883, %v7881
    %v8324 = vpack.c.b16 %v7884, %v7882
    %v8325 = vpack.c.b16 %v7887, %v7885
    %v8326 = vpack.c.b16 %v7888, %v7886
    %v8327 = vpack.c.b16 %v7891, %v7889
    %v8328 = vpack.c.b16 %v7892, %v7890
    %v8329 = vpack.c.b16 %v7895, %v7893
    %v8330 = vpack.c.b16 %v7896, %v7894
    %v8331 = vpack.c.b16 %v7899, %v7897
    %v8332 = vpack.c.b16 %v7900, %v7898
    %v8333 = vpack.c.b16 %v7903, %v7901
    %v8334 = vpack.c.b16 %v7904, %v7902
    %v8335 = vpack.c.b16 %v7907, %v7905
    %v8336 = vpack.c.b16 %v7908, %v7906
    %v8337 = vpack.c.b16 %v7911, %v7909
    %v8338 = vpack.c.b16 %v7912, %v7910
    %v8339 = vpack.c.b16 %v7915, %v7913
    %v8340 = vpack.c.b16 %v7916, %v7914
    %v8341 = vpack.c.b16 %v7919, %v7917
    %v8342 = vpack.c.b16 %v7920, %v7918
    %v8343 = vpack.c.b16 %v7923, %v7921
    %v8344 = vpack.c.b16 %v7924, %v7922
    %v8345 = vpack.c.b16 %v7927, %v7925
    %v8346 = vpack.c.b16 %v7928, %v7926
    %v8347 = vpack.c.b16 %v7931, %v7929
    %v8348 = vpack.c.b16 %v7932, %v7930
    %v8349 = vpack.c.b16 %v7935, %v7933
    %v8350 = vpack.c.b16 %v7936, %v7934
    %v8351 = vpack.c.b16 %v7939, %v7937
    %v8352 = vpack.c.b16 %v7940, %v7938
    %v8353 = vpack.c.b16 %v7943, %v7941
    %v8354 = vpack.c.b16 %v7944, %v7942
    %v8355 = vpack.c.b16 %v7947, %v7945
    %v8356 = vpack.c.b16 %v7948, %v7946
    %v8357 = vpack.c.b16 %v7951, %v7949
    %v8358 = vpack.c.b16 %v7952, %v7950
    %v8359 = vpack.c.b16 %v7955, %v7953
    %v8360 = vpack.c.b16 %v7956, %v7954
    %v8361 = vpack.c.b16 %v7959, %v7957
    %v8362 = vpack.c.b16 %v7960, %v7958
    %v8363 = vpack.c.b16 %v7963, %v7961
    %v8364 = vpack.c.b16 %v7964, %v7962
    %v8365 = vpack.c.b16 %v7967, %v7965
    %v8366 = vpack.c.b16 %v7968, %v7966
    %v8367 = vpack.c.b16 %v7971, %v7969
    %v8368 = vpack.c.b16 %v7972, %v7970
    %v8369 = vpack.c.b16 %v7975, %v7973
    %v8370 = vpack.c.b16 %v7976, %v7974
    %v8371 = vpack.c.b16 %v7979, %v7977
    %v8372 = vpack.c.b16 %v7980, %v7978
    %v8373 = vpack.c.b16 %v7983, %v7981
    %v8374 = vpack.c.b16 %v7984, %v7982
    %v8375 = vpack.c.b16 %v7987, %v7985
    %v8376 = vpack.c.b16 %v7988, %v7986
    %v8377 = vpack.c.b16 %v7991, %v7989
    %v8378 = vpack.c.b16 %v7992, %v7990
    %v8379 = vpack.c.b16 %v7995, %v7993
    %v8380 = vpack.c.b16 %v7996, %v7994
    %v8381 = vpack.c.b16 %v7999, %v7997
    %v8382 = vpack.c.b16 %v8000, %v7998
    %v8383 = vpack.c.b16 %v8003, %v8001
    %v8384 = vpack.c.b16 %v8004, %v8002
    %v8385 = vpack.c.b16 %v8007, %v8005
    %v8386 = vpack.c.b16 %v8008, %v8006
    %v8387 = vpack.c.b16 %v8011, %v8009
    %v8388 = vpack.c.b16 %v8012, %v8010
    %v8389 = vpack.c.b16 %v8015, %v8013
    %v8390 = vpack.c.b16 %v8016, %v8014
    %v8391 = vpack.c.b16 %v8019, %v8017
    %v8392 = vpack.c.b16 %v8020, %v8018
    %v8393 = vpack.c.b16 %v8023, %v8021
    %v8394 = vpack.c.b16 %v8024, %v8022
    %v8395 = vpack.c.b16 %v8027, %v8025
    %v8396 = vpack.c.b16 %v8028, %v8026
    %v8397 = vpack.c.b16 %v8031, %v8029
    %v8398 = vpack.c.b16 %v8032, %v8030
    %v8399 = vpack.c.b16 %v8035, %v8033
    %v8400 = vpack.c.b16 %v8036, %v8034
    %v8401 = vpack.c.b16 %v8039, %v8037
    %v8402 = vpack.c.b16 %v8040, %v8038
    %v8403 = vpack.c.b16 %v8043, %v8041
    %v8404 = vpack.c.b16 %v8044, %v8042
    %v8405 = vpack.c.b16 %v8047, %v8045
    %v8406 = vpack.c.b16 %v8048, %v8046
    %v8407 = vpack.c.b16 %v8051, %v8049
    %v8408 = vpack.c.b16 %v8052, %v8050
    %v8409 = vpack.c.b16 %v8055, %v8053
    %v8410 = vpack.c.b16 %v8056, %v8054
    %v8411 = vpack.c.b16 %v8059, %v8057
    %v8412 = vpack.c.b16 %v8060, %v8058
    %v8413 = vpack.c.b16 %v8063, %v8061
    %v8414 = vpack.c.b16 %v8064, %v8062
    %v8415 = vpack.c.b16 %v8067, %v8065
    %v8416 = vpack.c.b16 %v8068, %v8066
    %v8417 = vpack.c.b16 %v8071, %v8069
    %v8418 = vpack.c.b16 %v8072, %v8070
    %v8419 = vpack.c.b16 %v8075, %v8073
    %v8420 = vpack.c.b16 %v8076, %v8074
    %v8421 = vpack.c.b16 %v8079, %v8077
    %v8422 = vpack.c.b16 %v8080, %v8078
    %v8423 = vpack.c.b16 %v8083, %v8081
    %v8424 = vpack.c.b16 %v8084, %v8082
    %v8425 = vpack.c.b16 %v8087, %v8085
    %v8426 = vpack.c.b16 %v8088, %v8086
    %v8427 = vpack.c.b16 %v8091, %v8089
    %v8428 = vpack.c.b16 %v8092, %v8090
    %v8429 = vpack.c.b16 %v8095, %v8093
    %v8430 = vpack.c.b16 %v8096, %v8094
    %v8431 = vpack.c.b16 %v8099, %v8097
    %v8432 = vpack.c.b16 %v8100, %v8098
    %v8433 = vpack.c.b16 %v8103, %v8101
    %v8434 = vpack.c.b16 %v8104, %v8102
    %v8435 = vpack.c.b16 %v8107, %v8105
    %v8436 = vpack.c.b16 %v8108, %v8106
    %v8437 = vpack.c.b16 %v8111, %v8109
    %v8438 = vpack.c.b16 %v8112, %v8110
    %v8439 = vpack.c.b16 %v8115, %v8113
    %v8440 = vpack.c.b16 %v8116, %v8114
    %v8441 = vpack.c.b16 %v8119, %v8117
    %v8442 = vpack.c.b16 %v8120, %v8118
    %v8443 = vpack.c.b16 %v8123, %v8121
    %v8444 = vpack.c.b16 %v8124, %v8122
    %v8445 = vpack.c.b16 %v8127, %v8125
    %v8446 = vpack.c.b16 %v8128, %v8126
    %v8447 = vpack.c.b16 %v8131, %v8129
    %v8448 = vpack.c.b16 %v8132, %v8130
    %v8449 = vpack.c.b16 %v8135, %v8133
    %v8450 = vpack.c.b16 %v8136, %v8134
    %v8451 = vpack.c.b16 %v8139, %v8137
    %v8452 = vpack.c.b16 %v8140, %v8138
    %v8453 = vpack.c.b16 %v8143, %v8141
    %v8454 = vpack.c.b16 %v8144, %v8142
    %v8455 = vpack.c.b16 %v8147, %v8145
    %v8456 = vpack.c.b16 %v8148, %v8146
    %v8457 = vpack.c.b16 %v8151, %v8149
    %v8458 = vpack.c.b16 %v8152, %v8150
    %v8459 = vpack.c.b16 %v8155, %v8153
    %v8460 = vpack.c.b16 %v8156, %v8154
    %v8461 = vpack.c.b16 %v8159, %v8157
    %v8462 = vpack.c.b16 %v8160, %v8158
    %v8463 = vpack.c.b16 %v8163, %v8161
    %v8464 = vpack.c.b16 %v8164, %v8162
    %v8465 = vpack.c.b16 %v8167, %v8165
    %v8466 = vpack.c.b16 %v8168, %v8166
    %v8467 = vpack.c.b16 %v8171, %v8169
    %v8468 = vpack.c.b16 %v8172, %v8170
    %v8469 = vpack.c.b16 %v8175, %v8173
    %v8470 = vpack.c.b16 %v8176, %v8174
    %v8471 = vpack.c.b16 %v8179, %v8177
    %v8472 = vpack.c.b16 %v8180, %v8178
    %v8473 = vpack.c.b16 %v8183, %v8181
    %v8474 = vpack.c.b16 %v8184, %v8182
    %v8475 = vpack.c.b16 %v8187, %v8185
    %v8476 = vpack.c.b16 %v8188, %v8186
    %v8477 = vpack.c.b16 %v8191, %v8189
    %v8478 = vpack.c.b16 %v8192, %v8190
    %v8479 = vpack.c.b16 %v8195, %v8193
    %v8480 = vpack.c.b16 %v8196, %v8194
    %v8481 = vpack.c.b16 %v8199, %v8197
    %v8482 = vpack.c.b16 %v8200, %v8198
    %v8483 = vpack.c.b16 %v8203, %v8201
    %v8484 = vpack.c.b16 %v8204, %v8202
    %v8485 = vpack.c.b16 %v8207, %v8205
    %v8486 = vpack.c.b16 %v8208, %v8206
    %v8487 = vpack.c.b16 %v8211, %v8209
    %v8488 = vpack.c.b16 %v8212, %v8210
    %v8489 = vpack.c.b16 %v8215, %v8213
    %v8490 = vpack.c.b16 %v8216, %v8214
    %v8491 = vpack.c.b16 %v8219, %v8217
    %v8492 = vpack.c.b16 %v8220, %v8218
    %v8493 = vpack.c.b16 %v8223, %v8221
    %v8494 = vpack.c.b16 %v8224, %v8222
    %v8495 = vpack.c.b16 %v8227, %v8225
    %v8496 = vpack.c.b16 %v8228, %v8226
    %v8497 = vpack.c.b16 %v8231, %v8229
    %v8498 = vpack.c.b16 %v8232, %v8230
    %v8499 = vpack.c.b16 %v8235, %v8233
    %v8500 = vpack.c.b16 %v8236, %v8234
    %v8501 = vpack.c.b16 %v8239, %v8237
    %v8502 = vpack.c.b16 %v8240, %v8238
    %v8503 = vpack.c.b16 %v8243, %v8241
    %v8504 = vpack.c.b16 %v8244, %v8242
    %v8505 = vpack.c.b16 %v8247, %v8245
    %v8506 = vpack.c.b16 %v8248, %v8246
    %v8507 = vpack.c.b16 %v8251, %v8249
    %v8508 = vpack.c.b16 %v8252, %v8250
    %8765 = vmatprep.subr.bf16.mxu0 %v8268
    %8766 = vmatpush1.bf16.msra.mxu0 %v8267
    %8767 = vmatprep.subr.bf16.mxu0 %v8266
    %8768 = vmatpush1.bf16.msra.mxu0 %v8265
    %8769 = vmatprep.subr.bf16.mxu0 %v8264
    %8770 = vmatpush1.bf16.msra.mxu0 %v8263
    %8771 = vmatprep.subr.bf16.mxu0 %v8262
    %8772 = vmatpush1.bf16.msra.mxu0 %v8261
    %8773 = vmatprep.subr.bf16.mxu0 %v8260
    %8774 = vmatpush1.bf16.msra.mxu0 %v8259
    %8775 = vmatprep.subr.bf16.mxu0 %v8258
    %8776 = vmatpush1.bf16.msra.mxu0 %v8257
    %8777 = vmatprep.subr.bf16.mxu0 %v8256
    %8778 = vmatpush1.bf16.msra.mxu0 %v8255
    %8779 = vmatprep.subr.bf16.mxu0 %v8254
    %8780 = vmatpush1.bf16.msra.mxu0 %v8253
    %8781 = vmatprep.subr.bf16.mxu0 %v8284
    %8782 = vmatpush2.bf16.msra.mxu0 %v8283
    %8783 = vmatprep.subr.bf16.mxu0 %v8282
    %8784 = vmatpush2.bf16.msra.mxu0 %v8281
    %8785 = vmatprep.subr.bf16.mxu0 %v8280
    %8786 = vmatpush2.bf16.msra.mxu0 %v8279
    %8787 = vmatprep.subr.bf16.mxu0 %v8278
    %8788 = vmatpush2.bf16.msra.mxu0 %v8277
    %8789 = vmatprep.subr.bf16.mxu0 %v8276
    %8790 = vmatpush2.bf16.msra.mxu0 %v8275
    %8791 = vmatprep.subr.bf16.mxu0 %v8274
    %8792 = vmatpush2.bf16.msra.mxu0 %v8273
    %8793 = vmatprep.subr.bf16.mxu0 %v8272
    %8794 = vmatpush2.bf16.msra.mxu0 %v8271
    %8795 = vmatprep.subr.bf16.mxu0 %v8270
    %8796 = vmatpush2.bf16.msra.mxu0 %v8269
    %8797 = vmatprep.mubr.bf16.mxu0 %v3678
    %8798 = vmatmul.mubr.bf16.gmra.mxu0 %v3677
    %v8799 = vpop.f32.mrf.mxu0
    %v8800 = vadd.f32 %v7478, %v8799
    %v8801 = vpop.f32.mrf.mxu0
    %v8802 = vadd.f32 %v7482, %v8801
    %v8803 = vpop.f32.mrf.mxu0
    %v8804 = vpop.f32.mrf.mxu0
    %8805 = vdwg.mxu0
    %8806 = vmatprep.subr.bf16.mxu0 %v8300
    %8807 = vmatpush1.bf16.msra.mxu0 %v8299
    %8808 = vmatprep.subr.bf16.mxu0 %v8298
    %8809 = vmatpush1.bf16.msra.mxu0 %v8297
    %8810 = vmatprep.subr.bf16.mxu0 %v8296
    %8811 = vmatpush1.bf16.msra.mxu0 %v8295
    %8812 = vmatprep.subr.bf16.mxu0 %v8294
    %8813 = vmatpush1.bf16.msra.mxu0 %v8293
    %8814 = vmatprep.subr.bf16.mxu0 %v8292
    %8815 = vmatpush1.bf16.msra.mxu0 %v8291
    %8816 = vmatprep.subr.bf16.mxu0 %v8290
    %8817 = vmatpush1.bf16.msra.mxu0 %v8289
    %8818 = vmatprep.subr.bf16.mxu0 %v8288
    %8819 = vmatpush1.bf16.msra.mxu0 %v8287
    %8820 = vmatprep.subr.bf16.mxu0 %v8286
    %8821 = vmatpush1.bf16.msra.mxu0 %v8285
    %8822 = vmatprep.subr.bf16.mxu0 %v8316
    %8823 = vmatpush2.bf16.msra.mxu0 %v8315
    %8824 = vmatprep.subr.bf16.mxu0 %v8314
    %8825 = vmatpush2.bf16.msra.mxu0 %v8313
    %8826 = vmatprep.subr.bf16.mxu0 %v8312
    %8827 = vmatpush2.bf16.msra.mxu0 %v8311
    %8828 = vmatprep.subr.bf16.mxu0 %v8310
    %8829 = vmatpush2.bf16.msra.mxu0 %v8309
    %8830 = vmatprep.subr.bf16.mxu0 %v8308
    %8831 = vmatpush2.bf16.msra.mxu0 %v8307
    %8832 = vmatprep.subr.bf16.mxu0 %v8306
    %8833 = vmatpush2.bf16.msra.mxu0 %v8305
    %8834 = vmatprep.subr.bf16.mxu0 %v8304
    %8835 = vmatpush2.bf16.msra.mxu0 %v8303
    %8836 = vmatprep.subr.bf16.mxu0 %v8302
    %8837 = vmatpush2.bf16.msra.mxu0 %v8301
    %8838 = vmatprep.mubr.bf16.mxu0 %v3680
    %8839 = vmatmul.mubr.bf16.gmra.mxu0 %v3679
    %v8840 = vpop.f32.mrf.mxu0
    %v8841 = vadd.f32 %v8800, %v8840
    %v8842 = vpop.f32.mrf.mxu0
    %v8843 = vadd.f32 %v8802, %v8842
    %v8844 = vpop.f32.mrf.mxu0
    %v8845 = vpop.f32.mrf.mxu0
    %8846 = vdwg.mxu0
    %8847 = vmatprep.subr.bf16.mxu0 %v8332
    %8848 = vmatpush1.bf16.msra.mxu0 %v8331
    %8849 = vmatprep.subr.bf16.mxu0 %v8330
    %8850 = vmatpush1.bf16.msra.mxu0 %v8329
    %8851 = vmatprep.subr.bf16.mxu0 %v8328
    %8852 = vmatpush1.bf16.msra.mxu0 %v8327
    %8853 = vmatprep.subr.bf16.mxu0 %v8326
    %8854 = vmatpush1.bf16.msra.mxu0 %v8325
    %8855 = vmatprep.subr.bf16.mxu0 %v8324
    %8856 = vmatpush1.bf16.msra.mxu0 %v8323
    %8857 = vmatprep.subr.bf16.mxu0 %v8322
    %8858 = vmatpush1.bf16.msra.mxu0 %v8321
    %8859 = vmatprep.subr.bf16.mxu0 %v8320
    %8860 = vmatpush1.bf16.msra.mxu0 %v8319
    %8861 = vmatprep.subr.bf16.mxu0 %v8318
    %8862 = vmatpush1.bf16.msra.mxu0 %v8317
    %8863 = vmatprep.subr.bf16.mxu0 %v8348
    %8864 = vmatpush2.bf16.msra.mxu0 %v8347
    %8865 = vmatprep.subr.bf16.mxu0 %v8346
    %8866 = vmatpush2.bf16.msra.mxu0 %v8345
    %8867 = vmatprep.subr.bf16.mxu0 %v8344
    %8868 = vmatpush2.bf16.msra.mxu0 %v8343
    %8869 = vmatprep.subr.bf16.mxu0 %v8342
    %8870 = vmatpush2.bf16.msra.mxu0 %v8341
    %8871 = vmatprep.subr.bf16.mxu0 %v8340
    %8872 = vmatpush2.bf16.msra.mxu0 %v8339
    %8873 = vmatprep.subr.bf16.mxu0 %v8338
    %8874 = vmatpush2.bf16.msra.mxu0 %v8337
    %8875 = vmatprep.subr.bf16.mxu0 %v8336
    %8876 = vmatpush2.bf16.msra.mxu0 %v8335
    %8877 = vmatprep.subr.bf16.mxu0 %v8334
    %8878 = vmatpush2.bf16.msra.mxu0 %v8333
    %8879 = vmatprep.mubr.bf16.mxu0 %v3682
    %8880 = vmatmul.mubr.bf16.gmra.mxu0 %v3681
    %v8881 = vpop.f32.mrf.mxu0
    %v8882 = vadd.f32 %v8841, %v8881
    %v8883 = vpop.f32.mrf.mxu0
    %v8884 = vadd.f32 %v8843, %v8883
    %v8885 = vpop.f32.mrf.mxu0
    %v8886 = vpop.f32.mrf.mxu0
    %8887 = vdwg.mxu0
    %8888 = vmatprep.subr.bf16.mxu0 %v8364
    %8889 = vmatpush1.bf16.msra.mxu0 %v8363
    %8890 = vmatprep.subr.bf16.mxu0 %v8362
    %8891 = vmatpush1.bf16.msra.mxu0 %v8361
    %8892 = vmatprep.subr.bf16.mxu0 %v8360
    %8893 = vmatpush1.bf16.msra.mxu0 %v8359
    %8894 = vmatprep.subr.bf16.mxu0 %v8358
    %8895 = vmatpush1.bf16.msra.mxu0 %v8357
    %8896 = vmatprep.subr.bf16.mxu0 %v8356
    %8897 = vmatpush1.bf16.msra.mxu0 %v8355
    %8898 = vmatprep.subr.bf16.mxu0 %v8354
    %8899 = vmatpush1.bf16.msra.mxu0 %v8353
    %8900 = vmatprep.subr.bf16.mxu0 %v8352
    %8901 = vmatpush1.bf16.msra.mxu0 %v8351
    %8902 = vmatprep.subr.bf16.mxu0 %v8350
    %8903 = vmatpush1.bf16.msra.mxu0 %v8349
    %8904 = vmatprep.subr.bf16.mxu0 %v8380
    %8905 = vmatpush2.bf16.msra.mxu0 %v8379
    %8906 = vmatprep.subr.bf16.mxu0 %v8378
    %8907 = vmatpush2.bf16.msra.mxu0 %v8377
    %8908 = vmatprep.subr.bf16.mxu0 %v8376
    %8909 = vmatpush2.bf16.msra.mxu0 %v8375
    %8910 = vmatprep.subr.bf16.mxu0 %v8374
    %8911 = vmatpush2.bf16.msra.mxu0 %v8373
    %8912 = vmatprep.subr.bf16.mxu0 %v8372
    %8913 = vmatpush2.bf16.msra.mxu0 %v8371
    %8914 = vmatprep.subr.bf16.mxu0 %v8370
    %8915 = vmatpush2.bf16.msra.mxu0 %v8369
    %8916 = vmatprep.subr.bf16.mxu0 %v8368
    %8917 = vmatpush2.bf16.msra.mxu0 %v8367
    %8918 = vmatprep.subr.bf16.mxu0 %v8366
    %8919 = vmatpush2.bf16.msra.mxu0 %v8365
    %8920 = vmatprep.mubr.bf16.mxu0 %v3684
    %8921 = vmatmul.mubr.bf16.gmra.mxu0 %v3683
    %v8922 = vpop.f32.mrf.mxu0
    %v8923 = vadd.f32 %v8882, %v8922
    %v8924 = vpop.f32.mrf.mxu0
    %v8925 = vadd.f32 %v8884, %v8924
    %v8926 = vpop.f32.mrf.mxu0
    %v8927 = vpop.f32.mrf.mxu0
    %8928 = vdwg.mxu0
    %8929 = vmatprep.subr.bf16.mxu0 %v8396
    %8930 = vmatpush1.bf16.msra.mxu0 %v8395
    %8931 = vmatprep.subr.bf16.mxu0 %v8394
    %8932 = vmatpush1.bf16.msra.mxu0 %v8393
    %8933 = vmatprep.subr.bf16.mxu0 %v8392
    %8934 = vmatpush1.bf16.msra.mxu0 %v8391
    %8935 = vmatprep.subr.bf16.mxu0 %v8390
    %8936 = vmatpush1.bf16.msra.mxu0 %v8389
    %8937 = vmatprep.subr.bf16.mxu0 %v8388
    %8938 = vmatpush1.bf16.msra.mxu0 %v8387
    %8939 = vmatprep.subr.bf16.mxu0 %v8386
    %8940 = vmatpush1.bf16.msra.mxu0 %v8385
    %8941 = vmatprep.subr.bf16.mxu0 %v8384
    %8942 = vmatpush1.bf16.msra.mxu0 %v8383
    %8943 = vmatprep.subr.bf16.mxu0 %v8382
    %8944 = vmatpush1.bf16.msra.mxu0 %v8381
    %8945 = vmatprep.subr.bf16.mxu0 %v8412
    %8946 = vmatpush2.bf16.msra.mxu0 %v8411
    %8947 = vmatprep.subr.bf16.mxu0 %v8410
    %8948 = vmatpush2.bf16.msra.mxu0 %v8409
    %8949 = vmatprep.subr.bf16.mxu0 %v8408
    %8950 = vmatpush2.bf16.msra.mxu0 %v8407
    %8951 = vmatprep.subr.bf16.mxu0 %v8406
    %8952 = vmatpush2.bf16.msra.mxu0 %v8405
    %8953 = vmatprep.subr.bf16.mxu0 %v8404
    %8954 = vmatpush2.bf16.msra.mxu0 %v8403
    %8955 = vmatprep.subr.bf16.mxu0 %v8402
    %8956 = vmatpush2.bf16.msra.mxu0 %v8401
    %8957 = vmatprep.subr.bf16.mxu0 %v8400
    %8958 = vmatpush2.bf16.msra.mxu0 %v8399
    %8959 = vmatprep.subr.bf16.mxu0 %v8398
    %8960 = vmatpush2.bf16.msra.mxu0 %v8397
    %8961 = vmatprep.mubr.bf16.mxu0 %v3686
    %8962 = vmatmul.mubr.bf16.gmra.mxu0 %v3685
    %v8963 = vpop.f32.mrf.mxu0
    %v8964 = vadd.f32 %v8923, %v8963
    %v8965 = vpop.f32.mrf.mxu0
    %v8966 = vadd.f32 %v8925, %v8965
    %v8967 = vpop.f32.mrf.mxu0
    %v8968 = vpop.f32.mrf.mxu0
    %8969 = vdwg.mxu0
    %8970 = vmatprep.subr.bf16.mxu0 %v8428
    %8971 = vmatpush1.bf16.msra.mxu0 %v8427
    %8972 = vmatprep.subr.bf16.mxu0 %v8426
    %8973 = vmatpush1.bf16.msra.mxu0 %v8425
    %8974 = vmatprep.subr.bf16.mxu0 %v8424
    %8975 = vmatpush1.bf16.msra.mxu0 %v8423
    %8976 = vmatprep.subr.bf16.mxu0 %v8422
    %8977 = vmatpush1.bf16.msra.mxu0 %v8421
    %8978 = vmatprep.subr.bf16.mxu0 %v8420
    %8979 = vmatpush1.bf16.msra.mxu0 %v8419
    %8980 = vmatprep.subr.bf16.mxu0 %v8418
    %8981 = vmatpush1.bf16.msra.mxu0 %v8417
    %8982 = vmatprep.subr.bf16.mxu0 %v8416
    %8983 = vmatpush1.bf16.msra.mxu0 %v8415
    %8984 = vmatprep.subr.bf16.mxu0 %v8414
    %8985 = vmatpush1.bf16.msra.mxu0 %v8413
    %8986 = vmatprep.subr.bf16.mxu0 %v8444
    %8987 = vmatpush2.bf16.msra.mxu0 %v8443
    %8988 = vmatprep.subr.bf16.mxu0 %v8442
    %8989 = vmatpush2.bf16.msra.mxu0 %v8441
    %8990 = vmatprep.subr.bf16.mxu0 %v8440
    %8991 = vmatpush2.bf16.msra.mxu0 %v8439
    %8992 = vmatprep.subr.bf16.mxu0 %v8438
    %8993 = vmatpush2.bf16.msra.mxu0 %v8437
    %8994 = vmatprep.subr.bf16.mxu0 %v8436
    %8995 = vmatpush2.bf16.msra.mxu0 %v8435
    %8996 = vmatprep.subr.bf16.mxu0 %v8434
    %8997 = vmatpush2.bf16.msra.mxu0 %v8433
    %8998 = vmatprep.subr.bf16.mxu0 %v8432
    %8999 = vmatpush2.bf16.msra.mxu0 %v8431
    %9000 = vmatprep.subr.bf16.mxu0 %v8430
    %9001 = vmatpush2.bf16.msra.mxu0 %v8429
    %9002 = vmatprep.mubr.bf16.mxu0 %v3688
    %9003 = vmatmul.mubr.bf16.gmra.mxu0 %v3687
    %v9004 = vpop.f32.mrf.mxu0
    %v9005 = vadd.f32 %v8964, %v9004
    %v9006 = vpop.f32.mrf.mxu0
    %v9007 = vadd.f32 %v8966, %v9006
    %v9008 = vpop.f32.mrf.mxu0
    %v9009 = vpop.f32.mrf.mxu0
    %9010 = vdwg.mxu0
    %9011 = vmatprep.subr.bf16.mxu0 %v8460
    %9012 = vmatpush1.bf16.msra.mxu0 %v8459
    %9013 = vmatprep.subr.bf16.mxu0 %v8458
    %9014 = vmatpush1.bf16.msra.mxu0 %v8457
    %9015 = vmatprep.subr.bf16.mxu0 %v8456
    %9016 = vmatpush1.bf16.msra.mxu0 %v8455
    %9017 = vmatprep.subr.bf16.mxu0 %v8454
    %9018 = vmatpush1.bf16.msra.mxu0 %v8453
    %9019 = vmatprep.subr.bf16.mxu0 %v8452
    %9020 = vmatpush1.bf16.msra.mxu0 %v8451
    %9021 = vmatprep.subr.bf16.mxu0 %v8450
    %9022 = vmatpush1.bf16.msra.mxu0 %v8449
    %9023 = vmatprep.subr.bf16.mxu0 %v8448
    %9024 = vmatpush1.bf16.msra.mxu0 %v8447
    %9025 = vmatprep.subr.bf16.mxu0 %v8446
    %9026 = vmatpush1.bf16.msra.mxu0 %v8445
    %9027 = vmatprep.subr.bf16.mxu0 %v8476
    %9028 = vmatpush2.bf16.msra.mxu0 %v8475
    %9029 = vmatprep.subr.bf16.mxu0 %v8474
    %9030 = vmatpush2.bf16.msra.mxu0 %v8473
    %9031 = vmatprep.subr.bf16.mxu0 %v8472
    %9032 = vmatpush2.bf16.msra.mxu0 %v8471
    %9033 = vmatprep.subr.bf16.mxu0 %v8470
    %9034 = vmatpush2.bf16.msra.mxu0 %v8469
    %9035 = vmatprep.subr.bf16.mxu0 %v8468
    %9036 = vmatpush2.bf16.msra.mxu0 %v8467
    %9037 = vmatprep.subr.bf16.mxu0 %v8466
    %9038 = vmatpush2.bf16.msra.mxu0 %v8465
    %9039 = vmatprep.subr.bf16.mxu0 %v8464
    %9040 = vmatpush2.bf16.msra.mxu0 %v8463
    %9041 = vmatprep.subr.bf16.mxu0 %v8462
    %9042 = vmatpush2.bf16.msra.mxu0 %v8461
    %9043 = vmatprep.mubr.bf16.mxu0 %v3690
    %9044 = vmatmul.mubr.bf16.gmra.mxu0 %v3689
    %v9045 = vpop.f32.mrf.mxu0
    %v9046 = vadd.f32 %v9005, %v9045
    %v9047 = vpop.f32.mrf.mxu0
    %v9048 = vadd.f32 %v9007, %v9047
    %v9049 = vpop.f32.mrf.mxu0
    %v9050 = vpop.f32.mrf.mxu0
    %9051 = vdwg.mxu0
    %9052 = vmatprep.subr.bf16.mxu0 %v8492
    %9053 = vmatpush1.bf16.msra.mxu0 %v8491
    %9054 = vmatprep.subr.bf16.mxu0 %v8490
    %9055 = vmatpush1.bf16.msra.mxu0 %v8489
    %9056 = vmatprep.subr.bf16.mxu0 %v8488
    %9057 = vmatpush1.bf16.msra.mxu0 %v8487
    %9058 = vmatprep.subr.bf16.mxu0 %v8486
    %9059 = vmatpush1.bf16.msra.mxu0 %v8485
    %9060 = vmatprep.subr.bf16.mxu0 %v8484
    %9061 = vmatpush1.bf16.msra.mxu0 %v8483
    %9062 = vmatprep.subr.bf16.mxu0 %v8482
    %9063 = vmatpush1.bf16.msra.mxu0 %v8481
    %9064 = vmatprep.subr.bf16.mxu0 %v8480
    %9065 = vmatpush1.bf16.msra.mxu0 %v8479
    %9066 = vmatprep.subr.bf16.mxu0 %v8478
    %9067 = vmatpush1.bf16.msra.mxu0 %v8477
    %9068 = vmatprep.subr.bf16.mxu0 %v8508
    %9069 = vmatpush2.bf16.msra.mxu0 %v8507
    %9070 = vmatprep.subr.bf16.mxu0 %v8506
    %9071 = vmatpush2.bf16.msra.mxu0 %v8505
    %9072 = vmatprep.subr.bf16.mxu0 %v8504
    %9073 = vmatpush2.bf16.msra.mxu0 %v8503
    %9074 = vmatprep.subr.bf16.mxu0 %v8502
    %9075 = vmatpush2.bf16.msra.mxu0 %v8501
    %9076 = vmatprep.subr.bf16.mxu0 %v8500
    %9077 = vmatpush2.bf16.msra.mxu0 %v8499
    %9078 = vmatprep.subr.bf16.mxu0 %v8498
    %9079 = vmatpush2.bf16.msra.mxu0 %v8497
    %9080 = vmatprep.subr.bf16.mxu0 %v8496
    %9081 = vmatpush2.bf16.msra.mxu0 %v8495
    %9082 = vmatprep.subr.bf16.mxu0 %v8494
    %9083 = vmatpush2.bf16.msra.mxu0 %v8493
    %9084 = vmatprep.mubr.bf16.mxu0 %v3692
    %9085 = vmatmul.mubr.bf16.gmra.mxu0 %v3691
    %v9086 = vpop.f32.mrf.mxu0
    %v9087 = vadd.f32 %v9046, %v9086
    %v9088 = vpop.f32.mrf.mxu0
    %v9089 = vadd.f32 %v9048, %v9088
    %v9090 = vpop.f32.mrf.mxu0
    %v9091 = vpop.f32.mrf.mxu0
    %9092 = vdwg.mxu0
    %v9093 = vmax.f32 %v9087, 0.0
    %v9094 = vmax.f32 %v9089, 0.0
    %v9095 = vpack.c.bf16 %v9093, %v9093
    %v9096 = vpack.c.bf16 %v9094, %v9094
    %v9099 = vunpack.c.l.b16 %v9095
    %v9100 = vunpack.c.l.b16 %v9096
    %v9101 = vpack.c.b16 %v9100, %v9099
    %9103 = vst [vmem:[#allocation3 + $0x10] sm:$0xff] %v9101
    %v9104 = vld [vmem:[%s169 + $0x8] sm:$0xff]
    %v9105 = vld [vmem:[%s169 + $0x18] sm:$0xff]
    %v9106 = vld [vmem:[%s169 + $0x28] sm:$0xff]
    %v9107 = vld [vmem:[%s169 + $0x38] sm:$0xff]
    %v9108 = vld [vmem:[%s169 + $0x48] sm:$0xff]
    %v9109 = vld [vmem:[%s169 + $0x58] sm:$0xff]
    %v9110 = vld [vmem:[%s169 + $0x68] sm:$0xff]
    %v9111 = vld [vmem:[%s169 + $0x78] sm:$0xff]
    %v9112 = vld [vmem:[%s169 + $0x88] sm:$0xff]
    %v9113 = vld [vmem:[%s169 + $0x98] sm:$0xff]
    %v9114 = vld [vmem:[%s169 + $0xa8] sm:$0xff]
    %v9115 = vld [vmem:[%s169 + $0xb8] sm:$0xff]
    %v9116 = vld [vmem:[%s169 + $0xc8] sm:$0xff]
    %v9117 = vld [vmem:[%s169 + $0xd8] sm:$0xff]
    %v9118 = vld [vmem:[%s169 + $0xe8] sm:$0xff]
    %v9119 = vld [vmem:[%s169 + $0xf8] sm:$0xff]
    %v9120 = vld [vmem:[%s169 + $0x108] sm:$0xff]
    %v9121 = vld [vmem:[%s169 + $0x118] sm:$0xff]
    %v9122 = vld [vmem:[%s169 + $0x128] sm:$0xff]
    %v9123 = vld [vmem:[%s169 + $0x138] sm:$0xff]
    %v9124 = vld [vmem:[%s169 + $0x148] sm:$0xff]
    %v9125 = vld [vmem:[%s169 + $0x158] sm:$0xff]
    %v9126 = vld [vmem:[%s169 + $0x168] sm:$0xff]
    %v9127 = vld [vmem:[%s169 + $0x178] sm:$0xff]
    %v9128 = vld [vmem:[%s169 + $0x188] sm:$0xff]
    %v9129 = vld [vmem:[%s169 + $0x198] sm:$0xff]
    %v9130 = vld [vmem:[%s169 + $0x1a8] sm:$0xff]
    %v9131 = vld [vmem:[%s169 + $0x1b8] sm:$0xff]
    %v9132 = vld [vmem:[%s169 + $0x1c8] sm:$0xff]
    %v9133 = vld [vmem:[%s169 + $0x1d8] sm:$0xff]
    %v9134 = vld [vmem:[%s169 + $0x1e8] sm:$0xff]
    %v9135 = vld [vmem:[%s169 + $0x1f8] sm:$0xff]
    %v9136 = vld [vmem:[%s169 + $0x208] sm:$0xff]
    %v9137 = vld [vmem:[%s169 + $0x218] sm:$0xff]
    %v9138 = vld [vmem:[%s169 + $0x228] sm:$0xff]
    %v9139 = vld [vmem:[%s169 + $0x238] sm:$0xff]
    %v9140 = vld [vmem:[%s169 + $0x248] sm:$0xff]
    %v9141 = vld [vmem:[%s169 + $0x258] sm:$0xff]
    %v9142 = vld [vmem:[%s169 + $0x268] sm:$0xff]
    %v9143 = vld [vmem:[%s169 + $0x278] sm:$0xff]
    %v9144 = vld [vmem:[%s169 + $0x288] sm:$0xff]
    %v9145 = vld [vmem:[%s169 + $0x298] sm:$0xff]
    %v9146 = vld [vmem:[%s169 + $0x2a8] sm:$0xff]
    %v9147 = vld [vmem:[%s169 + $0x2b8] sm:$0xff]
    %v9148 = vld [vmem:[%s169 + $0x2c8] sm:$0xff]
    %v9149 = vld [vmem:[%s169 + $0x2d8] sm:$0xff]
    %v9150 = vld [vmem:[%s169 + $0x2e8] sm:$0xff]
    %v9151 = vld [vmem:[%s169 + $0x2f8] sm:$0xff]
    %v9152 = vld [vmem:[%s169 + $0x308] sm:$0xff]
    %v9153 = vld [vmem:[%s169 + $0x318] sm:$0xff]
    %v9154 = vld [vmem:[%s169 + $0x328] sm:$0xff]
    %v9155 = vld [vmem:[%s169 + $0x338] sm:$0xff]
    %v9156 = vld [vmem:[%s169 + $0x348] sm:$0xff]
    %v9157 = vld [vmem:[%s169 + $0x358] sm:$0xff]
    %v9158 = vld [vmem:[%s169 + $0x368] sm:$0xff]
    %v9159 = vld [vmem:[%s169 + $0x378] sm:$0xff]
    %v9160 = vld [vmem:[%s169 + $0x388] sm:$0xff]
    %v9161 = vld [vmem:[%s169 + $0x398] sm:$0xff]
    %v9162 = vld [vmem:[%s169 + $0x3a8] sm:$0xff]
    %v9163 = vld [vmem:[%s169 + $0x3b8] sm:$0xff]
    %v9164 = vld [vmem:[%s169 + $0x3c8] sm:$0xff]
    %v9165 = vld [vmem:[%s169 + $0x3d8] sm:$0xff]
    %v9166 = vld [vmem:[%s169 + $0x3e8] sm:$0xff]
    %v9167 = vld [vmem:[%s169 + $0x3f8] sm:$0xff]
    %v9168 = vld [vmem:[%s169 + $0x408] sm:$0xff]
    %v9169 = vld [vmem:[%s169 + $0x418] sm:$0xff]
    %v9170 = vld [vmem:[%s169 + $0x428] sm:$0xff]
    %v9171 = vld [vmem:[%s169 + $0x438] sm:$0xff]
    %v9172 = vld [vmem:[%s169 + $0x448] sm:$0xff]
    %v9173 = vld [vmem:[%s169 + $0x458] sm:$0xff]
    %v9174 = vld [vmem:[%s169 + $0x468] sm:$0xff]
    %v9175 = vld [vmem:[%s169 + $0x478] sm:$0xff]
    %v9176 = vld [vmem:[%s169 + $0x488] sm:$0xff]
    %v9177 = vld [vmem:[%s169 + $0x498] sm:$0xff]
    %v9178 = vld [vmem:[%s169 + $0x4a8] sm:$0xff]
    %v9179 = vld [vmem:[%s169 + $0x4b8] sm:$0xff]
    %v9180 = vld [vmem:[%s169 + $0x4c8] sm:$0xff]
    %v9181 = vld [vmem:[%s169 + $0x4d8] sm:$0xff]
    %v9182 = vld [vmem:[%s169 + $0x4e8] sm:$0xff]
    %v9183 = vld [vmem:[%s169 + $0x4f8] sm:$0xff]
    %v9184 = vld [vmem:[%s169 + $0x508] sm:$0xff]
    %v9185 = vld [vmem:[%s169 + $0x518] sm:$0xff]
    %v9186 = vld [vmem:[%s169 + $0x528] sm:$0xff]
    %v9187 = vld [vmem:[%s169 + $0x538] sm:$0xff]
    %v9188 = vld [vmem:[%s169 + $0x548] sm:$0xff]
    %v9189 = vld [vmem:[%s169 + $0x558] sm:$0xff]
    %v9190 = vld [vmem:[%s169 + $0x568] sm:$0xff]
    %v9191 = vld [vmem:[%s169 + $0x578] sm:$0xff]
    %v9192 = vld [vmem:[%s169 + $0x588] sm:$0xff]
    %v9193 = vld [vmem:[%s169 + $0x598] sm:$0xff]
    %v9194 = vld [vmem:[%s169 + $0x5a8] sm:$0xff]
    %v9195 = vld [vmem:[%s169 + $0x5b8] sm:$0xff]
    %v9196 = vld [vmem:[%s169 + $0x5c8] sm:$0xff]
    %v9197 = vld [vmem:[%s169 + $0x5d8] sm:$0xff]
    %v9198 = vld [vmem:[%s169 + $0x5e8] sm:$0xff]
    %v9199 = vld [vmem:[%s169 + $0x5f8] sm:$0xff]
    %v9200 = vld [vmem:[%s169 + $0x608] sm:$0xff]
    %v9201 = vld [vmem:[%s169 + $0x618] sm:$0xff]
    %v9202 = vld [vmem:[%s169 + $0x628] sm:$0xff]
    %v9203 = vld [vmem:[%s169 + $0x638] sm:$0xff]
    %v9204 = vld [vmem:[%s169 + $0x648] sm:$0xff]
    %v9205 = vld [vmem:[%s169 + $0x658] sm:$0xff]
    %v9206 = vld [vmem:[%s169 + $0x668] sm:$0xff]
    %v9207 = vld [vmem:[%s169 + $0x678] sm:$0xff]
    %v9208 = vld [vmem:[%s169 + $0x688] sm:$0xff]
    %v9209 = vld [vmem:[%s169 + $0x698] sm:$0xff]
    %v9210 = vld [vmem:[%s169 + $0x6a8] sm:$0xff]
    %v9211 = vld [vmem:[%s169 + $0x6b8] sm:$0xff]
    %v9212 = vld [vmem:[%s169 + $0x6c8] sm:$0xff]
    %v9213 = vld [vmem:[%s169 + $0x6d8] sm:$0xff]
    %v9214 = vld [vmem:[%s169 + $0x6e8] sm:$0xff]
    %v9215 = vld [vmem:[%s169 + $0x6f8] sm:$0xff]
    %v9216 = vld [vmem:[%s169 + $0x708] sm:$0xff]
    %v9217 = vld [vmem:[%s169 + $0x718] sm:$0xff]
    %v9218 = vld [vmem:[%s169 + $0x728] sm:$0xff]
    %v9219 = vld [vmem:[%s169 + $0x738] sm:$0xff]
    %v9220 = vld [vmem:[%s169 + $0x748] sm:$0xff]
    %v9221 = vld [vmem:[%s169 + $0x758] sm:$0xff]
    %v9222 = vld [vmem:[%s169 + $0x768] sm:$0xff]
    %v9223 = vld [vmem:[%s169 + $0x778] sm:$0xff]
    %v9224 = vld [vmem:[%s169 + $0x788] sm:$0xff]
    %v9225 = vld [vmem:[%s169 + $0x798] sm:$0xff]
    %v9226 = vld [vmem:[%s169 + $0x7a8] sm:$0xff]
    %v9227 = vld [vmem:[%s169 + $0x7b8] sm:$0xff]
    %v9228 = vld [vmem:[%s169 + $0x7c8] sm:$0xff]
    %v9229 = vld [vmem:[%s169 + $0x7d8] sm:$0xff]
    %v9230 = vld [vmem:[%s169 + $0x7e8] sm:$0xff]
    %v9231 = vld [vmem:[%s169 + $0x7f8] sm:$0xff]
    %v9232 = vld [vmem:[%s169 + $0x808] sm:$0xff]
    %v9233 = vld [vmem:[%s169 + $0x818] sm:$0xff]
    %v9234 = vld [vmem:[%s169 + $0x828] sm:$0xff]
    %v9235 = vld [vmem:[%s169 + $0x838] sm:$0xff]
    %v9236 = vld [vmem:[%s169 + $0x848] sm:$0xff]
    %v9237 = vld [vmem:[%s169 + $0x858] sm:$0xff]
    %v9238 = vld [vmem:[%s169 + $0x868] sm:$0xff]
    %v9239 = vld [vmem:[%s169 + $0x878] sm:$0xff]
    %v9240 = vld [vmem:[%s169 + $0x888] sm:$0xff]
    %v9241 = vld [vmem:[%s169 + $0x898] sm:$0xff]
    %v9242 = vld [vmem:[%s169 + $0x8a8] sm:$0xff]
    %v9243 = vld [vmem:[%s169 + $0x8b8] sm:$0xff]
    %v9244 = vld [vmem:[%s169 + $0x8c8] sm:$0xff]
    %v9245 = vld [vmem:[%s169 + $0x8d8] sm:$0xff]
    %v9246 = vld [vmem:[%s169 + $0x8e8] sm:$0xff]
    %v9247 = vld [vmem:[%s169 + $0x8f8] sm:$0xff]
    %v9248 = vld [vmem:[%s169 + $0x908] sm:$0xff]
    %v9249 = vld [vmem:[%s169 + $0x918] sm:$0xff]
    %v9250 = vld [vmem:[%s169 + $0x928] sm:$0xff]
    %v9251 = vld [vmem:[%s169 + $0x938] sm:$0xff]
    %v9252 = vld [vmem:[%s169 + $0x948] sm:$0xff]
    %v9253 = vld [vmem:[%s169 + $0x958] sm:$0xff]
    %v9254 = vld [vmem:[%s169 + $0x968] sm:$0xff]
    %v9255 = vld [vmem:[%s169 + $0x978] sm:$0xff]
    %v9256 = vld [vmem:[%s169 + $0x988] sm:$0xff]
    %v9257 = vld [vmem:[%s169 + $0x998] sm:$0xff]
    %v9258 = vld [vmem:[%s169 + $0x9a8] sm:$0xff]
    %v9259 = vld [vmem:[%s169 + $0x9b8] sm:$0xff]
    %v9260 = vld [vmem:[%s169 + $0x9c8] sm:$0xff]
    %v9261 = vld [vmem:[%s169 + $0x9d8] sm:$0xff]
    %v9262 = vld [vmem:[%s169 + $0x9e8] sm:$0xff]
    %v9263 = vld [vmem:[%s169 + $0x9f8] sm:$0xff]
    %v9264 = vld [vmem:[%s169 + $0xa08] sm:$0xff]
    %v9265 = vld [vmem:[%s169 + $0xa18] sm:$0xff]
    %v9266 = vld [vmem:[%s169 + $0xa28] sm:$0xff]
    %v9267 = vld [vmem:[%s169 + $0xa38] sm:$0xff]
    %v9268 = vld [vmem:[%s169 + $0xa48] sm:$0xff]
    %v9269 = vld [vmem:[%s169 + $0xa58] sm:$0xff]
    %v9270 = vld [vmem:[%s169 + $0xa68] sm:$0xff]
    %v9271 = vld [vmem:[%s169 + $0xa78] sm:$0xff]
    %v9272 = vld [vmem:[%s169 + $0xa88] sm:$0xff]
    %v9273 = vld [vmem:[%s169 + $0xa98] sm:$0xff]
    %v9274 = vld [vmem:[%s169 + $0xaa8] sm:$0xff]
    %v9275 = vld [vmem:[%s169 + $0xab8] sm:$0xff]
    %v9276 = vld [vmem:[%s169 + $0xac8] sm:$0xff]
    %v9277 = vld [vmem:[%s169 + $0xad8] sm:$0xff]
    %v9278 = vld [vmem:[%s169 + $0xae8] sm:$0xff]
    %v9279 = vld [vmem:[%s169 + $0xaf8] sm:$0xff]
    %v9280 = vld [vmem:[%s169 + $0xb08] sm:$0xff]
    %v9281 = vld [vmem:[%s169 + $0xb18] sm:$0xff]
    %v9282 = vld [vmem:[%s169 + $0xb28] sm:$0xff]
    %v9283 = vld [vmem:[%s169 + $0xb38] sm:$0xff]
    %v9284 = vld [vmem:[%s169 + $0xb48] sm:$0xff]
    %v9285 = vld [vmem:[%s169 + $0xb58] sm:$0xff]
    %v9286 = vld [vmem:[%s169 + $0xb68] sm:$0xff]
    %v9287 = vld [vmem:[%s169 + $0xb78] sm:$0xff]
    %v9288 = vld [vmem:[%s169 + $0xb88] sm:$0xff]
    %v9289 = vld [vmem:[%s169 + $0xb98] sm:$0xff]
    %v9290 = vld [vmem:[%s169 + $0xba8] sm:$0xff]
    %v9291 = vld [vmem:[%s169 + $0xbb8] sm:$0xff]
    %v9292 = vld [vmem:[%s169 + $0xbc8] sm:$0xff]
    %v9293 = vld [vmem:[%s169 + $0xbd8] sm:$0xff]
    %v9294 = vld [vmem:[%s169 + $0xbe8] sm:$0xff]
    %v9295 = vld [vmem:[%s169 + $0xbf8] sm:$0xff]
    %v9296 = vld [vmem:[%s169 + $0xc08] sm:$0xff]
    %v9297 = vld [vmem:[%s169 + $0xc18] sm:$0xff]
    %v9298 = vld [vmem:[%s169 + $0xc28] sm:$0xff]
    %v9299 = vld [vmem:[%s169 + $0xc38] sm:$0xff]
    %v9300 = vld [vmem:[%s169 + $0xc48] sm:$0xff]
    %v9301 = vld [vmem:[%s169 + $0xc58] sm:$0xff]
    %v9302 = vld [vmem:[%s169 + $0xc68] sm:$0xff]
    %v9303 = vld [vmem:[%s169 + $0xc78] sm:$0xff]
    %v9304 = vld [vmem:[%s169 + $0xc88] sm:$0xff]
    %v9305 = vld [vmem:[%s169 + $0xc98] sm:$0xff]
    %v9306 = vld [vmem:[%s169 + $0xca8] sm:$0xff]
    %v9307 = vld [vmem:[%s169 + $0xcb8] sm:$0xff]
    %v9308 = vld [vmem:[%s169 + $0xcc8] sm:$0xff]
    %v9309 = vld [vmem:[%s169 + $0xcd8] sm:$0xff]
    %v9310 = vld [vmem:[%s169 + $0xce8] sm:$0xff]
    %v9311 = vld [vmem:[%s169 + $0xcf8] sm:$0xff]
    %v9312 = vld [vmem:[%s169 + $0xd08] sm:$0xff]
    %v9313 = vld [vmem:[%s169 + $0xd18] sm:$0xff]
    %v9314 = vld [vmem:[%s169 + $0xd28] sm:$0xff]
    %v9315 = vld [vmem:[%s169 + $0xd38] sm:$0xff]
    %v9316 = vld [vmem:[%s169 + $0xd48] sm:$0xff]
    %v9317 = vld [vmem:[%s169 + $0xd58] sm:$0xff]
    %v9318 = vld [vmem:[%s169 + $0xd68] sm:$0xff]
    %v9319 = vld [vmem:[%s169 + $0xd78] sm:$0xff]
    %v9320 = vld [vmem:[%s169 + $0xd88] sm:$0xff]
    %v9321 = vld [vmem:[%s169 + $0xd98] sm:$0xff]
    %v9322 = vld [vmem:[%s169 + $0xda8] sm:$0xff]
    %v9323 = vld [vmem:[%s169 + $0xdb8] sm:$0xff]
    %v9324 = vld [vmem:[%s169 + $0xdc8] sm:$0xff]
    %v9325 = vld [vmem:[%s169 + $0xdd8] sm:$0xff]
    %v9326 = vld [vmem:[%s169 + $0xde8] sm:$0xff]
    %v9327 = vld [vmem:[%s169 + $0xdf8] sm:$0xff]
    %v9328 = vld [vmem:[%s169 + $0xe08] sm:$0xff]
    %v9329 = vld [vmem:[%s169 + $0xe18] sm:$0xff]
    %v9330 = vld [vmem:[%s169 + $0xe28] sm:$0xff]
    %v9331 = vld [vmem:[%s169 + $0xe38] sm:$0xff]
    %v9332 = vld [vmem:[%s169 + $0xe48] sm:$0xff]
    %v9333 = vld [vmem:[%s169 + $0xe58] sm:$0xff]
    %v9334 = vld [vmem:[%s169 + $0xe68] sm:$0xff]
    %v9335 = vld [vmem:[%s169 + $0xe78] sm:$0xff]
    %v9336 = vld [vmem:[%s169 + $0xe88] sm:$0xff]
    %v9337 = vld [vmem:[%s169 + $0xe98] sm:$0xff]
    %v9338 = vld [vmem:[%s169 + $0xea8] sm:$0xff]
    %v9339 = vld [vmem:[%s169 + $0xeb8] sm:$0xff]
    %v9340 = vld [vmem:[%s169 + $0xec8] sm:$0xff]
    %v9341 = vld [vmem:[%s169 + $0xed8] sm:$0xff]
    %v9342 = vld [vmem:[%s169 + $0xee8] sm:$0xff]
    %v9343 = vld [vmem:[%s169 + $0xef8] sm:$0xff]
    %v9344 = vld [vmem:[%s169 + $0xf08] sm:$0xff]
    %v9345 = vld [vmem:[%s169 + $0xf18] sm:$0xff]
    %v9346 = vld [vmem:[%s169 + $0xf28] sm:$0xff]
    %v9347 = vld [vmem:[%s169 + $0xf38] sm:$0xff]
    %v9348 = vld [vmem:[%s169 + $0xf48] sm:$0xff]
    %v9349 = vld [vmem:[%s169 + $0xf58] sm:$0xff]
    %v9350 = vld [vmem:[%s169 + $0xf68] sm:$0xff]
    %v9351 = vld [vmem:[%s169 + $0xf78] sm:$0xff]
    %v9352 = vld [vmem:[%s169 + $0xf88] sm:$0xff]
    %v9353 = vld [vmem:[%s169 + $0xf98] sm:$0xff]
    %v9354 = vld [vmem:[%s169 + $0xfa8] sm:$0xff]
    %v9355 = vld [vmem:[%s169 + $0xfb8] sm:$0xff]
    %v9356 = vld [vmem:[%s169 + $0xfc8] sm:$0xff]
    %v9357 = vld [vmem:[%s169 + $0xfd8] sm:$0xff]
    %v9358 = vld [vmem:[%s169 + $0xfe8] sm:$0xff]
    %v9359 = vld [vmem:[%s169 + $0xff8] sm:$0xff]
    %v9360 = vld [vmem:[#allocation13 + $0x6] sm:$0x3]
    %v9362 = vlaneseq
    %v9363 = vshrl.u32 %v9362, 7
    %v9364 = vsub.s32 0, %v9363
    %v9365 = vrot.slane %v9360, %v9364
    %v9366 = vlaneseq
    %v9367 = vshrl.u32 %v9366, 7
    %v9368 = vsub.s32 1, %v9367
    %v9369 = vrot.slane %v9360, %v9368
    %v9628 = vunpack.c.l.b16 %v9104
    %v9629 = vunpack.c.h.b16 %v9104
    %v9630 = vunpack.c.l.b16 %v9105
    %v9631 = vunpack.c.h.b16 %v9105
    %v9632 = vunpack.c.l.b16 %v9106
    %v9633 = vunpack.c.h.b16 %v9106
    %v9634 = vunpack.c.l.b16 %v9107
    %v9635 = vunpack.c.h.b16 %v9107
    %v9636 = vunpack.c.l.b16 %v9108
    %v9637 = vunpack.c.h.b16 %v9108
    %v9638 = vunpack.c.l.b16 %v9109
    %v9639 = vunpack.c.h.b16 %v9109
    %v9640 = vunpack.c.l.b16 %v9110
    %v9641 = vunpack.c.h.b16 %v9110
    %v9642 = vunpack.c.l.b16 %v9111
    %v9643 = vunpack.c.h.b16 %v9111
    %v9644 = vunpack.c.l.b16 %v9112
    %v9645 = vunpack.c.h.b16 %v9112
    %v9646 = vunpack.c.l.b16 %v9113
    %v9647 = vunpack.c.h.b16 %v9113
    %v9648 = vunpack.c.l.b16 %v9114
    %v9649 = vunpack.c.h.b16 %v9114
    %v9650 = vunpack.c.l.b16 %v9115
    %v9651 = vunpack.c.h.b16 %v9115
    %v9652 = vunpack.c.l.b16 %v9116
    %v9653 = vunpack.c.h.b16 %v9116
    %v9654 = vunpack.c.l.b16 %v9117
    %v9655 = vunpack.c.h.b16 %v9117
    %v9656 = vunpack.c.l.b16 %v9118
    %v9657 = vunpack.c.h.b16 %v9118
    %v9658 = vunpack.c.l.b16 %v9119
    %v9659 = vunpack.c.h.b16 %v9119
    %v9660 = vunpack.c.l.b16 %v9120
    %v9661 = vunpack.c.h.b16 %v9120
    %v9662 = vunpack.c.l.b16 %v9121
    %v9663 = vunpack.c.h.b16 %v9121
    %v9664 = vunpack.c.l.b16 %v9122
    %v9665 = vunpack.c.h.b16 %v9122
    %v9666 = vunpack.c.l.b16 %v9123
    %v9667 = vunpack.c.h.b16 %v9123
    %v9668 = vunpack.c.l.b16 %v9124
    %v9669 = vunpack.c.h.b16 %v9124
    %v9670 = vunpack.c.l.b16 %v9125
    %v9671 = vunpack.c.h.b16 %v9125
    %v9672 = vunpack.c.l.b16 %v9126
    %v9673 = vunpack.c.h.b16 %v9126
    %v9674 = vunpack.c.l.b16 %v9127
    %v9675 = vunpack.c.h.b16 %v9127
    %v9676 = vunpack.c.l.b16 %v9128
    %v9677 = vunpack.c.h.b16 %v9128
    %v9678 = vunpack.c.l.b16 %v9129
    %v9679 = vunpack.c.h.b16 %v9129
    %v9680 = vunpack.c.l.b16 %v9130
    %v9681 = vunpack.c.h.b16 %v9130
    %v9682 = vunpack.c.l.b16 %v9131
    %v9683 = vunpack.c.h.b16 %v9131
    %v9684 = vunpack.c.l.b16 %v9132
    %v9685 = vunpack.c.h.b16 %v9132
    %v9686 = vunpack.c.l.b16 %v9133
    %v9687 = vunpack.c.h.b16 %v9133
    %v9688 = vunpack.c.l.b16 %v9134
    %v9689 = vunpack.c.h.b16 %v9134
    %v9690 = vunpack.c.l.b16 %v9135
    %v9691 = vunpack.c.h.b16 %v9135
    %v9692 = vunpack.c.l.b16 %v9136
    %v9693 = vunpack.c.h.b16 %v9136
    %v9694 = vunpack.c.l.b16 %v9137
    %v9695 = vunpack.c.h.b16 %v9137
    %v9696 = vunpack.c.l.b16 %v9138
    %v9697 = vunpack.c.h.b16 %v9138
    %v9698 = vunpack.c.l.b16 %v9139
    %v9699 = vunpack.c.h.b16 %v9139
    %v9700 = vunpack.c.l.b16 %v9140
    %v9701 = vunpack.c.h.b16 %v9140
    %v9702 = vunpack.c.l.b16 %v9141
    %v9703 = vunpack.c.h.b16 %v9141
    %v9704 = vunpack.c.l.b16 %v9142
    %v9705 = vunpack.c.h.b16 %v9142
    %v9706 = vunpack.c.l.b16 %v9143
    %v9707 = vunpack.c.h.b16 %v9143
    %v9708 = vunpack.c.l.b16 %v9144
    %v9709 = vunpack.c.h.b16 %v9144
    %v9710 = vunpack.c.l.b16 %v9145
    %v9711 = vunpack.c.h.b16 %v9145
    %v9712 = vunpack.c.l.b16 %v9146
    %v9713 = vunpack.c.h.b16 %v9146
    %v9714 = vunpack.c.l.b16 %v9147
    %v9715 = vunpack.c.h.b16 %v9147
    %v9716 = vunpack.c.l.b16 %v9148
    %v9717 = vunpack.c.h.b16 %v9148
    %v9718 = vunpack.c.l.b16 %v9149
    %v9719 = vunpack.c.h.b16 %v9149
    %v9720 = vunpack.c.l.b16 %v9150
    %v9721 = vunpack.c.h.b16 %v9150
    %v9722 = vunpack.c.l.b16 %v9151
    %v9723 = vunpack.c.h.b16 %v9151
    %v9724 = vunpack.c.l.b16 %v9152
    %v9725 = vunpack.c.h.b16 %v9152
    %v9726 = vunpack.c.l.b16 %v9153
    %v9727 = vunpack.c.h.b16 %v9153
    %v9728 = vunpack.c.l.b16 %v9154
    %v9729 = vunpack.c.h.b16 %v9154
    %v9730 = vunpack.c.l.b16 %v9155
    %v9731 = vunpack.c.h.b16 %v9155
    %v9732 = vunpack.c.l.b16 %v9156
    %v9733 = vunpack.c.h.b16 %v9156
    %v9734 = vunpack.c.l.b16 %v9157
    %v9735 = vunpack.c.h.b16 %v9157
    %v9736 = vunpack.c.l.b16 %v9158
    %v9737 = vunpack.c.h.b16 %v9158
    %v9738 = vunpack.c.l.b16 %v9159
    %v9739 = vunpack.c.h.b16 %v9159
    %v9740 = vunpack.c.l.b16 %v9160
    %v9741 = vunpack.c.h.b16 %v9160
    %v9742 = vunpack.c.l.b16 %v9161
    %v9743 = vunpack.c.h.b16 %v9161
    %v9744 = vunpack.c.l.b16 %v9162
    %v9745 = vunpack.c.h.b16 %v9162
    %v9746 = vunpack.c.l.b16 %v9163
    %v9747 = vunpack.c.h.b16 %v9163
    %v9748 = vunpack.c.l.b16 %v9164
    %v9749 = vunpack.c.h.b16 %v9164
    %v9750 = vunpack.c.l.b16 %v9165
    %v9751 = vunpack.c.h.b16 %v9165
    %v9752 = vunpack.c.l.b16 %v9166
    %v9753 = vunpack.c.h.b16 %v9166
    %v9754 = vunpack.c.l.b16 %v9167
    %v9755 = vunpack.c.h.b16 %v9167
    %v9756 = vunpack.c.l.b16 %v9168
    %v9757 = vunpack.c.h.b16 %v9168
    %v9758 = vunpack.c.l.b16 %v9169
    %v9759 = vunpack.c.h.b16 %v9169
    %v9760 = vunpack.c.l.b16 %v9170
    %v9761 = vunpack.c.h.b16 %v9170
    %v9762 = vunpack.c.l.b16 %v9171
    %v9763 = vunpack.c.h.b16 %v9171
    %v9764 = vunpack.c.l.b16 %v9172
    %v9765 = vunpack.c.h.b16 %v9172
    %v9766 = vunpack.c.l.b16 %v9173
    %v9767 = vunpack.c.h.b16 %v9173
    %v9768 = vunpack.c.l.b16 %v9174
    %v9769 = vunpack.c.h.b16 %v9174
    %v9770 = vunpack.c.l.b16 %v9175
    %v9771 = vunpack.c.h.b16 %v9175
    %v9772 = vunpack.c.l.b16 %v9176
    %v9773 = vunpack.c.h.b16 %v9176
    %v9774 = vunpack.c.l.b16 %v9177
    %v9775 = vunpack.c.h.b16 %v9177
    %v9776 = vunpack.c.l.b16 %v9178
    %v9777 = vunpack.c.h.b16 %v9178
    %v9778 = vunpack.c.l.b16 %v9179
    %v9779 = vunpack.c.h.b16 %v9179
    %v9780 = vunpack.c.l.b16 %v9180
    %v9781 = vunpack.c.h.b16 %v9180
    %v9782 = vunpack.c.l.b16 %v9181
    %v9783 = vunpack.c.h.b16 %v9181
    %v9784 = vunpack.c.l.b16 %v9182
    %v9785 = vunpack.c.h.b16 %v9182
    %v9786 = vunpack.c.l.b16 %v9183
    %v9787 = vunpack.c.h.b16 %v9183
    %v9788 = vunpack.c.l.b16 %v9184
    %v9789 = vunpack.c.h.b16 %v9184
    %v9790 = vunpack.c.l.b16 %v9185
    %v9791 = vunpack.c.h.b16 %v9185
    %v9792 = vunpack.c.l.b16 %v9186
    %v9793 = vunpack.c.h.b16 %v9186
    %v9794 = vunpack.c.l.b16 %v9187
    %v9795 = vunpack.c.h.b16 %v9187
    %v9796 = vunpack.c.l.b16 %v9188
    %v9797 = vunpack.c.h.b16 %v9188
    %v9798 = vunpack.c.l.b16 %v9189
    %v9799 = vunpack.c.h.b16 %v9189
    %v9800 = vunpack.c.l.b16 %v9190
    %v9801 = vunpack.c.h.b16 %v9190
    %v9802 = vunpack.c.l.b16 %v9191
    %v9803 = vunpack.c.h.b16 %v9191
    %v9804 = vunpack.c.l.b16 %v9192
    %v9805 = vunpack.c.h.b16 %v9192
    %v9806 = vunpack.c.l.b16 %v9193
    %v9807 = vunpack.c.h.b16 %v9193
    %v9808 = vunpack.c.l.b16 %v9194
    %v9809 = vunpack.c.h.b16 %v9194
    %v9810 = vunpack.c.l.b16 %v9195
    %v9811 = vunpack.c.h.b16 %v9195
    %v9812 = vunpack.c.l.b16 %v9196
    %v9813 = vunpack.c.h.b16 %v9196
    %v9814 = vunpack.c.l.b16 %v9197
    %v9815 = vunpack.c.h.b16 %v9197
    %v9816 = vunpack.c.l.b16 %v9198
    %v9817 = vunpack.c.h.b16 %v9198
    %v9818 = vunpack.c.l.b16 %v9199
    %v9819 = vunpack.c.h.b16 %v9199
    %v9820 = vunpack.c.l.b16 %v9200
    %v9821 = vunpack.c.h.b16 %v9200
    %v9822 = vunpack.c.l.b16 %v9201
    %v9823 = vunpack.c.h.b16 %v9201
    %v9824 = vunpack.c.l.b16 %v9202
    %v9825 = vunpack.c.h.b16 %v9202
    %v9826 = vunpack.c.l.b16 %v9203
    %v9827 = vunpack.c.h.b16 %v9203
    %v9828 = vunpack.c.l.b16 %v9204
    %v9829 = vunpack.c.h.b16 %v9204
    %v9830 = vunpack.c.l.b16 %v9205
    %v9831 = vunpack.c.h.b16 %v9205
    %v9832 = vunpack.c.l.b16 %v9206
    %v9833 = vunpack.c.h.b16 %v9206
    %v9834 = vunpack.c.l.b16 %v9207
    %v9835 = vunpack.c.h.b16 %v9207
    %v9836 = vunpack.c.l.b16 %v9208
    %v9837 = vunpack.c.h.b16 %v9208
    %v9838 = vunpack.c.l.b16 %v9209
    %v9839 = vunpack.c.h.b16 %v9209
    %v9840 = vunpack.c.l.b16 %v9210
    %v9841 = vunpack.c.h.b16 %v9210
    %v9842 = vunpack.c.l.b16 %v9211
    %v9843 = vunpack.c.h.b16 %v9211
    %v9844 = vunpack.c.l.b16 %v9212
    %v9845 = vunpack.c.h.b16 %v9212
    %v9846 = vunpack.c.l.b16 %v9213
    %v9847 = vunpack.c.h.b16 %v9213
    %v9848 = vunpack.c.l.b16 %v9214
    %v9849 = vunpack.c.h.b16 %v9214
    %v9850 = vunpack.c.l.b16 %v9215
    %v9851 = vunpack.c.h.b16 %v9215
    %v9852 = vunpack.c.l.b16 %v9216
    %v9853 = vunpack.c.h.b16 %v9216
    %v9854 = vunpack.c.l.b16 %v9217
    %v9855 = vunpack.c.h.b16 %v9217
    %v9856 = vunpack.c.l.b16 %v9218
    %v9857 = vunpack.c.h.b16 %v9218
    %v9858 = vunpack.c.l.b16 %v9219
    %v9859 = vunpack.c.h.b16 %v9219
    %v9860 = vunpack.c.l.b16 %v9220
    %v9861 = vunpack.c.h.b16 %v9220
    %v9862 = vunpack.c.l.b16 %v9221
    %v9863 = vunpack.c.h.b16 %v9221
    %v9864 = vunpack.c.l.b16 %v9222
    %v9865 = vunpack.c.h.b16 %v9222
    %v9866 = vunpack.c.l.b16 %v9223
    %v9867 = vunpack.c.h.b16 %v9223
    %v9868 = vunpack.c.l.b16 %v9224
    %v9869 = vunpack.c.h.b16 %v9224
    %v9870 = vunpack.c.l.b16 %v9225
    %v9871 = vunpack.c.h.b16 %v9225
    %v9872 = vunpack.c.l.b16 %v9226
    %v9873 = vunpack.c.h.b16 %v9226
    %v9874 = vunpack.c.l.b16 %v9227
    %v9875 = vunpack.c.h.b16 %v9227
    %v9876 = vunpack.c.l.b16 %v9228
    %v9877 = vunpack.c.h.b16 %v9228
    %v9878 = vunpack.c.l.b16 %v9229
    %v9879 = vunpack.c.h.b16 %v9229
    %v9880 = vunpack.c.l.b16 %v9230
    %v9881 = vunpack.c.h.b16 %v9230
    %v9882 = vunpack.c.l.b16 %v9231
    %v9883 = vunpack.c.h.b16 %v9231
    %v9884 = vunpack.c.l.b16 %v9232
    %v9885 = vunpack.c.h.b16 %v9232
    %v9886 = vunpack.c.l.b16 %v9233
    %v9887 = vunpack.c.h.b16 %v9233
    %v9888 = vunpack.c.l.b16 %v9234
    %v9889 = vunpack.c.h.b16 %v9234
    %v9890 = vunpack.c.l.b16 %v9235
    %v9891 = vunpack.c.h.b16 %v9235
    %v9892 = vunpack.c.l.b16 %v9236
    %v9893 = vunpack.c.h.b16 %v9236
    %v9894 = vunpack.c.l.b16 %v9237
    %v9895 = vunpack.c.h.b16 %v9237
    %v9896 = vunpack.c.l.b16 %v9238
    %v9897 = vunpack.c.h.b16 %v9238
    %v9898 = vunpack.c.l.b16 %v9239
    %v9899 = vunpack.c.h.b16 %v9239
    %v9900 = vunpack.c.l.b16 %v9240
    %v9901 = vunpack.c.h.b16 %v9240
    %v9902 = vunpack.c.l.b16 %v9241
    %v9903 = vunpack.c.h.b16 %v9241
    %v9904 = vunpack.c.l.b16 %v9242
    %v9905 = vunpack.c.h.b16 %v9242
    %v9906 = vunpack.c.l.b16 %v9243
    %v9907 = vunpack.c.h.b16 %v9243
    %v9908 = vunpack.c.l.b16 %v9244
    %v9909 = vunpack.c.h.b16 %v9244
    %v9910 = vunpack.c.l.b16 %v9245
    %v9911 = vunpack.c.h.b16 %v9245
    %v9912 = vunpack.c.l.b16 %v9246
    %v9913 = vunpack.c.h.b16 %v9246
    %v9914 = vunpack.c.l.b16 %v9247
    %v9915 = vunpack.c.h.b16 %v9247
    %v9916 = vunpack.c.l.b16 %v9248
    %v9917 = vunpack.c.h.b16 %v9248
    %v9918 = vunpack.c.l.b16 %v9249
    %v9919 = vunpack.c.h.b16 %v9249
    %v9920 = vunpack.c.l.b16 %v9250
    %v9921 = vunpack.c.h.b16 %v9250
    %v9922 = vunpack.c.l.b16 %v9251
    %v9923 = vunpack.c.h.b16 %v9251
    %v9924 = vunpack.c.l.b16 %v9252
    %v9925 = vunpack.c.h.b16 %v9252
    %v9926 = vunpack.c.l.b16 %v9253
    %v9927 = vunpack.c.h.b16 %v9253
    %v9928 = vunpack.c.l.b16 %v9254
    %v9929 = vunpack.c.h.b16 %v9254
    %v9930 = vunpack.c.l.b16 %v9255
    %v9931 = vunpack.c.h.b16 %v9255
    %v9932 = vunpack.c.l.b16 %v9256
    %v9933 = vunpack.c.h.b16 %v9256
    %v9934 = vunpack.c.l.b16 %v9257
    %v9935 = vunpack.c.h.b16 %v9257
    %v9936 = vunpack.c.l.b16 %v9258
    %v9937 = vunpack.c.h.b16 %v9258
    %v9938 = vunpack.c.l.b16 %v9259
    %v9939 = vunpack.c.h.b16 %v9259
    %v9940 = vunpack.c.l.b16 %v9260
    %v9941 = vunpack.c.h.b16 %v9260
    %v9942 = vunpack.c.l.b16 %v9261
    %v9943 = vunpack.c.h.b16 %v9261
    %v9944 = vunpack.c.l.b16 %v9262
    %v9945 = vunpack.c.h.b16 %v9262
    %v9946 = vunpack.c.l.b16 %v9263
    %v9947 = vunpack.c.h.b16 %v9263
    %v9948 = vunpack.c.l.b16 %v9264
    %v9949 = vunpack.c.h.b16 %v9264
    %v9950 = vunpack.c.l.b16 %v9265
    %v9951 = vunpack.c.h.b16 %v9265
    %v9952 = vunpack.c.l.b16 %v9266
    %v9953 = vunpack.c.h.b16 %v9266
    %v9954 = vunpack.c.l.b16 %v9267
    %v9955 = vunpack.c.h.b16 %v9267
    %v9956 = vunpack.c.l.b16 %v9268
    %v9957 = vunpack.c.h.b16 %v9268
    %v9958 = vunpack.c.l.b16 %v9269
    %v9959 = vunpack.c.h.b16 %v9269
    %v9960 = vunpack.c.l.b16 %v9270
    %v9961 = vunpack.c.h.b16 %v9270
    %v9962 = vunpack.c.l.b16 %v9271
    %v9963 = vunpack.c.h.b16 %v9271
    %v9964 = vunpack.c.l.b16 %v9272
    %v9965 = vunpack.c.h.b16 %v9272
    %v9966 = vunpack.c.l.b16 %v9273
    %v9967 = vunpack.c.h.b16 %v9273
    %v9968 = vunpack.c.l.b16 %v9274
    %v9969 = vunpack.c.h.b16 %v9274
    %v9970 = vunpack.c.l.b16 %v9275
    %v9971 = vunpack.c.h.b16 %v9275
    %v9972 = vunpack.c.l.b16 %v9276
    %v9973 = vunpack.c.h.b16 %v9276
    %v9974 = vunpack.c.l.b16 %v9277
    %v9975 = vunpack.c.h.b16 %v9277
    %v9976 = vunpack.c.l.b16 %v9278
    %v9977 = vunpack.c.h.b16 %v9278
    %v9978 = vunpack.c.l.b16 %v9279
    %v9979 = vunpack.c.h.b16 %v9279
    %v9980 = vunpack.c.l.b16 %v9280
    %v9981 = vunpack.c.h.b16 %v9280
    %v9982 = vunpack.c.l.b16 %v9281
    %v9983 = vunpack.c.h.b16 %v9281
    %v9984 = vunpack.c.l.b16 %v9282
    %v9985 = vunpack.c.h.b16 %v9282
    %v9986 = vunpack.c.l.b16 %v9283
    %v9987 = vunpack.c.h.b16 %v9283
    %v9988 = vunpack.c.l.b16 %v9284
    %v9989 = vunpack.c.h.b16 %v9284
    %v9990 = vunpack.c.l.b16 %v9285
    %v9991 = vunpack.c.h.b16 %v9285
    %v9992 = vunpack.c.l.b16 %v9286
    %v9993 = vunpack.c.h.b16 %v9286
    %v9994 = vunpack.c.l.b16 %v9287
    %v9995 = vunpack.c.h.b16 %v9287
    %v9996 = vunpack.c.l.b16 %v9288
    %v9997 = vunpack.c.h.b16 %v9288
    %v9998 = vunpack.c.l.b16 %v9289
    %v9999 = vunpack.c.h.b16 %v9289
    %v10000 = vunpack.c.l.b16 %v9290
    %v10001 = vunpack.c.h.b16 %v9290
    %v10002 = vunpack.c.l.b16 %v9291
    %v10003 = vunpack.c.h.b16 %v9291
    %v10004 = vunpack.c.l.b16 %v9292
    %v10005 = vunpack.c.h.b16 %v9292
    %v10006 = vunpack.c.l.b16 %v9293
    %v10007 = vunpack.c.h.b16 %v9293
    %v10008 = vunpack.c.l.b16 %v9294
    %v10009 = vunpack.c.h.b16 %v9294
    %v10010 = vunpack.c.l.b16 %v9295
    %v10011 = vunpack.c.h.b16 %v9295
    %v10012 = vunpack.c.l.b16 %v9296
    %v10013 = vunpack.c.h.b16 %v9296
    %v10014 = vunpack.c.l.b16 %v9297
    %v10015 = vunpack.c.h.b16 %v9297
    %v10016 = vunpack.c.l.b16 %v9298
    %v10017 = vunpack.c.h.b16 %v9298
    %v10018 = vunpack.c.l.b16 %v9299
    %v10019 = vunpack.c.h.b16 %v9299
    %v10020 = vunpack.c.l.b16 %v9300
    %v10021 = vunpack.c.h.b16 %v9300
    %v10022 = vunpack.c.l.b16 %v9301
    %v10023 = vunpack.c.h.b16 %v9301
    %v10024 = vunpack.c.l.b16 %v9302
    %v10025 = vunpack.c.h.b16 %v9302
    %v10026 = vunpack.c.l.b16 %v9303
    %v10027 = vunpack.c.h.b16 %v9303
    %v10028 = vunpack.c.l.b16 %v9304
    %v10029 = vunpack.c.h.b16 %v9304
    %v10030 = vunpack.c.l.b16 %v9305
    %v10031 = vunpack.c.h.b16 %v9305
    %v10032 = vunpack.c.l.b16 %v9306
    %v10033 = vunpack.c.h.b16 %v9306
    %v10034 = vunpack.c.l.b16 %v9307
    %v10035 = vunpack.c.h.b16 %v9307
    %v10036 = vunpack.c.l.b16 %v9308
    %v10037 = vunpack.c.h.b16 %v9308
    %v10038 = vunpack.c.l.b16 %v9309
    %v10039 = vunpack.c.h.b16 %v9309
    %v10040 = vunpack.c.l.b16 %v9310
    %v10041 = vunpack.c.h.b16 %v9310
    %v10042 = vunpack.c.l.b16 %v9311
    %v10043 = vunpack.c.h.b16 %v9311
    %v10044 = vunpack.c.l.b16 %v9312
    %v10045 = vunpack.c.h.b16 %v9312
    %v10046 = vunpack.c.l.b16 %v9313
    %v10047 = vunpack.c.h.b16 %v9313
    %v10048 = vunpack.c.l.b16 %v9314
    %v10049 = vunpack.c.h.b16 %v9314
    %v10050 = vunpack.c.l.b16 %v9315
    %v10051 = vunpack.c.h.b16 %v9315
    %v10052 = vunpack.c.l.b16 %v9316
    %v10053 = vunpack.c.h.b16 %v9316
    %v10054 = vunpack.c.l.b16 %v9317
    %v10055 = vunpack.c.h.b16 %v9317
    %v10056 = vunpack.c.l.b16 %v9318
    %v10057 = vunpack.c.h.b16 %v9318
    %v10058 = vunpack.c.l.b16 %v9319
    %v10059 = vunpack.c.h.b16 %v9319
    %v10060 = vunpack.c.l.b16 %v9320
    %v10061 = vunpack.c.h.b16 %v9320
    %v10062 = vunpack.c.l.b16 %v9321
    %v10063 = vunpack.c.h.b16 %v9321
    %v10064 = vunpack.c.l.b16 %v9322
    %v10065 = vunpack.c.h.b16 %v9322
    %v10066 = vunpack.c.l.b16 %v9323
    %v10067 = vunpack.c.h.b16 %v9323
    %v10068 = vunpack.c.l.b16 %v9324
    %v10069 = vunpack.c.h.b16 %v9324
    %v10070 = vunpack.c.l.b16 %v9325
    %v10071 = vunpack.c.h.b16 %v9325
    %v10072 = vunpack.c.l.b16 %v9326
    %v10073 = vunpack.c.h.b16 %v9326
    %v10074 = vunpack.c.l.b16 %v9327
    %v10075 = vunpack.c.h.b16 %v9327
    %v10076 = vunpack.c.l.b16 %v9328
    %v10077 = vunpack.c.h.b16 %v9328
    %v10078 = vunpack.c.l.b16 %v9329
    %v10079 = vunpack.c.h.b16 %v9329
    %v10080 = vunpack.c.l.b16 %v9330
    %v10081 = vunpack.c.h.b16 %v9330
    %v10082 = vunpack.c.l.b16 %v9331
    %v10083 = vunpack.c.h.b16 %v9331
    %v10084 = vunpack.c.l.b16 %v9332
    %v10085 = vunpack.c.h.b16 %v9332
    %v10086 = vunpack.c.l.b16 %v9333
    %v10087 = vunpack.c.h.b16 %v9333
    %v10088 = vunpack.c.l.b16 %v9334
    %v10089 = vunpack.c.h.b16 %v9334
    %v10090 = vunpack.c.l.b16 %v9335
    %v10091 = vunpack.c.h.b16 %v9335
    %v10092 = vunpack.c.l.b16 %v9336
    %v10093 = vunpack.c.h.b16 %v9336
    %v10094 = vunpack.c.l.b16 %v9337
    %v10095 = vunpack.c.h.b16 %v9337
    %v10096 = vunpack.c.l.b16 %v9338
    %v10097 = vunpack.c.h.b16 %v9338
    %v10098 = vunpack.c.l.b16 %v9339
    %v10099 = vunpack.c.h.b16 %v9339
    %v10100 = vunpack.c.l.b16 %v9340
    %v10101 = vunpack.c.h.b16 %v9340
    %v10102 = vunpack.c.l.b16 %v9341
    %v10103 = vunpack.c.h.b16 %v9341
    %v10104 = vunpack.c.l.b16 %v9342
    %v10105 = vunpack.c.h.b16 %v9342
    %v10106 = vunpack.c.l.b16 %v9343
    %v10107 = vunpack.c.h.b16 %v9343
    %v10108 = vunpack.c.l.b16 %v9344
    %v10109 = vunpack.c.h.b16 %v9344
    %v10110 = vunpack.c.l.b16 %v9345
    %v10111 = vunpack.c.h.b16 %v9345
    %v10112 = vunpack.c.l.b16 %v9346
    %v10113 = vunpack.c.h.b16 %v9346
    %v10114 = vunpack.c.l.b16 %v9347
    %v10115 = vunpack.c.h.b16 %v9347
    %v10116 = vunpack.c.l.b16 %v9348
    %v10117 = vunpack.c.h.b16 %v9348
    %v10118 = vunpack.c.l.b16 %v9349
    %v10119 = vunpack.c.h.b16 %v9349
    %v10120 = vunpack.c.l.b16 %v9350
    %v10121 = vunpack.c.h.b16 %v9350
    %v10122 = vunpack.c.l.b16 %v9351
    %v10123 = vunpack.c.h.b16 %v9351
    %v10124 = vunpack.c.l.b16 %v9352
    %v10125 = vunpack.c.h.b16 %v9352
    %v10126 = vunpack.c.l.b16 %v9353
    %v10127 = vunpack.c.h.b16 %v9353
    %v10128 = vunpack.c.l.b16 %v9354
    %v10129 = vunpack.c.h.b16 %v9354
    %v10130 = vunpack.c.l.b16 %v9355
    %v10131 = vunpack.c.h.b16 %v9355
    %v10132 = vunpack.c.l.b16 %v9356
    %v10133 = vunpack.c.h.b16 %v9356
    %v10134 = vunpack.c.l.b16 %v9357
    %v10135 = vunpack.c.h.b16 %v9357
    %v10136 = vunpack.c.l.b16 %v9358
    %v10137 = vunpack.c.h.b16 %v9358
    %v10138 = vunpack.c.l.b16 %v9359
    %v10139 = vunpack.c.h.b16 %v9359
    %v10140 = vpack.c.b16 %v9630, %v9628
    %v10141 = vpack.c.b16 %v9631, %v9629
    %v10142 = vpack.c.b16 %v9634, %v9632
    %v10143 = vpack.c.b16 %v9635, %v9633
    %v10144 = vpack.c.b16 %v9638, %v9636
    %v10145 = vpack.c.b16 %v9639, %v9637
    %v10146 = vpack.c.b16 %v9642, %v9640
    %v10147 = vpack.c.b16 %v9643, %v9641
    %v10148 = vpack.c.b16 %v9646, %v9644
    %v10149 = vpack.c.b16 %v9647, %v9645
    %v10150 = vpack.c.b16 %v9650, %v9648
    %v10151 = vpack.c.b16 %v9651, %v9649
    %v10152 = vpack.c.b16 %v9654, %v9652
    %v10153 = vpack.c.b16 %v9655, %v9653
    %v10154 = vpack.c.b16 %v9658, %v9656
    %v10155 = vpack.c.b16 %v9659, %v9657
    %v10156 = vpack.c.b16 %v9662, %v9660
    %v10157 = vpack.c.b16 %v9663, %v9661
    %v10158 = vpack.c.b16 %v9666, %v9664
    %v10159 = vpack.c.b16 %v9667, %v9665
    %v10160 = vpack.c.b16 %v9670, %v9668
    %v10161 = vpack.c.b16 %v9671, %v9669
    %v10162 = vpack.c.b16 %v9674, %v9672
    %v10163 = vpack.c.b16 %v9675, %v9673
    %v10164 = vpack.c.b16 %v9678, %v9676
    %v10165 = vpack.c.b16 %v9679, %v9677
    %v10166 = vpack.c.b16 %v9682, %v9680
    %v10167 = vpack.c.b16 %v9683, %v9681
    %v10168 = vpack.c.b16 %v9686, %v9684
    %v10169 = vpack.c.b16 %v9687, %v9685
    %v10170 = vpack.c.b16 %v9690, %v9688
    %v10171 = vpack.c.b16 %v9691, %v9689
    %v10172 = vpack.c.b16 %v9694, %v9692
    %v10173 = vpack.c.b16 %v9695, %v9693
    %v10174 = vpack.c.b16 %v9698, %v9696
    %v10175 = vpack.c.b16 %v9699, %v9697
    %v10176 = vpack.c.b16 %v9702, %v9700
    %v10177 = vpack.c.b16 %v9703, %v9701
    %v10178 = vpack.c.b16 %v9706, %v9704
    %v10179 = vpack.c.b16 %v9707, %v9705
    %v10180 = vpack.c.b16 %v9710, %v9708
    %v10181 = vpack.c.b16 %v9711, %v9709
    %v10182 = vpack.c.b16 %v9714, %v9712
    %v10183 = vpack.c.b16 %v9715, %v9713
    %v10184 = vpack.c.b16 %v9718, %v9716
    %v10185 = vpack.c.b16 %v9719, %v9717
    %v10186 = vpack.c.b16 %v9722, %v9720
    %v10187 = vpack.c.b16 %v9723, %v9721
    %v10188 = vpack.c.b16 %v9726, %v9724
    %v10189 = vpack.c.b16 %v9727, %v9725
    %v10190 = vpack.c.b16 %v9730, %v9728
    %v10191 = vpack.c.b16 %v9731, %v9729
    %v10192 = vpack.c.b16 %v9734, %v9732
    %v10193 = vpack.c.b16 %v9735, %v9733
    %v10194 = vpack.c.b16 %v9738, %v9736
    %v10195 = vpack.c.b16 %v9739, %v9737
    %v10196 = vpack.c.b16 %v9742, %v9740
    %v10197 = vpack.c.b16 %v9743, %v9741
    %v10198 = vpack.c.b16 %v9746, %v9744
    %v10199 = vpack.c.b16 %v9747, %v9745
    %v10200 = vpack.c.b16 %v9750, %v9748
    %v10201 = vpack.c.b16 %v9751, %v9749
    %v10202 = vpack.c.b16 %v9754, %v9752
    %v10203 = vpack.c.b16 %v9755, %v9753
    %v10204 = vpack.c.b16 %v9758, %v9756
    %v10205 = vpack.c.b16 %v9759, %v9757
    %v10206 = vpack.c.b16 %v9762, %v9760
    %v10207 = vpack.c.b16 %v9763, %v9761
    %v10208 = vpack.c.b16 %v9766, %v9764
    %v10209 = vpack.c.b16 %v9767, %v9765
    %v10210 = vpack.c.b16 %v9770, %v9768
    %v10211 = vpack.c.b16 %v9771, %v9769
    %v10212 = vpack.c.b16 %v9774, %v9772
    %v10213 = vpack.c.b16 %v9775, %v9773
    %v10214 = vpack.c.b16 %v9778, %v9776
    %v10215 = vpack.c.b16 %v9779, %v9777
    %v10216 = vpack.c.b16 %v9782, %v9780
    %v10217 = vpack.c.b16 %v9783, %v9781
    %v10218 = vpack.c.b16 %v9786, %v9784
    %v10219 = vpack.c.b16 %v9787, %v9785
    %v10220 = vpack.c.b16 %v9790, %v9788
    %v10221 = vpack.c.b16 %v9791, %v9789
    %v10222 = vpack.c.b16 %v9794, %v9792
    %v10223 = vpack.c.b16 %v9795, %v9793
    %v10224 = vpack.c.b16 %v9798, %v9796
    %v10225 = vpack.c.b16 %v9799, %v9797
    %v10226 = vpack.c.b16 %v9802, %v9800
    %v10227 = vpack.c.b16 %v9803, %v9801
    %v10228 = vpack.c.b16 %v9806, %v9804
    %v10229 = vpack.c.b16 %v9807, %v9805
    %v10230 = vpack.c.b16 %v9810, %v9808
    %v10231 = vpack.c.b16 %v9811, %v9809
    %v10232 = vpack.c.b16 %v9814, %v9812
    %v10233 = vpack.c.b16 %v9815, %v9813
    %v10234 = vpack.c.b16 %v9818, %v9816
    %v10235 = vpack.c.b16 %v9819, %v9817
    %v10236 = vpack.c.b16 %v9822, %v9820
    %v10237 = vpack.c.b16 %v9823, %v9821
    %v10238 = vpack.c.b16 %v9826, %v9824
    %v10239 = vpack.c.b16 %v9827, %v9825
    %v10240 = vpack.c.b16 %v9830, %v9828
    %v10241 = vpack.c.b16 %v9831, %v9829
    %v10242 = vpack.c.b16 %v9834, %v9832
    %v10243 = vpack.c.b16 %v9835, %v9833
    %v10244 = vpack.c.b16 %v9838, %v9836
    %v10245 = vpack.c.b16 %v9839, %v9837
    %v10246 = vpack.c.b16 %v9842, %v9840
    %v10247 = vpack.c.b16 %v9843, %v9841
    %v10248 = vpack.c.b16 %v9846, %v9844
    %v10249 = vpack.c.b16 %v9847, %v9845
    %v10250 = vpack.c.b16 %v9850, %v9848
    %v10251 = vpack.c.b16 %v9851, %v9849
    %v10252 = vpack.c.b16 %v9854, %v9852
    %v10253 = vpack.c.b16 %v9855, %v9853
    %v10254 = vpack.c.b16 %v9858, %v9856
    %v10255 = vpack.c.b16 %v9859, %v9857
    %v10256 = vpack.c.b16 %v9862, %v9860
    %v10257 = vpack.c.b16 %v9863, %v9861
    %v10258 = vpack.c.b16 %v9866, %v9864
    %v10259 = vpack.c.b16 %v9867, %v9865
    %v10260 = vpack.c.b16 %v9870, %v9868
    %v10261 = vpack.c.b16 %v9871, %v9869
    %v10262 = vpack.c.b16 %v9874, %v9872
    %v10263 = vpack.c.b16 %v9875, %v9873
    %v10264 = vpack.c.b16 %v9878, %v9876
    %v10265 = vpack.c.b16 %v9879, %v9877
    %v10266 = vpack.c.b16 %v9882, %v9880
    %v10267 = vpack.c.b16 %v9883, %v9881
    %v10268 = vpack.c.b16 %v9886, %v9884
    %v10269 = vpack.c.b16 %v9887, %v9885
    %v10270 = vpack.c.b16 %v9890, %v9888
    %v10271 = vpack.c.b16 %v9891, %v9889
    %v10272 = vpack.c.b16 %v9894, %v9892
    %v10273 = vpack.c.b16 %v9895, %v9893
    %v10274 = vpack.c.b16 %v9898, %v9896
    %v10275 = vpack.c.b16 %v9899, %v9897
    %v10276 = vpack.c.b16 %v9902, %v9900
    %v10277 = vpack.c.b16 %v9903, %v9901
    %v10278 = vpack.c.b16 %v9906, %v9904
    %v10279 = vpack.c.b16 %v9907, %v9905
    %v10280 = vpack.c.b16 %v9910, %v9908
    %v10281 = vpack.c.b16 %v9911, %v9909
    %v10282 = vpack.c.b16 %v9914, %v9912
    %v10283 = vpack.c.b16 %v9915, %v9913
    %v10284 = vpack.c.b16 %v9918, %v9916
    %v10285 = vpack.c.b16 %v9919, %v9917
    %v10286 = vpack.c.b16 %v9922, %v9920
    %v10287 = vpack.c.b16 %v9923, %v9921
    %v10288 = vpack.c.b16 %v9926, %v9924
    %v10289 = vpack.c.b16 %v9927, %v9925
    %v10290 = vpack.c.b16 %v9930, %v9928
    %v10291 = vpack.c.b16 %v9931, %v9929
    %v10292 = vpack.c.b16 %v9934, %v9932
    %v10293 = vpack.c.b16 %v9935, %v9933
    %v10294 = vpack.c.b16 %v9938, %v9936
    %v10295 = vpack.c.b16 %v9939, %v9937
    %v10296 = vpack.c.b16 %v9942, %v9940
    %v10297 = vpack.c.b16 %v9943, %v9941
    %v10298 = vpack.c.b16 %v9946, %v9944
    %v10299 = vpack.c.b16 %v9947, %v9945
    %v10300 = vpack.c.b16 %v9950, %v9948
    %v10301 = vpack.c.b16 %v9951, %v9949
    %v10302 = vpack.c.b16 %v9954, %v9952
    %v10303 = vpack.c.b16 %v9955, %v9953
    %v10304 = vpack.c.b16 %v9958, %v9956
    %v10305 = vpack.c.b16 %v9959, %v9957
    %v10306 = vpack.c.b16 %v9962, %v9960
    %v10307 = vpack.c.b16 %v9963, %v9961
    %v10308 = vpack.c.b16 %v9966, %v9964
    %v10309 = vpack.c.b16 %v9967, %v9965
    %v10310 = vpack.c.b16 %v9970, %v9968
    %v10311 = vpack.c.b16 %v9971, %v9969
    %v10312 = vpack.c.b16 %v9974, %v9972
    %v10313 = vpack.c.b16 %v9975, %v9973
    %v10314 = vpack.c.b16 %v9978, %v9976
    %v10315 = vpack.c.b16 %v9979, %v9977
    %v10316 = vpack.c.b16 %v9982, %v9980
    %v10317 = vpack.c.b16 %v9983, %v9981
    %v10318 = vpack.c.b16 %v9986, %v9984
    %v10319 = vpack.c.b16 %v9987, %v9985
    %v10320 = vpack.c.b16 %v9990, %v9988
    %v10321 = vpack.c.b16 %v9991, %v9989
    %v10322 = vpack.c.b16 %v9994, %v9992
    %v10323 = vpack.c.b16 %v9995, %v9993
    %v10324 = vpack.c.b16 %v9998, %v9996
    %v10325 = vpack.c.b16 %v9999, %v9997
    %v10326 = vpack.c.b16 %v10002, %v10000
    %v10327 = vpack.c.b16 %v10003, %v10001
    %v10328 = vpack.c.b16 %v10006, %v10004
    %v10329 = vpack.c.b16 %v10007, %v10005
    %v10330 = vpack.c.b16 %v10010, %v10008
    %v10331 = vpack.c.b16 %v10011, %v10009
    %v10332 = vpack.c.b16 %v10014, %v10012
    %v10333 = vpack.c.b16 %v10015, %v10013
    %v10334 = vpack.c.b16 %v10018, %v10016
    %v10335 = vpack.c.b16 %v10019, %v10017
    %v10336 = vpack.c.b16 %v10022, %v10020
    %v10337 = vpack.c.b16 %v10023, %v10021
    %v10338 = vpack.c.b16 %v10026, %v10024
    %v10339 = vpack.c.b16 %v10027, %v10025
    %v10340 = vpack.c.b16 %v10030, %v10028
    %v10341 = vpack.c.b16 %v10031, %v10029
    %v10342 = vpack.c.b16 %v10034, %v10032
    %v10343 = vpack.c.b16 %v10035, %v10033
    %v10344 = vpack.c.b16 %v10038, %v10036
    %v10345 = vpack.c.b16 %v10039, %v10037
    %v10346 = vpack.c.b16 %v10042, %v10040
    %v10347 = vpack.c.b16 %v10043, %v10041
    %v10348 = vpack.c.b16 %v10046, %v10044
    %v10349 = vpack.c.b16 %v10047, %v10045
    %v10350 = vpack.c.b16 %v10050, %v10048
    %v10351 = vpack.c.b16 %v10051, %v10049
    %v10352 = vpack.c.b16 %v10054, %v10052
    %v10353 = vpack.c.b16 %v10055, %v10053
    %v10354 = vpack.c.b16 %v10058, %v10056
    %v10355 = vpack.c.b16 %v10059, %v10057
    %v10356 = vpack.c.b16 %v10062, %v10060
    %v10357 = vpack.c.b16 %v10063, %v10061
    %v10358 = vpack.c.b16 %v10066, %v10064
    %v10359 = vpack.c.b16 %v10067, %v10065
    %v10360 = vpack.c.b16 %v10070, %v10068
    %v10361 = vpack.c.b16 %v10071, %v10069
    %v10362 = vpack.c.b16 %v10074, %v10072
    %v10363 = vpack.c.b16 %v10075, %v10073
    %v10364 = vpack.c.b16 %v10078, %v10076
    %v10365 = vpack.c.b16 %v10079, %v10077
    %v10366 = vpack.c.b16 %v10082, %v10080
    %v10367 = vpack.c.b16 %v10083, %v10081
    %v10368 = vpack.c.b16 %v10086, %v10084
    %v10369 = vpack.c.b16 %v10087, %v10085
    %v10370 = vpack.c.b16 %v10090, %v10088
    %v10371 = vpack.c.b16 %v10091, %v10089
    %v10372 = vpack.c.b16 %v10094, %v10092
    %v10373 = vpack.c.b16 %v10095, %v10093
    %v10374 = vpack.c.b16 %v10098, %v10096
    %v10375 = vpack.c.b16 %v10099, %v10097
    %v10376 = vpack.c.b16 %v10102, %v10100
    %v10377 = vpack.c.b16 %v10103, %v10101
    %v10378 = vpack.c.b16 %v10106, %v10104
    %v10379 = vpack.c.b16 %v10107, %v10105
    %v10380 = vpack.c.b16 %v10110, %v10108
    %v10381 = vpack.c.b16 %v10111, %v10109
    %v10382 = vpack.c.b16 %v10114, %v10112
    %v10383 = vpack.c.b16 %v10115, %v10113
    %v10384 = vpack.c.b16 %v10118, %v10116
    %v10385 = vpack.c.b16 %v10119, %v10117
    %v10386 = vpack.c.b16 %v10122, %v10120
    %v10387 = vpack.c.b16 %v10123, %v10121
    %v10388 = vpack.c.b16 %v10126, %v10124
    %v10389 = vpack.c.b16 %v10127, %v10125
    %v10390 = vpack.c.b16 %v10130, %v10128
    %v10391 = vpack.c.b16 %v10131, %v10129
    %v10392 = vpack.c.b16 %v10134, %v10132
    %v10393 = vpack.c.b16 %v10135, %v10133
    %v10394 = vpack.c.b16 %v10138, %v10136
    %v10395 = vpack.c.b16 %v10139, %v10137
    %10652 = vmatprep.subr.bf16.mxu0 %v10155
    %10653 = vmatpush1.bf16.msra.mxu0 %v10154
    %10654 = vmatprep.subr.bf16.mxu0 %v10153
    %10655 = vmatpush1.bf16.msra.mxu0 %v10152
    %10656 = vmatprep.subr.bf16.mxu0 %v10151
    %10657 = vmatpush1.bf16.msra.mxu0 %v10150
    %10658 = vmatprep.subr.bf16.mxu0 %v10149
    %10659 = vmatpush1.bf16.msra.mxu0 %v10148
    %10660 = vmatprep.subr.bf16.mxu0 %v10147
    %10661 = vmatpush1.bf16.msra.mxu0 %v10146
    %10662 = vmatprep.subr.bf16.mxu0 %v10145
    %10663 = vmatpush1.bf16.msra.mxu0 %v10144
    %10664 = vmatprep.subr.bf16.mxu0 %v10143
    %10665 = vmatpush1.bf16.msra.mxu0 %v10142
    %10666 = vmatprep.subr.bf16.mxu0 %v10141
    %10667 = vmatpush1.bf16.msra.mxu0 %v10140
    %10668 = vmatprep.subr.bf16.mxu0 %v10171
    %10669 = vmatpush2.bf16.msra.mxu0 %v10170
    %10670 = vmatprep.subr.bf16.mxu0 %v10169
    %10671 = vmatpush2.bf16.msra.mxu0 %v10168
    %10672 = vmatprep.subr.bf16.mxu0 %v10167
    %10673 = vmatpush2.bf16.msra.mxu0 %v10166
    %10674 = vmatprep.subr.bf16.mxu0 %v10165
    %10675 = vmatpush2.bf16.msra.mxu0 %v10164
    %10676 = vmatprep.subr.bf16.mxu0 %v10163
    %10677 = vmatpush2.bf16.msra.mxu0 %v10162
    %10678 = vmatprep.subr.bf16.mxu0 %v10161
    %10679 = vmatpush2.bf16.msra.mxu0 %v10160
    %10680 = vmatprep.subr.bf16.mxu0 %v10159
    %10681 = vmatpush2.bf16.msra.mxu0 %v10158
    %10682 = vmatprep.subr.bf16.mxu0 %v10157
    %10683 = vmatpush2.bf16.msra.mxu0 %v10156
    %10684 = vmatprep.mubr.bf16.mxu0 %v3678
    %10685 = vmatmul.mubr.bf16.gmra.mxu0 %v3677
    %v10686 = vpop.f32.mrf.mxu0
    %v10687 = vadd.f32 %v9365, %v10686
    %v10688 = vpop.f32.mrf.mxu0
    %v10689 = vadd.f32 %v9369, %v10688
    %v10690 = vpop.f32.mrf.mxu0
    %v10691 = vpop.f32.mrf.mxu0
    %10692 = vdwg.mxu0
    %10693 = vmatprep.subr.bf16.mxu0 %v10187
    %10694 = vmatpush1.bf16.msra.mxu0 %v10186
    %10695 = vmatprep.subr.bf16.mxu0 %v10185
    %10696 = vmatpush1.bf16.msra.mxu0 %v10184
    %10697 = vmatprep.subr.bf16.mxu0 %v10183
    %10698 = vmatpush1.bf16.msra.mxu0 %v10182
    %10699 = vmatprep.subr.bf16.mxu0 %v10181
    %10700 = vmatpush1.bf16.msra.mxu0 %v10180
    %10701 = vmatprep.subr.bf16.mxu0 %v10179
    %10702 = vmatpush1.bf16.msra.mxu0 %v10178
    %10703 = vmatprep.subr.bf16.mxu0 %v10177
    %10704 = vmatpush1.bf16.msra.mxu0 %v10176
    %10705 = vmatprep.subr.bf16.mxu0 %v10175
    %10706 = vmatpush1.bf16.msra.mxu0 %v10174
    %10707 = vmatprep.subr.bf16.mxu0 %v10173
    %10708 = vmatpush1.bf16.msra.mxu0 %v10172
    %10709 = vmatprep.subr.bf16.mxu0 %v10203
    %10710 = vmatpush2.bf16.msra.mxu0 %v10202
    %10711 = vmatprep.subr.bf16.mxu0 %v10201
    %10712 = vmatpush2.bf16.msra.mxu0 %v10200
    %10713 = vmatprep.subr.bf16.mxu0 %v10199
    %10714 = vmatpush2.bf16.msra.mxu0 %v10198
    %10715 = vmatprep.subr.bf16.mxu0 %v10197
    %10716 = vmatpush2.bf16.msra.mxu0 %v10196
    %10717 = vmatprep.subr.bf16.mxu0 %v10195
    %10718 = vmatpush2.bf16.msra.mxu0 %v10194
    %10719 = vmatprep.subr.bf16.mxu0 %v10193
    %10720 = vmatpush2.bf16.msra.mxu0 %v10192
    %10721 = vmatprep.subr.bf16.mxu0 %v10191
    %10722 = vmatpush2.bf16.msra.mxu0 %v10190
    %10723 = vmatprep.subr.bf16.mxu0 %v10189
    %10724 = vmatpush2.bf16.msra.mxu0 %v10188
    %10725 = vmatprep.mubr.bf16.mxu0 %v3680
    %10726 = vmatmul.mubr.bf16.gmra.mxu0 %v3679
    %v10727 = vpop.f32.mrf.mxu0
    %v10728 = vadd.f32 %v10687, %v10727
    %v10729 = vpop.f32.mrf.mxu0
    %v10730 = vadd.f32 %v10689, %v10729
    %v10731 = vpop.f32.mrf.mxu0
    %v10732 = vpop.f32.mrf.mxu0
    %10733 = vdwg.mxu0
    %10734 = vmatprep.subr.bf16.mxu0 %v10219
    %10735 = vmatpush1.bf16.msra.mxu0 %v10218
    %10736 = vmatprep.subr.bf16.mxu0 %v10217
    %10737 = vmatpush1.bf16.msra.mxu0 %v10216
    %10738 = vmatprep.subr.bf16.mxu0 %v10215
    %10739 = vmatpush1.bf16.msra.mxu0 %v10214
    %10740 = vmatprep.subr.bf16.mxu0 %v10213
    %10741 = vmatpush1.bf16.msra.mxu0 %v10212
    %10742 = vmatprep.subr.bf16.mxu0 %v10211
    %10743 = vmatpush1.bf16.msra.mxu0 %v10210
    %10744 = vmatprep.subr.bf16.mxu0 %v10209
    %10745 = vmatpush1.bf16.msra.mxu0 %v10208
    %10746 = vmatprep.subr.bf16.mxu0 %v10207
    %10747 = vmatpush1.bf16.msra.mxu0 %v10206
    %10748 = vmatprep.subr.bf16.mxu0 %v10205
    %10749 = vmatpush1.bf16.msra.mxu0 %v10204
    %10750 = vmatprep.subr.bf16.mxu0 %v10235
    %10751 = vmatpush2.bf16.msra.mxu0 %v10234
    %10752 = vmatprep.subr.bf16.mxu0 %v10233
    %10753 = vmatpush2.bf16.msra.mxu0 %v10232
    %10754 = vmatprep.subr.bf16.mxu0 %v10231
    %10755 = vmatpush2.bf16.msra.mxu0 %v10230
    %10756 = vmatprep.subr.bf16.mxu0 %v10229
    %10757 = vmatpush2.bf16.msra.mxu0 %v10228
    %10758 = vmatprep.subr.bf16.mxu0 %v10227
    %10759 = vmatpush2.bf16.msra.mxu0 %v10226
    %10760 = vmatprep.subr.bf16.mxu0 %v10225
    %10761 = vmatpush2.bf16.msra.mxu0 %v10224
    %10762 = vmatprep.subr.bf16.mxu0 %v10223
    %10763 = vmatpush2.bf16.msra.mxu0 %v10222
    %10764 = vmatprep.subr.bf16.mxu0 %v10221
    %10765 = vmatpush2.bf16.msra.mxu0 %v10220
    %10766 = vmatprep.mubr.bf16.mxu0 %v3682
    %10767 = vmatmul.mubr.bf16.gmra.mxu0 %v3681
    %v10768 = vpop.f32.mrf.mxu0
    %v10769 = vadd.f32 %v10728, %v10768
    %v10770 = vpop.f32.mrf.mxu0
    %v10771 = vadd.f32 %v10730, %v10770
    %v10772 = vpop.f32.mrf.mxu0
    %v10773 = vpop.f32.mrf.mxu0
    %10774 = vdwg.mxu0
    %10775 = vmatprep.subr.bf16.mxu0 %v10251
    %10776 = vmatpush1.bf16.msra.mxu0 %v10250
    %10777 = vmatprep.subr.bf16.mxu0 %v10249
    %10778 = vmatpush1.bf16.msra.mxu0 %v10248
    %10779 = vmatprep.subr.bf16.mxu0 %v10247
    %10780 = vmatpush1.bf16.msra.mxu0 %v10246
    %10781 = vmatprep.subr.bf16.mxu0 %v10245
    %10782 = vmatpush1.bf16.msra.mxu0 %v10244
    %10783 = vmatprep.subr.bf16.mxu0 %v10243
    %10784 = vmatpush1.bf16.msra.mxu0 %v10242
    %10785 = vmatprep.subr.bf16.mxu0 %v10241
    %10786 = vmatpush1.bf16.msra.mxu0 %v10240
    %10787 = vmatprep.subr.bf16.mxu0 %v10239
    %10788 = vmatpush1.bf16.msra.mxu0 %v10238
    %10789 = vmatprep.subr.bf16.mxu0 %v10237
    %10790 = vmatpush1.bf16.msra.mxu0 %v10236
    %10791 = vmatprep.subr.bf16.mxu0 %v10267
    %10792 = vmatpush2.bf16.msra.mxu0 %v10266
    %10793 = vmatprep.subr.bf16.mxu0 %v10265
    %10794 = vmatpush2.bf16.msra.mxu0 %v10264
    %10795 = vmatprep.subr.bf16.mxu0 %v10263
    %10796 = vmatpush2.bf16.msra.mxu0 %v10262
    %10797 = vmatprep.subr.bf16.mxu0 %v10261
    %10798 = vmatpush2.bf16.msra.mxu0 %v10260
    %10799 = vmatprep.subr.bf16.mxu0 %v10259
    %10800 = vmatpush2.bf16.msra.mxu0 %v10258
    %10801 = vmatprep.subr.bf16.mxu0 %v10257
    %10802 = vmatpush2.bf16.msra.mxu0 %v10256
    %10803 = vmatprep.subr.bf16.mxu0 %v10255
    %10804 = vmatpush2.bf16.msra.mxu0 %v10254
    %10805 = vmatprep.subr.bf16.mxu0 %v10253
    %10806 = vmatpush2.bf16.msra.mxu0 %v10252
    %10807 = vmatprep.mubr.bf16.mxu0 %v3684
    %10808 = vmatmul.mubr.bf16.gmra.mxu0 %v3683
    %v10809 = vpop.f32.mrf.mxu0
    %v10810 = vadd.f32 %v10769, %v10809
    %v10811 = vpop.f32.mrf.mxu0
    %v10812 = vadd.f32 %v10771, %v10811
    %v10813 = vpop.f32.mrf.mxu0
    %v10814 = vpop.f32.mrf.mxu0
    %10815 = vdwg.mxu0
    %10816 = vmatprep.subr.bf16.mxu0 %v10283
    %10817 = vmatpush1.bf16.msra.mxu0 %v10282
    %10818 = vmatprep.subr.bf16.mxu0 %v10281
    %10819 = vmatpush1.bf16.msra.mxu0 %v10280
    %10820 = vmatprep.subr.bf16.mxu0 %v10279
    %10821 = vmatpush1.bf16.msra.mxu0 %v10278
    %10822 = vmatprep.subr.bf16.mxu0 %v10277
    %10823 = vmatpush1.bf16.msra.mxu0 %v10276
    %10824 = vmatprep.subr.bf16.mxu0 %v10275
    %10825 = vmatpush1.bf16.msra.mxu0 %v10274
    %10826 = vmatprep.subr.bf16.mxu0 %v10273
    %10827 = vmatpush1.bf16.msra.mxu0 %v10272
    %10828 = vmatprep.subr.bf16.mxu0 %v10271
    %10829 = vmatpush1.bf16.msra.mxu0 %v10270
    %10830 = vmatprep.subr.bf16.mxu0 %v10269
    %10831 = vmatpush1.bf16.msra.mxu0 %v10268
    %10832 = vmatprep.subr.bf16.mxu0 %v10299
    %10833 = vmatpush2.bf16.msra.mxu0 %v10298
    %10834 = vmatprep.subr.bf16.mxu0 %v10297
    %10835 = vmatpush2.bf16.msra.mxu0 %v10296
    %10836 = vmatprep.subr.bf16.mxu0 %v10295
    %10837 = vmatpush2.bf16.msra.mxu0 %v10294
    %10838 = vmatprep.subr.bf16.mxu0 %v10293
    %10839 = vmatpush2.bf16.msra.mxu0 %v10292
    %10840 = vmatprep.subr.bf16.mxu0 %v10291
    %10841 = vmatpush2.bf16.msra.mxu0 %v10290
    %10842 = vmatprep.subr.bf16.mxu0 %v10289
    %10843 = vmatpush2.bf16.msra.mxu0 %v10288
    %10844 = vmatprep.subr.bf16.mxu0 %v10287
    %10845 = vmatpush2.bf16.msra.mxu0 %v10286
    %10846 = vmatprep.subr.bf16.mxu0 %v10285
    %10847 = vmatpush2.bf16.msra.mxu0 %v10284
    %10848 = vmatprep.mubr.bf16.mxu0 %v3686
    %10849 = vmatmul.mubr.bf16.gmra.mxu0 %v3685
    %v10850 = vpop.f32.mrf.mxu0
    %v10851 = vadd.f32 %v10810, %v10850
    %v10852 = vpop.f32.mrf.mxu0
    %v10853 = vadd.f32 %v10812, %v10852
    %v10854 = vpop.f32.mrf.mxu0
    %v10855 = vpop.f32.mrf.mxu0
    %10856 = vdwg.mxu0
    %10857 = vmatprep.subr.bf16.mxu0 %v10315
    %10858 = vmatpush1.bf16.msra.mxu0 %v10314
    %10859 = vmatprep.subr.bf16.mxu0 %v10313
    %10860 = vmatpush1.bf16.msra.mxu0 %v10312
    %10861 = vmatprep.subr.bf16.mxu0 %v10311
    %10862 = vmatpush1.bf16.msra.mxu0 %v10310
    %10863 = vmatprep.subr.bf16.mxu0 %v10309
    %10864 = vmatpush1.bf16.msra.mxu0 %v10308
    %10865 = vmatprep.subr.bf16.mxu0 %v10307
    %10866 = vmatpush1.bf16.msra.mxu0 %v10306
    %10867 = vmatprep.subr.bf16.mxu0 %v10305
    %10868 = vmatpush1.bf16.msra.mxu0 %v10304
    %10869 = vmatprep.subr.bf16.mxu0 %v10303
    %10870 = vmatpush1.bf16.msra.mxu0 %v10302
    %10871 = vmatprep.subr.bf16.mxu0 %v10301
    %10872 = vmatpush1.bf16.msra.mxu0 %v10300
    %10873 = vmatprep.subr.bf16.mxu0 %v10331
    %10874 = vmatpush2.bf16.msra.mxu0 %v10330
    %10875 = vmatprep.subr.bf16.mxu0 %v10329
    %10876 = vmatpush2.bf16.msra.mxu0 %v10328
    %10877 = vmatprep.subr.bf16.mxu0 %v10327
    %10878 = vmatpush2.bf16.msra.mxu0 %v10326
    %10879 = vmatprep.subr.bf16.mxu0 %v10325
    %10880 = vmatpush2.bf16.msra.mxu0 %v10324
    %10881 = vmatprep.subr.bf16.mxu0 %v10323
    %10882 = vmatpush2.bf16.msra.mxu0 %v10322
    %10883 = vmatprep.subr.bf16.mxu0 %v10321
    %10884 = vmatpush2.bf16.msra.mxu0 %v10320
    %10885 = vmatprep.subr.bf16.mxu0 %v10319
    %10886 = vmatpush2.bf16.msra.mxu0 %v10318
    %10887 = vmatprep.subr.bf16.mxu0 %v10317
    %10888 = vmatpush2.bf16.msra.mxu0 %v10316
    %10889 = vmatprep.mubr.bf16.mxu0 %v3688
    %10890 = vmatmul.mubr.bf16.gmra.mxu0 %v3687
    %v10891 = vpop.f32.mrf.mxu0
    %v10892 = vadd.f32 %v10851, %v10891
    %v10893 = vpop.f32.mrf.mxu0
    %v10894 = vadd.f32 %v10853, %v10893
    %v10895 = vpop.f32.mrf.mxu0
    %v10896 = vpop.f32.mrf.mxu0
    %10897 = vdwg.mxu0
    %10898 = vmatprep.subr.bf16.mxu0 %v10347
    %10899 = vmatpush1.bf16.msra.mxu0 %v10346
    %10900 = vmatprep.subr.bf16.mxu0 %v10345
    %10901 = vmatpush1.bf16.msra.mxu0 %v10344
    %10902 = vmatprep.subr.bf16.mxu0 %v10343
    %10903 = vmatpush1.bf16.msra.mxu0 %v10342
    %10904 = vmatprep.subr.bf16.mxu0 %v10341
    %10905 = vmatpush1.bf16.msra.mxu0 %v10340
    %10906 = vmatprep.subr.bf16.mxu0 %v10339
    %10907 = vmatpush1.bf16.msra.mxu0 %v10338
    %10908 = vmatprep.subr.bf16.mxu0 %v10337
    %10909 = vmatpush1.bf16.msra.mxu0 %v10336
    %10910 = vmatprep.subr.bf16.mxu0 %v10335
    %10911 = vmatpush1.bf16.msra.mxu0 %v10334
    %10912 = vmatprep.subr.bf16.mxu0 %v10333
    %10913 = vmatpush1.bf16.msra.mxu0 %v10332
    %10914 = vmatprep.subr.bf16.mxu0 %v10363
    %10915 = vmatpush2.bf16.msra.mxu0 %v10362
    %10916 = vmatprep.subr.bf16.mxu0 %v10361
    %10917 = vmatpush2.bf16.msra.mxu0 %v10360
    %10918 = vmatprep.subr.bf16.mxu0 %v10359
    %10919 = vmatpush2.bf16.msra.mxu0 %v10358
    %10920 = vmatprep.subr.bf16.mxu0 %v10357
    %10921 = vmatpush2.bf16.msra.mxu0 %v10356
    %10922 = vmatprep.subr.bf16.mxu0 %v10355
    %10923 = vmatpush2.bf16.msra.mxu0 %v10354
    %10924 = vmatprep.subr.bf16.mxu0 %v10353
    %10925 = vmatpush2.bf16.msra.mxu0 %v10352
    %10926 = vmatprep.subr.bf16.mxu0 %v10351
    %10927 = vmatpush2.bf16.msra.mxu0 %v10350
    %10928 = vmatprep.subr.bf16.mxu0 %v10349
    %10929 = vmatpush2.bf16.msra.mxu0 %v10348
    %10930 = vmatprep.mubr.bf16.mxu0 %v3690
    %10931 = vmatmul.mubr.bf16.gmra.mxu0 %v3689
    %v10932 = vpop.f32.mrf.mxu0
    %v10933 = vadd.f32 %v10892, %v10932
    %v10934 = vpop.f32.mrf.mxu0
    %v10935 = vadd.f32 %v10894, %v10934
    %v10936 = vpop.f32.mrf.mxu0
    %v10937 = vpop.f32.mrf.mxu0
    %10938 = vdwg.mxu0
    %10939 = vmatprep.subr.bf16.mxu0 %v10379
    %10940 = vmatpush1.bf16.msra.mxu0 %v10378
    %10941 = vmatprep.subr.bf16.mxu0 %v10377
    %10942 = vmatpush1.bf16.msra.mxu0 %v10376
    %10943 = vmatprep.subr.bf16.mxu0 %v10375
    %10944 = vmatpush1.bf16.msra.mxu0 %v10374
    %10945 = vmatprep.subr.bf16.mxu0 %v10373
    %10946 = vmatpush1.bf16.msra.mxu0 %v10372
    %10947 = vmatprep.subr.bf16.mxu0 %v10371
    %10948 = vmatpush1.bf16.msra.mxu0 %v10370
    %10949 = vmatprep.subr.bf16.mxu0 %v10369
    %10950 = vmatpush1.bf16.msra.mxu0 %v10368
    %10951 = vmatprep.subr.bf16.mxu0 %v10367
    %10952 = vmatpush1.bf16.msra.mxu0 %v10366
    %10953 = vmatprep.subr.bf16.mxu0 %v10365
    %10954 = vmatpush1.bf16.msra.mxu0 %v10364
    %10955 = vmatprep.subr.bf16.mxu0 %v10395
    %10956 = vmatpush2.bf16.msra.mxu0 %v10394
    %10957 = vmatprep.subr.bf16.mxu0 %v10393
    %10958 = vmatpush2.bf16.msra.mxu0 %v10392
    %10959 = vmatprep.subr.bf16.mxu0 %v10391
    %10960 = vmatpush2.bf16.msra.mxu0 %v10390
    %10961 = vmatprep.subr.bf16.mxu0 %v10389
    %10962 = vmatpush2.bf16.msra.mxu0 %v10388
    %10963 = vmatprep.subr.bf16.mxu0 %v10387
    %10964 = vmatpush2.bf16.msra.mxu0 %v10386
    %10965 = vmatprep.subr.bf16.mxu0 %v10385
    %10966 = vmatpush2.bf16.msra.mxu0 %v10384
    %10967 = vmatprep.subr.bf16.mxu0 %v10383
    %10968 = vmatpush2.bf16.msra.mxu0 %v10382
    %10969 = vmatprep.subr.bf16.mxu0 %v10381
    %10970 = vmatpush2.bf16.msra.mxu0 %v10380
    %10971 = vmatprep.mubr.bf16.mxu0 %v3692
    %10972 = vmatmul.mubr.bf16.gmra.mxu0 %v3691
    %v10973 = vpop.f32.mrf.mxu0
    %v10974 = vadd.f32 %v10933, %v10973
    %v10975 = vpop.f32.mrf.mxu0
    %v10976 = vadd.f32 %v10935, %v10975
    %v10977 = vpop.f32.mrf.mxu0
    %v10978 = vpop.f32.mrf.mxu0
    %10979 = vdwg.mxu0
    %v10980 = vmax.f32 %v10974, 0.0
    %v10981 = vmax.f32 %v10976, 0.0
    %v10982 = vpack.c.bf16 %v10980, %v10980
    %v10983 = vpack.c.bf16 %v10981, %v10981
    %v10986 = vunpack.c.l.b16 %v10982
    %v10987 = vunpack.c.l.b16 %v10983
    %v10988 = vpack.c.b16 %v10987, %v10986
    %10990 = vst [vmem:[#allocation3 + $0x18] sm:$0xff] %v10988
    %v10991 = vld [vmem:[#allocation3] sm:$0xff]
    %v10992 = vld [vmem:[#allocation3 + $0x8] sm:$0xff]
    %v10993 = vld [vmem:[#allocation3 + $0x10] sm:$0xff]
    %v10994 = vld [vmem:[#allocation3 + $0x18] sm:$0xff]
    %s10995 = smul.u32 4, 128
    %s10996 = smul.u32 %s10995, 4
    %s10997 = sshll.u32 %s10996, 4
    %10998 = dma.done %s182, %s10997
    %v10999 = vld [vmem:[#allocation6] sm:$0xff]
    %v11000 = vld [vmem:[#allocation6 + $0x10] sm:$0xff]
    %v11001 = vld [vmem:[#allocation6 + $0x20] sm:$0xff]
    %v11002 = vld [vmem:[#allocation6 + $0x30] sm:$0xff]
    %v11003 = vld [vmem:[#allocation6 + $0x40] sm:$0xff]
    %v11004 = vld [vmem:[#allocation6 + $0x50] sm:$0xff]
    %v11005 = vld [vmem:[#allocation6 + $0x60] sm:$0xff]
    %v11006 = vld [vmem:[#allocation6 + $0x70] sm:$0xff]
    %v11007 = vld [vmem:[#allocation6 + $0x80] sm:$0xff]
    %v11008 = vld [vmem:[#allocation6 + $0x90] sm:$0xff]
    %v11009 = vld [vmem:[#allocation6 + $0xa0] sm:$0xff]
    %v11010 = vld [vmem:[#allocation6 + $0xb0] sm:$0xff]
    %v11011 = vld [vmem:[#allocation6 + $0xc0] sm:$0xff]
    %v11012 = vld [vmem:[#allocation6 + $0xd0] sm:$0xff]
    %v11013 = vld [vmem:[#allocation6 + $0xe0] sm:$0xff]
    %v11014 = vld [vmem:[#allocation6 + $0xf0] sm:$0xff]
    %v11015 = vld [vmem:[#allocation6 + $0x100] sm:$0xff]
    %v11016 = vld [vmem:[#allocation6 + $0x110] sm:$0xff]
    %v11017 = vld [vmem:[#allocation6 + $0x120] sm:$0xff]
    %v11018 = vld [vmem:[#allocation6 + $0x130] sm:$0xff]
    %v11019 = vld [vmem:[#allocation6 + $0x140] sm:$0xff]
    %v11020 = vld [vmem:[#allocation6 + $0x150] sm:$0xff]
    %v11021 = vld [vmem:[#allocation6 + $0x160] sm:$0xff]
    %v11022 = vld [vmem:[#allocation6 + $0x170] sm:$0xff]
    %v11023 = vld [vmem:[#allocation6 + $0x180] sm:$0xff]
    %v11024 = vld [vmem:[#allocation6 + $0x190] sm:$0xff]
    %v11025 = vld [vmem:[#allocation6 + $0x1a0] sm:$0xff]
    %v11026 = vld [vmem:[#allocation6 + $0x1b0] sm:$0xff]
    %v11027 = vld [vmem:[#allocation6 + $0x1c0] sm:$0xff]
    %v11028 = vld [vmem:[#allocation6 + $0x1d0] sm:$0xff]
    %v11029 = vld [vmem:[#allocation6 + $0x1e0] sm:$0xff]
    %v11030 = vld [vmem:[#allocation6 + $0x1f0] sm:$0xff]
    %v11031 = vld [vmem:[#allocation6 + $0x200] sm:$0xff]
    %v11032 = vld [vmem:[#allocation6 + $0x210] sm:$0xff]
    %v11033 = vld [vmem:[#allocation6 + $0x220] sm:$0xff]
    %v11034 = vld [vmem:[#allocation6 + $0x230] sm:$0xff]
    %v11035 = vld [vmem:[#allocation6 + $0x240] sm:$0xff]
    %v11036 = vld [vmem:[#allocation6 + $0x250] sm:$0xff]
    %v11037 = vld [vmem:[#allocation6 + $0x260] sm:$0xff]
    %v11038 = vld [vmem:[#allocation6 + $0x270] sm:$0xff]
    %v11039 = vld [vmem:[#allocation6 + $0x280] sm:$0xff]
    %v11040 = vld [vmem:[#allocation6 + $0x290] sm:$0xff]
    %v11041 = vld [vmem:[#allocation6 + $0x2a0] sm:$0xff]
    %v11042 = vld [vmem:[#allocation6 + $0x2b0] sm:$0xff]
    %v11043 = vld [vmem:[#allocation6 + $0x2c0] sm:$0xff]
    %v11044 = vld [vmem:[#allocation6 + $0x2d0] sm:$0xff]
    %v11045 = vld [vmem:[#allocation6 + $0x2e0] sm:$0xff]
    %v11046 = vld [vmem:[#allocation6 + $0x2f0] sm:$0xff]
    %v11047 = vld [vmem:[#allocation6 + $0x300] sm:$0xff]
    %v11048 = vld [vmem:[#allocation6 + $0x310] sm:$0xff]
    %v11049 = vld [vmem:[#allocation6 + $0x320] sm:$0xff]
    %v11050 = vld [vmem:[#allocation6 + $0x330] sm:$0xff]
    %v11051 = vld [vmem:[#allocation6 + $0x340] sm:$0xff]
    %v11052 = vld [vmem:[#allocation6 + $0x350] sm:$0xff]
    %v11053 = vld [vmem:[#allocation6 + $0x360] sm:$0xff]
    %v11054 = vld [vmem:[#allocation6 + $0x370] sm:$0xff]
    %v11055 = vld [vmem:[#allocation6 + $0x380] sm:$0xff]
    %v11056 = vld [vmem:[#allocation6 + $0x390] sm:$0xff]
    %v11057 = vld [vmem:[#allocation6 + $0x3a0] sm:$0xff]
    %v11058 = vld [vmem:[#allocation6 + $0x3b0] sm:$0xff]
    %v11059 = vld [vmem:[#allocation6 + $0x3c0] sm:$0xff]
    %v11060 = vld [vmem:[#allocation6 + $0x3d0] sm:$0xff]
    %v11061 = vld [vmem:[#allocation6 + $0x3e0] sm:$0xff]
    %v11062 = vld [vmem:[#allocation6 + $0x3f0] sm:$0xff]
    %v11063 = vld [vmem:[#allocation6 + $0x400] sm:$0xff]
    %v11064 = vld [vmem:[#allocation6 + $0x410] sm:$0xff]
    %v11065 = vld [vmem:[#allocation6 + $0x420] sm:$0xff]
    %v11066 = vld [vmem:[#allocation6 + $0x430] sm:$0xff]
    %v11067 = vld [vmem:[#allocation6 + $0x440] sm:$0xff]
    %v11068 = vld [vmem:[#allocation6 + $0x450] sm:$0xff]
    %v11069 = vld [vmem:[#allocation6 + $0x460] sm:$0xff]
    %v11070 = vld [vmem:[#allocation6 + $0x470] sm:$0xff]
    %v11071 = vld [vmem:[#allocation6 + $0x480] sm:$0xff]
    %v11072 = vld [vmem:[#allocation6 + $0x490] sm:$0xff]
    %v11073 = vld [vmem:[#allocation6 + $0x4a0] sm:$0xff]
    %v11074 = vld [vmem:[#allocation6 + $0x4b0] sm:$0xff]
    %v11075 = vld [vmem:[#allocation6 + $0x4c0] sm:$0xff]
    %v11076 = vld [vmem:[#allocation6 + $0x4d0] sm:$0xff]
    %v11077 = vld [vmem:[#allocation6 + $0x4e0] sm:$0xff]
    %v11078 = vld [vmem:[#allocation6 + $0x4f0] sm:$0xff]
    %v11079 = vld [vmem:[#allocation6 + $0x500] sm:$0xff]
    %v11080 = vld [vmem:[#allocation6 + $0x510] sm:$0xff]
    %v11081 = vld [vmem:[#allocation6 + $0x520] sm:$0xff]
    %v11082 = vld [vmem:[#allocation6 + $0x530] sm:$0xff]
    %v11083 = vld [vmem:[#allocation6 + $0x540] sm:$0xff]
    %v11084 = vld [vmem:[#allocation6 + $0x550] sm:$0xff]
    %v11085 = vld [vmem:[#allocation6 + $0x560] sm:$0xff]
    %v11086 = vld [vmem:[#allocation6 + $0x570] sm:$0xff]
    %v11087 = vld [vmem:[#allocation6 + $0x580] sm:$0xff]
    %v11088 = vld [vmem:[#allocation6 + $0x590] sm:$0xff]
    %v11089 = vld [vmem:[#allocation6 + $0x5a0] sm:$0xff]
    %v11090 = vld [vmem:[#allocation6 + $0x5b0] sm:$0xff]
    %v11091 = vld [vmem:[#allocation6 + $0x5c0] sm:$0xff]
    %v11092 = vld [vmem:[#allocation6 + $0x5d0] sm:$0xff]
    %v11093 = vld [vmem:[#allocation6 + $0x5e0] sm:$0xff]
    %v11094 = vld [vmem:[#allocation6 + $0x5f0] sm:$0xff]
    %v11095 = vld [vmem:[#allocation6 + $0x600] sm:$0xff]
    %v11096 = vld [vmem:[#allocation6 + $0x610] sm:$0xff]
    %v11097 = vld [vmem:[#allocation6 + $0x620] sm:$0xff]
    %v11098 = vld [vmem:[#allocation6 + $0x630] sm:$0xff]
    %v11099 = vld [vmem:[#allocation6 + $0x640] sm:$0xff]
    %v11100 = vld [vmem:[#allocation6 + $0x650] sm:$0xff]
    %v11101 = vld [vmem:[#allocation6 + $0x660] sm:$0xff]
    %v11102 = vld [vmem:[#allocation6 + $0x670] sm:$0xff]
    %v11103 = vld [vmem:[#allocation6 + $0x680] sm:$0xff]
    %v11104 = vld [vmem:[#allocation6 + $0x690] sm:$0xff]
    %v11105 = vld [vmem:[#allocation6 + $0x6a0] sm:$0xff]
    %v11106 = vld [vmem:[#allocation6 + $0x6b0] sm:$0xff]
    %v11107 = vld [vmem:[#allocation6 + $0x6c0] sm:$0xff]
    %v11108 = vld [vmem:[#allocation6 + $0x6d0] sm:$0xff]
    %v11109 = vld [vmem:[#allocation6 + $0x6e0] sm:$0xff]
    %v11110 = vld [vmem:[#allocation6 + $0x6f0] sm:$0xff]
    %v11111 = vld [vmem:[#allocation6 + $0x700] sm:$0xff]
    %v11112 = vld [vmem:[#allocation6 + $0x710] sm:$0xff]
    %v11113 = vld [vmem:[#allocation6 + $0x720] sm:$0xff]
    %v11114 = vld [vmem:[#allocation6 + $0x730] sm:$0xff]
    %v11115 = vld [vmem:[#allocation6 + $0x740] sm:$0xff]
    %v11116 = vld [vmem:[#allocation6 + $0x750] sm:$0xff]
    %v11117 = vld [vmem:[#allocation6 + $0x760] sm:$0xff]
    %v11118 = vld [vmem:[#allocation6 + $0x770] sm:$0xff]
    %v11119 = vld [vmem:[#allocation6 + $0x780] sm:$0xff]
    %v11120 = vld [vmem:[#allocation6 + $0x790] sm:$0xff]
    %v11121 = vld [vmem:[#allocation6 + $0x7a0] sm:$0xff]
    %v11122 = vld [vmem:[#allocation6 + $0x7b0] sm:$0xff]
    %v11123 = vld [vmem:[#allocation6 + $0x7c0] sm:$0xff]
    %v11124 = vld [vmem:[#allocation6 + $0x7d0] sm:$0xff]
    %v11125 = vld [vmem:[#allocation6 + $0x7e0] sm:$0xff]
    %v11126 = vld [vmem:[#allocation6 + $0x7f0] sm:$0xff]
    %v11127 = vld [vmem:[#allocation14] sm:$0x3]
    %v11129 = vlaneseq
    %v11130 = vshrl.u32 %v11129, 7
    %v11131 = vsub.s32 0, %v11130
    %v11132 = vrot.slane %v11127, %v11131
    %v11133 = vlaneseq
    %v11134 = vshrl.u32 %v11133, 7
    %v11135 = vsub.s32 1, %v11134
    %v11136 = vrot.slane %v11127, %v11135
    %v11143 = vunpack.c.l.b16 %v10991
    %v11144 = vunpack.c.h.b16 %v10991
    %v11145 = vunpack.c.l.b16 %v10992
    %v11146 = vunpack.c.h.b16 %v10992
    %v11147 = vunpack.c.l.b16 %v10993
    %v11148 = vunpack.c.h.b16 %v10993
    %v11149 = vunpack.c.l.b16 %v10994
    %v11150 = vunpack.c.h.b16 %v10994
    %v11151 = vpack.c.b16 %v11143, %v11143
    %v11152 = vpack.c.b16 %v11144, %v11144
    %v11153 = vpack.c.b16 %v11145, %v11145
    %v11154 = vpack.c.b16 %v11146, %v11146
    %v11155 = vpack.c.b16 %v11147, %v11147
    %v11156 = vpack.c.b16 %v11148, %v11148
    %v11157 = vpack.c.b16 %v11149, %v11149
    %v11158 = vpack.c.b16 %v11150, %v11150
    %v11295 = vunpack.c.l.b16 %v10999
    %v11296 = vunpack.c.h.b16 %v10999
    %v11297 = vunpack.c.l.b16 %v11000
    %v11298 = vunpack.c.h.b16 %v11000
    %v11299 = vunpack.c.l.b16 %v11001
    %v11300 = vunpack.c.h.b16 %v11001
    %v11301 = vunpack.c.l.b16 %v11002
    %v11302 = vunpack.c.h.b16 %v11002
    %v11303 = vunpack.c.l.b16 %v11003
    %v11304 = vunpack.c.h.b16 %v11003
    %v11305 = vunpack.c.l.b16 %v11004
    %v11306 = vunpack.c.h.b16 %v11004
    %v11307 = vunpack.c.l.b16 %v11005
    %v11308 = vunpack.c.h.b16 %v11005
    %v11309 = vunpack.c.l.b16 %v11006
    %v11310 = vunpack.c.h.b16 %v11006
    %v11311 = vunpack.c.l.b16 %v11007
    %v11312 = vunpack.c.h.b16 %v11007
    %v11313 = vunpack.c.l.b16 %v11008
    %v11314 = vunpack.c.h.b16 %v11008
    %v11315 = vunpack.c.l.b16 %v11009
    %v11316 = vunpack.c.h.b16 %v11009
    %v11317 = vunpack.c.l.b16 %v11010
    %v11318 = vunpack.c.h.b16 %v11010
    %v11319 = vunpack.c.l.b16 %v11011
    %v11320 = vunpack.c.h.b16 %v11011
    %v11321 = vunpack.c.l.b16 %v11012
    %v11322 = vunpack.c.h.b16 %v11012
    %v11323 = vunpack.c.l.b16 %v11013
    %v11324 = vunpack.c.h.b16 %v11013
    %v11325 = vunpack.c.l.b16 %v11014
    %v11326 = vunpack.c.h.b16 %v11014
    %v11327 = vunpack.c.l.b16 %v11015
    %v11328 = vunpack.c.h.b16 %v11015
    %v11329 = vunpack.c.l.b16 %v11016
    %v11330 = vunpack.c.h.b16 %v11016
    %v11331 = vunpack.c.l.b16 %v11017
    %v11332 = vunpack.c.h.b16 %v11017
    %v11333 = vunpack.c.l.b16 %v11018
    %v11334 = vunpack.c.h.b16 %v11018
    %v11335 = vunpack.c.l.b16 %v11019
    %v11336 = vunpack.c.h.b16 %v11019
    %v11337 = vunpack.c.l.b16 %v11020
    %v11338 = vunpack.c.h.b16 %v11020
    %v11339 = vunpack.c.l.b16 %v11021
    %v11340 = vunpack.c.h.b16 %v11021
    %v11341 = vunpack.c.l.b16 %v11022
    %v11342 = vunpack.c.h.b16 %v11022
    %v11343 = vunpack.c.l.b16 %v11023
    %v11344 = vunpack.c.h.b16 %v11023
    %v11345 = vunpack.c.l.b16 %v11024
    %v11346 = vunpack.c.h.b16 %v11024
    %v11347 = vunpack.c.l.b16 %v11025
    %v11348 = vunpack.c.h.b16 %v11025
    %v11349 = vunpack.c.l.b16 %v11026
    %v11350 = vunpack.c.h.b16 %v11026
    %v11351 = vunpack.c.l.b16 %v11027
    %v11352 = vunpack.c.h.b16 %v11027
    %v11353 = vunpack.c.l.b16 %v11028
    %v11354 = vunpack.c.h.b16 %v11028
    %v11355 = vunpack.c.l.b16 %v11029
    %v11356 = vunpack.c.h.b16 %v11029
    %v11357 = vunpack.c.l.b16 %v11030
    %v11358 = vunpack.c.h.b16 %v11030
    %v11359 = vunpack.c.l.b16 %v11031
    %v11360 = vunpack.c.h.b16 %v11031
    %v11361 = vunpack.c.l.b16 %v11032
    %v11362 = vunpack.c.h.b16 %v11032
    %v11363 = vunpack.c.l.b16 %v11033
    %v11364 = vunpack.c.h.b16 %v11033
    %v11365 = vunpack.c.l.b16 %v11034
    %v11366 = vunpack.c.h.b16 %v11034
    %v11367 = vunpack.c.l.b16 %v11035
    %v11368 = vunpack.c.h.b16 %v11035
    %v11369 = vunpack.c.l.b16 %v11036
    %v11370 = vunpack.c.h.b16 %v11036
    %v11371 = vunpack.c.l.b16 %v11037
    %v11372 = vunpack.c.h.b16 %v11037
    %v11373 = vunpack.c.l.b16 %v11038
    %v11374 = vunpack.c.h.b16 %v11038
    %v11375 = vunpack.c.l.b16 %v11039
    %v11376 = vunpack.c.h.b16 %v11039
    %v11377 = vunpack.c.l.b16 %v11040
    %v11378 = vunpack.c.h.b16 %v11040
    %v11379 = vunpack.c.l.b16 %v11041
    %v11380 = vunpack.c.h.b16 %v11041
    %v11381 = vunpack.c.l.b16 %v11042
    %v11382 = vunpack.c.h.b16 %v11042
    %v11383 = vunpack.c.l.b16 %v11043
    %v11384 = vunpack.c.h.b16 %v11043
    %v11385 = vunpack.c.l.b16 %v11044
    %v11386 = vunpack.c.h.b16 %v11044
    %v11387 = vunpack.c.l.b16 %v11045
    %v11388 = vunpack.c.h.b16 %v11045
    %v11389 = vunpack.c.l.b16 %v11046
    %v11390 = vunpack.c.h.b16 %v11046
    %v11391 = vunpack.c.l.b16 %v11047
    %v11392 = vunpack.c.h.b16 %v11047
    %v11393 = vunpack.c.l.b16 %v11048
    %v11394 = vunpack.c.h.b16 %v11048
    %v11395 = vunpack.c.l.b16 %v11049
    %v11396 = vunpack.c.h.b16 %v11049
    %v11397 = vunpack.c.l.b16 %v11050
    %v11398 = vunpack.c.h.b16 %v11050
    %v11399 = vunpack.c.l.b16 %v11051
    %v11400 = vunpack.c.h.b16 %v11051
    %v11401 = vunpack.c.l.b16 %v11052
    %v11402 = vunpack.c.h.b16 %v11052
    %v11403 = vunpack.c.l.b16 %v11053
    %v11404 = vunpack.c.h.b16 %v11053
    %v11405 = vunpack.c.l.b16 %v11054
    %v11406 = vunpack.c.h.b16 %v11054
    %v11407 = vunpack.c.l.b16 %v11055
    %v11408 = vunpack.c.h.b16 %v11055
    %v11409 = vunpack.c.l.b16 %v11056
    %v11410 = vunpack.c.h.b16 %v11056
    %v11411 = vunpack.c.l.b16 %v11057
    %v11412 = vunpack.c.h.b16 %v11057
    %v11413 = vunpack.c.l.b16 %v11058
    %v11414 = vunpack.c.h.b16 %v11058
    %v11415 = vunpack.c.l.b16 %v11059
    %v11416 = vunpack.c.h.b16 %v11059
    %v11417 = vunpack.c.l.b16 %v11060
    %v11418 = vunpack.c.h.b16 %v11060
    %v11419 = vunpack.c.l.b16 %v11061
    %v11420 = vunpack.c.h.b16 %v11061
    %v11421 = vunpack.c.l.b16 %v11062
    %v11422 = vunpack.c.h.b16 %v11062
    %v11423 = vunpack.c.l.b16 %v11063
    %v11424 = vunpack.c.h.b16 %v11063
    %v11425 = vunpack.c.l.b16 %v11064
    %v11426 = vunpack.c.h.b16 %v11064
    %v11427 = vunpack.c.l.b16 %v11065
    %v11428 = vunpack.c.h.b16 %v11065
    %v11429 = vunpack.c.l.b16 %v11066
    %v11430 = vunpack.c.h.b16 %v11066
    %v11431 = vunpack.c.l.b16 %v11067
    %v11432 = vunpack.c.h.b16 %v11067
    %v11433 = vunpack.c.l.b16 %v11068
    %v11434 = vunpack.c.h.b16 %v11068
    %v11435 = vunpack.c.l.b16 %v11069
    %v11436 = vunpack.c.h.b16 %v11069
    %v11437 = vunpack.c.l.b16 %v11070
    %v11438 = vunpack.c.h.b16 %v11070
    %v11439 = vunpack.c.l.b16 %v11071
    %v11440 = vunpack.c.h.b16 %v11071
    %v11441 = vunpack.c.l.b16 %v11072
    %v11442 = vunpack.c.h.b16 %v11072
    %v11443 = vunpack.c.l.b16 %v11073
    %v11444 = vunpack.c.h.b16 %v11073
    %v11445 = vunpack.c.l.b16 %v11074
    %v11446 = vunpack.c.h.b16 %v11074
    %v11447 = vunpack.c.l.b16 %v11075
    %v11448 = vunpack.c.h.b16 %v11075
    %v11449 = vunpack.c.l.b16 %v11076
    %v11450 = vunpack.c.h.b16 %v11076
    %v11451 = vunpack.c.l.b16 %v11077
    %v11452 = vunpack.c.h.b16 %v11077
    %v11453 = vunpack.c.l.b16 %v11078
    %v11454 = vunpack.c.h.b16 %v11078
    %v11455 = vunpack.c.l.b16 %v11079
    %v11456 = vunpack.c.h.b16 %v11079
    %v11457 = vunpack.c.l.b16 %v11080
    %v11458 = vunpack.c.h.b16 %v11080
    %v11459 = vunpack.c.l.b16 %v11081
    %v11460 = vunpack.c.h.b16 %v11081
    %v11461 = vunpack.c.l.b16 %v11082
    %v11462 = vunpack.c.h.b16 %v11082
    %v11463 = vunpack.c.l.b16 %v11083
    %v11464 = vunpack.c.h.b16 %v11083
    %v11465 = vunpack.c.l.b16 %v11084
    %v11466 = vunpack.c.h.b16 %v11084
    %v11467 = vunpack.c.l.b16 %v11085
    %v11468 = vunpack.c.h.b16 %v11085
    %v11469 = vunpack.c.l.b16 %v11086
    %v11470 = vunpack.c.h.b16 %v11086
    %v11471 = vunpack.c.l.b16 %v11087
    %v11472 = vunpack.c.h.b16 %v11087
    %v11473 = vunpack.c.l.b16 %v11088
    %v11474 = vunpack.c.h.b16 %v11088
    %v11475 = vunpack.c.l.b16 %v11089
    %v11476 = vunpack.c.h.b16 %v11089
    %v11477 = vunpack.c.l.b16 %v11090
    %v11478 = vunpack.c.h.b16 %v11090
    %v11479 = vunpack.c.l.b16 %v11091
    %v11480 = vunpack.c.h.b16 %v11091
    %v11481 = vunpack.c.l.b16 %v11092
    %v11482 = vunpack.c.h.b16 %v11092
    %v11483 = vunpack.c.l.b16 %v11093
    %v11484 = vunpack.c.h.b16 %v11093
    %v11485 = vunpack.c.l.b16 %v11094
    %v11486 = vunpack.c.h.b16 %v11094
    %v11487 = vunpack.c.l.b16 %v11095
    %v11488 = vunpack.c.h.b16 %v11095
    %v11489 = vunpack.c.l.b16 %v11096
    %v11490 = vunpack.c.h.b16 %v11096
    %v11491 = vunpack.c.l.b16 %v11097
    %v11492 = vunpack.c.h.b16 %v11097
    %v11493 = vunpack.c.l.b16 %v11098
    %v11494 = vunpack.c.h.b16 %v11098
    %v11495 = vunpack.c.l.b16 %v11099
    %v11496 = vunpack.c.h.b16 %v11099
    %v11497 = vunpack.c.l.b16 %v11100
    %v11498 = vunpack.c.h.b16 %v11100
    %v11499 = vunpack.c.l.b16 %v11101
    %v11500 = vunpack.c.h.b16 %v11101
    %v11501 = vunpack.c.l.b16 %v11102
    %v11502 = vunpack.c.h.b16 %v11102
    %v11503 = vunpack.c.l.b16 %v11103
    %v11504 = vunpack.c.h.b16 %v11103
    %v11505 = vunpack.c.l.b16 %v11104
    %v11506 = vunpack.c.h.b16 %v11104
    %v11507 = vunpack.c.l.b16 %v11105
    %v11508 = vunpack.c.h.b16 %v11105
    %v11509 = vunpack.c.l.b16 %v11106
    %v11510 = vunpack.c.h.b16 %v11106
    %v11511 = vunpack.c.l.b16 %v11107
    %v11512 = vunpack.c.h.b16 %v11107
    %v11513 = vunpack.c.l.b16 %v11108
    %v11514 = vunpack.c.h.b16 %v11108
    %v11515 = vunpack.c.l.b16 %v11109
    %v11516 = vunpack.c.h.b16 %v11109
    %v11517 = vunpack.c.l.b16 %v11110
    %v11518 = vunpack.c.h.b16 %v11110
    %v11519 = vunpack.c.l.b16 %v11111
    %v11520 = vunpack.c.h.b16 %v11111
    %v11521 = vunpack.c.l.b16 %v11112
    %v11522 = vunpack.c.h.b16 %v11112
    %v11523 = vunpack.c.l.b16 %v11113
    %v11524 = vunpack.c.h.b16 %v11113
    %v11525 = vunpack.c.l.b16 %v11114
    %v11526 = vunpack.c.h.b16 %v11114
    %v11527 = vunpack.c.l.b16 %v11115
    %v11528 = vunpack.c.h.b16 %v11115
    %v11529 = vunpack.c.l.b16 %v11116
    %v11530 = vunpack.c.h.b16 %v11116
    %v11531 = vunpack.c.l.b16 %v11117
    %v11532 = vunpack.c.h.b16 %v11117
    %v11533 = vunpack.c.l.b16 %v11118
    %v11534 = vunpack.c.h.b16 %v11118
    %v11535 = vunpack.c.l.b16 %v11119
    %v11536 = vunpack.c.h.b16 %v11119
    %v11537 = vunpack.c.l.b16 %v11120
    %v11538 = vunpack.c.h.b16 %v11120
    %v11539 = vunpack.c.l.b16 %v11121
    %v11540 = vunpack.c.h.b16 %v11121
    %v11541 = vunpack.c.l.b16 %v11122
    %v11542 = vunpack.c.h.b16 %v11122
    %v11543 = vunpack.c.l.b16 %v11123
    %v11544 = vunpack.c.h.b16 %v11123
    %v11545 = vunpack.c.l.b16 %v11124
    %v11546 = vunpack.c.h.b16 %v11124
    %v11547 = vunpack.c.l.b16 %v11125
    %v11548 = vunpack.c.h.b16 %v11125
    %v11549 = vunpack.c.l.b16 %v11126
    %v11550 = vunpack.c.h.b16 %v11126
    %v11551 = vpack.c.b16 %v11297, %v11295
    %v11552 = vpack.c.b16 %v11298, %v11296
    %v11553 = vpack.c.b16 %v11301, %v11299
    %v11554 = vpack.c.b16 %v11302, %v11300
    %v11555 = vpack.c.b16 %v11305, %v11303
    %v11556 = vpack.c.b16 %v11306, %v11304
    %v11557 = vpack.c.b16 %v11309, %v11307
    %v11558 = vpack.c.b16 %v11310, %v11308
    %v11559 = vpack.c.b16 %v11313, %v11311
    %v11560 = vpack.c.b16 %v11314, %v11312
    %v11561 = vpack.c.b16 %v11317, %v11315
    %v11562 = vpack.c.b16 %v11318, %v11316
    %v11563 = vpack.c.b16 %v11321, %v11319
    %v11564 = vpack.c.b16 %v11322, %v11320
    %v11565 = vpack.c.b16 %v11325, %v11323
    %v11566 = vpack.c.b16 %v11326, %v11324
    %v11567 = vpack.c.b16 %v11329, %v11327
    %v11568 = vpack.c.b16 %v11330, %v11328
    %v11569 = vpack.c.b16 %v11333, %v11331
    %v11570 = vpack.c.b16 %v11334, %v11332
    %v11571 = vpack.c.b16 %v11337, %v11335
    %v11572 = vpack.c.b16 %v11338, %v11336
    %v11573 = vpack.c.b16 %v11341, %v11339
    %v11574 = vpack.c.b16 %v11342, %v11340
    %v11575 = vpack.c.b16 %v11345, %v11343
    %v11576 = vpack.c.b16 %v11346, %v11344
    %v11577 = vpack.c.b16 %v11349, %v11347
    %v11578 = vpack.c.b16 %v11350, %v11348
    %v11579 = vpack.c.b16 %v11353, %v11351
    %v11580 = vpack.c.b16 %v11354, %v11352
    %v11581 = vpack.c.b16 %v11357, %v11355
    %v11582 = vpack.c.b16 %v11358, %v11356
    %v11583 = vpack.c.b16 %v11361, %v11359
    %v11584 = vpack.c.b16 %v11362, %v11360
    %v11585 = vpack.c.b16 %v11365, %v11363
    %v11586 = vpack.c.b16 %v11366, %v11364
    %v11587 = vpack.c.b16 %v11369, %v11367
    %v11588 = vpack.c.b16 %v11370, %v11368
    %v11589 = vpack.c.b16 %v11373, %v11371
    %v11590 = vpack.c.b16 %v11374, %v11372
    %v11591 = vpack.c.b16 %v11377, %v11375
    %v11592 = vpack.c.b16 %v11378, %v11376
    %v11593 = vpack.c.b16 %v11381, %v11379
    %v11594 = vpack.c.b16 %v11382, %v11380
    %v11595 = vpack.c.b16 %v11385, %v11383
    %v11596 = vpack.c.b16 %v11386, %v11384
    %v11597 = vpack.c.b16 %v11389, %v11387
    %v11598 = vpack.c.b16 %v11390, %v11388
    %v11599 = vpack.c.b16 %v11393, %v11391
    %v11600 = vpack.c.b16 %v11394, %v11392
    %v11601 = vpack.c.b16 %v11397, %v11395
    %v11602 = vpack.c.b16 %v11398, %v11396
    %v11603 = vpack.c.b16 %v11401, %v11399
    %v11604 = vpack.c.b16 %v11402, %v11400
    %v11605 = vpack.c.b16 %v11405, %v11403
    %v11606 = vpack.c.b16 %v11406, %v11404
    %v11607 = vpack.c.b16 %v11409, %v11407
    %v11608 = vpack.c.b16 %v11410, %v11408
    %v11609 = vpack.c.b16 %v11413, %v11411
    %v11610 = vpack.c.b16 %v11414, %v11412
    %v11611 = vpack.c.b16 %v11417, %v11415
    %v11612 = vpack.c.b16 %v11418, %v11416
    %v11613 = vpack.c.b16 %v11421, %v11419
    %v11614 = vpack.c.b16 %v11422, %v11420
    %v11615 = vpack.c.b16 %v11425, %v11423
    %v11616 = vpack.c.b16 %v11426, %v11424
    %v11617 = vpack.c.b16 %v11429, %v11427
    %v11618 = vpack.c.b16 %v11430, %v11428
    %v11619 = vpack.c.b16 %v11433, %v11431
    %v11620 = vpack.c.b16 %v11434, %v11432
    %v11621 = vpack.c.b16 %v11437, %v11435
    %v11622 = vpack.c.b16 %v11438, %v11436
    %v11623 = vpack.c.b16 %v11441, %v11439
    %v11624 = vpack.c.b16 %v11442, %v11440
    %v11625 = vpack.c.b16 %v11445, %v11443
    %v11626 = vpack.c.b16 %v11446, %v11444
    %v11627 = vpack.c.b16 %v11449, %v11447
    %v11628 = vpack.c.b16 %v11450, %v11448
    %v11629 = vpack.c.b16 %v11453, %v11451
    %v11630 = vpack.c.b16 %v11454, %v11452
    %v11631 = vpack.c.b16 %v11457, %v11455
    %v11632 = vpack.c.b16 %v11458, %v11456
    %v11633 = vpack.c.b16 %v11461, %v11459
    %v11634 = vpack.c.b16 %v11462, %v11460
    %v11635 = vpack.c.b16 %v11465, %v11463
    %v11636 = vpack.c.b16 %v11466, %v11464
    %v11637 = vpack.c.b16 %v11469, %v11467
    %v11638 = vpack.c.b16 %v11470, %v11468
    %v11639 = vpack.c.b16 %v11473, %v11471
    %v11640 = vpack.c.b16 %v11474, %v11472
    %v11641 = vpack.c.b16 %v11477, %v11475
    %v11642 = vpack.c.b16 %v11478, %v11476
    %v11643 = vpack.c.b16 %v11481, %v11479
    %v11644 = vpack.c.b16 %v11482, %v11480
    %v11645 = vpack.c.b16 %v11485, %v11483
    %v11646 = vpack.c.b16 %v11486, %v11484
    %v11647 = vpack.c.b16 %v11489, %v11487
    %v11648 = vpack.c.b16 %v11490, %v11488
    %v11649 = vpack.c.b16 %v11493, %v11491
    %v11650 = vpack.c.b16 %v11494, %v11492
    %v11651 = vpack.c.b16 %v11497, %v11495
    %v11652 = vpack.c.b16 %v11498, %v11496
    %v11653 = vpack.c.b16 %v11501, %v11499
    %v11654 = vpack.c.b16 %v11502, %v11500
    %v11655 = vpack.c.b16 %v11505, %v11503
    %v11656 = vpack.c.b16 %v11506, %v11504
    %v11657 = vpack.c.b16 %v11509, %v11507
    %v11658 = vpack.c.b16 %v11510, %v11508
    %v11659 = vpack.c.b16 %v11513, %v11511
    %v11660 = vpack.c.b16 %v11514, %v11512
    %v11661 = vpack.c.b16 %v11517, %v11515
    %v11662 = vpack.c.b16 %v11518, %v11516
    %v11663 = vpack.c.b16 %v11521, %v11519
    %v11664 = vpack.c.b16 %v11522, %v11520
    %v11665 = vpack.c.b16 %v11525, %v11523
    %v11666 = vpack.c.b16 %v11526, %v11524
    %v11667 = vpack.c.b16 %v11529, %v11527
    %v11668 = vpack.c.b16 %v11530, %v11528
    %v11669 = vpack.c.b16 %v11533, %v11531
    %v11670 = vpack.c.b16 %v11534, %v11532
    %v11671 = vpack.c.b16 %v11537, %v11535
    %v11672 = vpack.c.b16 %v11538, %v11536
    %v11673 = vpack.c.b16 %v11541, %v11539
    %v11674 = vpack.c.b16 %v11542, %v11540
    %v11675 = vpack.c.b16 %v11545, %v11543
    %v11676 = vpack.c.b16 %v11546, %v11544
    %v11677 = vpack.c.b16 %v11549, %v11547
    %v11678 = vpack.c.b16 %v11550, %v11548
    %11807 = vmatprep.subr.bf16.mxu0 %v11566
    %11808 = vmatpush1.bf16.msra.mxu0 %v11565
    %11809 = vmatprep.subr.bf16.mxu0 %v11564
    %11810 = vmatpush1.bf16.msra.mxu0 %v11563
    %11811 = vmatprep.subr.bf16.mxu0 %v11562
    %11812 = vmatpush1.bf16.msra.mxu0 %v11561
    %11813 = vmatprep.subr.bf16.mxu0 %v11560
    %11814 = vmatpush1.bf16.msra.mxu0 %v11559
    %11815 = vmatprep.subr.bf16.mxu0 %v11558
    %11816 = vmatpush1.bf16.msra.mxu0 %v11557
    %11817 = vmatprep.subr.bf16.mxu0 %v11556
    %11818 = vmatpush1.bf16.msra.mxu0 %v11555
    %11819 = vmatprep.subr.bf16.mxu0 %v11554
    %11820 = vmatpush1.bf16.msra.mxu0 %v11553
    %11821 = vmatprep.subr.bf16.mxu0 %v11552
    %11822 = vmatpush1.bf16.msra.mxu0 %v11551
    %11823 = vmatprep.subr.bf16.mxu0 %v11582
    %11824 = vmatpush2.bf16.msra.mxu0 %v11581
    %11825 = vmatprep.subr.bf16.mxu0 %v11580
    %11826 = vmatpush2.bf16.msra.mxu0 %v11579
    %11827 = vmatprep.subr.bf16.mxu0 %v11578
    %11828 = vmatpush2.bf16.msra.mxu0 %v11577
    %11829 = vmatprep.subr.bf16.mxu0 %v11576
    %11830 = vmatpush2.bf16.msra.mxu0 %v11575
    %11831 = vmatprep.subr.bf16.mxu0 %v11574
    %11832 = vmatpush2.bf16.msra.mxu0 %v11573
    %11833 = vmatprep.subr.bf16.mxu0 %v11572
    %11834 = vmatpush2.bf16.msra.mxu0 %v11571
    %11835 = vmatprep.subr.bf16.mxu0 %v11570
    %11836 = vmatpush2.bf16.msra.mxu0 %v11569
    %11837 = vmatprep.subr.bf16.mxu0 %v11568
    %11838 = vmatpush2.bf16.msra.mxu0 %v11567
    %11839 = vmatprep.mubr.bf16.mxu0 %v11152
    %11840 = vmatmul.mubr.bf16.gmra.mxu0 %v11151
    %v11841 = vpop.f32.mrf.mxu0
    %v11842 = vadd.f32 %v11132, %v11841
    %v11843 = vpop.f32.mrf.mxu0
    %v11844 = vadd.f32 %v11136, %v11843
    %v11845 = vpop.f32.mrf.mxu0
    %v11846 = vpop.f32.mrf.mxu0
    %11847 = vdwg.mxu0
    %11848 = vmatprep.subr.bf16.mxu0 %v11598
    %11849 = vmatpush1.bf16.msra.mxu0 %v11597
    %11850 = vmatprep.subr.bf16.mxu0 %v11596
    %11851 = vmatpush1.bf16.msra.mxu0 %v11595
    %11852 = vmatprep.subr.bf16.mxu0 %v11594
    %11853 = vmatpush1.bf16.msra.mxu0 %v11593
    %11854 = vmatprep.subr.bf16.mxu0 %v11592
    %11855 = vmatpush1.bf16.msra.mxu0 %v11591
    %11856 = vmatprep.subr.bf16.mxu0 %v11590
    %11857 = vmatpush1.bf16.msra.mxu0 %v11589
    %11858 = vmatprep.subr.bf16.mxu0 %v11588
    %11859 = vmatpush1.bf16.msra.mxu0 %v11587
    %11860 = vmatprep.subr.bf16.mxu0 %v11586
    %11861 = vmatpush1.bf16.msra.mxu0 %v11585
    %11862 = vmatprep.subr.bf16.mxu0 %v11584
    %11863 = vmatpush1.bf16.msra.mxu0 %v11583
    %11864 = vmatprep.subr.bf16.mxu0 %v11614
    %11865 = vmatpush2.bf16.msra.mxu0 %v11613
    %11866 = vmatprep.subr.bf16.mxu0 %v11612
    %11867 = vmatpush2.bf16.msra.mxu0 %v11611
    %11868 = vmatprep.subr.bf16.mxu0 %v11610
    %11869 = vmatpush2.bf16.msra.mxu0 %v11609
    %11870 = vmatprep.subr.bf16.mxu0 %v11608
    %11871 = vmatpush2.bf16.msra.mxu0 %v11607
    %11872 = vmatprep.subr.bf16.mxu0 %v11606
    %11873 = vmatpush2.bf16.msra.mxu0 %v11605
    %11874 = vmatprep.subr.bf16.mxu0 %v11604
    %11875 = vmatpush2.bf16.msra.mxu0 %v11603
    %11876 = vmatprep.subr.bf16.mxu0 %v11602
    %11877 = vmatpush2.bf16.msra.mxu0 %v11601
    %11878 = vmatprep.subr.bf16.mxu0 %v11600
    %11879 = vmatpush2.bf16.msra.mxu0 %v11599
    %11880 = vmatprep.mubr.bf16.mxu0 %v11154
    %11881 = vmatmul.mubr.bf16.gmra.mxu0 %v11153
    %v11882 = vpop.f32.mrf.mxu0
    %v11883 = vadd.f32 %v11842, %v11882
    %v11884 = vpop.f32.mrf.mxu0
    %v11885 = vadd.f32 %v11844, %v11884
    %v11886 = vpop.f32.mrf.mxu0
    %v11887 = vpop.f32.mrf.mxu0
    %11888 = vdwg.mxu0
    %11889 = vmatprep.subr.bf16.mxu0 %v11630
    %11890 = vmatpush1.bf16.msra.mxu0 %v11629
    %11891 = vmatprep.subr.bf16.mxu0 %v11628
    %11892 = vmatpush1.bf16.msra.mxu0 %v11627
    %11893 = vmatprep.subr.bf16.mxu0 %v11626
    %11894 = vmatpush1.bf16.msra.mxu0 %v11625
    %11895 = vmatprep.subr.bf16.mxu0 %v11624
    %11896 = vmatpush1.bf16.msra.mxu0 %v11623
    %11897 = vmatprep.subr.bf16.mxu0 %v11622
    %11898 = vmatpush1.bf16.msra.mxu0 %v11621
    %11899 = vmatprep.subr.bf16.mxu0 %v11620
    %11900 = vmatpush1.bf16.msra.mxu0 %v11619
    %11901 = vmatprep.subr.bf16.mxu0 %v11618
    %11902 = vmatpush1.bf16.msra.mxu0 %v11617
    %11903 = vmatprep.subr.bf16.mxu0 %v11616
    %11904 = vmatpush1.bf16.msra.mxu0 %v11615
    %11905 = vmatprep.subr.bf16.mxu0 %v11646
    %11906 = vmatpush2.bf16.msra.mxu0 %v11645
    %11907 = vmatprep.subr.bf16.mxu0 %v11644
    %11908 = vmatpush2.bf16.msra.mxu0 %v11643
    %11909 = vmatprep.subr.bf16.mxu0 %v11642
    %11910 = vmatpush2.bf16.msra.mxu0 %v11641
    %11911 = vmatprep.subr.bf16.mxu0 %v11640
    %11912 = vmatpush2.bf16.msra.mxu0 %v11639
    %11913 = vmatprep.subr.bf16.mxu0 %v11638
    %11914 = vmatpush2.bf16.msra.mxu0 %v11637
    %11915 = vmatprep.subr.bf16.mxu0 %v11636
    %11916 = vmatpush2.bf16.msra.mxu0 %v11635
    %11917 = vmatprep.subr.bf16.mxu0 %v11634
    %11918 = vmatpush2.bf16.msra.mxu0 %v11633
    %11919 = vmatprep.subr.bf16.mxu0 %v11632
    %11920 = vmatpush2.bf16.msra.mxu0 %v11631
    %11921 = vmatprep.mubr.bf16.mxu0 %v11156
    %11922 = vmatmul.mubr.bf16.gmra.mxu0 %v11155
    %v11923 = vpop.f32.mrf.mxu0
    %v11924 = vadd.f32 %v11883, %v11923
    %v11925 = vpop.f32.mrf.mxu0
    %v11926 = vadd.f32 %v11885, %v11925
    %v11927 = vpop.f32.mrf.mxu0
    %v11928 = vpop.f32.mrf.mxu0
    %11929 = vdwg.mxu0
    %11930 = vmatprep.subr.bf16.mxu0 %v11662
    %11931 = vmatpush1.bf16.msra.mxu0 %v11661
    %11932 = vmatprep.subr.bf16.mxu0 %v11660
    %11933 = vmatpush1.bf16.msra.mxu0 %v11659
    %11934 = vmatprep.subr.bf16.mxu0 %v11658
    %11935 = vmatpush1.bf16.msra.mxu0 %v11657
    %11936 = vmatprep.subr.bf16.mxu0 %v11656
    %11937 = vmatpush1.bf16.msra.mxu0 %v11655
    %11938 = vmatprep.subr.bf16.mxu0 %v11654
    %11939 = vmatpush1.bf16.msra.mxu0 %v11653
    %11940 = vmatprep.subr.bf16.mxu0 %v11652
    %11941 = vmatpush1.bf16.msra.mxu0 %v11651
    %11942 = vmatprep.subr.bf16.mxu0 %v11650
    %11943 = vmatpush1.bf16.msra.mxu0 %v11649
    %11944 = vmatprep.subr.bf16.mxu0 %v11648
    %11945 = vmatpush1.bf16.msra.mxu0 %v11647
    %11946 = vmatprep.subr.bf16.mxu0 %v11678
    %11947 = vmatpush2.bf16.msra.mxu0 %v11677
    %11948 = vmatprep.subr.bf16.mxu0 %v11676
    %11949 = vmatpush2.bf16.msra.mxu0 %v11675
    %11950 = vmatprep.subr.bf16.mxu0 %v11674
    %11951 = vmatpush2.bf16.msra.mxu0 %v11673
    %11952 = vmatprep.subr.bf16.mxu0 %v11672
    %11953 = vmatpush2.bf16.msra.mxu0 %v11671
    %11954 = vmatprep.subr.bf16.mxu0 %v11670
    %11955 = vmatpush2.bf16.msra.mxu0 %v11669
    %11956 = vmatprep.subr.bf16.mxu0 %v11668
    %11957 = vmatpush2.bf16.msra.mxu0 %v11667
    %11958 = vmatprep.subr.bf16.mxu0 %v11666
    %11959 = vmatpush2.bf16.msra.mxu0 %v11665
    %11960 = vmatprep.subr.bf16.mxu0 %v11664
    %11961 = vmatpush2.bf16.msra.mxu0 %v11663
    %11962 = vmatprep.mubr.bf16.mxu0 %v11158
    %11963 = vmatmul.mubr.bf16.gmra.mxu0 %v11157
    %v11964 = vpop.f32.mrf.mxu0
    %v11965 = vadd.f32 %v11924, %v11964
    %v11966 = vpop.f32.mrf.mxu0
    %v11967 = vadd.f32 %v11926, %v11966
    %v11968 = vpop.f32.mrf.mxu0
    %v11969 = vpop.f32.mrf.mxu0
    %11970 = vdwg.mxu0
    %v11971 = vmax.f32 %v11965, 0.0
    %v11972 = vmax.f32 %v11967, 0.0
    %v11973 = vpack.c.bf16 %v11971, %v11971
    %v11974 = vpack.c.bf16 %v11972, %v11972
    %v11977 = vunpack.c.l.b16 %v11973
    %v11978 = vunpack.c.l.b16 %v11974
    %v11979 = vpack.c.b16 %v11978, %v11977
    %11981 = vst [vmem:[#allocation2] sm:$0xff] %v11979
    %v11982 = vld [vmem:[#allocation6 + $0x8] sm:$0xff]
    %v11983 = vld [vmem:[#allocation6 + $0x18] sm:$0xff]
    %v11984 = vld [vmem:[#allocation6 + $0x28] sm:$0xff]
    %v11985 = vld [vmem:[#allocation6 + $0x38] sm:$0xff]
    %v11986 = vld [vmem:[#allocation6 + $0x48] sm:$0xff]
    %v11987 = vld [vmem:[#allocation6 + $0x58] sm:$0xff]
    %v11988 = vld [vmem:[#allocation6 + $0x68] sm:$0xff]
    %v11989 = vld [vmem:[#allocation6 + $0x78] sm:$0xff]
    %v11990 = vld [vmem:[#allocation6 + $0x88] sm:$0xff]
    %v11991 = vld [vmem:[#allocation6 + $0x98] sm:$0xff]
    %v11992 = vld [vmem:[#allocation6 + $0xa8] sm:$0xff]
    %v11993 = vld [vmem:[#allocation6 + $0xb8] sm:$0xff]
    %v11994 = vld [vmem:[#allocation6 + $0xc8] sm:$0xff]
    %v11995 = vld [vmem:[#allocation6 + $0xd8] sm:$0xff]
    %v11996 = vld [vmem:[#allocation6 + $0xe8] sm:$0xff]
    %v11997 = vld [vmem:[#allocation6 + $0xf8] sm:$0xff]
    %v11998 = vld [vmem:[#allocation6 + $0x108] sm:$0xff]
    %v11999 = vld [vmem:[#allocation6 + $0x118] sm:$0xff]
    %v12000 = vld [vmem:[#allocation6 + $0x128] sm:$0xff]
    %v12001 = vld [vmem:[#allocation6 + $0x138] sm:$0xff]
    %v12002 = vld [vmem:[#allocation6 + $0x148] sm:$0xff]
    %v12003 = vld [vmem:[#allocation6 + $0x158] sm:$0xff]
    %v12004 = vld [vmem:[#allocation6 + $0x168] sm:$0xff]
    %v12005 = vld [vmem:[#allocation6 + $0x178] sm:$0xff]
    %v12006 = vld [vmem:[#allocation6 + $0x188] sm:$0xff]
    %v12007 = vld [vmem:[#allocation6 + $0x198] sm:$0xff]
    %v12008 = vld [vmem:[#allocation6 + $0x1a8] sm:$0xff]
    %v12009 = vld [vmem:[#allocation6 + $0x1b8] sm:$0xff]
    %v12010 = vld [vmem:[#allocation6 + $0x1c8] sm:$0xff]
    %v12011 = vld [vmem:[#allocation6 + $0x1d8] sm:$0xff]
    %v12012 = vld [vmem:[#allocation6 + $0x1e8] sm:$0xff]
    %v12013 = vld [vmem:[#allocation6 + $0x1f8] sm:$0xff]
    %v12014 = vld [vmem:[#allocation6 + $0x208] sm:$0xff]
    %v12015 = vld [vmem:[#allocation6 + $0x218] sm:$0xff]
    %v12016 = vld [vmem:[#allocation6 + $0x228] sm:$0xff]
    %v12017 = vld [vmem:[#allocation6 + $0x238] sm:$0xff]
    %v12018 = vld [vmem:[#allocation6 + $0x248] sm:$0xff]
    %v12019 = vld [vmem:[#allocation6 + $0x258] sm:$0xff]
    %v12020 = vld [vmem:[#allocation6 + $0x268] sm:$0xff]
    %v12021 = vld [vmem:[#allocation6 + $0x278] sm:$0xff]
    %v12022 = vld [vmem:[#allocation6 + $0x288] sm:$0xff]
    %v12023 = vld [vmem:[#allocation6 + $0x298] sm:$0xff]
    %v12024 = vld [vmem:[#allocation6 + $0x2a8] sm:$0xff]
    %v12025 = vld [vmem:[#allocation6 + $0x2b8] sm:$0xff]
    %v12026 = vld [vmem:[#allocation6 + $0x2c8] sm:$0xff]
    %v12027 = vld [vmem:[#allocation6 + $0x2d8] sm:$0xff]
    %v12028 = vld [vmem:[#allocation6 + $0x2e8] sm:$0xff]
    %v12029 = vld [vmem:[#allocation6 + $0x2f8] sm:$0xff]
    %v12030 = vld [vmem:[#allocation6 + $0x308] sm:$0xff]
    %v12031 = vld [vmem:[#allocation6 + $0x318] sm:$0xff]
    %v12032 = vld [vmem:[#allocation6 + $0x328] sm:$0xff]
    %v12033 = vld [vmem:[#allocation6 + $0x338] sm:$0xff]
    %v12034 = vld [vmem:[#allocation6 + $0x348] sm:$0xff]
    %v12035 = vld [vmem:[#allocation6 + $0x358] sm:$0xff]
    %v12036 = vld [vmem:[#allocation6 + $0x368] sm:$0xff]
    %v12037 = vld [vmem:[#allocation6 + $0x378] sm:$0xff]
    %v12038 = vld [vmem:[#allocation6 + $0x388] sm:$0xff]
    %v12039 = vld [vmem:[#allocation6 + $0x398] sm:$0xff]
    %v12040 = vld [vmem:[#allocation6 + $0x3a8] sm:$0xff]
    %v12041 = vld [vmem:[#allocation6 + $0x3b8] sm:$0xff]
    %v12042 = vld [vmem:[#allocation6 + $0x3c8] sm:$0xff]
    %v12043 = vld [vmem:[#allocation6 + $0x3d8] sm:$0xff]
    %v12044 = vld [vmem:[#allocation6 + $0x3e8] sm:$0xff]
    %v12045 = vld [vmem:[#allocation6 + $0x3f8] sm:$0xff]
    %v12046 = vld [vmem:[#allocation6 + $0x408] sm:$0xff]
    %v12047 = vld [vmem:[#allocation6 + $0x418] sm:$0xff]
    %v12048 = vld [vmem:[#allocation6 + $0x428] sm:$0xff]
    %v12049 = vld [vmem:[#allocation6 + $0x438] sm:$0xff]
    %v12050 = vld [vmem:[#allocation6 + $0x448] sm:$0xff]
    %v12051 = vld [vmem:[#allocation6 + $0x458] sm:$0xff]
    %v12052 = vld [vmem:[#allocation6 + $0x468] sm:$0xff]
    %v12053 = vld [vmem:[#allocation6 + $0x478] sm:$0xff]
    %v12054 = vld [vmem:[#allocation6 + $0x488] sm:$0xff]
    %v12055 = vld [vmem:[#allocation6 + $0x498] sm:$0xff]
    %v12056 = vld [vmem:[#allocation6 + $0x4a8] sm:$0xff]
    %v12057 = vld [vmem:[#allocation6 + $0x4b8] sm:$0xff]
    %v12058 = vld [vmem:[#allocation6 + $0x4c8] sm:$0xff]
    %v12059 = vld [vmem:[#allocation6 + $0x4d8] sm:$0xff]
    %v12060 = vld [vmem:[#allocation6 + $0x4e8] sm:$0xff]
    %v12061 = vld [vmem:[#allocation6 + $0x4f8] sm:$0xff]
    %v12062 = vld [vmem:[#allocation6 + $0x508] sm:$0xff]
    %v12063 = vld [vmem:[#allocation6 + $0x518] sm:$0xff]
    %v12064 = vld [vmem:[#allocation6 + $0x528] sm:$0xff]
    %v12065 = vld [vmem:[#allocation6 + $0x538] sm:$0xff]
    %v12066 = vld [vmem:[#allocation6 + $0x548] sm:$0xff]
    %v12067 = vld [vmem:[#allocation6 + $0x558] sm:$0xff]
    %v12068 = vld [vmem:[#allocation6 + $0x568] sm:$0xff]
    %v12069 = vld [vmem:[#allocation6 + $0x578] sm:$0xff]
    %v12070 = vld [vmem:[#allocation6 + $0x588] sm:$0xff]
    %v12071 = vld [vmem:[#allocation6 + $0x598] sm:$0xff]
    %v12072 = vld [vmem:[#allocation6 + $0x5a8] sm:$0xff]
    %v12073 = vld [vmem:[#allocation6 + $0x5b8] sm:$0xff]
    %v12074 = vld [vmem:[#allocation6 + $0x5c8] sm:$0xff]
    %v12075 = vld [vmem:[#allocation6 + $0x5d8] sm:$0xff]
    %v12076 = vld [vmem:[#allocation6 + $0x5e8] sm:$0xff]
    %v12077 = vld [vmem:[#allocation6 + $0x5f8] sm:$0xff]
    %v12078 = vld [vmem:[#allocation6 + $0x608] sm:$0xff]
    %v12079 = vld [vmem:[#allocation6 + $0x618] sm:$0xff]
    %v12080 = vld [vmem:[#allocation6 + $0x628] sm:$0xff]
    %v12081 = vld [vmem:[#allocation6 + $0x638] sm:$0xff]
    %v12082 = vld [vmem:[#allocation6 + $0x648] sm:$0xff]
    %v12083 = vld [vmem:[#allocation6 + $0x658] sm:$0xff]
    %v12084 = vld [vmem:[#allocation6 + $0x668] sm:$0xff]
    %v12085 = vld [vmem:[#allocation6 + $0x678] sm:$0xff]
    %v12086 = vld [vmem:[#allocation6 + $0x688] sm:$0xff]
    %v12087 = vld [vmem:[#allocation6 + $0x698] sm:$0xff]
    %v12088 = vld [vmem:[#allocation6 + $0x6a8] sm:$0xff]
    %v12089 = vld [vmem:[#allocation6 + $0x6b8] sm:$0xff]
    %v12090 = vld [vmem:[#allocation6 + $0x6c8] sm:$0xff]
    %v12091 = vld [vmem:[#allocation6 + $0x6d8] sm:$0xff]
    %v12092 = vld [vmem:[#allocation6 + $0x6e8] sm:$0xff]
    %v12093 = vld [vmem:[#allocation6 + $0x6f8] sm:$0xff]
    %v12094 = vld [vmem:[#allocation6 + $0x708] sm:$0xff]
    %v12095 = vld [vmem:[#allocation6 + $0x718] sm:$0xff]
    %v12096 = vld [vmem:[#allocation6 + $0x728] sm:$0xff]
    %v12097 = vld [vmem:[#allocation6 + $0x738] sm:$0xff]
    %v12098 = vld [vmem:[#allocation6 + $0x748] sm:$0xff]
    %v12099 = vld [vmem:[#allocation6 + $0x758] sm:$0xff]
    %v12100 = vld [vmem:[#allocation6 + $0x768] sm:$0xff]
    %v12101 = vld [vmem:[#allocation6 + $0x778] sm:$0xff]
    %v12102 = vld [vmem:[#allocation6 + $0x788] sm:$0xff]
    %v12103 = vld [vmem:[#allocation6 + $0x798] sm:$0xff]
    %v12104 = vld [vmem:[#allocation6 + $0x7a8] sm:$0xff]
    %v12105 = vld [vmem:[#allocation6 + $0x7b8] sm:$0xff]
    %v12106 = vld [vmem:[#allocation6 + $0x7c8] sm:$0xff]
    %v12107 = vld [vmem:[#allocation6 + $0x7d8] sm:$0xff]
    %v12108 = vld [vmem:[#allocation6 + $0x7e8] sm:$0xff]
    %v12109 = vld [vmem:[#allocation6 + $0x7f8] sm:$0xff]
    %v12110 = vld [vmem:[#allocation14 + $0x2] sm:$0x3]
    %v12112 = vlaneseq
    %v12113 = vshrl.u32 %v12112, 7
    %v12114 = vsub.s32 0, %v12113
    %v12115 = vrot.slane %v12110, %v12114
    %v12116 = vlaneseq
    %v12117 = vshrl.u32 %v12116, 7
    %v12118 = vsub.s32 1, %v12117
    %v12119 = vrot.slane %v12110, %v12118
    %v12250 = vunpack.c.l.b16 %v11982
    %v12251 = vunpack.c.h.b16 %v11982
    %v12252 = vunpack.c.l.b16 %v11983
    %v12253 = vunpack.c.h.b16 %v11983
    %v12254 = vunpack.c.l.b16 %v11984
    %v12255 = vunpack.c.h.b16 %v11984
    %v12256 = vunpack.c.l.b16 %v11985
    %v12257 = vunpack.c.h.b16 %v11985
    %v12258 = vunpack.c.l.b16 %v11986
    %v12259 = vunpack.c.h.b16 %v11986
    %v12260 = vunpack.c.l.b16 %v11987
    %v12261 = vunpack.c.h.b16 %v11987
    %v12262 = vunpack.c.l.b16 %v11988
    %v12263 = vunpack.c.h.b16 %v11988
    %v12264 = vunpack.c.l.b16 %v11989
    %v12265 = vunpack.c.h.b16 %v11989
    %v12266 = vunpack.c.l.b16 %v11990
    %v12267 = vunpack.c.h.b16 %v11990
    %v12268 = vunpack.c.l.b16 %v11991
    %v12269 = vunpack.c.h.b16 %v11991
    %v12270 = vunpack.c.l.b16 %v11992
    %v12271 = vunpack.c.h.b16 %v11992
    %v12272 = vunpack.c.l.b16 %v11993
    %v12273 = vunpack.c.h.b16 %v11993
    %v12274 = vunpack.c.l.b16 %v11994
    %v12275 = vunpack.c.h.b16 %v11994
    %v12276 = vunpack.c.l.b16 %v11995
    %v12277 = vunpack.c.h.b16 %v11995
    %v12278 = vunpack.c.l.b16 %v11996
    %v12279 = vunpack.c.h.b16 %v11996
    %v12280 = vunpack.c.l.b16 %v11997
    %v12281 = vunpack.c.h.b16 %v11997
    %v12282 = vunpack.c.l.b16 %v11998
    %v12283 = vunpack.c.h.b16 %v11998
    %v12284 = vunpack.c.l.b16 %v11999
    %v12285 = vunpack.c.h.b16 %v11999
    %v12286 = vunpack.c.l.b16 %v12000
    %v12287 = vunpack.c.h.b16 %v12000
    %v12288 = vunpack.c.l.b16 %v12001
    %v12289 = vunpack.c.h.b16 %v12001
    %v12290 = vunpack.c.l.b16 %v12002
    %v12291 = vunpack.c.h.b16 %v12002
    %v12292 = vunpack.c.l.b16 %v12003
    %v12293 = vunpack.c.h.b16 %v12003
    %v12294 = vunpack.c.l.b16 %v12004
    %v12295 = vunpack.c.h.b16 %v12004
    %v12296 = vunpack.c.l.b16 %v12005
    %v12297 = vunpack.c.h.b16 %v12005
    %v12298 = vunpack.c.l.b16 %v12006
    %v12299 = vunpack.c.h.b16 %v12006
    %v12300 = vunpack.c.l.b16 %v12007
    %v12301 = vunpack.c.h.b16 %v12007
    %v12302 = vunpack.c.l.b16 %v12008
    %v12303 = vunpack.c.h.b16 %v12008
    %v12304 = vunpack.c.l.b16 %v12009
    %v12305 = vunpack.c.h.b16 %v12009
    %v12306 = vunpack.c.l.b16 %v12010
    %v12307 = vunpack.c.h.b16 %v12010
    %v12308 = vunpack.c.l.b16 %v12011
    %v12309 = vunpack.c.h.b16 %v12011
    %v12310 = vunpack.c.l.b16 %v12012
    %v12311 = vunpack.c.h.b16 %v12012
    %v12312 = vunpack.c.l.b16 %v12013
    %v12313 = vunpack.c.h.b16 %v12013
    %v12314 = vunpack.c.l.b16 %v12014
    %v12315 = vunpack.c.h.b16 %v12014
    %v12316 = vunpack.c.l.b16 %v12015
    %v12317 = vunpack.c.h.b16 %v12015
    %v12318 = vunpack.c.l.b16 %v12016
    %v12319 = vunpack.c.h.b16 %v12016
    %v12320 = vunpack.c.l.b16 %v12017
    %v12321 = vunpack.c.h.b16 %v12017
    %v12322 = vunpack.c.l.b16 %v12018
    %v12323 = vunpack.c.h.b16 %v12018
    %v12324 = vunpack.c.l.b16 %v12019
    %v12325 = vunpack.c.h.b16 %v12019
    %v12326 = vunpack.c.l.b16 %v12020
    %v12327 = vunpack.c.h.b16 %v12020
    %v12328 = vunpack.c.l.b16 %v12021
    %v12329 = vunpack.c.h.b16 %v12021
    %v12330 = vunpack.c.l.b16 %v12022
    %v12331 = vunpack.c.h.b16 %v12022
    %v12332 = vunpack.c.l.b16 %v12023
    %v12333 = vunpack.c.h.b16 %v12023
    %v12334 = vunpack.c.l.b16 %v12024
    %v12335 = vunpack.c.h.b16 %v12024
    %v12336 = vunpack.c.l.b16 %v12025
    %v12337 = vunpack.c.h.b16 %v12025
    %v12338 = vunpack.c.l.b16 %v12026
    %v12339 = vunpack.c.h.b16 %v12026
    %v12340 = vunpack.c.l.b16 %v12027
    %v12341 = vunpack.c.h.b16 %v12027
    %v12342 = vunpack.c.l.b16 %v12028
    %v12343 = vunpack.c.h.b16 %v12028
    %v12344 = vunpack.c.l.b16 %v12029
    %v12345 = vunpack.c.h.b16 %v12029
    %v12346 = vunpack.c.l.b16 %v12030
    %v12347 = vunpack.c.h.b16 %v12030
    %v12348 = vunpack.c.l.b16 %v12031
    %v12349 = vunpack.c.h.b16 %v12031
    %v12350 = vunpack.c.l.b16 %v12032
    %v12351 = vunpack.c.h.b16 %v12032
    %v12352 = vunpack.c.l.b16 %v12033
    %v12353 = vunpack.c.h.b16 %v12033
    %v12354 = vunpack.c.l.b16 %v12034
    %v12355 = vunpack.c.h.b16 %v12034
    %v12356 = vunpack.c.l.b16 %v12035
    %v12357 = vunpack.c.h.b16 %v12035
    %v12358 = vunpack.c.l.b16 %v12036
    %v12359 = vunpack.c.h.b16 %v12036
    %v12360 = vunpack.c.l.b16 %v12037
    %v12361 = vunpack.c.h.b16 %v12037
    %v12362 = vunpack.c.l.b16 %v12038
    %v12363 = vunpack.c.h.b16 %v12038
    %v12364 = vunpack.c.l.b16 %v12039
    %v12365 = vunpack.c.h.b16 %v12039
    %v12366 = vunpack.c.l.b16 %v12040
    %v12367 = vunpack.c.h.b16 %v12040
    %v12368 = vunpack.c.l.b16 %v12041
    %v12369 = vunpack.c.h.b16 %v12041
    %v12370 = vunpack.c.l.b16 %v12042
    %v12371 = vunpack.c.h.b16 %v12042
    %v12372 = vunpack.c.l.b16 %v12043
    %v12373 = vunpack.c.h.b16 %v12043
    %v12374 = vunpack.c.l.b16 %v12044
    %v12375 = vunpack.c.h.b16 %v12044
    %v12376 = vunpack.c.l.b16 %v12045
    %v12377 = vunpack.c.h.b16 %v12045
    %v12378 = vunpack.c.l.b16 %v12046
    %v12379 = vunpack.c.h.b16 %v12046
    %v12380 = vunpack.c.l.b16 %v12047
    %v12381 = vunpack.c.h.b16 %v12047
    %v12382 = vunpack.c.l.b16 %v12048
    %v12383 = vunpack.c.h.b16 %v12048
    %v12384 = vunpack.c.l.b16 %v12049
    %v12385 = vunpack.c.h.b16 %v12049
    %v12386 = vunpack.c.l.b16 %v12050
    %v12387 = vunpack.c.h.b16 %v12050
    %v12388 = vunpack.c.l.b16 %v12051
    %v12389 = vunpack.c.h.b16 %v12051
    %v12390 = vunpack.c.l.b16 %v12052
    %v12391 = vunpack.c.h.b16 %v12052
    %v12392 = vunpack.c.l.b16 %v12053
    %v12393 = vunpack.c.h.b16 %v12053
    %v12394 = vunpack.c.l.b16 %v12054
    %v12395 = vunpack.c.h.b16 %v12054
    %v12396 = vunpack.c.l.b16 %v12055
    %v12397 = vunpack.c.h.b16 %v12055
    %v12398 = vunpack.c.l.b16 %v12056
    %v12399 = vunpack.c.h.b16 %v12056
    %v12400 = vunpack.c.l.b16 %v12057
    %v12401 = vunpack.c.h.b16 %v12057
    %v12402 = vunpack.c.l.b16 %v12058
    %v12403 = vunpack.c.h.b16 %v12058
    %v12404 = vunpack.c.l.b16 %v12059
    %v12405 = vunpack.c.h.b16 %v12059
    %v12406 = vunpack.c.l.b16 %v12060
    %v12407 = vunpack.c.h.b16 %v12060
    %v12408 = vunpack.c.l.b16 %v12061
    %v12409 = vunpack.c.h.b16 %v12061
    %v12410 = vunpack.c.l.b16 %v12062
    %v12411 = vunpack.c.h.b16 %v12062
    %v12412 = vunpack.c.l.b16 %v12063
    %v12413 = vunpack.c.h.b16 %v12063
    %v12414 = vunpack.c.l.b16 %v12064
    %v12415 = vunpack.c.h.b16 %v12064
    %v12416 = vunpack.c.l.b16 %v12065
    %v12417 = vunpack.c.h.b16 %v12065
    %v12418 = vunpack.c.l.b16 %v12066
    %v12419 = vunpack.c.h.b16 %v12066
    %v12420 = vunpack.c.l.b16 %v12067
    %v12421 = vunpack.c.h.b16 %v12067
    %v12422 = vunpack.c.l.b16 %v12068
    %v12423 = vunpack.c.h.b16 %v12068
    %v12424 = vunpack.c.l.b16 %v12069
    %v12425 = vunpack.c.h.b16 %v12069
    %v12426 = vunpack.c.l.b16 %v12070
    %v12427 = vunpack.c.h.b16 %v12070
    %v12428 = vunpack.c.l.b16 %v12071
    %v12429 = vunpack.c.h.b16 %v12071
    %v12430 = vunpack.c.l.b16 %v12072
    %v12431 = vunpack.c.h.b16 %v12072
    %v12432 = vunpack.c.l.b16 %v12073
    %v12433 = vunpack.c.h.b16 %v12073
    %v12434 = vunpack.c.l.b16 %v12074
    %v12435 = vunpack.c.h.b16 %v12074
    %v12436 = vunpack.c.l.b16 %v12075
    %v12437 = vunpack.c.h.b16 %v12075
    %v12438 = vunpack.c.l.b16 %v12076
    %v12439 = vunpack.c.h.b16 %v12076
    %v12440 = vunpack.c.l.b16 %v12077
    %v12441 = vunpack.c.h.b16 %v12077
    %v12442 = vunpack.c.l.b16 %v12078
    %v12443 = vunpack.c.h.b16 %v12078
    %v12444 = vunpack.c.l.b16 %v12079
    %v12445 = vunpack.c.h.b16 %v12079
    %v12446 = vunpack.c.l.b16 %v12080
    %v12447 = vunpack.c.h.b16 %v12080
    %v12448 = vunpack.c.l.b16 %v12081
    %v12449 = vunpack.c.h.b16 %v12081
    %v12450 = vunpack.c.l.b16 %v12082
    %v12451 = vunpack.c.h.b16 %v12082
    %v12452 = vunpack.c.l.b16 %v12083
    %v12453 = vunpack.c.h.b16 %v12083
    %v12454 = vunpack.c.l.b16 %v12084
    %v12455 = vunpack.c.h.b16 %v12084
    %v12456 = vunpack.c.l.b16 %v12085
    %v12457 = vunpack.c.h.b16 %v12085
    %v12458 = vunpack.c.l.b16 %v12086
    %v12459 = vunpack.c.h.b16 %v12086
    %v12460 = vunpack.c.l.b16 %v12087
    %v12461 = vunpack.c.h.b16 %v12087
    %v12462 = vunpack.c.l.b16 %v12088
    %v12463 = vunpack.c.h.b16 %v12088
    %v12464 = vunpack.c.l.b16 %v12089
    %v12465 = vunpack.c.h.b16 %v12089
    %v12466 = vunpack.c.l.b16 %v12090
    %v12467 = vunpack.c.h.b16 %v12090
    %v12468 = vunpack.c.l.b16 %v12091
    %v12469 = vunpack.c.h.b16 %v12091
    %v12470 = vunpack.c.l.b16 %v12092
    %v12471 = vunpack.c.h.b16 %v12092
    %v12472 = vunpack.c.l.b16 %v12093
    %v12473 = vunpack.c.h.b16 %v12093
    %v12474 = vunpack.c.l.b16 %v12094
    %v12475 = vunpack.c.h.b16 %v12094
    %v12476 = vunpack.c.l.b16 %v12095
    %v12477 = vunpack.c.h.b16 %v12095
    %v12478 = vunpack.c.l.b16 %v12096
    %v12479 = vunpack.c.h.b16 %v12096
    %v12480 = vunpack.c.l.b16 %v12097
    %v12481 = vunpack.c.h.b16 %v12097
    %v12482 = vunpack.c.l.b16 %v12098
    %v12483 = vunpack.c.h.b16 %v12098
    %v12484 = vunpack.c.l.b16 %v12099
    %v12485 = vunpack.c.h.b16 %v12099
    %v12486 = vunpack.c.l.b16 %v12100
    %v12487 = vunpack.c.h.b16 %v12100
    %v12488 = vunpack.c.l.b16 %v12101
    %v12489 = vunpack.c.h.b16 %v12101
    %v12490 = vunpack.c.l.b16 %v12102
    %v12491 = vunpack.c.h.b16 %v12102
    %v12492 = vunpack.c.l.b16 %v12103
    %v12493 = vunpack.c.h.b16 %v12103
    %v12494 = vunpack.c.l.b16 %v12104
    %v12495 = vunpack.c.h.b16 %v12104
    %v12496 = vunpack.c.l.b16 %v12105
    %v12497 = vunpack.c.h.b16 %v12105
    %v12498 = vunpack.c.l.b16 %v12106
    %v12499 = vunpack.c.h.b16 %v12106
    %v12500 = vunpack.c.l.b16 %v12107
    %v12501 = vunpack.c.h.b16 %v12107
    %v12502 = vunpack.c.l.b16 %v12108
    %v12503 = vunpack.c.h.b16 %v12108
    %v12504 = vunpack.c.l.b16 %v12109
    %v12505 = vunpack.c.h.b16 %v12109
    %v12506 = vpack.c.b16 %v12252, %v12250
    %v12507 = vpack.c.b16 %v12253, %v12251
    %v12508 = vpack.c.b16 %v12256, %v12254
    %v12509 = vpack.c.b16 %v12257, %v12255
    %v12510 = vpack.c.b16 %v12260, %v12258
    %v12511 = vpack.c.b16 %v12261, %v12259
    %v12512 = vpack.c.b16 %v12264, %v12262
    %v12513 = vpack.c.b16 %v12265, %v12263
    %v12514 = vpack.c.b16 %v12268, %v12266
    %v12515 = vpack.c.b16 %v12269, %v12267
    %v12516 = vpack.c.b16 %v12272, %v12270
    %v12517 = vpack.c.b16 %v12273, %v12271
    %v12518 = vpack.c.b16 %v12276, %v12274
    %v12519 = vpack.c.b16 %v12277, %v12275
    %v12520 = vpack.c.b16 %v12280, %v12278
    %v12521 = vpack.c.b16 %v12281, %v12279
    %v12522 = vpack.c.b16 %v12284, %v12282
    %v12523 = vpack.c.b16 %v12285, %v12283
    %v12524 = vpack.c.b16 %v12288, %v12286
    %v12525 = vpack.c.b16 %v12289, %v12287
    %v12526 = vpack.c.b16 %v12292, %v12290
    %v12527 = vpack.c.b16 %v12293, %v12291
    %v12528 = vpack.c.b16 %v12296, %v12294
    %v12529 = vpack.c.b16 %v12297, %v12295
    %v12530 = vpack.c.b16 %v12300, %v12298
    %v12531 = vpack.c.b16 %v12301, %v12299
    %v12532 = vpack.c.b16 %v12304, %v12302
    %v12533 = vpack.c.b16 %v12305, %v12303
    %v12534 = vpack.c.b16 %v12308, %v12306
    %v12535 = vpack.c.b16 %v12309, %v12307
    %v12536 = vpack.c.b16 %v12312, %v12310
    %v12537 = vpack.c.b16 %v12313, %v12311
    %v12538 = vpack.c.b16 %v12316, %v12314
    %v12539 = vpack.c.b16 %v12317, %v12315
    %v12540 = vpack.c.b16 %v12320, %v12318
    %v12541 = vpack.c.b16 %v12321, %v12319
    %v12542 = vpack.c.b16 %v12324, %v12322
    %v12543 = vpack.c.b16 %v12325, %v12323
    %v12544 = vpack.c.b16 %v12328, %v12326
    %v12545 = vpack.c.b16 %v12329, %v12327
    %v12546 = vpack.c.b16 %v12332, %v12330
    %v12547 = vpack.c.b16 %v12333, %v12331
    %v12548 = vpack.c.b16 %v12336, %v12334
    %v12549 = vpack.c.b16 %v12337, %v12335
    %v12550 = vpack.c.b16 %v12340, %v12338
    %v12551 = vpack.c.b16 %v12341, %v12339
    %v12552 = vpack.c.b16 %v12344, %v12342
    %v12553 = vpack.c.b16 %v12345, %v12343
    %v12554 = vpack.c.b16 %v12348, %v12346
    %v12555 = vpack.c.b16 %v12349, %v12347
    %v12556 = vpack.c.b16 %v12352, %v12350
    %v12557 = vpack.c.b16 %v12353, %v12351
    %v12558 = vpack.c.b16 %v12356, %v12354
    %v12559 = vpack.c.b16 %v12357, %v12355
    %v12560 = vpack.c.b16 %v12360, %v12358
    %v12561 = vpack.c.b16 %v12361, %v12359
    %v12562 = vpack.c.b16 %v12364, %v12362
    %v12563 = vpack.c.b16 %v12365, %v12363
    %v12564 = vpack.c.b16 %v12368, %v12366
    %v12565 = vpack.c.b16 %v12369, %v12367
    %v12566 = vpack.c.b16 %v12372, %v12370
    %v12567 = vpack.c.b16 %v12373, %v12371
    %v12568 = vpack.c.b16 %v12376, %v12374
    %v12569 = vpack.c.b16 %v12377, %v12375
    %v12570 = vpack.c.b16 %v12380, %v12378
    %v12571 = vpack.c.b16 %v12381, %v12379
    %v12572 = vpack.c.b16 %v12384, %v12382
    %v12573 = vpack.c.b16 %v12385, %v12383
    %v12574 = vpack.c.b16 %v12388, %v12386
    %v12575 = vpack.c.b16 %v12389, %v12387
    %v12576 = vpack.c.b16 %v12392, %v12390
    %v12577 = vpack.c.b16 %v12393, %v12391
    %v12578 = vpack.c.b16 %v12396, %v12394
    %v12579 = vpack.c.b16 %v12397, %v12395
    %v12580 = vpack.c.b16 %v12400, %v12398
    %v12581 = vpack.c.b16 %v12401, %v12399
    %v12582 = vpack.c.b16 %v12404, %v12402
    %v12583 = vpack.c.b16 %v12405, %v12403
    %v12584 = vpack.c.b16 %v12408, %v12406
    %v12585 = vpack.c.b16 %v12409, %v12407
    %v12586 = vpack.c.b16 %v12412, %v12410
    %v12587 = vpack.c.b16 %v12413, %v12411
    %v12588 = vpack.c.b16 %v12416, %v12414
    %v12589 = vpack.c.b16 %v12417, %v12415
    %v12590 = vpack.c.b16 %v12420, %v12418
    %v12591 = vpack.c.b16 %v12421, %v12419
    %v12592 = vpack.c.b16 %v12424, %v12422
    %v12593 = vpack.c.b16 %v12425, %v12423
    %v12594 = vpack.c.b16 %v12428, %v12426
    %v12595 = vpack.c.b16 %v12429, %v12427
    %v12596 = vpack.c.b16 %v12432, %v12430
    %v12597 = vpack.c.b16 %v12433, %v12431
    %v12598 = vpack.c.b16 %v12436, %v12434
    %v12599 = vpack.c.b16 %v12437, %v12435
    %v12600 = vpack.c.b16 %v12440, %v12438
    %v12601 = vpack.c.b16 %v12441, %v12439
    %v12602 = vpack.c.b16 %v12444, %v12442
    %v12603 = vpack.c.b16 %v12445, %v12443
    %v12604 = vpack.c.b16 %v12448, %v12446
    %v12605 = vpack.c.b16 %v12449, %v12447
    %v12606 = vpack.c.b16 %v12452, %v12450
    %v12607 = vpack.c.b16 %v12453, %v12451
    %v12608 = vpack.c.b16 %v12456, %v12454
    %v12609 = vpack.c.b16 %v12457, %v12455
    %v12610 = vpack.c.b16 %v12460, %v12458
    %v12611 = vpack.c.b16 %v12461, %v12459
    %v12612 = vpack.c.b16 %v12464, %v12462
    %v12613 = vpack.c.b16 %v12465, %v12463
    %v12614 = vpack.c.b16 %v12468, %v12466
    %v12615 = vpack.c.b16 %v12469, %v12467
    %v12616 = vpack.c.b16 %v12472, %v12470
    %v12617 = vpack.c.b16 %v12473, %v12471
    %v12618 = vpack.c.b16 %v12476, %v12474
    %v12619 = vpack.c.b16 %v12477, %v12475
    %v12620 = vpack.c.b16 %v12480, %v12478
    %v12621 = vpack.c.b16 %v12481, %v12479
    %v12622 = vpack.c.b16 %v12484, %v12482
    %v12623 = vpack.c.b16 %v12485, %v12483
    %v12624 = vpack.c.b16 %v12488, %v12486
    %v12625 = vpack.c.b16 %v12489, %v12487
    %v12626 = vpack.c.b16 %v12492, %v12490
    %v12627 = vpack.c.b16 %v12493, %v12491
    %v12628 = vpack.c.b16 %v12496, %v12494
    %v12629 = vpack.c.b16 %v12497, %v12495
    %v12630 = vpack.c.b16 %v12500, %v12498
    %v12631 = vpack.c.b16 %v12501, %v12499
    %v12632 = vpack.c.b16 %v12504, %v12502
    %v12633 = vpack.c.b16 %v12505, %v12503
    %12762 = vmatprep.subr.bf16.mxu0 %v12521
    %12763 = vmatpush1.bf16.msra.mxu0 %v12520
    %12764 = vmatprep.subr.bf16.mxu0 %v12519
    %12765 = vmatpush1.bf16.msra.mxu0 %v12518
    %12766 = vmatprep.subr.bf16.mxu0 %v12517
    %12767 = vmatpush1.bf16.msra.mxu0 %v12516
    %12768 = vmatprep.subr.bf16.mxu0 %v12515
    %12769 = vmatpush1.bf16.msra.mxu0 %v12514
    %12770 = vmatprep.subr.bf16.mxu0 %v12513
    %12771 = vmatpush1.bf16.msra.mxu0 %v12512
    %12772 = vmatprep.subr.bf16.mxu0 %v12511
    %12773 = vmatpush1.bf16.msra.mxu0 %v12510
    %12774 = vmatprep.subr.bf16.mxu0 %v12509
    %12775 = vmatpush1.bf16.msra.mxu0 %v12508
    %12776 = vmatprep.subr.bf16.mxu0 %v12507
    %12777 = vmatpush1.bf16.msra.mxu0 %v12506
    %12778 = vmatprep.subr.bf16.mxu0 %v12537
    %12779 = vmatpush2.bf16.msra.mxu0 %v12536
    %12780 = vmatprep.subr.bf16.mxu0 %v12535
    %12781 = vmatpush2.bf16.msra.mxu0 %v12534
    %12782 = vmatprep.subr.bf16.mxu0 %v12533
    %12783 = vmatpush2.bf16.msra.mxu0 %v12532
    %12784 = vmatprep.subr.bf16.mxu0 %v12531
    %12785 = vmatpush2.bf16.msra.mxu0 %v12530
    %12786 = vmatprep.subr.bf16.mxu0 %v12529
    %12787 = vmatpush2.bf16.msra.mxu0 %v12528
    %12788 = vmatprep.subr.bf16.mxu0 %v12527
    %12789 = vmatpush2.bf16.msra.mxu0 %v12526
    %12790 = vmatprep.subr.bf16.mxu0 %v12525
    %12791 = vmatpush2.bf16.msra.mxu0 %v12524
    %12792 = vmatprep.subr.bf16.mxu0 %v12523
    %12793 = vmatpush2.bf16.msra.mxu0 %v12522
    %12794 = vmatprep.mubr.bf16.mxu0 %v11152
    %12795 = vmatmul.mubr.bf16.gmra.mxu0 %v11151
    %v12796 = vpop.f32.mrf.mxu0
    %v12797 = vadd.f32 %v12115, %v12796
    %v12798 = vpop.f32.mrf.mxu0
    %v12799 = vadd.f32 %v12119, %v12798
    %v12800 = vpop.f32.mrf.mxu0
    %v12801 = vpop.f32.mrf.mxu0
    %12802 = vdwg.mxu0
    %12803 = vmatprep.subr.bf16.mxu0 %v12553
    %12804 = vmatpush1.bf16.msra.mxu0 %v12552
    %12805 = vmatprep.subr.bf16.mxu0 %v12551
    %12806 = vmatpush1.bf16.msra.mxu0 %v12550
    %12807 = vmatprep.subr.bf16.mxu0 %v12549
    %12808 = vmatpush1.bf16.msra.mxu0 %v12548
    %12809 = vmatprep.subr.bf16.mxu0 %v12547
    %12810 = vmatpush1.bf16.msra.mxu0 %v12546
    %12811 = vmatprep.subr.bf16.mxu0 %v12545
    %12812 = vmatpush1.bf16.msra.mxu0 %v12544
    %12813 = vmatprep.subr.bf16.mxu0 %v12543
    %12814 = vmatpush1.bf16.msra.mxu0 %v12542
    %12815 = vmatprep.subr.bf16.mxu0 %v12541
    %12816 = vmatpush1.bf16.msra.mxu0 %v12540
    %12817 = vmatprep.subr.bf16.mxu0 %v12539
    %12818 = vmatpush1.bf16.msra.mxu0 %v12538
    %12819 = vmatprep.subr.bf16.mxu0 %v12569
    %12820 = vmatpush2.bf16.msra.mxu0 %v12568
    %12821 = vmatprep.subr.bf16.mxu0 %v12567
    %12822 = vmatpush2.bf16.msra.mxu0 %v12566
    %12823 = vmatprep.subr.bf16.mxu0 %v12565
    %12824 = vmatpush2.bf16.msra.mxu0 %v12564
    %12825 = vmatprep.subr.bf16.mxu0 %v12563
    %12826 = vmatpush2.bf16.msra.mxu0 %v12562
    %12827 = vmatprep.subr.bf16.mxu0 %v12561
    %12828 = vmatpush2.bf16.msra.mxu0 %v12560
    %12829 = vmatprep.subr.bf16.mxu0 %v12559
    %12830 = vmatpush2.bf16.msra.mxu0 %v12558
    %12831 = vmatprep.subr.bf16.mxu0 %v12557
    %12832 = vmatpush2.bf16.msra.mxu0 %v12556
    %12833 = vmatprep.subr.bf16.mxu0 %v12555
    %12834 = vmatpush2.bf16.msra.mxu0 %v12554
    %12835 = vmatprep.mubr.bf16.mxu0 %v11154
    %12836 = vmatmul.mubr.bf16.gmra.mxu0 %v11153
    %v12837 = vpop.f32.mrf.mxu0
    %v12838 = vadd.f32 %v12797, %v12837
    %v12839 = vpop.f32.mrf.mxu0
    %v12840 = vadd.f32 %v12799, %v12839
    %v12841 = vpop.f32.mrf.mxu0
    %v12842 = vpop.f32.mrf.mxu0
    %12843 = vdwg.mxu0
    %12844 = vmatprep.subr.bf16.mxu0 %v12585
    %12845 = vmatpush1.bf16.msra.mxu0 %v12584
    %12846 = vmatprep.subr.bf16.mxu0 %v12583
    %12847 = vmatpush1.bf16.msra.mxu0 %v12582
    %12848 = vmatprep.subr.bf16.mxu0 %v12581
    %12849 = vmatpush1.bf16.msra.mxu0 %v12580
    %12850 = vmatprep.subr.bf16.mxu0 %v12579
    %12851 = vmatpush1.bf16.msra.mxu0 %v12578
    %12852 = vmatprep.subr.bf16.mxu0 %v12577
    %12853 = vmatpush1.bf16.msra.mxu0 %v12576
    %12854 = vmatprep.subr.bf16.mxu0 %v12575
    %12855 = vmatpush1.bf16.msra.mxu0 %v12574
    %12856 = vmatprep.subr.bf16.mxu0 %v12573
    %12857 = vmatpush1.bf16.msra.mxu0 %v12572
    %12858 = vmatprep.subr.bf16.mxu0 %v12571
    %12859 = vmatpush1.bf16.msra.mxu0 %v12570
    %12860 = vmatprep.subr.bf16.mxu0 %v12601
    %12861 = vmatpush2.bf16.msra.mxu0 %v12600
    %12862 = vmatprep.subr.bf16.mxu0 %v12599
    %12863 = vmatpush2.bf16.msra.mxu0 %v12598
    %12864 = vmatprep.subr.bf16.mxu0 %v12597
    %12865 = vmatpush2.bf16.msra.mxu0 %v12596
    %12866 = vmatprep.subr.bf16.mxu0 %v12595
    %12867 = vmatpush2.bf16.msra.mxu0 %v12594
    %12868 = vmatprep.subr.bf16.mxu0 %v12593
    %12869 = vmatpush2.bf16.msra.mxu0 %v12592
    %12870 = vmatprep.subr.bf16.mxu0 %v12591
    %12871 = vmatpush2.bf16.msra.mxu0 %v12590
    %12872 = vmatprep.subr.bf16.mxu0 %v12589
    %12873 = vmatpush2.bf16.msra.mxu0 %v12588
    %12874 = vmatprep.subr.bf16.mxu0 %v12587
    %12875 = vmatpush2.bf16.msra.mxu0 %v12586
    %12876 = vmatprep.mubr.bf16.mxu0 %v11156
    %12877 = vmatmul.mubr.bf16.gmra.mxu0 %v11155
    %v12878 = vpop.f32.mrf.mxu0
    %v12879 = vadd.f32 %v12838, %v12878
    %v12880 = vpop.f32.mrf.mxu0
    %v12881 = vadd.f32 %v12840, %v12880
    %v12882 = vpop.f32.mrf.mxu0
    %v12883 = vpop.f32.mrf.mxu0
    %12884 = vdwg.mxu0
    %12885 = vmatprep.subr.bf16.mxu0 %v12617
    %12886 = vmatpush1.bf16.msra.mxu0 %v12616
    %12887 = vmatprep.subr.bf16.mxu0 %v12615
    %12888 = vmatpush1.bf16.msra.mxu0 %v12614
    %12889 = vmatprep.subr.bf16.mxu0 %v12613
    %12890 = vmatpush1.bf16.msra.mxu0 %v12612
    %12891 = vmatprep.subr.bf16.mxu0 %v12611
    %12892 = vmatpush1.bf16.msra.mxu0 %v12610
    %12893 = vmatprep.subr.bf16.mxu0 %v12609
    %12894 = vmatpush1.bf16.msra.mxu0 %v12608
    %12895 = vmatprep.subr.bf16.mxu0 %v12607
    %12896 = vmatpush1.bf16.msra.mxu0 %v12606
    %12897 = vmatprep.subr.bf16.mxu0 %v12605
    %12898 = vmatpush1.bf16.msra.mxu0 %v12604
    %12899 = vmatprep.subr.bf16.mxu0 %v12603
    %12900 = vmatpush1.bf16.msra.mxu0 %v12602
    %12901 = vmatprep.subr.bf16.mxu0 %v12633
    %12902 = vmatpush2.bf16.msra.mxu0 %v12632
    %12903 = vmatprep.subr.bf16.mxu0 %v12631
    %12904 = vmatpush2.bf16.msra.mxu0 %v12630
    %12905 = vmatprep.subr.bf16.mxu0 %v12629
    %12906 = vmatpush2.bf16.msra.mxu0 %v12628
    %12907 = vmatprep.subr.bf16.mxu0 %v12627
    %12908 = vmatpush2.bf16.msra.mxu0 %v12626
    %12909 = vmatprep.subr.bf16.mxu0 %v12625
    %12910 = vmatpush2.bf16.msra.mxu0 %v12624
    %12911 = vmatprep.subr.bf16.mxu0 %v12623
    %12912 = vmatpush2.bf16.msra.mxu0 %v12622
    %12913 = vmatprep.subr.bf16.mxu0 %v12621
    %12914 = vmatpush2.bf16.msra.mxu0 %v12620
    %12915 = vmatprep.subr.bf16.mxu0 %v12619
    %12916 = vmatpush2.bf16.msra.mxu0 %v12618
    %12917 = vmatprep.mubr.bf16.mxu0 %v11158
    %12918 = vmatmul.mubr.bf16.gmra.mxu0 %v11157
    %v12919 = vpop.f32.mrf.mxu0
    %v12920 = vadd.f32 %v12879, %v12919
    %v12921 = vpop.f32.mrf.mxu0
    %v12922 = vadd.f32 %v12881, %v12921
    %v12923 = vpop.f32.mrf.mxu0
    %v12924 = vpop.f32.mrf.mxu0
    %12925 = vdwg.mxu0
    %v12926 = vmax.f32 %v12920, 0.0
    %v12927 = vmax.f32 %v12922, 0.0
    %v12928 = vpack.c.bf16 %v12926, %v12926
    %v12929 = vpack.c.bf16 %v12927, %v12927
    %v12932 = vunpack.c.l.b16 %v12928
    %v12933 = vunpack.c.l.b16 %v12929
    %v12934 = vpack.c.b16 %v12933, %v12932
    %12936 = vst [vmem:[#allocation2 + $0x8] sm:$0xff] %v12934
    %v12937 = vld [vmem:[#allocation2] sm:$0xff]
    %v12938 = vld [vmem:[#allocation2 + $0x8] sm:$0xff]
    %s12939 = smul.u32 4, 64
    %s12940 = smul.u32 %s12939, 2
    %s12941 = sshll.u32 %s12940, 4
    %12942 = dma.done %s194, %s12941
    %v12943 = vld [vmem:[#allocation7] sm:$0xff]
    %v12944 = vld [vmem:[#allocation7 + $0x8] sm:$0xff]
    %v12945 = vld [vmem:[#allocation7 + $0x10] sm:$0xff]
    %v12946 = vld [vmem:[#allocation7 + $0x18] sm:$0xff]
    %v12947 = vld [vmem:[#allocation7 + $0x20] sm:$0xff]
    %v12948 = vld [vmem:[#allocation7 + $0x28] sm:$0xff]
    %v12949 = vld [vmem:[#allocation7 + $0x30] sm:$0xff]
    %v12950 = vld [vmem:[#allocation7 + $0x38] sm:$0xff]
    %v12951 = vld [vmem:[#allocation7 + $0x40] sm:$0xff]
    %v12952 = vld [vmem:[#allocation7 + $0x48] sm:$0xff]
    %v12953 = vld [vmem:[#allocation7 + $0x50] sm:$0xff]
    %v12954 = vld [vmem:[#allocation7 + $0x58] sm:$0xff]
    %v12955 = vld [vmem:[#allocation7 + $0x60] sm:$0xff]
    %v12956 = vld [vmem:[#allocation7 + $0x68] sm:$0xff]
    %v12957 = vld [vmem:[#allocation7 + $0x70] sm:$0xff]
    %v12958 = vld [vmem:[#allocation7 + $0x78] sm:$0xff]
    %v12959 = vld [vmem:[#allocation7 + $0x80] sm:$0xff]
    %v12960 = vld [vmem:[#allocation7 + $0x88] sm:$0xff]
    %v12961 = vld [vmem:[#allocation7 + $0x90] sm:$0xff]
    %v12962 = vld [vmem:[#allocation7 + $0x98] sm:$0xff]
    %v12963 = vld [vmem:[#allocation7 + $0xa0] sm:$0xff]
    %v12964 = vld [vmem:[#allocation7 + $0xa8] sm:$0xff]
    %v12965 = vld [vmem:[#allocation7 + $0xb0] sm:$0xff]
    %v12966 = vld [vmem:[#allocation7 + $0xb8] sm:$0xff]
    %v12967 = vld [vmem:[#allocation7 + $0xc0] sm:$0xff]
    %v12968 = vld [vmem:[#allocation7 + $0xc8] sm:$0xff]
    %v12969 = vld [vmem:[#allocation7 + $0xd0] sm:$0xff]
    %v12970 = vld [vmem:[#allocation7 + $0xd8] sm:$0xff]
    %v12971 = vld [vmem:[#allocation7 + $0xe0] sm:$0xff]
    %v12972 = vld [vmem:[#allocation7 + $0xe8] sm:$0xff]
    %v12973 = vld [vmem:[#allocation7 + $0xf0] sm:$0xff]
    %v12974 = vld [vmem:[#allocation7 + $0xf8] sm:$0xff]
    %v12975 = vld [vmem:[#allocation7 + $0x100] sm:$0xff]
    %v12976 = vld [vmem:[#allocation7 + $0x108] sm:$0xff]
    %v12977 = vld [vmem:[#allocation7 + $0x110] sm:$0xff]
    %v12978 = vld [vmem:[#allocation7 + $0x118] sm:$0xff]
    %v12979 = vld [vmem:[#allocation7 + $0x120] sm:$0xff]
    %v12980 = vld [vmem:[#allocation7 + $0x128] sm:$0xff]
    %v12981 = vld [vmem:[#allocation7 + $0x130] sm:$0xff]
    %v12982 = vld [vmem:[#allocation7 + $0x138] sm:$0xff]
    %v12983 = vld [vmem:[#allocation7 + $0x140] sm:$0xff]
    %v12984 = vld [vmem:[#allocation7 + $0x148] sm:$0xff]
    %v12985 = vld [vmem:[#allocation7 + $0x150] sm:$0xff]
    %v12986 = vld [vmem:[#allocation7 + $0x158] sm:$0xff]
    %v12987 = vld [vmem:[#allocation7 + $0x160] sm:$0xff]
    %v12988 = vld [vmem:[#allocation7 + $0x168] sm:$0xff]
    %v12989 = vld [vmem:[#allocation7 + $0x170] sm:$0xff]
    %v12990 = vld [vmem:[#allocation7 + $0x178] sm:$0xff]
    %v12991 = vld [vmem:[#allocation7 + $0x180] sm:$0xff]
    %v12992 = vld [vmem:[#allocation7 + $0x188] sm:$0xff]
    %v12993 = vld [vmem:[#allocation7 + $0x190] sm:$0xff]
    %v12994 = vld [vmem:[#allocation7 + $0x198] sm:$0xff]
    %v12995 = vld [vmem:[#allocation7 + $0x1a0] sm:$0xff]
    %v12996 = vld [vmem:[#allocation7 + $0x1a8] sm:$0xff]
    %v12997 = vld [vmem:[#allocation7 + $0x1b0] sm:$0xff]
    %v12998 = vld [vmem:[#allocation7 + $0x1b8] sm:$0xff]
    %v12999 = vld [vmem:[#allocation7 + $0x1c0] sm:$0xff]
    %v13000 = vld [vmem:[#allocation7 + $0x1c8] sm:$0xff]
    %v13001 = vld [vmem:[#allocation7 + $0x1d0] sm:$0xff]
    %v13002 = vld [vmem:[#allocation7 + $0x1d8] sm:$0xff]
    %v13003 = vld [vmem:[#allocation7 + $0x1e0] sm:$0xff]
    %v13004 = vld [vmem:[#allocation7 + $0x1e8] sm:$0xff]
    %v13005 = vld [vmem:[#allocation7 + $0x1f0] sm:$0xff]
    %v13006 = vld [vmem:[#allocation7 + $0x1f8] sm:$0xff]
    %v13007 = vld [vmem:[#allocation16] sm:$0x3]
    %v13009 = vlaneseq
    %v13010 = vshrl.u32 %v13009, 7
    %v13011 = vsub.s32 0, %v13010
    %v13012 = vrot.slane %v13007, %v13011
    %v13013 = vlaneseq
    %v13014 = vshrl.u32 %v13013, 7
    %v13015 = vsub.s32 1, %v13014
    %v13016 = vrot.slane %v13007, %v13015
    %v13021 = vunpack.c.l.b16 %v12937
    %v13022 = vunpack.c.h.b16 %v12937
    %v13023 = vunpack.c.l.b16 %v12938
    %v13024 = vunpack.c.h.b16 %v12938
    %v13025 = vpack.c.b16 %v13021, %v13021
    %v13026 = vpack.c.b16 %v13022, %v13022
    %v13027 = vpack.c.b16 %v13023, %v13023
    %v13028 = vpack.c.b16 %v13024, %v13024
    %v13097 = vunpack.c.l.b16 %v12943
    %v13098 = vunpack.c.h.b16 %v12943
    %v13099 = vunpack.c.l.b16 %v12944
    %v13100 = vunpack.c.h.b16 %v12944
    %v13101 = vunpack.c.l.b16 %v12945
    %v13102 = vunpack.c.h.b16 %v12945
    %v13103 = vunpack.c.l.b16 %v12946
    %v13104 = vunpack.c.h.b16 %v12946
    %v13105 = vunpack.c.l.b16 %v12947
    %v13106 = vunpack.c.h.b16 %v12947
    %v13107 = vunpack.c.l.b16 %v12948
    %v13108 = vunpack.c.h.b16 %v12948
    %v13109 = vunpack.c.l.b16 %v12949
    %v13110 = vunpack.c.h.b16 %v12949
    %v13111 = vunpack.c.l.b16 %v12950
    %v13112 = vunpack.c.h.b16 %v12950
    %v13113 = vunpack.c.l.b16 %v12951
    %v13114 = vunpack.c.h.b16 %v12951
    %v13115 = vunpack.c.l.b16 %v12952
    %v13116 = vunpack.c.h.b16 %v12952
    %v13117 = vunpack.c.l.b16 %v12953
    %v13118 = vunpack.c.h.b16 %v12953
    %v13119 = vunpack.c.l.b16 %v12954
    %v13120 = vunpack.c.h.b16 %v12954
    %v13121 = vunpack.c.l.b16 %v12955
    %v13122 = vunpack.c.h.b16 %v12955
    %v13123 = vunpack.c.l.b16 %v12956
    %v13124 = vunpack.c.h.b16 %v12956
    %v13125 = vunpack.c.l.b16 %v12957
    %v13126 = vunpack.c.h.b16 %v12957
    %v13127 = vunpack.c.l.b16 %v12958
    %v13128 = vunpack.c.h.b16 %v12958
    %v13129 = vunpack.c.l.b16 %v12959
    %v13130 = vunpack.c.h.b16 %v12959
    %v13131 = vunpack.c.l.b16 %v12960
    %v13132 = vunpack.c.h.b16 %v12960
    %v13133 = vunpack.c.l.b16 %v12961
    %v13134 = vunpack.c.h.b16 %v12961
    %v13135 = vunpack.c.l.b16 %v12962
    %v13136 = vunpack.c.h.b16 %v12962
    %v13137 = vunpack.c.l.b16 %v12963
    %v13138 = vunpack.c.h.b16 %v12963
    %v13139 = vunpack.c.l.b16 %v12964
    %v13140 = vunpack.c.h.b16 %v12964
    %v13141 = vunpack.c.l.b16 %v12965
    %v13142 = vunpack.c.h.b16 %v12965
    %v13143 = vunpack.c.l.b16 %v12966
    %v13144 = vunpack.c.h.b16 %v12966
    %v13145 = vunpack.c.l.b16 %v12967
    %v13146 = vunpack.c.h.b16 %v12967
    %v13147 = vunpack.c.l.b16 %v12968
    %v13148 = vunpack.c.h.b16 %v12968
    %v13149 = vunpack.c.l.b16 %v12969
    %v13150 = vunpack.c.h.b16 %v12969
    %v13151 = vunpack.c.l.b16 %v12970
    %v13152 = vunpack.c.h.b16 %v12970
    %v13153 = vunpack.c.l.b16 %v12971
    %v13154 = vunpack.c.h.b16 %v12971
    %v13155 = vunpack.c.l.b16 %v12972
    %v13156 = vunpack.c.h.b16 %v12972
    %v13157 = vunpack.c.l.b16 %v12973
    %v13158 = vunpack.c.h.b16 %v12973
    %v13159 = vunpack.c.l.b16 %v12974
    %v13160 = vunpack.c.h.b16 %v12974
    %v13161 = vunpack.c.l.b16 %v12975
    %v13162 = vunpack.c.h.b16 %v12975
    %v13163 = vunpack.c.l.b16 %v12976
    %v13164 = vunpack.c.h.b16 %v12976
    %v13165 = vunpack.c.l.b16 %v12977
    %v13166 = vunpack.c.h.b16 %v12977
    %v13167 = vunpack.c.l.b16 %v12978
    %v13168 = vunpack.c.h.b16 %v12978
    %v13169 = vunpack.c.l.b16 %v12979
    %v13170 = vunpack.c.h.b16 %v12979
    %v13171 = vunpack.c.l.b16 %v12980
    %v13172 = vunpack.c.h.b16 %v12980
    %v13173 = vunpack.c.l.b16 %v12981
    %v13174 = vunpack.c.h.b16 %v12981
    %v13175 = vunpack.c.l.b16 %v12982
    %v13176 = vunpack.c.h.b16 %v12982
    %v13177 = vunpack.c.l.b16 %v12983
    %v13178 = vunpack.c.h.b16 %v12983
    %v13179 = vunpack.c.l.b16 %v12984
    %v13180 = vunpack.c.h.b16 %v12984
    %v13181 = vunpack.c.l.b16 %v12985
    %v13182 = vunpack.c.h.b16 %v12985
    %v13183 = vunpack.c.l.b16 %v12986
    %v13184 = vunpack.c.h.b16 %v12986
    %v13185 = vunpack.c.l.b16 %v12987
    %v13186 = vunpack.c.h.b16 %v12987
    %v13187 = vunpack.c.l.b16 %v12988
    %v13188 = vunpack.c.h.b16 %v12988
    %v13189 = vunpack.c.l.b16 %v12989
    %v13190 = vunpack.c.h.b16 %v12989
    %v13191 = vunpack.c.l.b16 %v12990
    %v13192 = vunpack.c.h.b16 %v12990
    %v13193 = vunpack.c.l.b16 %v12991
    %v13194 = vunpack.c.h.b16 %v12991
    %v13195 = vunpack.c.l.b16 %v12992
    %v13196 = vunpack.c.h.b16 %v12992
    %v13197 = vunpack.c.l.b16 %v12993
    %v13198 = vunpack.c.h.b16 %v12993
    %v13199 = vunpack.c.l.b16 %v12994
    %v13200 = vunpack.c.h.b16 %v12994
    %v13201 = vunpack.c.l.b16 %v12995
    %v13202 = vunpack.c.h.b16 %v12995
    %v13203 = vunpack.c.l.b16 %v12996
    %v13204 = vunpack.c.h.b16 %v12996
    %v13205 = vunpack.c.l.b16 %v12997
    %v13206 = vunpack.c.h.b16 %v12997
    %v13207 = vunpack.c.l.b16 %v12998
    %v13208 = vunpack.c.h.b16 %v12998
    %v13209 = vunpack.c.l.b16 %v12999
    %v13210 = vunpack.c.h.b16 %v12999
    %v13211 = vunpack.c.l.b16 %v13000
    %v13212 = vunpack.c.h.b16 %v13000
    %v13213 = vunpack.c.l.b16 %v13001
    %v13214 = vunpack.c.h.b16 %v13001
    %v13215 = vunpack.c.l.b16 %v13002
    %v13216 = vunpack.c.h.b16 %v13002
    %v13217 = vunpack.c.l.b16 %v13003
    %v13218 = vunpack.c.h.b16 %v13003
    %v13219 = vunpack.c.l.b16 %v13004
    %v13220 = vunpack.c.h.b16 %v13004
    %v13221 = vunpack.c.l.b16 %v13005
    %v13222 = vunpack.c.h.b16 %v13005
    %v13223 = vunpack.c.l.b16 %v13006
    %v13224 = vunpack.c.h.b16 %v13006
    %v13225 = vpack.c.b16 %v13099, %v13097
    %v13226 = vpack.c.b16 %v13100, %v13098
    %v13227 = vpack.c.b16 %v13103, %v13101
    %v13228 = vpack.c.b16 %v13104, %v13102
    %v13229 = vpack.c.b16 %v13107, %v13105
    %v13230 = vpack.c.b16 %v13108, %v13106
    %v13231 = vpack.c.b16 %v13111, %v13109
    %v13232 = vpack.c.b16 %v13112, %v13110
    %v13233 = vpack.c.b16 %v13115, %v13113
    %v13234 = vpack.c.b16 %v13116, %v13114
    %v13235 = vpack.c.b16 %v13119, %v13117
    %v13236 = vpack.c.b16 %v13120, %v13118
    %v13237 = vpack.c.b16 %v13123, %v13121
    %v13238 = vpack.c.b16 %v13124, %v13122
    %v13239 = vpack.c.b16 %v13127, %v13125
    %v13240 = vpack.c.b16 %v13128, %v13126
    %v13241 = vpack.c.b16 %v13131, %v13129
    %v13242 = vpack.c.b16 %v13132, %v13130
    %v13243 = vpack.c.b16 %v13135, %v13133
    %v13244 = vpack.c.b16 %v13136, %v13134
    %v13245 = vpack.c.b16 %v13139, %v13137
    %v13246 = vpack.c.b16 %v13140, %v13138
    %v13247 = vpack.c.b16 %v13143, %v13141
    %v13248 = vpack.c.b16 %v13144, %v13142
    %v13249 = vpack.c.b16 %v13147, %v13145
    %v13250 = vpack.c.b16 %v13148, %v13146
    %v13251 = vpack.c.b16 %v13151, %v13149
    %v13252 = vpack.c.b16 %v13152, %v13150
    %v13253 = vpack.c.b16 %v13155, %v13153
    %v13254 = vpack.c.b16 %v13156, %v13154
    %v13255 = vpack.c.b16 %v13159, %v13157
    %v13256 = vpack.c.b16 %v13160, %v13158
    %v13257 = vpack.c.b16 %v13163, %v13161
    %v13258 = vpack.c.b16 %v13164, %v13162
    %v13259 = vpack.c.b16 %v13167, %v13165
    %v13260 = vpack.c.b16 %v13168, %v13166
    %v13261 = vpack.c.b16 %v13171, %v13169
    %v13262 = vpack.c.b16 %v13172, %v13170
    %v13263 = vpack.c.b16 %v13175, %v13173
    %v13264 = vpack.c.b16 %v13176, %v13174
    %v13265 = vpack.c.b16 %v13179, %v13177
    %v13266 = vpack.c.b16 %v13180, %v13178
    %v13267 = vpack.c.b16 %v13183, %v13181
    %v13268 = vpack.c.b16 %v13184, %v13182
    %v13269 = vpack.c.b16 %v13187, %v13185
    %v13270 = vpack.c.b16 %v13188, %v13186
    %v13271 = vpack.c.b16 %v13191, %v13189
    %v13272 = vpack.c.b16 %v13192, %v13190
    %v13273 = vpack.c.b16 %v13195, %v13193
    %v13274 = vpack.c.b16 %v13196, %v13194
    %v13275 = vpack.c.b16 %v13199, %v13197
    %v13276 = vpack.c.b16 %v13200, %v13198
    %v13277 = vpack.c.b16 %v13203, %v13201
    %v13278 = vpack.c.b16 %v13204, %v13202
    %v13279 = vpack.c.b16 %v13207, %v13205
    %v13280 = vpack.c.b16 %v13208, %v13206
    %v13281 = vpack.c.b16 %v13211, %v13209
    %v13282 = vpack.c.b16 %v13212, %v13210
    %v13283 = vpack.c.b16 %v13215, %v13213
    %v13284 = vpack.c.b16 %v13216, %v13214
    %v13285 = vpack.c.b16 %v13219, %v13217
    %v13286 = vpack.c.b16 %v13220, %v13218
    %v13287 = vpack.c.b16 %v13223, %v13221
    %v13288 = vpack.c.b16 %v13224, %v13222
    %13353 = vmatprep.subr.bf16.mxu0 %v13240
    %13354 = vmatpush1.bf16.msra.mxu0 %v13239
    %13355 = vmatprep.subr.bf16.mxu0 %v13238
    %13356 = vmatpush1.bf16.msra.mxu0 %v13237
    %13357 = vmatprep.subr.bf16.mxu0 %v13236
    %13358 = vmatpush1.bf16.msra.mxu0 %v13235
    %13359 = vmatprep.subr.bf16.mxu0 %v13234
    %13360 = vmatpush1.bf16.msra.mxu0 %v13233
    %13361 = vmatprep.subr.bf16.mxu0 %v13232
    %13362 = vmatpush1.bf16.msra.mxu0 %v13231
    %13363 = vmatprep.subr.bf16.mxu0 %v13230
    %13364 = vmatpush1.bf16.msra.mxu0 %v13229
    %13365 = vmatprep.subr.bf16.mxu0 %v13228
    %13366 = vmatpush1.bf16.msra.mxu0 %v13227
    %13367 = vmatprep.subr.bf16.mxu0 %v13226
    %13368 = vmatpush1.bf16.msra.mxu0 %v13225
    %13369 = vmatprep.subr.bf16.mxu0 %v13256
    %13370 = vmatpush2.bf16.msra.mxu0 %v13255
    %13371 = vmatprep.subr.bf16.mxu0 %v13254
    %13372 = vmatpush2.bf16.msra.mxu0 %v13253
    %13373 = vmatprep.subr.bf16.mxu0 %v13252
    %13374 = vmatpush2.bf16.msra.mxu0 %v13251
    %13375 = vmatprep.subr.bf16.mxu0 %v13250
    %13376 = vmatpush2.bf16.msra.mxu0 %v13249
    %13377 = vmatprep.subr.bf16.mxu0 %v13248
    %13378 = vmatpush2.bf16.msra.mxu0 %v13247
    %13379 = vmatprep.subr.bf16.mxu0 %v13246
    %13380 = vmatpush2.bf16.msra.mxu0 %v13245
    %13381 = vmatprep.subr.bf16.mxu0 %v13244
    %13382 = vmatpush2.bf16.msra.mxu0 %v13243
    %13383 = vmatprep.subr.bf16.mxu0 %v13242
    %13384 = vmatpush2.bf16.msra.mxu0 %v13241
    %13385 = vmatprep.mubr.bf16.mxu0 %v13026
    %13386 = vmatmul.mubr.bf16.gmra.mxu0 %v13025
    %v13387 = vpop.f32.mrf.mxu0
    %v13388 = vadd.f32 %v13012, %v13387
    %v13389 = vpop.f32.mrf.mxu0
    %v13390 = vadd.f32 %v13016, %v13389
    %v13391 = vpop.f32.mrf.mxu0
    %v13392 = vpop.f32.mrf.mxu0
    %13393 = vdwg.mxu0
    %13394 = vmatprep.subr.bf16.mxu0 %v13272
    %13395 = vmatpush1.bf16.msra.mxu0 %v13271
    %13396 = vmatprep.subr.bf16.mxu0 %v13270
    %13397 = vmatpush1.bf16.msra.mxu0 %v13269
    %13398 = vmatprep.subr.bf16.mxu0 %v13268
    %13399 = vmatpush1.bf16.msra.mxu0 %v13267
    %13400 = vmatprep.subr.bf16.mxu0 %v13266
    %13401 = vmatpush1.bf16.msra.mxu0 %v13265
    %13402 = vmatprep.subr.bf16.mxu0 %v13264
    %13403 = vmatpush1.bf16.msra.mxu0 %v13263
    %13404 = vmatprep.subr.bf16.mxu0 %v13262
    %13405 = vmatpush1.bf16.msra.mxu0 %v13261
    %13406 = vmatprep.subr.bf16.mxu0 %v13260
    %13407 = vmatpush1.bf16.msra.mxu0 %v13259
    %13408 = vmatprep.subr.bf16.mxu0 %v13258
    %13409 = vmatpush1.bf16.msra.mxu0 %v13257
    %13410 = vmatprep.subr.bf16.mxu0 %v13288
    %13411 = vmatpush2.bf16.msra.mxu0 %v13287
    %13412 = vmatprep.subr.bf16.mxu0 %v13286
    %13413 = vmatpush2.bf16.msra.mxu0 %v13285
    %13414 = vmatprep.subr.bf16.mxu0 %v13284
    %13415 = vmatpush2.bf16.msra.mxu0 %v13283
    %13416 = vmatprep.subr.bf16.mxu0 %v13282
    %13417 = vmatpush2.bf16.msra.mxu0 %v13281
    %13418 = vmatprep.subr.bf16.mxu0 %v13280
    %13419 = vmatpush2.bf16.msra.mxu0 %v13279
    %13420 = vmatprep.subr.bf16.mxu0 %v13278
    %13421 = vmatpush2.bf16.msra.mxu0 %v13277
    %13422 = vmatprep.subr.bf16.mxu0 %v13276
    %13423 = vmatpush2.bf16.msra.mxu0 %v13275
    %13424 = vmatprep.subr.bf16.mxu0 %v13274
    %13425 = vmatpush2.bf16.msra.mxu0 %v13273
    %13426 = vmatprep.mubr.bf16.mxu0 %v13028
    %13427 = vmatmul.mubr.bf16.gmra.mxu0 %v13027
    %v13428 = vpop.f32.mrf.mxu0
    %v13429 = vadd.f32 %v13388, %v13428
    %v13430 = vpop.f32.mrf.mxu0
    %v13431 = vadd.f32 %v13390, %v13430
    %v13432 = vpop.f32.mrf.mxu0
    %v13433 = vpop.f32.mrf.mxu0
    %13434 = vdwg.mxu0
    %v13435 = vmax.f32 %v13429, 0.0
    %v13436 = vmax.f32 %v13431, 0.0
    %v13437 = vpack.c.bf16 %v13435, %v13435
    %v13438 = vpack.c.bf16 %v13436, %v13436
    %v13441 = vunpack.c.l.b16 %v13437
    %v13442 = vunpack.c.l.b16 %v13438
    %v13443 = vpack.c.b16 %v13442, %v13441
    %13445 = vst [vmem:[#allocation3] sm:$0xff] %v13443
    %v13446 = vld [vmem:[#allocation3] sm:$0xff]
    %v13447 = vld [vmem:[#allocation9] sm:$0xf]
    %v13448 = vld [vmem:[#allocation9 + $0x4] sm:$0xf]
    %v13449 = vld [vmem:[#allocation9 + $0x8] sm:$0xf]
    %v13450 = vld [vmem:[#allocation9 + $0xc] sm:$0xf]
    %v13451 = vld [vmem:[#allocation9 + $0x10] sm:$0xf]
    %v13452 = vld [vmem:[#allocation9 + $0x14] sm:$0xf]
    %v13453 = vld [vmem:[#allocation9 + $0x18] sm:$0xf]
    %v13454 = vld [vmem:[#allocation9 + $0x1c] sm:$0xf]
    %v13455 = vld [vmem:[#allocation9 + $0x20] sm:$0xf]
    %v13456 = vld [vmem:[#allocation9 + $0x24] sm:$0xf]
    %v13457 = vld [vmem:[#allocation9 + $0x28] sm:$0xf]
    %v13458 = vld [vmem:[#allocation9 + $0x2c] sm:$0xf]
    %v13459 = vld [vmem:[#allocation9 + $0x30] sm:$0xf]
    %v13460 = vld [vmem:[#allocation9 + $0x34] sm:$0xf]
    %v13461 = vld [vmem:[#allocation9 + $0x38] sm:$0xf]
    %v13462 = vld [vmem:[#allocation9 + $0x3c] sm:$0xf]
    %v13463 = vld [vmem:[#allocation9 + $0x40] sm:$0xf]
    %v13464 = vld [vmem:[#allocation9 + $0x44] sm:$0xf]
    %v13465 = vld [vmem:[#allocation9 + $0x48] sm:$0xf]
    %v13466 = vld [vmem:[#allocation9 + $0x4c] sm:$0xf]
    %v13467 = vld [vmem:[#allocation9 + $0x50] sm:$0xf]
    %v13468 = vld [vmem:[#allocation9 + $0x54] sm:$0xf]
    %v13469 = vld [vmem:[#allocation9 + $0x58] sm:$0xf]
    %v13470 = vld [vmem:[#allocation9 + $0x5c] sm:$0xf]
    %v13471 = vld [vmem:[#allocation9 + $0x60] sm:$0xf]
    %v13472 = vld [vmem:[#allocation9 + $0x64] sm:$0xf]
    %v13473 = vld [vmem:[#allocation9 + $0x68] sm:$0xf]
    %v13474 = vld [vmem:[#allocation9 + $0x6c] sm:$0xf]
    %v13475 = vld [vmem:[#allocation9 + $0x70] sm:$0xf]
    %v13476 = vld [vmem:[#allocation9 + $0x74] sm:$0xf]
    %v13477 = vld [vmem:[#allocation9 + $0x78] sm:$0xf]
    %v13478 = vld [vmem:[#allocation9 + $0x7c] sm:$0xf]
    %v13479 = vld [vmem:[#allocation17] sm:$0x1]
    %v13481 = vlaneseq
    %v13482 = vshrl.u32 %v13481, 7
    %v13483 = vsub.s32 0, %v13482
    %v13484 = vrot.slane %v13479, %v13483
    %v13487 = vunpack.c.l.b16 %v13446
    %v13488 = vunpack.c.h.b16 %v13446
    %v13489 = vpack.c.b16 %v13487, %v13487
    %v13490 = vpack.c.b16 %v13488, %v13488
    %v13525 = vunpack.c.l.b16 %v13447
    %v13526 = vunpack.c.l.b16 %v13448
    %v13527 = vunpack.c.l.b16 %v13449
    %v13528 = vunpack.c.l.b16 %v13450
    %v13529 = vunpack.c.l.b16 %v13451
    %v13530 = vunpack.c.l.b16 %v13452
    %v13531 = vunpack.c.l.b16 %v13453
    %v13532 = vunpack.c.l.b16 %v13454
    %v13533 = vunpack.c.l.b16 %v13455
    %v13534 = vunpack.c.l.b16 %v13456
    %v13535 = vunpack.c.l.b16 %v13457
    %v13536 = vunpack.c.l.b16 %v13458
    %v13537 = vunpack.c.l.b16 %v13459
    %v13538 = vunpack.c.l.b16 %v13460
    %v13539 = vunpack.c.l.b16 %v13461
    %v13540 = vunpack.c.l.b16 %v13462
    %v13541 = vunpack.c.l.b16 %v13463
    %v13542 = vunpack.c.l.b16 %v13464
    %v13543 = vunpack.c.l.b16 %v13465
    %v13544 = vunpack.c.l.b16 %v13466
    %v13545 = vunpack.c.l.b16 %v13467
    %v13546 = vunpack.c.l.b16 %v13468
    %v13547 = vunpack.c.l.b16 %v13469
    %v13548 = vunpack.c.l.b16 %v13470
    %v13549 = vunpack.c.l.b16 %v13471
    %v13550 = vunpack.c.l.b16 %v13472
    %v13551 = vunpack.c.l.b16 %v13473
    %v13552 = vunpack.c.l.b16 %v13474
    %v13553 = vunpack.c.l.b16 %v13475
    %v13554 = vunpack.c.l.b16 %v13476
    %v13555 = vunpack.c.l.b16 %v13477
    %v13556 = vunpack.c.l.b16 %v13478
    %v13557 = vpack.c.b16 %v13526, %v13525
    %v13558 = vpack.c.b16 %v13528, %v13527
    %v13559 = vpack.c.b16 %v13530, %v13529
    %v13560 = vpack.c.b16 %v13532, %v13531
    %v13561 = vpack.c.b16 %v13534, %v13533
    %v13562 = vpack.c.b16 %v13536, %v13535
    %v13563 = vpack.c.b16 %v13538, %v13537
    %v13564 = vpack.c.b16 %v13540, %v13539
    %v13565 = vpack.c.b16 %v13542, %v13541
    %v13566 = vpack.c.b16 %v13544, %v13543
    %v13567 = vpack.c.b16 %v13546, %v13545
    %v13568 = vpack.c.b16 %v13548, %v13547
    %v13569 = vpack.c.b16 %v13550, %v13549
    %v13570 = vpack.c.b16 %v13552, %v13551
    %v13571 = vpack.c.b16 %v13554, %v13553
    %v13572 = vpack.c.b16 %v13556, %v13555
    %13589 = vmatprep.subr.bf16.mxu0 0
    %13590 = vmatpush1.bf16.msra.mxu0 %v13564
    %13591 = vmatprep.subr.bf16.mxu0 0
    %13592 = vmatpush1.bf16.msra.mxu0 %v13563
    %13593 = vmatprep.subr.bf16.mxu0 0
    %13594 = vmatpush1.bf16.msra.mxu0 %v13562
    %13595 = vmatprep.subr.bf16.mxu0 0
    %13596 = vmatpush1.bf16.msra.mxu0 %v13561
    %13597 = vmatprep.subr.bf16.mxu0 0
    %13598 = vmatpush1.bf16.msra.mxu0 %v13560
    %13599 = vmatprep.subr.bf16.mxu0 0
    %13600 = vmatpush1.bf16.msra.mxu0 %v13559
    %13601 = vmatprep.subr.bf16.mxu0 0
    %13602 = vmatpush1.bf16.msra.mxu0 %v13558
    %13603 = vmatprep.subr.bf16.mxu0 0
    %13604 = vmatpush1.bf16.msra.mxu0 %v13557
    %13605 = vmatprep.subr.bf16.mxu0 0
    %13606 = vmatpush2.bf16.msra.mxu0 %v13572
    %13607 = vmatprep.subr.bf16.mxu0 0
    %13608 = vmatpush2.bf16.msra.mxu0 %v13571
    %13609 = vmatprep.subr.bf16.mxu0 0
    %13610 = vmatpush2.bf16.msra.mxu0 %v13570
    %13611 = vmatprep.subr.bf16.mxu0 0
    %13612 = vmatpush2.bf16.msra.mxu0 %v13569
    %13613 = vmatprep.subr.bf16.mxu0 0
    %13614 = vmatpush2.bf16.msra.mxu0 %v13568
    %13615 = vmatprep.subr.bf16.mxu0 0
    %13616 = vmatpush2.bf16.msra.mxu0 %v13567
    %13617 = vmatprep.subr.bf16.mxu0 0
    %13618 = vmatpush2.bf16.msra.mxu0 %v13566
    %13619 = vmatprep.subr.bf16.mxu0 0
    %13620 = vmatpush2.bf16.msra.mxu0 %v13565
    %13621 = vmatprep.mubr.bf16.mxu0 %v13490
    %13622 = vmatmul.mubr.bf16.gmra.mxu0 %v13489
    %v13623 = vpop.f32.mrf.mxu0
    %v13624 = vadd.f32 %v13484, %v13623
    %v13625 = vpop.f32.mrf.mxu0
    %v13626 = vpop.f32.mrf.mxu0
    %v13627 = vpop.f32.mrf.mxu0
    %13628 = vdwg.mxu0
    %13629 = vst [vmem:[%s11] sm:$0xff] %v13624
    // Predicated region
    $region86: #{ann_forward_pallas.1} parent=1 // pred_check
      _
    $region87: #{ann_forward_pallas.1} parent=1 // pred_check_branch
      %13631 = sbr.rel (0) target = $region89
    $region88: #{ann_forward_pallas.1} parent=1 // pred_region
      _
    $region89: #{ann_forward_pallas.1} parent=1 // pred_fallthru
      _
    // Predicated region
    $region90: #{ann_forward_pallas.1} parent=1 // pred_check
      _
    $region91: #{ann_forward_pallas.1} parent=1 // pred_check_branch
      %13633 = sbr.rel (0) target = $region93
    $region92: #{ann_forward_pallas.1} parent=1 // pred_region
      _
    $region93: #{ann_forward_pallas.1} parent=1 // pred_fallthru
      _
    %13634 = vsyncpa [#allocation10], 1
    %13635 = vsyncpa [#allocation12], 1
    %13636 = vsyncpa [#allocation15], 1
    %13637 = vsyncpa [#allocation18], 1
  %13638 = vsyncmov [#allocation8]
  %s13639 = vpop.sfrf %13638
  %p13640 = scmp.eq.s32.totalorder %s13639, 0
  %p13641 = pneg %p13640
  %13643 = shalt.err (%p13641)
  %s13644 = scalar_lea.sflag [#allocation8], 1
  %13645 = vsyncmov %s13644
  %s13646 = vpop.sfrf %13645
  %p13647 = scmp.eq.s32.totalorder %s13646, 0
  %p13648 = pneg %p13647
  %13650 = shalt.err (%p13648)
  %s13651 = scalar_lea.sflag [#allocation8], 2
  %13652 = vsyncmov %s13651
  %s13653 = vpop.sfrf %13652
  %p13654 = scmp.eq.s32.totalorder %s13653, 0
  %p13655 = pneg %p13654
  %13657 = shalt.err (%p13655)
  %s13658 = scalar_lea.sflag [#allocation8], 3
  %13659 = vsyncmov %s13658
  %s13660 = vpop.sfrf %13659
  %p13661 = scmp.eq.s32.totalorder %s13660, 0
  %p13662 = pneg %p13661
  %13664 = shalt.err (%p13662)
  %s13665 = scalar_lea.sflag [#allocation8], 4
  %13666 = vsyncmov %s13665
  %s13667 = vpop.sfrf %13666
  %p13668 = scmp.eq.s32.totalorder %s13667, 0
  %p13669 = pneg %p13668
  %13671 = shalt.err (%p13669)
  %s13672 = scalar_lea.sflag [#allocation8], 5
  %13673 = vsyncmov %s13672
  %s13674 = vpop.sfrf %13673
  %p13675 = scmp.eq.s32.totalorder %s13674, 0
  %p13676 = pneg %p13675
  %13678 = shalt.err (%p13676)
  %s13679 = scalar_lea.sflag [#allocation8], 6
  %13680 = vsyncmov %s13679
  %s13681 = vpop.sfrf %13680
  %p13682 = scmp.eq.s32.totalorder %s13681, 0
  %p13683 = pneg %p13682
  %13685 = shalt.err (%p13683)
  %s13686 = scalar_lea.sflag [#allocation8], 7
  %13687 = vsyncmov %s13686
  %s13688 = vpop.sfrf %13687
  %p13689 = scmp.eq.s32.totalorder %s13688, 0
  %p13690 = pneg %p13689
  %13692 = shalt.err (%p13690)

</llo_original>
